<compile_context>
chip_gen: v7x
topology: tpu7x:2x2x1
jax: 0.10.0
libtpu: 0.0.40
codegen_flags: <defaults>
</compile_context>

<pallas_src>
import jax
import jax.numpy as jnp
from jax import lax
from jax.experimental import pallas as pl
from jax.experimental.pallas import tpu as pltpu

# ----------------------- small, module-consistent config --------------------
BATCH        = 2
NUM_CHANNELS = 8        # num_channels
NUM_SAMPLES  = 200      # num_samples (T)
EMBED_DIM    = 40       # embed_dim (divisible by 5 and by num_heads)
POOL_SIZE    = 50
POOL_STRIDE  = 15
NUM_HEADS    = 8
FC_RATIO     = 4
DEPTH        = 2
NUM_CLASSES  = 2
TEMP_EMBED   = (NUM_SAMPLES - POOL_SIZE) // POOL_STRIDE + 1   # sequence len N = 11
D_K          = EMBED_DIM // NUM_HEADS                         # 5
HIDDEN       = EMBED_DIM * FC_RATIO                           # 160
KMAX         = 65                      # largest temporal kernel
PAD          = (KMAX - 1) // 2         # 32 ("same" padding for unified conv)
KC           = KMAX * NUM_CHANNELS     # 520 (fused conv contraction dim)
INV_SQRT_DK  = 1.0 / (float(D_K) ** 0.5)
N2           = 2 * TEMP_EMBED          # merged-stream row count (22)


# ------------------------------- helpers ------------------------------------
def _elu(x):
    return jnp.where(x > 0, x, jnp.exp(jnp.minimum(x, 0.0)) - 1.0)


def _gelu(x):
    # exact (erf-based) GELU, matching nn.GELU() default
    return 0.5 * x * (1.0 + lax.erf(x * 0.7071067811865476))


def _layer_norm(x, g, b, eps=1e-5):
    mean = jnp.mean(x, axis=-1, keepdims=True)
    var = jnp.mean((x - mean) ** 2, axis=-1, keepdims=True)
    return (x - mean) * lax.rsqrt(var + eps) * g + b


# --------------------------- the fused network kernel ------------------------
def _tmransnet_kernel(
    patches_ref,               # (1, T, KC)      im2col patches (built in wrapper)
    aconv_ref, bconv_ref,      # (KC, D), (1, D) fused temporal+spatial conv (BN folded)
    pool_ref,                  # (N, T)          mean-pooling matrix (1/P entries)
    wqkv_ref, bqkv_ref,        # (L, D, 3D), (L, 1, 3D)
    wo_ref,                    # (L, D, D)
    w1_ref, b1_ref,            # (L, D, H), (L, 1, H)
    w2_ref,                    # (L, H, D)
    vec_ref,                   # (L, 6, D) rows: ln1_g, ln1_b, ln2_g, ln2_b, bo, b2
    wc_ref, bc_ref,            # (N, 2N), (N, 1)  conv_encoder (BN folded, [wc0|wc1])
    wcls_ref, bcls_ref,        # (NUM_CLASSES, N, D), (1, NUM_CLASSES)
    logits_ref,                # (1, 1, NUM_CLASSES)
    feat_ref,                  # (1, N, D)
):
    f32 = jnp.float32

    # ---- fused temporal conv + BN1 + spatial conv + BN2 + ELU (one matmul) --
    z = jnp.dot(patches_ref[0], aconv_ref[...],
                preferred_element_type=f32) + bconv_ref[...]
    z = _elu(z)                                               # (T, D)

    # ---- avg-pool + var-pool in a single MXU pass ---------------------------
    # center per feature to reduce E[x^2]-mean^2 cancellation (var is shift-inv.)
    c = jnp.mean(z, axis=0, keepdims=True)                    # (1, D)
    zc = z - c
    zcat = jnp.concatenate([zc, zc * zc], axis=1)             # (T, 2D)
    r = jnp.dot(pool_ref[...], zcat, preferred_element_type=f32)   # (N, 2D)
    mu_c = r[:, :EMBED_DIM]
    ms_c = r[:, EMBED_DIM:]
    mean = mu_c + c                                           # avg_pool stream
    # unbiased variance (torch .var default): (E[x^2]-mean^2) * P/(P-1)
    var = (ms_c - mu_c * mu_c) * (float(POOL_SIZE) / float(POOL_SIZE - 1))
    logvar = jnp.log(jnp.clip(var, 1e-6, 1e6))                # var_pool stream
    x = jnp.concatenate([mean, logvar], axis=0)               # (2N, D)

    # ---- additive block mask: queries attend only to keys of their stream ---
    row = lax.broadcasted_iota(jnp.int32, (N2, N2), 0)
    col = lax.broadcasted_iota(jnp.int32, (N2, N2), 1)
    amask = jnp.where((row >= TEMP_EMBED) == (col >= TEMP_EMBED),
                      0.0, -1e9).astype(f32)                  # (2N, 2N)

    # ---------------- transformer encoder (streams merged in rows) -----------
    for l in range(DEPTH):                                    # shared weights
        slab = vec_ref[l]                                     # (6, D)
        ln1_g = slab[0:1, :]
        ln1_b = slab[1:2, :]
        ln2_g = slab[2:3, :]
        ln2_b = slab[3:4, :]
        bo    = slab[4:5, :]
        b2    = slab[5:6, :]

        rx = _layer_norm(x, ln1_g, ln1_b)
        qkv = jnp.dot(rx, wqkv_ref[l], preferred_element_type=f32) + bqkv_ref[l]
        q = qkv[:, :EMBED_DIM]
        k = qkv[:, EMBED_DIM:2 * EMBED_DIM]
        v = qkv[:, 2 * EMBED_DIM:]
        # heads batched once over the merged (2N) rows
        qh = jnp.stack([q[:, h * D_K:(h + 1) * D_K] for h in range(NUM_HEADS)], axis=0)
        kh = jnp.stack([k[:, h * D_K:(h + 1) * D_K] for h in range(NUM_HEADS)], axis=0)
        vh = jnp.stack([v[:, h * D_K:(h + 1) * D_K] for h in range(NUM_HEADS)], axis=0)
        s = jnp.einsum('hqd,hkd->hqk', qh, kh,
                       preferred_element_type=f32) * INV_SQRT_DK       # (H,2N,2N)
        s = s + amask[None]
        s = s - jnp.max(s, axis=-1, keepdims=True)
        e = jnp.exp(s)
        attn = e / jnp.sum(e, axis=-1, keepdims=True)          # exact softmax
        ctx = jnp.einsum('hqk,hkd->hqd', attn, vh,
                         preferred_element_type=f32)           # (H, 2N, d_k)
        cat = jnp.concatenate([ctx[h] for h in range(NUM_HEADS)], axis=-1)  # (2N,D)
        attn_out = jnp.dot(cat, wo_ref[l], preferred_element_type=f32) + bo
        out1 = x + attn_out
        r2 = _layer_norm(out1, ln2_g, ln2_b)
        h1 = _gelu(jnp.dot(r2, w1_ref[l], preferred_element_type=f32) + b1_ref[l])
        ffn = jnp.dot(h1, w2_ref[l], preferred_element_type=f32) + b2
        x = out1 + ffn

    # ---- conv_encoder: Conv2d(N, N, (2,1)) + folded BN + ELU (one matmul) ---
    y = jnp.dot(wc_ref[...], x, preferred_element_type=f32) + bc_ref[...]
    y = _elu(y)                                               # (N, D)
    feat_ref[0] = y.astype(feat_ref.dtype)

    # ---- classifier Linear(N*D, num_classes) (tiny; no in-kernel flatten) ---
    cls_cols = []
    for j in range(NUM_CLASSES):
        cls_cols.append(jnp.sum(y * wcls_ref[j], axis=-1, keepdims=True))  # (N, 1)
    m = jnp.concatenate(cls_cols, axis=-1)                    # (N, NUM_CLASSES)
    logits = jnp.sum(m, axis=0, keepdims=True) + bcls_ref[...]
    logits_ref[0] = logits.astype(logits_ref.dtype)


# ------------------------------- parameters ----------------------------------
def init_params(key):
    ks = iter(jax.random.split(key, 128))

    def nrm(shape, scale=0.05):
        return scale * jax.random.normal(next(ks), shape, jnp.float32)

    def unif(shape, lo, hi):
        return jax.random.uniform(next(ks), shape, jnp.float32, lo, hi)

    def bn(n):  # eval-mode BatchNorm folded to scale/shift
        gamma = unif((n,), 0.9, 1.1)
        beta = nrm((n,), 0.02)
        mean = nrm((n,), 0.05)
        var = unif((n,), 0.8, 1.2)
        scale = gamma / jnp.sqrt(var + 1e-5)
        shift = beta - mean * scale
        return scale, shift

    params = {}

    # --- five temporal conv branches merged into one centered 65-tap filter --
    branch_sizes = [1, 15, 25, 51, 65]
    f_per = EMBED_DIM // 5
    wt = jnp.zeros((KMAX, EMBED_DIM), jnp.float32)      # wt[k, f_in]
    bt = jnp.zeros((EMBED_DIM,), jnp.float32)
    for bi, ksz in enumerate(branch_sizes):
        w = nrm((f_per, ksz), 0.1)      # torch Conv2d(1, f_per, (1, ksz)).weight[:,0,0,:]
        b = nrm((f_per,), 0.05)
        off = (KMAX - ksz) // 2
        wt = wt.at[off:off + ksz, bi * f_per:(bi + 1) * f_per].set(w.T)
        bt = bt.at[bi * f_per:(bi + 1) * f_per].set(b)
    s1, sh1 = bn(EMBED_DIM)             # bn1

    # --- spatial conv: torch Conv2d(D, D, (C, 1)).weight -> (D_out, D_in, C) --
    ws = nrm((EMBED_DIM, EMBED_DIM, NUM_CHANNELS), 0.05)
    bs = nrm((EMBED_DIM,), 0.05)
    s2, sh2 = bn(EMBED_DIM)             # bn2

    # fold temporal conv + BN1 + spatial conv + BN2 into one linear map:
    #   z_pre[t, fo] = sum_{k,c} x_pad[c, t+k] * A[(k,c), fo] + b_conv[fo]
    a = jnp.einsum('kf,f,ofc->kco', wt, s1, ws) * s2[None, None, :]
    params["a_conv"] = a.reshape(KC, EMBED_DIM)               # rows ordered (k, c)
    b0 = jnp.einsum('ofc,f->o', ws, bt * s1 + sh1) + bs
    params["b_conv"] = (b0 * s2 + sh2).reshape(1, EMBED_DIM)

    # --- pooling matrix: mean over each (size=50, stride=15) window ----------
    t_idx = jnp.arange(NUM_SAMPLES)[None, :]
    n_start = (jnp.arange(TEMP_EMBED) * POOL_STRIDE)[:, None]
    mask = (t_idx >= n_start) & (t_idx < n_start + POOL_SIZE)
    params["pool"] = mask.astype(jnp.float32) / float(POOL_SIZE)      # (N, T)

    # --- transformer layers (weights stored (in, out) == torch weight.T) -----
    wqkv_l, bqkv_l, wo_l, w1_l, b1_l, w2_l, vec_l = [], [], [], [], [], [], []
    for _ in range(DEPTH):
        ln1_g = unif((EMBED_DIM,), 0.9, 1.1)
        ln1_b = nrm((EMBED_DIM,), 0.02)
        wq = nrm((EMBED_DIM, EMBED_DIM), 0.1)
        wk = nrm((EMBED_DIM, EMBED_DIM), 0.1)
        wv = nrm((EMBED_DIM, EMBED_DIM), 0.1)
        wqkv_l.append(jnp.concatenate([wq, wk, wv], axis=1))           # (D, 3D)
        bqkv_l.append(jnp.concatenate(
            [nrm((1, EMBED_DIM), 0.05) for _ in range(3)], axis=1))    # (1, 3D)
        wo_l.append(nrm((EMBED_DIM, EMBED_DIM), 0.1))
        bo = nrm((EMBED_DIM,), 0.05)
        ln2_g = unif((EMBED_DIM,), 0.9, 1.1)
        ln2_b = nrm((EMBED_DIM,), 0.02)
        w1_l.append(nrm((EMBED_DIM, HIDDEN), 0.1))
        b1_l.append(nrm((1, HIDDEN), 0.05))
        w2_l.append(nrm((HIDDEN, EMBED_DIM), 0.1))
        b2 = nrm((EMBED_DIM,), 0.05)
        vec_l.append(jnp.stack([ln1_g, ln1_b, ln2_g, ln2_b, bo, b2], axis=0))  # (6, D)
    params["wqkv"] = jnp.stack(wqkv_l, axis=0)
    params["bqkv"] = jnp.stack(bqkv_l, axis=0)
    params["wo"] = jnp.stack(wo_l, axis=0)
    params["w1"] = jnp.stack(w1_l, axis=0)
    params["b1"] = jnp.stack(b1_l, axis=0)
    params["w2"] = jnp.stack(w2_l, axis=0)
    params["vecs"] = jnp.stack(vec_l, axis=0)                          # (L, 6, D)

    # --- conv encoder Conv2d(N, N, (2,1)) + BatchNorm2d(N), BN folded --------
    wc = nrm((TEMP_EMBED, TEMP_EMBED, 2), 0.1)   # (n_out, n_in, 2)
    bcv = nrm((TEMP_EMBED,), 0.05)
    sc, shc = bn(TEMP_EMBED)
    wc0 = wc[:, :, 0] * sc[:, None]
    wc1 = wc[:, :, 1] * sc[:, None]
    params["wc"] = jnp.concatenate([wc0, wc1], axis=1)                 # (N, 2N)
    params["bc"] = (bcv * sc + shc).reshape(TEMP_EMBED, 1)

    # --- classifier Linear(N*D, num_classes): torch weight (n_cls, N*D) ------
    wcls = nrm((NUM_CLASSES, TEMP_EMBED * EMBED_DIM), 0.1)
    params["wcls"] = wcls.reshape(NUM_CLASSES, TEMP_EMBED, EMBED_DIM)
    params["bcls"] = nrm((1, NUM_CLASSES), 0.05)
    return params


# ------------------------------- forward -------------------------------------
def tmransnet_forward(x, params):
    B = x.shape[0]
    # im2col hoisted out of the kernel: build (B, T, K*C) patches in XLA.
    xp = jnp.pad(x, ((0, 0), (0, 0), (PAD, PAD)))            # (B, C, T_PAD)
    xpt = jnp.transpose(xp, (0, 2, 1))                       # (B, T_PAD, C)
    cols = [lax.slice_in_dim(xpt, k, k + NUM_SAMPLES, axis=1) for k in range(KMAX)]
    patches = jnp.concatenate(cols, axis=2)                  # (B, T, K*C), col = k*C + c

    weight_names = ["a_conv", "b_conv", "pool", "wqkv", "bqkv", "wo",
                    "w1", "b1", "w2", "vecs", "wc", "bc", "wcls", "bcls"]
    weights = [params[k] for k in weight_names]

    def _const_spec(a):
        zeros = (0,) * a.ndim
        return pl.BlockSpec(a.shape, lambda b, _z=zeros: _z)

    in_specs = [pl.BlockSpec((1, NUM_SAMPLES, KC), lambda b: (b, 0, 0))]
    in_specs += [_const_spec(w) for w in weights]

    out_shape = (
        jax.ShapeDtypeStruct((B, 1, NUM_CLASSES), jnp.float32),
        jax.ShapeDtypeStruct((B, TEMP_EMBED, EMBED_DIM), jnp.float32),
    )
    out_specs = (
        pl.BlockSpec((1, 1, NUM_CLASSES), lambda b: (b, 0, 0)),
        pl.BlockSpec((1, TEMP_EMBED, EMBED_DIM), lambda b: (b, 0, 0)),
    )

    logits3, feat3 = pl.pallas_call(
        _tmransnet_kernel,
        out_shape=out_shape,
        grid=(B,),
        in_specs=in_specs,
        out_specs=out_specs,
        compiler_params=pltpu.CompilerParams(
            dimension_semantics=("parallel",)),
    )(patches, *weights)

    logits = logits3.reshape(B, NUM_CLASSES)
    feat = feat3.reshape(B, TEMP_EMBED * EMBED_DIM)
    return logits, feat


if __name__ == "__main__":
    key = jax.random.PRNGKey(0)
    pkey, xkey = jax.random.split(key)
    params = init_params(pkey)
    x = jax.random.normal(xkey, (BATCH, NUM_CHANNELS, NUM_SAMPLES), jnp.float32)
    fwd = jax.jit(tmransnet_forward)
    logits, feat = fwd(x, params)
    jax.block_until_ready((logits, feat))
    assert logits.shape == (BATCH, NUM_CLASSES)
    assert feat.shape == (BATCH, TEMP_EMBED * EMBED_DIM)
    assert bool(jnp.all(jnp.isfinite(logits))) and bool(jnp.all(jnp.isfinite(feat)))
    print("KERNEL_OK")
</pallas_src>

<mosaic_0001>
module attributes {stable_mosaic.version = 11 : i64} {
  func.func @_tmransnet_kernel(%arg0: i32, %arg1: memref<1x200x520xf32, #tpu.memory_space<vmem>>, %arg2: memref<520x40xf32, #tpu.memory_space<vmem>>, %arg3: memref<1x40xf32, #tpu.memory_space<vmem>>, %arg4: memref<11x200xf32, #tpu.memory_space<vmem>>, %arg5: memref<2x40x120xf32, #tpu.memory_space<vmem>>, %arg6: memref<2x1x120xf32, #tpu.memory_space<vmem>>, %arg7: memref<2x40x40xf32, #tpu.memory_space<vmem>>, %arg8: memref<2x40x160xf32, #tpu.memory_space<vmem>>, %arg9: memref<2x1x160xf32, #tpu.memory_space<vmem>>, %arg10: memref<2x160x40xf32, #tpu.memory_space<vmem>>, %arg11: memref<2x6x40xf32, #tpu.memory_space<vmem>>, %arg12: memref<11x22xf32, #tpu.memory_space<vmem>>, %arg13: memref<11x1xf32, #tpu.memory_space<vmem>>, %arg14: memref<2x11x40xf32, #tpu.memory_space<vmem>>, %arg15: memref<1x2xf32, #tpu.memory_space<vmem>>, %arg16: memref<1x1x2xf32, #tpu.memory_space<vmem>>, %arg17: memref<1x11x40xf32, #tpu.memory_space<vmem>>) attributes {dimension_semantics = [#tpu.dimension_semantics<parallel>], iteration_bounds = array<i64: 2>, scalar_prefetch = 0 : i64, scratch_operands = 0 : i64, tpu.core_type = #tpu.core_type<tc>, window_params = [{transform_indices = @transform_0, window_bounds = array<i64: 1, 200, 520>}, {pipeline_mode = #tpu.pipeline_mode<synchronous>, transform_indices = @transform_1, window_bounds = array<i64: 520, 40>}, {pipeline_mode = #tpu.pipeline_mode<synchronous>, transform_indices = @transform_2, window_bounds = array<i64: 1, 40>}, {pipeline_mode = #tpu.pipeline_mode<synchronous>, transform_indices = @transform_3, window_bounds = array<i64: 11, 200>}, {pipeline_mode = #tpu.pipeline_mode<synchronous>, transform_indices = @transform_4, window_bounds = array<i64: 2, 40, 120>}, {pipeline_mode = #tpu.pipeline_mode<synchronous>, transform_indices = @transform_5, window_bounds = array<i64: 2, 1, 120>}, {pipeline_mode = #tpu.pipeline_mode<synchronous>, transform_indices = @transform_6, window_bounds = array<i64: 2, 40, 40>}, {pipeline_mode = #tpu.pipeline_mode<synchronous>, transform_indices = @transform_7, window_bounds = array<i64: 2, 40, 160>}, {pipeline_mode = #tpu.pipeline_mode<synchronous>, transform_indices = @transform_8, window_bounds = array<i64: 2, 1, 160>}, {pipeline_mode = #tpu.pipeline_mode<synchronous>, transform_indices = @transform_9, window_bounds = array<i64: 2, 160, 40>}, {pipeline_mode = #tpu.pipeline_mode<synchronous>, transform_indices = @transform_10, window_bounds = array<i64: 2, 6, 40>}, {pipeline_mode = #tpu.pipeline_mode<synchronous>, transform_indices = @transform_11, window_bounds = array<i64: 11, 22>}, {pipeline_mode = #tpu.pipeline_mode<synchronous>, transform_indices = @transform_12, window_bounds = array<i64: 11, 1>}, {pipeline_mode = #tpu.pipeline_mode<synchronous>, transform_indices = @transform_13, window_bounds = array<i64: 2, 11, 40>}, {pipeline_mode = #tpu.pipeline_mode<synchronous>, transform_indices = @transform_14, window_bounds = array<i64: 1, 2>}, {transform_indices = @transform_15, window_bounds = array<i64: 1, 1, 2>}, {transform_indices = @transform_16, window_bounds = array<i64: 1, 11, 40>}]} {
    %c0 = arith.constant 0 : index
    %c0_0 = arith.constant 0 : index
    %c0_1 = arith.constant 0 : index
    %0 = vector.load %arg1[%c0, %c0_0, %c0_1] : memref<1x200x520xf32, #tpu.memory_space<vmem>>, vector<1x200x520xf32>
    %1 = vector.shape_cast %0 : vector<1x200x520xf32> to vector<200x520xf32>
    %c0_2 = arith.constant 0 : index
    %c0_3 = arith.constant 0 : index
    %2 = vector.load %arg2[%c0_2, %c0_3] : memref<520x40xf32, #tpu.memory_space<vmem>>, vector<520x40xf32>
    %cst = arith.constant dense<0.000000e+00> : vector<200x40xf32>
    %3 = tpu.matmul %1, %2, %cst {dimension_numbers = #tpu.dot_dimension_numbers<[1], [0], [0], [1], [0, 0, 1, 1], [], []>} : vector<200x520xf32>, vector<520x40xf32>, vector<200x40xf32> -> vector<200x40xf32>
    %c0_4 = arith.constant 0 : index
    %c0_5 = arith.constant 0 : index
    %4 = vector.load %arg3[%c0_4, %c0_5] : memref<1x40xf32, #tpu.memory_space<vmem>>, vector<1x40xf32>
    %5 = vector.broadcast %4 : vector<1x40xf32> to vector<200x40xf32>
    %6 = arith.addf %3, %5 : vector<200x40xf32>
    %cst_6 = arith.constant 0.000000e+00 : f32
    %7 = vector.broadcast %cst_6 : f32 to vector<200x40xf32>
    %8 = arith.cmpf ogt, %6, %7 : vector<200x40xf32>
    %cst_7 = arith.constant 0.000000e+00 : f32
    %9 = vector.broadcast %cst_7 : f32 to vector<200x40xf32>
    %10 = arith.minimumf %6, %9 : vector<200x40xf32>
    %11 = math.exp %10 : vector<200x40xf32>
    %cst_8 = arith.constant 1.000000e+00 : f32
    %12 = vector.broadcast %cst_8 : f32 to vector<200x40xf32>
    %13 = arith.subf %11, %12 : vector<200x40xf32>
    %14 = arith.select %8, %6, %13 : vector<200x40xi1>, vector<200x40xf32>
    %cst_9 = arith.constant dense<0.000000e+00> : vector<40xf32>
    %15 = vector.multi_reduction <add>, %14, %cst_9 [0] : vector<200x40xf32> to vector<40xf32>
    %16 = vector.shape_cast %15 : vector<40xf32> to vector<1x40xf32>
    %cst_10 = arith.constant 2.000000e+02 : f32
    %17 = vector.broadcast %cst_10 : f32 to vector<1x40xf32>
    %18 = arith.divf %16, %17 : vector<1x40xf32>
    %19 = vector.broadcast %18 : vector<1x40xf32> to vector<200x40xf32>
    %20 = arith.subf %14, %19 : vector<200x40xf32>
    %21 = arith.mulf %20, %20 : vector<200x40xf32>
    %22 = tpu.concatenate %20, %21 in 1 : vector<200x40xf32>, vector<200x40xf32> -> vector<200x80xf32>
    %c0_11 = arith.constant 0 : index
    %c0_12 = arith.constant 0 : index
    %23 = vector.load %arg4[%c0_11, %c0_12] : memref<11x200xf32, #tpu.memory_space<vmem>>, vector<11x200xf32>
    %cst_13 = arith.constant dense<0.000000e+00> : vector<11x80xf32>
    %24 = tpu.matmul %23, %22, %cst_13 {dimension_numbers = #tpu.dot_dimension_numbers<[1], [0], [0], [1], [0, 0, 1, 1], [], []>} : vector<11x200xf32>, vector<200x80xf32>, vector<11x80xf32> -> vector<11x80xf32>
    %25 = vector.extract_strided_slice %24 {offsets = [0, 0], sizes = [11, 40], strides = [1, 1]} : vector<11x80xf32> to vector<11x40xf32>
    %26 = vector.extract_strided_slice %24 {offsets = [0, 40], sizes = [11, 40], strides = [1, 1]} : vector<11x80xf32> to vector<11x40xf32>
    %27 = vector.broadcast %18 : vector<1x40xf32> to vector<11x40xf32>
    %28 = arith.addf %25, %27 : vector<11x40xf32>
    %29 = arith.mulf %25, %25 : vector<11x40xf32>
    %30 = arith.subf %26, %29 : vector<11x40xf32>
    %cst_14 = arith.constant 1.02040815 : f32
    %31 = vector.broadcast %cst_14 : f32 to vector<11x40xf32>
    %32 = arith.mulf %30, %31 : vector<11x40xf32>
    %cst_15 = arith.constant 9.99999997E-7 : f32
    %cst_16 = arith.constant 1.000000e+06 : f32
    %33 = vector.broadcast %cst_15 : f32 to vector<11x40xf32>
    %34 = arith.maximumf %33, %32 : vector<11x40xf32>
    %35 = vector.broadcast %cst_16 : f32 to vector<11x40xf32>
    %36 = arith.minimumf %35, %34 : vector<11x40xf32>
    %37 = math.log %36 : vector<11x40xf32>
    %38 = tpu.concatenate %28, %37 in 0 : vector<11x40xf32>, vector<11x40xf32> -> vector<22x40xf32>
    %39 = tpu.iota {dimensions = array<i32: 0>} : vector<22x22xi32>
    %40 = tpu.iota {dimensions = array<i32: 1>} : vector<22x22xi32>
    %c11_i32 = arith.constant 11 : i32
    %41 = vector.broadcast %c11_i32 : i32 to vector<22x22xi32>
    %42 = arith.cmpi sge, %39, %41 : vector<22x22xi32>
    %c11_i32_17 = arith.constant 11 : i32
    %43 = vector.broadcast %c11_i32_17 : i32 to vector<22x22xi32>
    %44 = arith.cmpi sge, %40, %43 : vector<22x22xi32>
    %45 = arith.xori %42, %44 : vector<22x22xi1>
    %cst_18 = arith.constant dense<true> : vector<22x22xi1>
    %46 = arith.xori %45, %cst_18 : vector<22x22xi1>
    %cst_19 = arith.constant 0.000000e+00 : f32
    %cst_20 = arith.constant -1.000000e+09 : f32
    %47 = vector.broadcast %cst_19 : f32 to vector<22x22xf32>
    %48 = vector.broadcast %cst_20 : f32 to vector<22x22xf32>
    %49 = arith.select %46, %47, %48 : vector<22x22xi1>, vector<22x22xf32>
    %c0_21 = arith.constant 0 : index
    %c0_22 = arith.constant 0 : index
    %c0_23 = arith.constant 0 : index
    %50 = vector.load %arg11[%c0_21, %c0_22, %c0_23] : memref<2x6x40xf32, #tpu.memory_space<vmem>>, vector<1x6x40xf32>
    %51 = vector.shape_cast %50 : vector<1x6x40xf32> to vector<6x40xf32>
    %52 = vector.extract_strided_slice %51 {offsets = [0, 0], sizes = [1, 40], strides = [1, 1]} : vector<6x40xf32> to vector<1x40xf32>
    %53 = vector.extract_strided_slice %51 {offsets = [1, 0], sizes = [1, 40], strides = [1, 1]} : vector<6x40xf32> to vector<1x40xf32>
    %54 = vector.extract_strided_slice %51 {offsets = [2, 0], sizes = [1, 40], strides = [1, 1]} : vector<6x40xf32> to vector<1x40xf32>
    %55 = vector.extract_strided_slice %51 {offsets = [3, 0], sizes = [1, 40], strides = [1, 1]} : vector<6x40xf32> to vector<1x40xf32>
    %56 = vector.extract_strided_slice %51 {offsets = [4, 0], sizes = [1, 40], strides = [1, 1]} : vector<6x40xf32> to vector<1x40xf32>
    %57 = vector.extract_strided_slice %51 {offsets = [5, 0], sizes = [1, 40], strides = [1, 1]} : vector<6x40xf32> to vector<1x40xf32>
    %cst_24 = arith.constant dense<0.000000e+00> : vector<22xf32>
    %58 = vector.multi_reduction <add>, %38, %cst_24 [1] : vector<22x40xf32> to vector<22xf32>
    %59 = vector.shape_cast %58 : vector<22xf32> to vector<22x1xf32>
    %cst_25 = arith.constant 4.000000e+01 : f32
    %60 = vector.broadcast %cst_25 : f32 to vector<22x1xf32>
    %61 = arith.divf %59, %60 : vector<22x1xf32>
    %62 = vector.broadcast %61 : vector<22x1xf32> to vector<22x40xf32>
    %63 = arith.subf %38, %62 : vector<22x40xf32>
    %64 = arith.mulf %63, %63 : vector<22x40xf32>
    %cst_26 = arith.constant dense<0.000000e+00> : vector<22xf32>
    %65 = vector.multi_reduction <add>, %64, %cst_26 [1] : vector<22x40xf32> to vector<22xf32>
    %66 = vector.shape_cast %65 : vector<22xf32> to vector<22x1xf32>
    %cst_27 = arith.constant 4.000000e+01 : f32
    %67 = vector.broadcast %cst_27 : f32 to vector<22x1xf32>
    %68 = arith.divf %66, %67 : vector<22x1xf32>
    %69 = vector.broadcast %61 : vector<22x1xf32> to vector<22x40xf32>
    %70 = arith.subf %38, %69 : vector<22x40xf32>
    %cst_28 = arith.constant 9.99999974E-6 : f32
    %71 = vector.broadcast %cst_28 : f32 to vector<22x1xf32>
    %72 = arith.addf %68, %71 : vector<22x1xf32>
    %73 = math.rsqrt %72 : vector<22x1xf32>
    %74 = vector.broadcast %73 : vector<22x1xf32> to vector<22x40xf32>
    %75 = arith.mulf %70, %74 : vector<22x40xf32>
    %76 = vector.broadcast %52 : vector<1x40xf32> to vector<22x40xf32>
    %77 = arith.mulf %75, %76 : vector<22x40xf32>
    %78 = vector.broadcast %53 : vector<1x40xf32> to vector<22x40xf32>
    %79 = arith.addf %77, %78 : vector<22x40xf32>
    %c0_29 = arith.constant 0 : index
    %c0_30 = arith.constant 0 : index
    %c0_31 = arith.constant 0 : index
    %80 = vector.load %arg5[%c0_29, %c0_30, %c0_31] : memref<2x40x120xf32, #tpu.memory_space<vmem>>, vector<1x40x120xf32>
    %81 = vector.shape_cast %80 : vector<1x40x120xf32> to vector<40x120xf32>
    %cst_32 = arith.constant dense<0.000000e+00> : vector<22x120xf32>
    %82 = tpu.matmul %79, %81, %cst_32 {dimension_numbers = #tpu.dot_dimension_numbers<[1], [0], [0], [1], [0, 0, 1, 1], [], []>} : vector<22x40xf32>, vector<40x120xf32>, vector<22x120xf32> -> vector<22x120xf32>
    %c0_33 = arith.constant 0 : index
    %c0_34 = arith.constant 0 : index
    %c0_35 = arith.constant 0 : index
    %83 = vector.load %arg6[%c0_33, %c0_34, %c0_35] : memref<2x1x120xf32, #tpu.memory_space<vmem>>, vector<1x1x120xf32>
    %84 = vector.shape_cast %83 : vector<1x1x120xf32> to vector<1x120xf32>
    %85 = vector.broadcast %84 : vector<1x120xf32> to vector<22x120xf32>
    %86 = arith.addf %82, %85 : vector<22x120xf32>
    %87 = vector.extract_strided_slice %86 {offsets = [0, 0], sizes = [22, 40], strides = [1, 1]} : vector<22x120xf32> to vector<22x40xf32>
    %88 = vector.extract_strided_slice %86 {offsets = [0, 40], sizes = [22, 40], strides = [1, 1]} : vector<22x120xf32> to vector<22x40xf32>
    %89 = vector.extract_strided_slice %86 {offsets = [0, 80], sizes = [22, 40], strides = [1, 1]} : vector<22x120xf32> to vector<22x40xf32>
    %90 = vector.extract_strided_slice %87 {offsets = [0, 0], sizes = [22, 5], strides = [1, 1]} : vector<22x40xf32> to vector<22x5xf32>
    %91 = vector.extract_strided_slice %87 {offsets = [0, 5], sizes = [22, 5], strides = [1, 1]} : vector<22x40xf32> to vector<22x5xf32>
    %92 = vector.extract_strided_slice %87 {offsets = [0, 10], sizes = [22, 5], strides = [1, 1]} : vector<22x40xf32> to vector<22x5xf32>
    %93 = vector.extract_strided_slice %87 {offsets = [0, 15], sizes = [22, 5], strides = [1, 1]} : vector<22x40xf32> to vector<22x5xf32>
    %94 = vector.extract_strided_slice %87 {offsets = [0, 20], sizes = [22, 5], strides = [1, 1]} : vector<22x40xf32> to vector<22x5xf32>
    %95 = vector.extract_strided_slice %87 {offsets = [0, 25], sizes = [22, 5], strides = [1, 1]} : vector<22x40xf32> to vector<22x5xf32>
    %96 = vector.extract_strided_slice %87 {offsets = [0, 30], sizes = [22, 5], strides = [1, 1]} : vector<22x40xf32> to vector<22x5xf32>
    %97 = vector.extract_strided_slice %87 {offsets = [0, 35], sizes = [22, 5], strides = [1, 1]} : vector<22x40xf32> to vector<22x5xf32>
    %98 = vector.shape_cast %90 : vector<22x5xf32> to vector<1x22x5xf32>
    %99 = vector.shape_cast %91 : vector<22x5xf32> to vector<1x22x5xf32>
    %100 = vector.shape_cast %92 : vector<22x5xf32> to vector<1x22x5xf32>
    %101 = vector.shape_cast %93 : vector<22x5xf32> to vector<1x22x5xf32>
    %102 = vector.shape_cast %94 : vector<22x5xf32> to vector<1x22x5xf32>
    %103 = vector.shape_cast %95 : vector<22x5xf32> to vector<1x22x5xf32>
    %104 = vector.shape_cast %96 : vector<22x5xf32> to vector<1x22x5xf32>
    %105 = vector.shape_cast %97 : vector<22x5xf32> to vector<1x22x5xf32>
    %106 = tpu.concatenate %98, %99, %100, %101, %102, %103, %104, %105 in 0 : vector<1x22x5xf32>, vector<1x22x5xf32>, vector<1x22x5xf32>, vector<1x22x5xf32>, vector<1x22x5xf32>, vector<1x22x5xf32>, vector<1x22x5xf32>, vector<1x22x5xf32> -> vector<8x22x5xf32>
    %107 = vector.extract_strided_slice %88 {offsets = [0, 0], sizes = [22, 5], strides = [1, 1]} : vector<22x40xf32> to vector<22x5xf32>
    %108 = vector.extract_strided_slice %88 {offsets = [0, 5], sizes = [22, 5], strides = [1, 1]} : vector<22x40xf32> to vector<22x5xf32>
    %109 = vector.extract_strided_slice %88 {offsets = [0, 10], sizes = [22, 5], strides = [1, 1]} : vector<22x40xf32> to vector<22x5xf32>
    %110 = vector.extract_strided_slice %88 {offsets = [0, 15], sizes = [22, 5], strides = [1, 1]} : vector<22x40xf32> to vector<22x5xf32>
    %111 = vector.extract_strided_slice %88 {offsets = [0, 20], sizes = [22, 5], strides = [1, 1]} : vector<22x40xf32> to vector<22x5xf32>
    %112 = vector.extract_strided_slice %88 {offsets = [0, 25], sizes = [22, 5], strides = [1, 1]} : vector<22x40xf32> to vector<22x5xf32>
    %113 = vector.extract_strided_slice %88 {offsets = [0, 30], sizes = [22, 5], strides = [1, 1]} : vector<22x40xf32> to vector<22x5xf32>
    %114 = vector.extract_strided_slice %88 {offsets = [0, 35], sizes = [22, 5], strides = [1, 1]} : vector<22x40xf32> to vector<22x5xf32>
    %115 = vector.shape_cast %107 : vector<22x5xf32> to vector<1x22x5xf32>
    %116 = vector.shape_cast %108 : vector<22x5xf32> to vector<1x22x5xf32>
    %117 = vector.shape_cast %109 : vector<22x5xf32> to vector<1x22x5xf32>
    %118 = vector.shape_cast %110 : vector<22x5xf32> to vector<1x22x5xf32>
    %119 = vector.shape_cast %111 : vector<22x5xf32> to vector<1x22x5xf32>
    %120 = vector.shape_cast %112 : vector<22x5xf32> to vector<1x22x5xf32>
    %121 = vector.shape_cast %113 : vector<22x5xf32> to vector<1x22x5xf32>
    %122 = vector.shape_cast %114 : vector<22x5xf32> to vector<1x22x5xf32>
    %123 = tpu.concatenate %115, %116, %117, %118, %119, %120, %121, %122 in 0 : vector<1x22x5xf32>, vector<1x22x5xf32>, vector<1x22x5xf32>, vector<1x22x5xf32>, vector<1x22x5xf32>, vector<1x22x5xf32>, vector<1x22x5xf32>, vector<1x22x5xf32> -> vector<8x22x5xf32>
    %124 = vector.extract_strided_slice %89 {offsets = [0, 0], sizes = [22, 5], strides = [1, 1]} : vector<22x40xf32> to vector<22x5xf32>
    %125 = vector.extract_strided_slice %89 {offsets = [0, 5], sizes = [22, 5], strides = [1, 1]} : vector<22x40xf32> to vector<22x5xf32>
    %126 = vector.extract_strided_slice %89 {offsets = [0, 10], sizes = [22, 5], strides = [1, 1]} : vector<22x40xf32> to vector<22x5xf32>
    %127 = vector.extract_strided_slice %89 {offsets = [0, 15], sizes = [22, 5], strides = [1, 1]} : vector<22x40xf32> to vector<22x5xf32>
    %128 = vector.extract_strided_slice %89 {offsets = [0, 20], sizes = [22, 5], strides = [1, 1]} : vector<22x40xf32> to vector<22x5xf32>
    %129 = vector.extract_strided_slice %89 {offsets = [0, 25], sizes = [22, 5], strides = [1, 1]} : vector<22x40xf32> to vector<22x5xf32>
    %130 = vector.extract_strided_slice %89 {offsets = [0, 30], sizes = [22, 5], strides = [1, 1]} : vector<22x40xf32> to vector<22x5xf32>
    %131 = vector.extract_strided_slice %89 {offsets = [0, 35], sizes = [22, 5], strides = [1, 1]} : vector<22x40xf32> to vector<22x5xf32>
    %132 = vector.shape_cast %124 : vector<22x5xf32> to vector<1x22x5xf32>
    %133 = vector.shape_cast %125 : vector<22x5xf32> to vector<1x22x5xf32>
    %134 = vector.shape_cast %126 : vector<22x5xf32> to vector<1x22x5xf32>
    %135 = vector.shape_cast %127 : vector<22x5xf32> to vector<1x22x5xf32>
    %136 = vector.shape_cast %128 : vector<22x5xf32> to vector<1x22x5xf32>
    %137 = vector.shape_cast %129 : vector<22x5xf32> to vector<1x22x5xf32>
    %138 = vector.shape_cast %130 : vector<22x5xf32> to vector<1x22x5xf32>
    %139 = vector.shape_cast %131 : vector<22x5xf32> to vector<1x22x5xf32>
    %140 = tpu.concatenate %132, %133, %134, %135, %136, %137, %138, %139 in 0 : vector<1x22x5xf32>, vector<1x22x5xf32>, vector<1x22x5xf32>, vector<1x22x5xf32>, vector<1x22x5xf32>, vector<1x22x5xf32>, vector<1x22x5xf32>, vector<1x22x5xf32> -> vector<8x22x5xf32>
    "tpu.trace_start"() <{level = 10 : i32, message = "hqd,hkd->hqk"}> : () -> ()
    %cst_36 = arith.constant dense<0.000000e+00> : vector<8x22x22xf32>
    %141 = tpu.matmul %106, %123, %cst_36 {dimension_numbers = #tpu.dot_dimension_numbers<[2], [2], [1], [1], [0, 0, 0, 1, 1, 1], [0], [0]>} : vector<8x22x5xf32>, vector<8x22x5xf32>, vector<8x22x22xf32> -> vector<8x22x22xf32>
    "tpu.trace_stop"() : () -> ()
    %cst_37 = arith.constant 0.44721359 : f32
    %142 = vector.broadcast %cst_37 : f32 to vector<8x22x22xf32>
    %143 = arith.mulf %141, %142 : vector<8x22x22xf32>
    %144 = vector.shape_cast %49 : vector<22x22xf32> to vector<1x22x22xf32>
    %145 = vector.broadcast %144 : vector<1x22x22xf32> to vector<8x22x22xf32>
    %146 = arith.addf %143, %145 : vector<8x22x22xf32>
    %cst_38 = arith.constant dense<0xFF800000> : vector<8x22xf32>
    %147 = vector.multi_reduction <maximumf>, %146, %cst_38 [2] : vector<8x22x22xf32> to vector<8x22xf32>
    %148 = vector.shape_cast %147 : vector<8x22xf32> to vector<8x22x1xf32>
    %149 = vector.broadcast %148 : vector<8x22x1xf32> to vector<8x22x22xf32>
    %150 = arith.subf %146, %149 : vector<8x22x22xf32>
    %151 = math.exp %150 : vector<8x22x22xf32>
    %cst_39 = arith.constant dense<0.000000e+00> : vector<8x22xf32>
    %152 = vector.multi_reduction <add>, %151, %cst_39 [2] : vector<8x22x22xf32> to vector<8x22xf32>
    %153 = vector.shape_cast %152 : vector<8x22xf32> to vector<8x22x1xf32>
    %154 = vector.broadcast %153 : vector<8x22x1xf32> to vector<8x22x22xf32>
    %155 = arith.divf %151, %154 : vector<8x22x22xf32>
    "tpu.trace_start"() <{level = 10 : i32, message = "hqk,hkd->hqd"}> : () -> ()
    %cst_40 = arith.constant dense<0.000000e+00> : vector<8x22x5xf32>
    %156 = tpu.matmul %155, %140, %cst_40 {dimension_numbers = #tpu.dot_dimension_numbers<[2], [1], [1], [2], [0, 0, 0, 1, 1, 2], [0], [0]>} : vector<8x22x22xf32>, vector<8x22x5xf32>, vector<8x22x5xf32> -> vector<8x22x5xf32>
    "tpu.trace_stop"() : () -> ()
    %157 = vector.extract_strided_slice %156 {offsets = [0, 0, 0], sizes = [1, 22, 5], strides = [1, 1, 1]} : vector<8x22x5xf32> to vector<1x22x5xf32>
    %158 = vector.shape_cast %157 : vector<1x22x5xf32> to vector<22x5xf32>
    %159 = vector.extract_strided_slice %156 {offsets = [1, 0, 0], sizes = [1, 22, 5], strides = [1, 1, 1]} : vector<8x22x5xf32> to vector<1x22x5xf32>
    %160 = vector.shape_cast %159 : vector<1x22x5xf32> to vector<22x5xf32>
    %161 = vector.extract_strided_slice %156 {offsets = [2, 0, 0], sizes = [1, 22, 5], strides = [1, 1, 1]} : vector<8x22x5xf32> to vector<1x22x5xf32>
    %162 = vector.shape_cast %161 : vector<1x22x5xf32> to vector<22x5xf32>
    %163 = vector.extract_strided_slice %156 {offsets = [3, 0, 0], sizes = [1, 22, 5], strides = [1, 1, 1]} : vector<8x22x5xf32> to vector<1x22x5xf32>
    %164 = vector.shape_cast %163 : vector<1x22x5xf32> to vector<22x5xf32>
    %165 = vector.extract_strided_slice %156 {offsets = [4, 0, 0], sizes = [1, 22, 5], strides = [1, 1, 1]} : vector<8x22x5xf32> to vector<1x22x5xf32>
    %166 = vector.shape_cast %165 : vector<1x22x5xf32> to vector<22x5xf32>
    %167 = vector.extract_strided_slice %156 {offsets = [5, 0, 0], sizes = [1, 22, 5], strides = [1, 1, 1]} : vector<8x22x5xf32> to vector<1x22x5xf32>
    %168 = vector.shape_cast %167 : vector<1x22x5xf32> to vector<22x5xf32>
    %169 = vector.extract_strided_slice %156 {offsets = [6, 0, 0], sizes = [1, 22, 5], strides = [1, 1, 1]} : vector<8x22x5xf32> to vector<1x22x5xf32>
    %170 = vector.shape_cast %169 : vector<1x22x5xf32> to vector<22x5xf32>
    %171 = vector.extract_strided_slice %156 {offsets = [7, 0, 0], sizes = [1, 22, 5], strides = [1, 1, 1]} : vector<8x22x5xf32> to vector<1x22x5xf32>
    %172 = vector.shape_cast %171 : vector<1x22x5xf32> to vector<22x5xf32>
    %173 = tpu.concatenate %158, %160, %162, %164, %166, %168, %170, %172 in 1 : vector<22x5xf32>, vector<22x5xf32>, vector<22x5xf32>, vector<22x5xf32>, vector<22x5xf32>, vector<22x5xf32>, vector<22x5xf32>, vector<22x5xf32> -> vector<22x40xf32>
    %c0_41 = arith.constant 0 : index
    %c0_42 = arith.constant 0 : index
    %c0_43 = arith.constant 0 : index
    %174 = vector.load %arg7[%c0_41, %c0_42, %c0_43] : memref<2x40x40xf32, #tpu.memory_space<vmem>>, vector<1x40x40xf32>
    %175 = vector.shape_cast %174 : vector<1x40x40xf32> to vector<40x40xf32>
    %cst_44 = arith.constant dense<0.000000e+00> : vector<22x40xf32>
    %176 = tpu.matmul %173, %175, %cst_44 {dimension_numbers = #tpu.dot_dimension_numbers<[1], [0], [0], [1], [0, 0, 1, 1], [], []>} : vector<22x40xf32>, vector<40x40xf32>, vector<22x40xf32> -> vector<22x40xf32>
    %177 = vector.broadcast %56 : vector<1x40xf32> to vector<22x40xf32>
    %178 = arith.addf %176, %177 : vector<22x40xf32>
    %179 = arith.addf %38, %178 : vector<22x40xf32>
    %cst_45 = arith.constant dense<0.000000e+00> : vector<22xf32>
    %180 = vector.multi_reduction <add>, %179, %cst_45 [1] : vector<22x40xf32> to vector<22xf32>
    %181 = vector.shape_cast %180 : vector<22xf32> to vector<22x1xf32>
    %cst_46 = arith.constant 4.000000e+01 : f32
    %182 = vector.broadcast %cst_46 : f32 to vector<22x1xf32>
    %183 = arith.divf %181, %182 : vector<22x1xf32>
    %184 = vector.broadcast %183 : vector<22x1xf32> to vector<22x40xf32>
    %185 = arith.subf %179, %184 : vector<22x40xf32>
    %186 = arith.mulf %185, %185 : vector<22x40xf32>
    %cst_47 = arith.constant dense<0.000000e+00> : vector<22xf32>
    %187 = vector.multi_reduction <add>, %186, %cst_47 [1] : vector<22x40xf32> to vector<22xf32>
    %188 = vector.shape_cast %187 : vector<22xf32> to vector<22x1xf32>
    %cst_48 = arith.constant 4.000000e+01 : f32
    %189 = vector.broadcast %cst_48 : f32 to vector<22x1xf32>
    %190 = arith.divf %188, %189 : vector<22x1xf32>
    %191 = vector.broadcast %183 : vector<22x1xf32> to vector<22x40xf32>
    %192 = arith.subf %179, %191 : vector<22x40xf32>
    %cst_49 = arith.constant 9.99999974E-6 : f32
    %193 = vector.broadcast %cst_49 : f32 to vector<22x1xf32>
    %194 = arith.addf %190, %193 : vector<22x1xf32>
    %195 = math.rsqrt %194 : vector<22x1xf32>
    %196 = vector.broadcast %195 : vector<22x1xf32> to vector<22x40xf32>
    %197 = arith.mulf %192, %196 : vector<22x40xf32>
    %198 = vector.broadcast %54 : vector<1x40xf32> to vector<22x40xf32>
    %199 = arith.mulf %197, %198 : vector<22x40xf32>
    %200 = vector.broadcast %55 : vector<1x40xf32> to vector<22x40xf32>
    %201 = arith.addf %199, %200 : vector<22x40xf32>
    %c0_50 = arith.constant 0 : index
    %c0_51 = arith.constant 0 : index
    %c0_52 = arith.constant 0 : index
    %202 = vector.load %arg8[%c0_50, %c0_51, %c0_52] : memref<2x40x160xf32, #tpu.memory_space<vmem>>, vector<1x40x160xf32>
    %203 = vector.shape_cast %202 : vector<1x40x160xf32> to vector<40x160xf32>
    %cst_53 = arith.constant dense<0.000000e+00> : vector<22x160xf32>
    %204 = tpu.matmul %201, %203, %cst_53 {dimension_numbers = #tpu.dot_dimension_numbers<[1], [0], [0], [1], [0, 0, 1, 1], [], []>} : vector<22x40xf32>, vector<40x160xf32>, vector<22x160xf32> -> vector<22x160xf32>
    %c0_54 = arith.constant 0 : index
    %c0_55 = arith.constant 0 : index
    %c0_56 = arith.constant 0 : index
    %205 = vector.load %arg9[%c0_54, %c0_55, %c0_56] : memref<2x1x160xf32, #tpu.memory_space<vmem>>, vector<1x1x160xf32>
    %206 = vector.shape_cast %205 : vector<1x1x160xf32> to vector<1x160xf32>
    %207 = vector.broadcast %206 : vector<1x160xf32> to vector<22x160xf32>
    %208 = arith.addf %204, %207 : vector<22x160xf32>
    %cst_57 = arith.constant 5.000000e-01 : f32
    %209 = vector.broadcast %cst_57 : f32 to vector<22x160xf32>
    %210 = arith.mulf %209, %208 : vector<22x160xf32>
    %cst_58 = arith.constant 0.707106769 : f32
    %211 = vector.broadcast %cst_58 : f32 to vector<22x160xf32>
    %212 = arith.mulf %208, %211 : vector<22x160xf32>
    %213 = math.erf %212 : vector<22x160xf32>
    %cst_59 = arith.constant 1.000000e+00 : f32
    %214 = vector.broadcast %cst_59 : f32 to vector<22x160xf32>
    %215 = arith.addf %214, %213 : vector<22x160xf32>
    %216 = arith.mulf %210, %215 : vector<22x160xf32>
    %c0_60 = arith.constant 0 : index
    %c0_61 = arith.constant 0 : index
    %c0_62 = arith.constant 0 : index
    %217 = vector.load %arg10[%c0_60, %c0_61, %c0_62] : memref<2x160x40xf32, #tpu.memory_space<vmem>>, vector<1x160x40xf32>
    %218 = vector.shape_cast %217 : vector<1x160x40xf32> to vector<160x40xf32>
    %cst_63 = arith.constant dense<0.000000e+00> : vector<22x40xf32>
    %219 = tpu.matmul %216, %218, %cst_63 {dimension_numbers = #tpu.dot_dimension_numbers<[1], [0], [0], [1], [0, 0, 1, 1], [], []>} : vector<22x160xf32>, vector<160x40xf32>, vector<22x40xf32> -> vector<22x40xf32>
    %220 = vector.broadcast %57 : vector<1x40xf32> to vector<22x40xf32>
    %221 = arith.addf %219, %220 : vector<22x40xf32>
    %222 = arith.addf %179, %221 : vector<22x40xf32>
    %c1 = arith.constant 1 : index
    %c0_64 = arith.constant 0 : index
    %c0_65 = arith.constant 0 : index
    %223 = vector.load %arg11[%c1, %c0_64, %c0_65] : memref<2x6x40xf32, #tpu.memory_space<vmem>>, vector<1x6x40xf32>
    %224 = vector.shape_cast %223 : vector<1x6x40xf32> to vector<6x40xf32>
    %225 = vector.extract_strided_slice %224 {offsets = [0, 0], sizes = [1, 40], strides = [1, 1]} : vector<6x40xf32> to vector<1x40xf32>
    %226 = vector.extract_strided_slice %224 {offsets = [1, 0], sizes = [1, 40], strides = [1, 1]} : vector<6x40xf32> to vector<1x40xf32>
    %227 = vector.extract_strided_slice %224 {offsets = [2, 0], sizes = [1, 40], strides = [1, 1]} : vector<6x40xf32> to vector<1x40xf32>
    %228 = vector.extract_strided_slice %224 {offsets = [3, 0], sizes = [1, 40], strides = [1, 1]} : vector<6x40xf32> to vector<1x40xf32>
    %229 = vector.extract_strided_slice %224 {offsets = [4, 0], sizes = [1, 40], strides = [1, 1]} : vector<6x40xf32> to vector<1x40xf32>
    %230 = vector.extract_strided_slice %224 {offsets = [5, 0], sizes = [1, 40], strides = [1, 1]} : vector<6x40xf32> to vector<1x40xf32>
    %cst_66 = arith.constant dense<0.000000e+00> : vector<22xf32>
    %231 = vector.multi_reduction <add>, %222, %cst_66 [1] : vector<22x40xf32> to vector<22xf32>
    %232 = vector.shape_cast %231 : vector<22xf32> to vector<22x1xf32>
    %cst_67 = arith.constant 4.000000e+01 : f32
    %233 = vector.broadcast %cst_67 : f32 to vector<22x1xf32>
    %234 = arith.divf %232, %233 : vector<22x1xf32>
    %235 = vector.broadcast %234 : vector<22x1xf32> to vector<22x40xf32>
    %236 = arith.subf %222, %235 : vector<22x40xf32>
    %237 = arith.mulf %236, %236 : vector<22x40xf32>
    %cst_68 = arith.constant dense<0.000000e+00> : vector<22xf32>
    %238 = vector.multi_reduction <add>, %237, %cst_68 [1] : vector<22x40xf32> to vector<22xf32>
    %239 = vector.shape_cast %238 : vector<22xf32> to vector<22x1xf32>
    %cst_69 = arith.constant 4.000000e+01 : f32
    %240 = vector.broadcast %cst_69 : f32 to vector<22x1xf32>
    %241 = arith.divf %239, %240 : vector<22x1xf32>
    %242 = vector.broadcast %234 : vector<22x1xf32> to vector<22x40xf32>
    %243 = arith.subf %222, %242 : vector<22x40xf32>
    %cst_70 = arith.constant 9.99999974E-6 : f32
    %244 = vector.broadcast %cst_70 : f32 to vector<22x1xf32>
    %245 = arith.addf %241, %244 : vector<22x1xf32>
    %246 = math.rsqrt %245 : vector<22x1xf32>
    %247 = vector.broadcast %246 : vector<22x1xf32> to vector<22x40xf32>
    %248 = arith.mulf %243, %247 : vector<22x40xf32>
    %249 = vector.broadcast %225 : vector<1x40xf32> to vector<22x40xf32>
    %250 = arith.mulf %248, %249 : vector<22x40xf32>
    %251 = vector.broadcast %226 : vector<1x40xf32> to vector<22x40xf32>
    %252 = arith.addf %250, %251 : vector<22x40xf32>
    %c1_71 = arith.constant 1 : index
    %c0_72 = arith.constant 0 : index
    %c0_73 = arith.constant 0 : index
    %253 = vector.load %arg5[%c1_71, %c0_72, %c0_73] : memref<2x40x120xf32, #tpu.memory_space<vmem>>, vector<1x40x120xf32>
    %254 = vector.shape_cast %253 : vector<1x40x120xf32> to vector<40x120xf32>
    %cst_74 = arith.constant dense<0.000000e+00> : vector<22x120xf32>
    %255 = tpu.matmul %252, %254, %cst_74 {dimension_numbers = #tpu.dot_dimension_numbers<[1], [0], [0], [1], [0, 0, 1, 1], [], []>} : vector<22x40xf32>, vector<40x120xf32>, vector<22x120xf32> -> vector<22x120xf32>
    %c1_75 = arith.constant 1 : index
    %c0_76 = arith.constant 0 : index
    %c0_77 = arith.constant 0 : index
    %256 = vector.load %arg6[%c1_75, %c0_76, %c0_77] : memref<2x1x120xf32, #tpu.memory_space<vmem>>, vector<1x1x120xf32>
    %257 = vector.shape_cast %256 : vector<1x1x120xf32> to vector<1x120xf32>
    %258 = vector.broadcast %257 : vector<1x120xf32> to vector<22x120xf32>
    %259 = arith.addf %255, %258 : vector<22x120xf32>
    %260 = vector.extract_strided_slice %259 {offsets = [0, 0], sizes = [22, 40], strides = [1, 1]} : vector<22x120xf32> to vector<22x40xf32>
    %261 = vector.extract_strided_slice %259 {offsets = [0, 40], sizes = [22, 40], strides = [1, 1]} : vector<22x120xf32> to vector<22x40xf32>
    %262 = vector.extract_strided_slice %259 {offsets = [0, 80], sizes = [22, 40], strides = [1, 1]} : vector<22x120xf32> to vector<22x40xf32>
    %263 = vector.extract_strided_slice %260 {offsets = [0, 0], sizes = [22, 5], strides = [1, 1]} : vector<22x40xf32> to vector<22x5xf32>
    %264 = vector.extract_strided_slice %260 {offsets = [0, 5], sizes = [22, 5], strides = [1, 1]} : vector<22x40xf32> to vector<22x5xf32>
    %265 = vector.extract_strided_slice %260 {offsets = [0, 10], sizes = [22, 5], strides = [1, 1]} : vector<22x40xf32> to vector<22x5xf32>
    %266 = vector.extract_strided_slice %260 {offsets = [0, 15], sizes = [22, 5], strides = [1, 1]} : vector<22x40xf32> to vector<22x5xf32>
    %267 = vector.extract_strided_slice %260 {offsets = [0, 20], sizes = [22, 5], strides = [1, 1]} : vector<22x40xf32> to vector<22x5xf32>
    %268 = vector.extract_strided_slice %260 {offsets = [0, 25], sizes = [22, 5], strides = [1, 1]} : vector<22x40xf32> to vector<22x5xf32>
    %269 = vector.extract_strided_slice %260 {offsets = [0, 30], sizes = [22, 5], strides = [1, 1]} : vector<22x40xf32> to vector<22x5xf32>
    %270 = vector.extract_strided_slice %260 {offsets = [0, 35], sizes = [22, 5], strides = [1, 1]} : vector<22x40xf32> to vector<22x5xf32>
    %271 = vector.shape_cast %263 : vector<22x5xf32> to vector<1x22x5xf32>
    %272 = vector.shape_cast %264 : vector<22x5xf32> to vector<1x22x5xf32>
    %273 = vector.shape_cast %265 : vector<22x5xf32> to vector<1x22x5xf32>
    %274 = vector.shape_cast %266 : vector<22x5xf32> to vector<1x22x5xf32>
    %275 = vector.shape_cast %267 : vector<22x5xf32> to vector<1x22x5xf32>
    %276 = vector.shape_cast %268 : vector<22x5xf32> to vector<1x22x5xf32>
    %277 = vector.shape_cast %269 : vector<22x5xf32> to vector<1x22x5xf32>
    %278 = vector.shape_cast %270 : vector<22x5xf32> to vector<1x22x5xf32>
    %279 = tpu.concatenate %271, %272, %273, %274, %275, %276, %277, %278 in 0 : vector<1x22x5xf32>, vector<1x22x5xf32>, vector<1x22x5xf32>, vector<1x22x5xf32>, vector<1x22x5xf32>, vector<1x22x5xf32>, vector<1x22x5xf32>, vector<1x22x5xf32> -> vector<8x22x5xf32>
    %280 = vector.extract_strided_slice %261 {offsets = [0, 0], sizes = [22, 5], strides = [1, 1]} : vector<22x40xf32> to vector<22x5xf32>
    %281 = vector.extract_strided_slice %261 {offsets = [0, 5], sizes = [22, 5], strides = [1, 1]} : vector<22x40xf32> to vector<22x5xf32>
    %282 = vector.extract_strided_slice %261 {offsets = [0, 10], sizes = [22, 5], strides = [1, 1]} : vector<22x40xf32> to vector<22x5xf32>
    %283 = vector.extract_strided_slice %261 {offsets = [0, 15], sizes = [22, 5], strides = [1, 1]} : vector<22x40xf32> to vector<22x5xf32>
    %284 = vector.extract_strided_slice %261 {offsets = [0, 20], sizes = [22, 5], strides = [1, 1]} : vector<22x40xf32> to vector<22x5xf32>
    %285 = vector.extract_strided_slice %261 {offsets = [0, 25], sizes = [22, 5], strides = [1, 1]} : vector<22x40xf32> to vector<22x5xf32>
    %286 = vector.extract_strided_slice %261 {offsets = [0, 30], sizes = [22, 5], strides = [1, 1]} : vector<22x40xf32> to vector<22x5xf32>
    %287 = vector.extract_strided_slice %261 {offsets = [0, 35], sizes = [22, 5], strides = [1, 1]} : vector<22x40xf32> to vector<22x5xf32>
    %288 = vector.shape_cast %280 : vector<22x5xf32> to vector<1x22x5xf32>
    %289 = vector.shape_cast %281 : vector<22x5xf32> to vector<1x22x5xf32>
    %290 = vector.shape_cast %282 : vector<22x5xf32> to vector<1x22x5xf32>
    %291 = vector.shape_cast %283 : vector<22x5xf32> to vector<1x22x5xf32>
    %292 = vector.shape_cast %284 : vector<22x5xf32> to vector<1x22x5xf32>
    %293 = vector.shape_cast %285 : vector<22x5xf32> to vector<1x22x5xf32>
    %294 = vector.shape_cast %286 : vector<22x5xf32> to vector<1x22x5xf32>
    %295 = vector.shape_cast %287 : vector<22x5xf32> to vector<1x22x5xf32>
    %296 = tpu.concatenate %288, %289, %290, %291, %292, %293, %294, %295 in 0 : vector<1x22x5xf32>, vector<1x22x5xf32>, vector<1x22x5xf32>, vector<1x22x5xf32>, vector<1x22x5xf32>, vector<1x22x5xf32>, vector<1x22x5xf32>, vector<1x22x5xf32> -> vector<8x22x5xf32>
    %297 = vector.extract_strided_slice %262 {offsets = [0, 0], sizes = [22, 5], strides = [1, 1]} : vector<22x40xf32> to vector<22x5xf32>
    %298 = vector.extract_strided_slice %262 {offsets = [0, 5], sizes = [22, 5], strides = [1, 1]} : vector<22x40xf32> to vector<22x5xf32>
    %299 = vector.extract_strided_slice %262 {offsets = [0, 10], sizes = [22, 5], strides = [1, 1]} : vector<22x40xf32> to vector<22x5xf32>
    %300 = vector.extract_strided_slice %262 {offsets = [0, 15], sizes = [22, 5], strides = [1, 1]} : vector<22x40xf32> to vector<22x5xf32>
    %301 = vector.extract_strided_slice %262 {offsets = [0, 20], sizes = [22, 5], strides = [1, 1]} : vector<22x40xf32> to vector<22x5xf32>
    %302 = vector.extract_strided_slice %262 {offsets = [0, 25], sizes = [22, 5], strides = [1, 1]} : vector<22x40xf32> to vector<22x5xf32>
    %303 = vector.extract_strided_slice %262 {offsets = [0, 30], sizes = [22, 5], strides = [1, 1]} : vector<22x40xf32> to vector<22x5xf32>
    %304 = vector.extract_strided_slice %262 {offsets = [0, 35], sizes = [22, 5], strides = [1, 1]} : vector<22x40xf32> to vector<22x5xf32>
    %305 = vector.shape_cast %297 : vector<22x5xf32> to vector<1x22x5xf32>
    %306 = vector.shape_cast %298 : vector<22x5xf32> to vector<1x22x5xf32>
    %307 = vector.shape_cast %299 : vector<22x5xf32> to vector<1x22x5xf32>
    %308 = vector.shape_cast %300 : vector<22x5xf32> to vector<1x22x5xf32>
    %309 = vector.shape_cast %301 : vector<22x5xf32> to vector<1x22x5xf32>
    %310 = vector.shape_cast %302 : vector<22x5xf32> to vector<1x22x5xf32>
    %311 = vector.shape_cast %303 : vector<22x5xf32> to vector<1x22x5xf32>
    %312 = vector.shape_cast %304 : vector<22x5xf32> to vector<1x22x5xf32>
    %313 = tpu.concatenate %305, %306, %307, %308, %309, %310, %311, %312 in 0 : vector<1x22x5xf32>, vector<1x22x5xf32>, vector<1x22x5xf32>, vector<1x22x5xf32>, vector<1x22x5xf32>, vector<1x22x5xf32>, vector<1x22x5xf32>, vector<1x22x5xf32> -> vector<8x22x5xf32>
    "tpu.trace_start"() <{level = 10 : i32, message = "hqd,hkd->hqk"}> : () -> ()
    %cst_78 = arith.constant dense<0.000000e+00> : vector<8x22x22xf32>
    %314 = tpu.matmul %279, %296, %cst_78 {dimension_numbers = #tpu.dot_dimension_numbers<[2], [2], [1], [1], [0, 0, 0, 1, 1, 1], [0], [0]>} : vector<8x22x5xf32>, vector<8x22x5xf32>, vector<8x22x22xf32> -> vector<8x22x22xf32>
    "tpu.trace_stop"() : () -> ()
    %cst_79 = arith.constant 0.44721359 : f32
    %315 = vector.broadcast %cst_79 : f32 to vector<8x22x22xf32>
    %316 = arith.mulf %314, %315 : vector<8x22x22xf32>
    %317 = vector.shape_cast %49 : vector<22x22xf32> to vector<1x22x22xf32>
    %318 = vector.broadcast %317 : vector<1x22x22xf32> to vector<8x22x22xf32>
    %319 = arith.addf %316, %318 : vector<8x22x22xf32>
    %cst_80 = arith.constant dense<0xFF800000> : vector<8x22xf32>
    %320 = vector.multi_reduction <maximumf>, %319, %cst_80 [2] : vector<8x22x22xf32> to vector<8x22xf32>
    %321 = vector.shape_cast %320 : vector<8x22xf32> to vector<8x22x1xf32>
    %322 = vector.broadcast %321 : vector<8x22x1xf32> to vector<8x22x22xf32>
    %323 = arith.subf %319, %322 : vector<8x22x22xf32>
    %324 = math.exp %323 : vector<8x22x22xf32>
    %cst_81 = arith.constant dense<0.000000e+00> : vector<8x22xf32>
    %325 = vector.multi_reduction <add>, %324, %cst_81 [2] : vector<8x22x22xf32> to vector<8x22xf32>
    %326 = vector.shape_cast %325 : vector<8x22xf32> to vector<8x22x1xf32>
    %327 = vector.broadcast %326 : vector<8x22x1xf32> to vector<8x22x22xf32>
    %328 = arith.divf %324, %327 : vector<8x22x22xf32>
    "tpu.trace_start"() <{level = 10 : i32, message = "hqk,hkd->hqd"}> : () -> ()
    %cst_82 = arith.constant dense<0.000000e+00> : vector<8x22x5xf32>
    %329 = tpu.matmul %328, %313, %cst_82 {dimension_numbers = #tpu.dot_dimension_numbers<[2], [1], [1], [2], [0, 0, 0, 1, 1, 2], [0], [0]>} : vector<8x22x22xf32>, vector<8x22x5xf32>, vector<8x22x5xf32> -> vector<8x22x5xf32>
    "tpu.trace_stop"() : () -> ()
    %330 = vector.extract_strided_slice %329 {offsets = [0, 0, 0], sizes = [1, 22, 5], strides = [1, 1, 1]} : vector<8x22x5xf32> to vector<1x22x5xf32>
    %331 = vector.shape_cast %330 : vector<1x22x5xf32> to vector<22x5xf32>
    %332 = vector.extract_strided_slice %329 {offsets = [1, 0, 0], sizes = [1, 22, 5], strides = [1, 1, 1]} : vector<8x22x5xf32> to vector<1x22x5xf32>
    %333 = vector.shape_cast %332 : vector<1x22x5xf32> to vector<22x5xf32>
    %334 = vector.extract_strided_slice %329 {offsets = [2, 0, 0], sizes = [1, 22, 5], strides = [1, 1, 1]} : vector<8x22x5xf32> to vector<1x22x5xf32>
    %335 = vector.shape_cast %334 : vector<1x22x5xf32> to vector<22x5xf32>
    %336 = vector.extract_strided_slice %329 {offsets = [3, 0, 0], sizes = [1, 22, 5], strides = [1, 1, 1]} : vector<8x22x5xf32> to vector<1x22x5xf32>
    %337 = vector.shape_cast %336 : vector<1x22x5xf32> to vector<22x5xf32>
    %338 = vector.extract_strided_slice %329 {offsets = [4, 0, 0], sizes = [1, 22, 5], strides = [1, 1, 1]} : vector<8x22x5xf32> to vector<1x22x5xf32>
    %339 = vector.shape_cast %338 : vector<1x22x5xf32> to vector<22x5xf32>
    %340 = vector.extract_strided_slice %329 {offsets = [5, 0, 0], sizes = [1, 22, 5], strides = [1, 1, 1]} : vector<8x22x5xf32> to vector<1x22x5xf32>
    %341 = vector.shape_cast %340 : vector<1x22x5xf32> to vector<22x5xf32>
    %342 = vector.extract_strided_slice %329 {offsets = [6, 0, 0], sizes = [1, 22, 5], strides = [1, 1, 1]} : vector<8x22x5xf32> to vector<1x22x5xf32>
    %343 = vector.shape_cast %342 : vector<1x22x5xf32> to vector<22x5xf32>
    %344 = vector.extract_strided_slice %329 {offsets = [7, 0, 0], sizes = [1, 22, 5], strides = [1, 1, 1]} : vector<8x22x5xf32> to vector<1x22x5xf32>
    %345 = vector.shape_cast %344 : vector<1x22x5xf32> to vector<22x5xf32>
    %346 = tpu.concatenate %331, %333, %335, %337, %339, %341, %343, %345 in 1 : vector<22x5xf32>, vector<22x5xf32>, vector<22x5xf32>, vector<22x5xf32>, vector<22x5xf32>, vector<22x5xf32>, vector<22x5xf32>, vector<22x5xf32> -> vector<22x40xf32>
    %c1_83 = arith.constant 1 : index
    %c0_84 = arith.constant 0 : index
    %c0_85 = arith.constant 0 : index
    %347 = vector.load %arg7[%c1_83, %c0_84, %c0_85] : memref<2x40x40xf32, #tpu.memory_space<vmem>>, vector<1x40x40xf32>
    %348 = vector.shape_cast %347 : vector<1x40x40xf32> to vector<40x40xf32>
    %cst_86 = arith.constant dense<0.000000e+00> : vector<22x40xf32>
    %349 = tpu.matmul %346, %348, %cst_86 {dimension_numbers = #tpu.dot_dimension_numbers<[1], [0], [0], [1], [0, 0, 1, 1], [], []>} : vector<22x40xf32>, vector<40x40xf32>, vector<22x40xf32> -> vector<22x40xf32>
    %350 = vector.broadcast %229 : vector<1x40xf32> to vector<22x40xf32>
    %351 = arith.addf %349, %350 : vector<22x40xf32>
    %352 = arith.addf %222, %351 : vector<22x40xf32>
    %cst_87 = arith.constant dense<0.000000e+00> : vector<22xf32>
    %353 = vector.multi_reduction <add>, %352, %cst_87 [1] : vector<22x40xf32> to vector<22xf32>
    %354 = vector.shape_cast %353 : vector<22xf32> to vector<22x1xf32>
    %cst_88 = arith.constant 4.000000e+01 : f32
    %355 = vector.broadcast %cst_88 : f32 to vector<22x1xf32>
    %356 = arith.divf %354, %355 : vector<22x1xf32>
    %357 = vector.broadcast %356 : vector<22x1xf32> to vector<22x40xf32>
    %358 = arith.subf %352, %357 : vector<22x40xf32>
    %359 = arith.mulf %358, %358 : vector<22x40xf32>
    %cst_89 = arith.constant dense<0.000000e+00> : vector<22xf32>
    %360 = vector.multi_reduction <add>, %359, %cst_89 [1] : vector<22x40xf32> to vector<22xf32>
    %361 = vector.shape_cast %360 : vector<22xf32> to vector<22x1xf32>
    %cst_90 = arith.constant 4.000000e+01 : f32
    %362 = vector.broadcast %cst_90 : f32 to vector<22x1xf32>
    %363 = arith.divf %361, %362 : vector<22x1xf32>
    %364 = vector.broadcast %356 : vector<22x1xf32> to vector<22x40xf32>
    %365 = arith.subf %352, %364 : vector<22x40xf32>
    %cst_91 = arith.constant 9.99999974E-6 : f32
    %366 = vector.broadcast %cst_91 : f32 to vector<22x1xf32>
    %367 = arith.addf %363, %366 : vector<22x1xf32>
    %368 = math.rsqrt %367 : vector<22x1xf32>
    %369 = vector.broadcast %368 : vector<22x1xf32> to vector<22x40xf32>
    %370 = arith.mulf %365, %369 : vector<22x40xf32>
    %371 = vector.broadcast %227 : vector<1x40xf32> to vector<22x40xf32>
    %372 = arith.mulf %370, %371 : vector<22x40xf32>
    %373 = vector.broadcast %228 : vector<1x40xf32> to vector<22x40xf32>
    %374 = arith.addf %372, %373 : vector<22x40xf32>
    %c1_92 = arith.constant 1 : index
    %c0_93 = arith.constant 0 : index
    %c0_94 = arith.constant 0 : index
    %375 = vector.load %arg8[%c1_92, %c0_93, %c0_94] : memref<2x40x160xf32, #tpu.memory_space<vmem>>, vector<1x40x160xf32>
    %376 = vector.shape_cast %375 : vector<1x40x160xf32> to vector<40x160xf32>
    %cst_95 = arith.constant dense<0.000000e+00> : vector<22x160xf32>
    %377 = tpu.matmul %374, %376, %cst_95 {dimension_numbers = #tpu.dot_dimension_numbers<[1], [0], [0], [1], [0, 0, 1, 1], [], []>} : vector<22x40xf32>, vector<40x160xf32>, vector<22x160xf32> -> vector<22x160xf32>
    %c1_96 = arith.constant 1 : index
    %c0_97 = arith.constant 0 : index
    %c0_98 = arith.constant 0 : index
    %378 = vector.load %arg9[%c1_96, %c0_97, %c0_98] : memref<2x1x160xf32, #tpu.memory_space<vmem>>, vector<1x1x160xf32>
    %379 = vector.shape_cast %378 : vector<1x1x160xf32> to vector<1x160xf32>
    %380 = vector.broadcast %379 : vector<1x160xf32> to vector<22x160xf32>
    %381 = arith.addf %377, %380 : vector<22x160xf32>
    %cst_99 = arith.constant 5.000000e-01 : f32
    %382 = vector.broadcast %cst_99 : f32 to vector<22x160xf32>
    %383 = arith.mulf %382, %381 : vector<22x160xf32>
    %cst_100 = arith.constant 0.707106769 : f32
    %384 = vector.broadcast %cst_100 : f32 to vector<22x160xf32>
    %385 = arith.mulf %381, %384 : vector<22x160xf32>
    %386 = math.erf %385 : vector<22x160xf32>
    %cst_101 = arith.constant 1.000000e+00 : f32
    %387 = vector.broadcast %cst_101 : f32 to vector<22x160xf32>
    %388 = arith.addf %387, %386 : vector<22x160xf32>
    %389 = arith.mulf %383, %388 : vector<22x160xf32>
    %c1_102 = arith.constant 1 : index
    %c0_103 = arith.constant 0 : index
    %c0_104 = arith.constant 0 : index
    %390 = vector.load %arg10[%c1_102, %c0_103, %c0_104] : memref<2x160x40xf32, #tpu.memory_space<vmem>>, vector<1x160x40xf32>
    %391 = vector.shape_cast %390 : vector<1x160x40xf32> to vector<160x40xf32>
    %cst_105 = arith.constant dense<0.000000e+00> : vector<22x40xf32>
    %392 = tpu.matmul %389, %391, %cst_105 {dimension_numbers = #tpu.dot_dimension_numbers<[1], [0], [0], [1], [0, 0, 1, 1], [], []>} : vector<22x160xf32>, vector<160x40xf32>, vector<22x40xf32> -> vector<22x40xf32>
    %393 = vector.broadcast %230 : vector<1x40xf32> to vector<22x40xf32>
    %394 = arith.addf %392, %393 : vector<22x40xf32>
    %395 = arith.addf %352, %394 : vector<22x40xf32>
    %c0_106 = arith.constant 0 : index
    %c0_107 = arith.constant 0 : index
    %396 = vector.load %arg12[%c0_106, %c0_107] : memref<11x22xf32, #tpu.memory_space<vmem>>, vector<11x22xf32>
    %cst_108 = arith.constant dense<0.000000e+00> : vector<11x40xf32>
    %397 = tpu.matmul %396, %395, %cst_108 {dimension_numbers = #tpu.dot_dimension_numbers<[1], [0], [0], [1], [0, 0, 1, 1], [], []>} : vector<11x22xf32>, vector<22x40xf32>, vector<11x40xf32> -> vector<11x40xf32>
    %c0_109 = arith.constant 0 : index
    %c0_110 = arith.constant 0 : index
    %398 = vector.load %arg13[%c0_109, %c0_110] : memref<11x1xf32, #tpu.memory_space<vmem>>, vector<11x1xf32>
    %399 = vector.broadcast %398 : vector<11x1xf32> to vector<11x40xf32>
    %400 = arith.addf %397, %399 : vector<11x40xf32>
    %cst_111 = arith.constant 0.000000e+00 : f32
    %401 = vector.broadcast %cst_111 : f32 to vector<11x40xf32>
    %402 = arith.cmpf ogt, %400, %401 : vector<11x40xf32>
    %cst_112 = arith.constant 0.000000e+00 : f32
    %403 = vector.broadcast %cst_112 : f32 to vector<11x40xf32>
    %404 = arith.minimumf %400, %403 : vector<11x40xf32>
    %405 = math.exp %404 : vector<11x40xf32>
    %cst_113 = arith.constant 1.000000e+00 : f32
    %406 = vector.broadcast %cst_113 : f32 to vector<11x40xf32>
    %407 = arith.subf %405, %406 : vector<11x40xf32>
    %408 = arith.select %402, %400, %407 : vector<11x40xi1>, vector<11x40xf32>
    %c0_114 = arith.constant 0 : index
    %c0_115 = arith.constant 0 : index
    %c0_116 = arith.constant 0 : index
    %409 = vector.load %arg17[%c0_114, %c0_115, %c0_116] : memref<1x11x40xf32, #tpu.memory_space<vmem>>, vector<1x11x40xf32>
    %410 = vector.shape_cast %409 : vector<1x11x40xf32> to vector<11x40xf32>
    %411 = vector.shape_cast %408 : vector<11x40xf32> to vector<1x11x40xf32>
    tpu.vector_store %arg17[%c0_114, %c0_115, %c0_116], %411 {strides = array<i32>} : memref<1x11x40xf32, #tpu.memory_space<vmem>>, vector<1x11x40xf32>,
    %c0_117 = arith.constant 0 : index
    %c0_118 = arith.constant 0 : index
    %c0_119 = arith.constant 0 : index
    %412 = vector.load %arg14[%c0_117, %c0_118, %c0_119] : memref<2x11x40xf32, #tpu.memory_space<vmem>>, vector<1x11x40xf32>
    %413 = vector.shape_cast %412 : vector<1x11x40xf32> to vector<11x40xf32>
    %414 = arith.mulf %408, %413 : vector<11x40xf32>
    %cst_120 = arith.constant dense<0.000000e+00> : vector<11xf32>
    %415 = vector.multi_reduction <add>, %414, %cst_120 [1] : vector<11x40xf32> to vector<11xf32>
    %416 = vector.shape_cast %415 : vector<11xf32> to vector<11x1xf32>
    %c1_121 = arith.constant 1 : index
    %c0_122 = arith.constant 0 : index
    %c0_123 = arith.constant 0 : index
    %417 = vector.load %arg14[%c1_121, %c0_122, %c0_123] : memref<2x11x40xf32, #tpu.memory_space<vmem>>, vector<1x11x40xf32>
    %418 = vector.shape_cast %417 : vector<1x11x40xf32> to vector<11x40xf32>
    %419 = arith.mulf %408, %418 : vector<11x40xf32>
    %cst_124 = arith.constant dense<0.000000e+00> : vector<11xf32>
    %420 = vector.multi_reduction <add>, %419, %cst_124 [1] : vector<11x40xf32> to vector<11xf32>
    %421 = vector.shape_cast %420 : vector<11xf32> to vector<11x1xf32>
    %422 = tpu.concatenate %416, %421 in 1 : vector<11x1xf32>, vector<11x1xf32> -> vector<11x2xf32>
    %cst_125 = arith.constant dense<0.000000e+00> : vector<2xf32>
    %423 = vector.multi_reduction <add>, %422, %cst_125 [0] : vector<11x2xf32> to vector<2xf32>
    %424 = vector.shape_cast %423 : vector<2xf32> to vector<1x2xf32>
    %c0_126 = arith.constant 0 : index
    %c0_127 = arith.constant 0 : index
    %425 = vector.load %arg15[%c0_126, %c0_127] : memref<1x2xf32, #tpu.memory_space<vmem>>, vector<1x2xf32>
    %426 = arith.addf %424, %425 : vector<1x2xf32>
    %c0_128 = arith.constant 0 : index
    %c0_129 = arith.constant 0 : index
    %c0_130 = arith.constant 0 : index
    %427 = vector.load %arg16[%c0_128, %c0_129, %c0_130] : memref<1x1x2xf32, #tpu.memory_space<vmem>>, vector<1x1x2xf32>
    %428 = vector.shape_cast %427 : vector<1x1x2xf32> to vector<1x2xf32>
    %429 = vector.shape_cast %426 : vector<1x2xf32> to vector<1x1x2xf32>
    tpu.vector_store %arg16[%c0_128, %c0_129, %c0_130], %429 {strides = array<i32>} : memref<1x1x2xf32, #tpu.memory_space<vmem>>, vector<1x1x2xf32>,
    return
  }
  func.func @transform_0(%arg0: i32) -> (i32, i32, i32) {
    %c0_i32 = arith.constant 0 : i32
    %c0_i32_0 = arith.constant 0 : i32
    %c0_i32_1 = arith.constant 0 : i32
    return %arg0, %c0_i32, %c0_i32_0 : i32, i32, i32
  }
  func.func @transform_1(%arg0: i32) -> (i32, i32) {
    %c0_i32 = arith.constant 0 : i32
    %c0_i32_0 = arith.constant 0 : i32
    %c0_i32_1 = arith.constant 0 : i32
    return %c0_i32, %c0_i32_0 : i32, i32
  }
  func.func @transform_2(%arg0: i32) -> (i32, i32) {
    %c0_i32 = arith.constant 0 : i32
    %c0_i32_0 = arith.constant 0 : i32
    %c0_i32_1 = arith.constant 0 : i32
    return %c0_i32, %c0_i32_0 : i32, i32
  }
  func.func @transform_3(%arg0: i32) -> (i32, i32) {
    %c0_i32 = arith.constant 0 : i32
    %c0_i32_0 = arith.constant 0 : i32
    %c0_i32_1 = arith.constant 0 : i32
    return %c0_i32, %c0_i32_0 : i32, i32
  }
  func.func @transform_4(%arg0: i32) -> (i32, i32, i32) {
    %c0_i32 = arith.constant 0 : i32
    %c0_i32_0 = arith.constant 0 : i32
    %c0_i32_1 = arith.constant 0 : i32
    %c0_i32_2 = arith.constant 0 : i32
    return %c0_i32, %c0_i32_0, %c0_i32_1 : i32, i32, i32
  }
  func.func @transform_5(%arg0: i32) -> (i32, i32, i32) {
    %c0_i32 = arith.constant 0 : i32
    %c0_i32_0 = arith.constant 0 : i32
    %c0_i32_1 = arith.constant 0 : i32
    %c0_i32_2 = arith.constant 0 : i32
    return %c0_i32, %c0_i32_0, %c0_i32_1 : i32, i32, i32
  }
  func.func @transform_6(%arg0: i32) -> (i32, i32, i32) {
    %c0_i32 = arith.constant 0 : i32
    %c0_i32_0 = arith.constant 0 : i32
    %c0_i32_1 = arith.constant 0 : i32
    %c0_i32_2 = arith.constant 0 : i32
    return %c0_i32, %c0_i32_0, %c0_i32_1 : i32, i32, i32
  }
  func.func @transform_7(%arg0: i32) -> (i32, i32, i32) {
    %c0_i32 = arith.constant 0 : i32
    %c0_i32_0 = arith.constant 0 : i32
    %c0_i32_1 = arith.constant 0 : i32
    %c0_i32_2 = arith.constant 0 : i32
    return %c0_i32, %c0_i32_0, %c0_i32_1 : i32, i32, i32
  }
  func.func @transform_8(%arg0: i32) -> (i32, i32, i32) {
    %c0_i32 = arith.constant 0 : i32
    %c0_i32_0 = arith.constant 0 : i32
    %c0_i32_1 = arith.constant 0 : i32
    %c0_i32_2 = arith.constant 0 : i32
    return %c0_i32, %c0_i32_0, %c0_i32_1 : i32, i32, i32
  }
  func.func @transform_9(%arg0: i32) -> (i32, i32, i32) {
    %c0_i32 = arith.constant 0 : i32
    %c0_i32_0 = arith.constant 0 : i32
    %c0_i32_1 = arith.constant 0 : i32
    %c0_i32_2 = arith.constant 0 : i32
    return %c0_i32, %c0_i32_0, %c0_i32_1 : i32, i32, i32
  }
  func.func @transform_10(%arg0: i32) -> (i32, i32, i32) {
    %c0_i32 = arith.constant 0 : i32
    %c0_i32_0 = arith.constant 0 : i32
    %c0_i32_1 = arith.constant 0 : i32
    %c0_i32_2 = arith.constant 0 : i32
    return %c0_i32, %c0_i32_0, %c0_i32_1 : i32, i32, i32
  }
  func.func @transform_11(%arg0: i32) -> (i32, i32) {
    %c0_i32 = arith.constant 0 : i32
    %c0_i32_0 = arith.constant 0 : i32
    %c0_i32_1 = arith.constant 0 : i32
    return %c0_i32, %c0_i32_0 : i32, i32
  }
  func.func @transform_12(%arg0: i32) -> (i32, i32) {
    %c0_i32 = arith.constant 0 : i32
    %c0_i32_0 = arith.constant 0 : i32
    %c0_i32_1 = arith.constant 0 : i32
    return %c0_i32, %c0_i32_0 : i32, i32
  }
  func.func @transform_13(%arg0: i32) -> (i32, i32, i32) {
    %c0_i32 = arith.constant 0 : i32
    %c0_i32_0 = arith.constant 0 : i32
    %c0_i32_1 = arith.constant 0 : i32
    %c0_i32_2 = arith.constant 0 : i32
    return %c0_i32, %c0_i32_0, %c0_i32_1 : i32, i32, i32
  }
  func.func @transform_14(%arg0: i32) -> (i32, i32) {
    %c0_i32 = arith.constant 0 : i32
    %c0_i32_0 = arith.constant 0 : i32
    %c0_i32_1 = arith.constant 0 : i32
    return %c0_i32, %c0_i32_0 : i32, i32
  }
  func.func @transform_15(%arg0: i32) -> (i32, i32, i32) {
    %c0_i32 = arith.constant 0 : i32
    %c0_i32_0 = arith.constant 0 : i32
    %c0_i32_1 = arith.constant 0 : i32
    return %arg0, %c0_i32, %c0_i32_0 : i32, i32, i32
  }
  func.func @transform_16(%arg0: i32) -> (i32, i32, i32) {
    %c0_i32 = arith.constant 0 : i32
    %c0_i32_0 = arith.constant 0 : i32
    %c0_i32_1 = arith.constant 0 : i32
    return %arg0, %c0_i32, %c0_i32_0 : i32, i32, i32
  }
}

</mosaic_0001>

<llo_original>
// kernel: tmransnet_forward.1
$region0: #{tmransnet_forward.1}
  #allocation0 [shape = 'u32[]', space=smem, size = 0x4, offset = 0x4, fixed_abs, tag = 'smem constant byte address 0x4 - core index']
  #allocation1 [shape = 'u32[144,128]{1,0:T(1,128)}', space=vmem, size = 0x12000, scoped, tag = 'internal scratch']
  %s0 = inlined_call_operand.vmem [shape: f32[2,200,520], index: 0, kind: input, shape index: {}]
  %s1 = inlined_call_operand.vmem [shape: f32[520,40], index: 1, kind: input, shape index: {}]
  %s2 = inlined_call_operand.vmem [shape: f32[1,40], index: 2, kind: input, shape index: {}]
  %s3 = inlined_call_operand.vmem [shape: f32[11,200], index: 3, kind: input, shape index: {}]
  %s4 = inlined_call_operand.vmem [shape: f32[2,40,120], index: 4, kind: input, shape index: {}]
  %s5 = inlined_call_operand.vmem [shape: f32[2,1,120], index: 5, kind: input, shape index: {}]
  %s6 = inlined_call_operand.vmem [shape: f32[2,40,40], index: 6, kind: input, shape index: {}]
  %s7 = inlined_call_operand.vmem [shape: f32[2,40,160], index: 7, kind: input, shape index: {}]
  %s8 = inlined_call_operand.vmem [shape: f32[2,1,160], index: 8, kind: input, shape index: {}]
  %s9 = inlined_call_operand.vmem [shape: f32[2,160,40], index: 9, kind: input, shape index: {}]
  %s10 = inlined_call_operand.vmem [shape: f32[2,6,40], index: 10, kind: input, shape index: {}]
  %s11 = inlined_call_operand.vmem [shape: f32[11,22], index: 11, kind: input, shape index: {}]
  %s12 = inlined_call_operand.vmem [shape: f32[11,1], index: 12, kind: input, shape index: {}]
  %s13 = inlined_call_operand.vmem [shape: f32[2,11,40], index: 13, kind: input, shape index: {}]
  %s14 = inlined_call_operand.vmem [shape: f32[1,2], index: 14, kind: input, shape index: {}]
  %s15 = inlined_call_operand.hbm [shape: f32[2,1,2], index: 15, kind: output, shape index: {0}]
  %s16 = inlined_call_operand.vmem [shape: f32[2,11,40], index: 16, kind: output, shape index: {1}]
  %17 = xla_tuple %s15, %s16
  %s18 = sld [smem:[#allocation0]]
  $region101: #{tmransnet_forward.1} parent=0
    _
  %s20 = ssub.s32 1, %s18
  %s21 = scalar_select 0, %s20, %s18
  $region1: #{tmransnet_forward.1} parent=0
    #allocation2 [shape = 'u8[1024]{0}', space=vmem, size = 0x400, scoped, tag = 'output window, operand 0']
    #allocation3 [shape = 's32[2]{0}', space=sflag, size = 0x8, scoped, tag = 'scoped memory for tmransnet_forward.1']
    %22 = vsyncpa [#allocation3], 0
    %s23 = scalar_lea.sflag [#allocation3], 1
    %24 = vsyncpa %s23, 0
    loop: start=0, step=1, limit=4
    $region2: #{tmransnet_forward.1} parent=1 // loop_pre_header
      _
    $region3: #{tmransnet_forward.1} parent=1 // loop_header
      %s26 = sphi 0, %s30
      %p27 = scmp.ge.s32.totalorder %s26, 4
      %s36 = sphi 0, %s38
      %s39 = sphi 0, %s36
      %s40 = sphi 0, %s39
      %s56 = sphi 0, %s40
      %s60 = sphi 0, %s60
      %s62 = sphi 0, %s60
      %s63 = sphi 0, %s62
      %s77 = sphi 0, %s63
      %s81 = sphi 0, %s81
      %s83 = sphi 0, %s81
      %s84 = sphi 0, %s83
      %s98 = sphi 0, %s84
      %s102 = sphi 0, %s102
      %s104 = sphi 0, %s102
      %s105 = sphi 0, %s104
      %s119 = sphi 0, %s105
      %s123 = sphi 0, %s123
      %s125 = sphi 0, %s123
      %s126 = sphi 0, %s125
      %s140 = sphi 0, %s126
      %s144 = sphi 0, %s144
      %s146 = sphi 0, %s144
      %s147 = sphi 0, %s146
      %s161 = sphi 0, %s147
      %s165 = sphi 0, %s165
      %s167 = sphi 0, %s165
      %s168 = sphi 0, %s167
      %s182 = sphi 0, %s168
      %s186 = sphi 0, %s186
      %s188 = sphi 0, %s186
      %s189 = sphi 0, %s188
      %s203 = sphi 0, %s189
      %s207 = sphi 0, %s207
      %s209 = sphi 0, %s207
      %s210 = sphi 0, %s209
      %s224 = sphi 0, %s210
      %s228 = sphi 0, %s228
      %s230 = sphi 0, %s228
      %s231 = sphi 0, %s230
      %s245 = sphi 0, %s231
      %s249 = sphi 0, %s249
      %s251 = sphi 0, %s249
      %s252 = sphi 0, %s251
      %s266 = sphi 0, %s252
      %s270 = sphi 0, %s270
      %s272 = sphi 0, %s270
      %s273 = sphi 0, %s272
      %s287 = sphi 0, %s273
      %s291 = sphi 0, %s291
      %s293 = sphi 0, %s291
      %s294 = sphi 0, %s293
      %s308 = sphi 0, %s294
      %s312 = sphi 0, %s312
      %s314 = sphi 0, %s312
      %s315 = sphi 0, %s314
      %s329 = sphi 0, %s315
      %s333 = sphi 0, %s333
      %s335 = sphi 0, %s333
      %s336 = sphi 0, %s335
      %s350 = sphi 0, %s336
      %s356 = sphi 0, %s358
      %s359 = sphi 0, %s356
      %s360 = sphi 0, %s359
      %s376 = sphi 0, %s360
      %s382 = sphi 0, %s384
      %s385 = sphi 0, %s382
      %s386 = sphi 0, %s385
      %s402 = sphi 0, %s386
    $region4: #{tmransnet_forward.1} parent=1 // loop_header_branch
      %29 = sbr.rel (%p27) target = $region8
    $region5: #{tmransnet_forward.1} parent=1 // loop_body
      %s31 = ssub.s32 %s26, 1
      %s32 = ssub.s32 %s26, 2
      %s33 = sadd.s32 %s26, 1
      %s34 = ssub.s32 %s26, %s33
      %p35 = scmp.eq.s32.totalorder %s34, 0
      %s37 = sadd.s32 %s36, 1
      %s38 = scalar_select %p35, %s36, %s37
      %p41 = pneg %p35
      %p42 = scmp.eq.s32.totalorder %s26, 1
      %p43 = por %p41, %p42
      %p44 = scmp.ne.s32.totalorder %s36, %s39
      %p45 = scmp.eq.s32.totalorder %s26, 0
      %p46 = por %p44, %p45
      %p47 = scmp.ne.s32.totalorder %s36, %s39
      %p48 = scmp.eq.s32.totalorder %s31, 1
      %p49 = por %p47, %p48
      %p50 = scmp.ne.s32.totalorder %s39, %s40
      %p51 = scmp.eq.s32.totalorder %s31, 0
      %p52 = por %p50, %p51
      %p53 = scmp.ne.s32.totalorder %s39, %s40
      %p54 = scmp.eq.s32.totalorder %s32, 1
      %p55 = por %p53, %p54
      %p57 = scmp.ne.s32.totalorder %s40, %s56
      %p58 = scmp.eq.s32.totalorder %s32, 0
      %p59 = por %p57, %p58
      %s61 = sadd.s32 %s60, 1
      %p64 = scmp.eq.s32.totalorder %s26, 1
      %p65 = scmp.ne.s32.totalorder %s60, %s62
      %p66 = scmp.eq.s32.totalorder %s26, 0
      %p67 = por %p65, %p66
      %p68 = scmp.ne.s32.totalorder %s60, %s62
      %p69 = scmp.eq.s32.totalorder %s31, 1
      %p70 = por %p68, %p69
      %p71 = scmp.ne.s32.totalorder %s62, %s63
      %p72 = scmp.eq.s32.totalorder %s31, 0
      %p73 = por %p71, %p72
      %p74 = scmp.ne.s32.totalorder %s62, %s63
      %p75 = scmp.eq.s32.totalorder %s32, 1
      %p76 = por %p74, %p75
      %p78 = scmp.ne.s32.totalorder %s63, %s77
      %p79 = scmp.eq.s32.totalorder %s32, 0
      %p80 = por %p78, %p79
      %s82 = sadd.s32 %s81, 1
      %p85 = scmp.eq.s32.totalorder %s26, 1
      %p86 = scmp.ne.s32.totalorder %s81, %s83
      %p87 = scmp.eq.s32.totalorder %s26, 0
      %p88 = por %p86, %p87
      %p89 = scmp.ne.s32.totalorder %s81, %s83
      %p90 = scmp.eq.s32.totalorder %s31, 1
      %p91 = por %p89, %p90
      %p92 = scmp.ne.s32.totalorder %s83, %s84
      %p93 = scmp.eq.s32.totalorder %s31, 0
      %p94 = por %p92, %p93
      %p95 = scmp.ne.s32.totalorder %s83, %s84
      %p96 = scmp.eq.s32.totalorder %s32, 1
      %p97 = por %p95, %p96
      %p99 = scmp.ne.s32.totalorder %s84, %s98
      %p100 = scmp.eq.s32.totalorder %s32, 0
      %p101 = por %p99, %p100
      %s103 = sadd.s32 %s102, 1
      %p106 = scmp.eq.s32.totalorder %s26, 1
      %p107 = scmp.ne.s32.totalorder %s102, %s104
      %p108 = scmp.eq.s32.totalorder %s26, 0
      %p109 = por %p107, %p108
      %p110 = scmp.ne.s32.totalorder %s102, %s104
      %p111 = scmp.eq.s32.totalorder %s31, 1
      %p112 = por %p110, %p111
      %p113 = scmp.ne.s32.totalorder %s104, %s105
      %p114 = scmp.eq.s32.totalorder %s31, 0
      %p115 = por %p113, %p114
      %p116 = scmp.ne.s32.totalorder %s104, %s105
      %p117 = scmp.eq.s32.totalorder %s32, 1
      %p118 = por %p116, %p117
      %p120 = scmp.ne.s32.totalorder %s105, %s119
      %p121 = scmp.eq.s32.totalorder %s32, 0
      %p122 = por %p120, %p121
      %s124 = sadd.s32 %s123, 1
      %p127 = scmp.eq.s32.totalorder %s26, 1
      %p128 = scmp.ne.s32.totalorder %s123, %s125
      %p129 = scmp.eq.s32.totalorder %s26, 0
      %p130 = por %p128, %p129
      %p131 = scmp.ne.s32.totalorder %s123, %s125
      %p132 = scmp.eq.s32.totalorder %s31, 1
      %p133 = por %p131, %p132
      %p134 = scmp.ne.s32.totalorder %s125, %s126
      %p135 = scmp.eq.s32.totalorder %s31, 0
      %p136 = por %p134, %p135
      %p137 = scmp.ne.s32.totalorder %s125, %s126
      %p138 = scmp.eq.s32.totalorder %s32, 1
      %p139 = por %p137, %p138
      %p141 = scmp.ne.s32.totalorder %s126, %s140
      %p142 = scmp.eq.s32.totalorder %s32, 0
      %p143 = por %p141, %p142
      %s145 = sadd.s32 %s144, 1
      %p148 = scmp.eq.s32.totalorder %s26, 1
      %p149 = scmp.ne.s32.totalorder %s144, %s146
      %p150 = scmp.eq.s32.totalorder %s26, 0
      %p151 = por %p149, %p150
      %p152 = scmp.ne.s32.totalorder %s144, %s146
      %p153 = scmp.eq.s32.totalorder %s31, 1
      %p154 = por %p152, %p153
      %p155 = scmp.ne.s32.totalorder %s146, %s147
      %p156 = scmp.eq.s32.totalorder %s31, 0
      %p157 = por %p155, %p156
      %p158 = scmp.ne.s32.totalorder %s146, %s147
      %p159 = scmp.eq.s32.totalorder %s32, 1
      %p160 = por %p158, %p159
      %p162 = scmp.ne.s32.totalorder %s147, %s161
      %p163 = scmp.eq.s32.totalorder %s32, 0
      %p164 = por %p162, %p163
      %s166 = sadd.s32 %s165, 1
      %p169 = scmp.eq.s32.totalorder %s26, 1
      %p170 = scmp.ne.s32.totalorder %s165, %s167
      %p171 = scmp.eq.s32.totalorder %s26, 0
      %p172 = por %p170, %p171
      %p173 = scmp.ne.s32.totalorder %s165, %s167
      %p174 = scmp.eq.s32.totalorder %s31, 1
      %p175 = por %p173, %p174
      %p176 = scmp.ne.s32.totalorder %s167, %s168
      %p177 = scmp.eq.s32.totalorder %s31, 0
      %p178 = por %p176, %p177
      %p179 = scmp.ne.s32.totalorder %s167, %s168
      %p180 = scmp.eq.s32.totalorder %s32, 1
      %p181 = por %p179, %p180
      %p183 = scmp.ne.s32.totalorder %s168, %s182
      %p184 = scmp.eq.s32.totalorder %s32, 0
      %p185 = por %p183, %p184
      %s187 = sadd.s32 %s186, 1
      %p190 = scmp.eq.s32.totalorder %s26, 1
      %p191 = scmp.ne.s32.totalorder %s186, %s188
      %p192 = scmp.eq.s32.totalorder %s26, 0
      %p193 = por %p191, %p192
      %p194 = scmp.ne.s32.totalorder %s186, %s188
      %p195 = scmp.eq.s32.totalorder %s31, 1
      %p196 = por %p194, %p195
      %p197 = scmp.ne.s32.totalorder %s188, %s189
      %p198 = scmp.eq.s32.totalorder %s31, 0
      %p199 = por %p197, %p198
      %p200 = scmp.ne.s32.totalorder %s188, %s189
      %p201 = scmp.eq.s32.totalorder %s32, 1
      %p202 = por %p200, %p201
      %p204 = scmp.ne.s32.totalorder %s189, %s203
      %p205 = scmp.eq.s32.totalorder %s32, 0
      %p206 = por %p204, %p205
      %s208 = sadd.s32 %s207, 1
      %p211 = scmp.eq.s32.totalorder %s26, 1
      %p212 = scmp.ne.s32.totalorder %s207, %s209
      %p213 = scmp.eq.s32.totalorder %s26, 0
      %p214 = por %p212, %p213
      %p215 = scmp.ne.s32.totalorder %s207, %s209
      %p216 = scmp.eq.s32.totalorder %s31, 1
      %p217 = por %p215, %p216
      %p218 = scmp.ne.s32.totalorder %s209, %s210
      %p219 = scmp.eq.s32.totalorder %s31, 0
      %p220 = por %p218, %p219
      %p221 = scmp.ne.s32.totalorder %s209, %s210
      %p222 = scmp.eq.s32.totalorder %s32, 1
      %p223 = por %p221, %p222
      %p225 = scmp.ne.s32.totalorder %s210, %s224
      %p226 = scmp.eq.s32.totalorder %s32, 0
      %p227 = por %p225, %p226
      %s229 = sadd.s32 %s228, 1
      %p232 = scmp.eq.s32.totalorder %s26, 1
      %p233 = scmp.ne.s32.totalorder %s228, %s230
      %p234 = scmp.eq.s32.totalorder %s26, 0
      %p235 = por %p233, %p234
      %p236 = scmp.ne.s32.totalorder %s228, %s230
      %p237 = scmp.eq.s32.totalorder %s31, 1
      %p238 = por %p236, %p237
      %p239 = scmp.ne.s32.totalorder %s230, %s231
      %p240 = scmp.eq.s32.totalorder %s31, 0
      %p241 = por %p239, %p240
      %p242 = scmp.ne.s32.totalorder %s230, %s231
      %p243 = scmp.eq.s32.totalorder %s32, 1
      %p244 = por %p242, %p243
      %p246 = scmp.ne.s32.totalorder %s231, %s245
      %p247 = scmp.eq.s32.totalorder %s32, 0
      %p248 = por %p246, %p247
      %s250 = sadd.s32 %s249, 1
      %p253 = scmp.eq.s32.totalorder %s26, 1
      %p254 = scmp.ne.s32.totalorder %s249, %s251
      %p255 = scmp.eq.s32.totalorder %s26, 0
      %p256 = por %p254, %p255
      %p257 = scmp.ne.s32.totalorder %s249, %s251
      %p258 = scmp.eq.s32.totalorder %s31, 1
      %p259 = por %p257, %p258
      %p260 = scmp.ne.s32.totalorder %s251, %s252
      %p261 = scmp.eq.s32.totalorder %s31, 0
      %p262 = por %p260, %p261
      %p263 = scmp.ne.s32.totalorder %s251, %s252
      %p264 = scmp.eq.s32.totalorder %s32, 1
      %p265 = por %p263, %p264
      %p267 = scmp.ne.s32.totalorder %s252, %s266
      %p268 = scmp.eq.s32.totalorder %s32, 0
      %p269 = por %p267, %p268
      %s271 = sadd.s32 %s270, 1
      %p274 = scmp.eq.s32.totalorder %s26, 1
      %p275 = scmp.ne.s32.totalorder %s270, %s272
      %p276 = scmp.eq.s32.totalorder %s26, 0
      %p277 = por %p275, %p276
      %p278 = scmp.ne.s32.totalorder %s270, %s272
      %p279 = scmp.eq.s32.totalorder %s31, 1
      %p280 = por %p278, %p279
      %p281 = scmp.ne.s32.totalorder %s272, %s273
      %p282 = scmp.eq.s32.totalorder %s31, 0
      %p283 = por %p281, %p282
      %p284 = scmp.ne.s32.totalorder %s272, %s273
      %p285 = scmp.eq.s32.totalorder %s32, 1
      %p286 = por %p284, %p285
      %p288 = scmp.ne.s32.totalorder %s273, %s287
      %p289 = scmp.eq.s32.totalorder %s32, 0
      %p290 = por %p288, %p289
      %s292 = sadd.s32 %s291, 1
      %p295 = scmp.eq.s32.totalorder %s26, 1
      %p296 = scmp.ne.s32.totalorder %s291, %s293
      %p297 = scmp.eq.s32.totalorder %s26, 0
      %p298 = por %p296, %p297
      %p299 = scmp.ne.s32.totalorder %s291, %s293
      %p300 = scmp.eq.s32.totalorder %s31, 1
      %p301 = por %p299, %p300
      %p302 = scmp.ne.s32.totalorder %s293, %s294
      %p303 = scmp.eq.s32.totalorder %s31, 0
      %p304 = por %p302, %p303
      %p305 = scmp.ne.s32.totalorder %s293, %s294
      %p306 = scmp.eq.s32.totalorder %s32, 1
      %p307 = por %p305, %p306
      %p309 = scmp.ne.s32.totalorder %s294, %s308
      %p310 = scmp.eq.s32.totalorder %s32, 0
      %p311 = por %p309, %p310
      %s313 = sadd.s32 %s312, 1
      %p316 = scmp.eq.s32.totalorder %s26, 1
      %p317 = scmp.ne.s32.totalorder %s312, %s314
      %p318 = scmp.eq.s32.totalorder %s26, 0
      %p319 = por %p317, %p318
      %p320 = scmp.ne.s32.totalorder %s312, %s314
      %p321 = scmp.eq.s32.totalorder %s31, 1
      %p322 = por %p320, %p321
      %p323 = scmp.ne.s32.totalorder %s314, %s315
      %p324 = scmp.eq.s32.totalorder %s31, 0
      %p325 = por %p323, %p324
      %p326 = scmp.ne.s32.totalorder %s314, %s315
      %p327 = scmp.eq.s32.totalorder %s32, 1
      %p328 = por %p326, %p327
      %p330 = scmp.ne.s32.totalorder %s315, %s329
      %p331 = scmp.eq.s32.totalorder %s32, 0
      %p332 = por %p330, %p331
      %s334 = sadd.s32 %s333, 1
      %p337 = scmp.eq.s32.totalorder %s26, 1
      %p338 = scmp.ne.s32.totalorder %s333, %s335
      %p339 = scmp.eq.s32.totalorder %s26, 0
      %p340 = por %p338, %p339
      %p341 = scmp.ne.s32.totalorder %s333, %s335
      %p342 = scmp.eq.s32.totalorder %s31, 1
      %p343 = por %p341, %p342
      %p344 = scmp.ne.s32.totalorder %s335, %s336
      %p345 = scmp.eq.s32.totalorder %s31, 0
      %p346 = por %p344, %p345
      %p347 = scmp.ne.s32.totalorder %s335, %s336
      %p348 = scmp.eq.s32.totalorder %s32, 1
      %p349 = por %p347, %p348
      %p351 = scmp.ne.s32.totalorder %s336, %s350
      %p352 = scmp.eq.s32.totalorder %s32, 0
      %p353 = por %p351, %p352
      %s354 = ssub.s32 %s26, %s33
      %p355 = scmp.eq.s32.totalorder %s354, 0
      %s357 = sadd.s32 %s356, 1
      %s358 = scalar_select %p355, %s356, %s357
      %p361 = pneg %p355
      %p362 = scmp.eq.s32.totalorder %s26, 1
      %p363 = por %p361, %p362
      %p364 = scmp.ne.s32.totalorder %s356, %s359
      %p365 = scmp.eq.s32.totalorder %s26, 0
      %p366 = por %p364, %p365
      %p367 = scmp.ne.s32.totalorder %s356, %s359
      %p368 = scmp.eq.s32.totalorder %s31, 1
      %p369 = por %p367, %p368
      %p370 = scmp.ne.s32.totalorder %s359, %s360
      %p371 = scmp.eq.s32.totalorder %s31, 0
      %p372 = por %p370, %p371
      %p373 = scmp.ne.s32.totalorder %s359, %s360
      %p374 = scmp.eq.s32.totalorder %s32, 1
      %p375 = por %p373, %p374
      %p377 = scmp.ne.s32.totalorder %s360, %s376
      %p378 = scmp.eq.s32.totalorder %s32, 0
      %p379 = por %p377, %p378
      %s380 = ssub.s32 %s26, %s33
      %p381 = scmp.eq.s32.totalorder %s380, 0
      %s383 = sadd.s32 %s382, 1
      %s384 = scalar_select %p381, %s382, %s383
      %p387 = pneg %p381
      %p388 = scmp.eq.s32.totalorder %s26, 1
      %p389 = por %p387, %p388
      %p390 = scmp.ne.s32.totalorder %s382, %s385
      %p391 = scmp.eq.s32.totalorder %s26, 0
      %p392 = por %p390, %p391
      %p393 = scmp.ne.s32.totalorder %s382, %s385
      %p394 = scmp.eq.s32.totalorder %s31, 1
      %p395 = por %p393, %p394
      %p396 = scmp.ne.s32.totalorder %s385, %s386
      %p397 = scmp.eq.s32.totalorder %s31, 0
      %p398 = por %p396, %p397
      %p399 = scmp.ne.s32.totalorder %s385, %s386
      %p400 = scmp.eq.s32.totalorder %s32, 1
      %p401 = por %p399, %p400
      %p403 = scmp.ne.s32.totalorder %s386, %s402
      %p404 = scmp.eq.s32.totalorder %s32, 0
      %p405 = por %p403, %p404
      %p406 = scmp.le.s32.totalorder 1, %s26
      %p407 = scmp.lt.s32.totalorder %s26, 3
      %p408 = pnand %p406, %p407
      %p409 = pneg %p408
      // Predicated region
      $region9: #{tmransnet_forward.1} parent=5 // pred_check
        _
      $region10: #{tmransnet_forward.1} parent=5 // pred_check_branch
        %411 = sbr.rel (%p408) target = $region12
      $region11: #{tmransnet_forward.1} parent=5 // pred_region
        %s412 = ssub.s32 %s26, 1
        // Predicated region
        $region13: #{tmransnet_forward.1} parent=11 // pred_check
          %p413 = pneg %p73
        $region14: #{tmransnet_forward.1} parent=11 // pred_check_branch
          %415 = sbr.rel (%p413) target = $region16
        $region15: #{tmransnet_forward.1} parent=11 // pred_region
          _
        $region16: #{tmransnet_forward.1} parent=11 // pred_fallthru
          _
        // Predicated region
        $region17: #{tmransnet_forward.1} parent=11 // pred_check
          %p416 = pneg %p94
        $region18: #{tmransnet_forward.1} parent=11 // pred_check_branch
          %418 = sbr.rel (%p416) target = $region20
        $region19: #{tmransnet_forward.1} parent=11 // pred_region
          _
        $region20: #{tmransnet_forward.1} parent=11 // pred_fallthru
          _
        // Predicated region
        $region21: #{tmransnet_forward.1} parent=11 // pred_check
          %p419 = pneg %p115
        $region22: #{tmransnet_forward.1} parent=11 // pred_check_branch
          %421 = sbr.rel (%p419) target = $region24
        $region23: #{tmransnet_forward.1} parent=11 // pred_region
          _
        $region24: #{tmransnet_forward.1} parent=11 // pred_fallthru
          _
        // Predicated region
        $region25: #{tmransnet_forward.1} parent=11 // pred_check
          %p422 = pneg %p136
        $region26: #{tmransnet_forward.1} parent=11 // pred_check_branch
          %424 = sbr.rel (%p422) target = $region28
        $region27: #{tmransnet_forward.1} parent=11 // pred_region
          _
        $region28: #{tmransnet_forward.1} parent=11 // pred_fallthru
          _
        // Predicated region
        $region29: #{tmransnet_forward.1} parent=11 // pred_check
          %p425 = pneg %p157
        $region30: #{tmransnet_forward.1} parent=11 // pred_check_branch
          %427 = sbr.rel (%p425) target = $region32
        $region31: #{tmransnet_forward.1} parent=11 // pred_region
          _
        $region32: #{tmransnet_forward.1} parent=11 // pred_fallthru
          _
        // Predicated region
        $region33: #{tmransnet_forward.1} parent=11 // pred_check
          %p428 = pneg %p178
        $region34: #{tmransnet_forward.1} parent=11 // pred_check_branch
          %430 = sbr.rel (%p428) target = $region36
        $region35: #{tmransnet_forward.1} parent=11 // pred_region
          _
        $region36: #{tmransnet_forward.1} parent=11 // pred_fallthru
          _
        // Predicated region
        $region37: #{tmransnet_forward.1} parent=11 // pred_check
          %p431 = pneg %p199
        $region38: #{tmransnet_forward.1} parent=11 // pred_check_branch
          %433 = sbr.rel (%p431) target = $region40
        $region39: #{tmransnet_forward.1} parent=11 // pred_region
          _
        $region40: #{tmransnet_forward.1} parent=11 // pred_fallthru
          _
        // Predicated region
        $region41: #{tmransnet_forward.1} parent=11 // pred_check
          %p434 = pneg %p220
        $region42: #{tmransnet_forward.1} parent=11 // pred_check_branch
          %436 = sbr.rel (%p434) target = $region44
        $region43: #{tmransnet_forward.1} parent=11 // pred_region
          _
        $region44: #{tmransnet_forward.1} parent=11 // pred_fallthru
          _
        // Predicated region
        $region45: #{tmransnet_forward.1} parent=11 // pred_check
          %p437 = pneg %p241
        $region46: #{tmransnet_forward.1} parent=11 // pred_check_branch
          %439 = sbr.rel (%p437) target = $region48
        $region47: #{tmransnet_forward.1} parent=11 // pred_region
          _
        $region48: #{tmransnet_forward.1} parent=11 // pred_fallthru
          _
        // Predicated region
        $region49: #{tmransnet_forward.1} parent=11 // pred_check
          %p440 = pneg %p262
        $region50: #{tmransnet_forward.1} parent=11 // pred_check_branch
          %442 = sbr.rel (%p440) target = $region52
        $region51: #{tmransnet_forward.1} parent=11 // pred_region
          _
        $region52: #{tmransnet_forward.1} parent=11 // pred_fallthru
          _
        // Predicated region
        $region53: #{tmransnet_forward.1} parent=11 // pred_check
          %p443 = pneg %p283
        $region54: #{tmransnet_forward.1} parent=11 // pred_check_branch
          %445 = sbr.rel (%p443) target = $region56
        $region55: #{tmransnet_forward.1} parent=11 // pred_region
          _
        $region56: #{tmransnet_forward.1} parent=11 // pred_fallthru
          _
        // Predicated region
        $region57: #{tmransnet_forward.1} parent=11 // pred_check
          %p446 = pneg %p304
        $region58: #{tmransnet_forward.1} parent=11 // pred_check_branch
          %448 = sbr.rel (%p446) target = $region60
        $region59: #{tmransnet_forward.1} parent=11 // pred_region
          _
        $region60: #{tmransnet_forward.1} parent=11 // pred_fallthru
          _
        // Predicated region
        $region61: #{tmransnet_forward.1} parent=11 // pred_check
          %p449 = pneg %p325
        $region62: #{tmransnet_forward.1} parent=11 // pred_check_branch
          %451 = sbr.rel (%p449) target = $region64
        $region63: #{tmransnet_forward.1} parent=11 // pred_region
          _
        $region64: #{tmransnet_forward.1} parent=11 // pred_fallthru
          _
        // Predicated region
        $region65: #{tmransnet_forward.1} parent=11 // pred_check
          %p452 = pneg %p346
        $region66: #{tmransnet_forward.1} parent=11 // pred_check_branch
          %454 = sbr.rel (%p452) target = $region68
        $region67: #{tmransnet_forward.1} parent=11 // pred_region
          _
        $region68: #{tmransnet_forward.1} parent=11 // pred_fallthru
          _
      $region12: #{tmransnet_forward.1} parent=5 // pred_fallthru
        _
      %p455 = scmp.lt.s32.totalorder %s26, 2
      // Predicated region
      $region69: #{tmransnet_forward.1} parent=5 // pred_check
        %p456 = pneg %p455
      $region70: #{tmransnet_forward.1} parent=5 // pred_check_branch
        %458 = sbr.rel (%p456) target = $region72
      $region71: #{tmransnet_forward.1} parent=5 // pred_region
        // Predicated region
        $region73: #{tmransnet_forward.1} parent=71 // pred_check
          %p459 = pneg %p46
        $region74: #{tmransnet_forward.1} parent=71 // pred_check_branch
          %461 = sbr.rel (%p459) target = $region76
        $region75: #{tmransnet_forward.1} parent=71 // pred_region
          %p462 = scmp.lt.s32.totalorder %s26, 1
          %s463 = scalar_select %p462, %s26, 1
          %s464 = smul.addr %s463, 125
          %s465 = smul.addr %s464, 8
          %s466 = scalar_lea.vmem %s0, %s465
        $region76: #{tmransnet_forward.1} parent=71 // pred_fallthru
          _
      $region72: #{tmransnet_forward.1} parent=5 // pred_fallthru
        _
      %p467 = scmp.le.s32.totalorder 1, %s26
      %p468 = scmp.lt.s32.totalorder %s26, 3
      %p469 = pnand %p467, %p468
      %p470 = pneg %p469
      // Predicated region
      $region77: #{tmransnet_forward.1} parent=5 // pred_check
        _
      $region78: #{tmransnet_forward.1} parent=5 // pred_check_branch
        %472 = sbr.rel (%p469) target = $region80
      $region79: #{tmransnet_forward.1} parent=5 // pred_region
        %s473 = ssub.s32 %s26, 1
        %p474 = scmp.lt.s32.totalorder %s31, 1
        %s475 = scalar_select %p474, %s31, 1
        %s476 = smul.addr %s475, 125
        %s477 = smul.addr %s476, 8
        %s478 = scalar_lea.vmem %s0, %s477
        %p479 = pneg %p52
        %p480 = pneg %p49
        %p481 = pneg %p73
        %p482 = pneg %p70
        %p483 = pneg %p94
        %p484 = pneg %p91
        %p485 = pneg %p115
        %p486 = pneg %p112
        %p487 = pneg %p136
        %p488 = pneg %p133
        %p489 = pneg %p157
        %p490 = pneg %p154
        %p491 = pneg %p178
        %p492 = pneg %p175
        %p493 = pneg %p199
        %p494 = pneg %p196
        %p495 = pneg %p220
        %p496 = pneg %p217
        %p497 = pneg %p241
        %p498 = pneg %p238
        %p499 = pneg %p262
        %p500 = pneg %p259
        %p501 = pneg %p283
        %p502 = pneg %p280
        %p503 = pneg %p304
        %p504 = pneg %p301
        %p505 = pneg %p325
        %p506 = pneg %p322
        %p507 = pneg %p346
        %p508 = pneg %p343
        %p509 = pneg %p372
        %p510 = pneg %p369
        %s511 = sand.u32 %s359, 1
        %s512 = scalar_lea.sflag [#allocation3], %s511
        %s513 = sand.u32 %s359, 1
        %s514 = scalar_lea.vmem [#allocation2], %s513
        %p515 = pneg %p398
        %p516 = pneg %p395
        %p517 = scmp.lt.s32.totalorder %s31, 1
        %s518 = scalar_select %p517, %s31, 1
        %s519 = smul.addr %s518, 2
        %s520 = smul.addr %s519, 8
        %s521 = scalar_lea.vmem %s16, %s520
        %p522 = scmp.lt.s32.totalorder %s31, 1
        %s523 = scalar_select %p522, %s31, 1
        %s524 = smul.addr %s523, 125
        %s525 = smul.addr %s524, 8
        %s526 = scalar_lea.vmem %s0, %s525
        %p527 = scmp.lt.s32.totalorder %s31, 1
        %s528 = scalar_select %p527, %s31, 1
        %s529 = smul.addr %s528, 2
        %s530 = smul.addr %s529, 8
        %s531 = scalar_lea.vmem %s16, %s530
        %v532 = vld [vmem:[%s526] sm:$0xff]
        %v533 = vld [vmem:[%s526 + $0x8] sm:$0xff]
        %v534 = vld [vmem:[%s526 + $0x10] sm:$0xff]
        %v535 = vld [vmem:[%s526 + $0x18] sm:$0xff]
        %v536 = vld [vmem:[%s526 + $0x20] sm:$0xff]
        %v537 = vld [vmem:[%s526 + $0x28] sm:$0xff]
        %v538 = vld [vmem:[%s526 + $0x30] sm:$0xff]
        %v539 = vld [vmem:[%s526 + $0x38] sm:$0xff]
        %v540 = vld [vmem:[%s526 + $0x40] sm:$0xff]
        %v541 = vld [vmem:[%s526 + $0x48] sm:$0xff]
        %v542 = vld [vmem:[%s526 + $0x50] sm:$0xff]
        %v543 = vld [vmem:[%s526 + $0x58] sm:$0xff]
        %v544 = vld [vmem:[%s526 + $0x60] sm:$0xff]
        %v545 = vld [vmem:[%s526 + $0x68] sm:$0xff]
        %v546 = vld [vmem:[%s526 + $0x70] sm:$0xff]
        %v547 = vld [vmem:[%s526 + $0x78] sm:$0xff]
        %v548 = vld [vmem:[%s526 + $0x80] sm:$0xff]
        %v549 = vld [vmem:[%s526 + $0x88] sm:$0xff]
        %v550 = vld [vmem:[%s526 + $0x90] sm:$0xff]
        %v551 = vld [vmem:[%s526 + $0x98] sm:$0xff]
        %v552 = vld [vmem:[%s526 + $0xa0] sm:$0xff]
        %v553 = vld [vmem:[%s526 + $0xa8] sm:$0xff]
        %v554 = vld [vmem:[%s526 + $0xb0] sm:$0xff]
        %v555 = vld [vmem:[%s526 + $0xb8] sm:$0xff]
        %v556 = vld [vmem:[%s526 + $0xc0] sm:$0xff]
        %v557 = vld [vmem:[%s526 + $0xc8] sm:$0xff]
        %v558 = vld [vmem:[%s526 + $0xd0] sm:$0xff]
        %v559 = vld [vmem:[%s526 + $0xd8] sm:$0xff]
        %v560 = vld [vmem:[%s526 + $0xe0] sm:$0xff]
        %v561 = vld [vmem:[%s526 + $0xe8] sm:$0xff]
        %v562 = vld [vmem:[%s526 + $0xf0] sm:$0xff]
        %v563 = vld [vmem:[%s526 + $0xf8] sm:$0xff]
        %v564 = vld [vmem:[%s526 + $0x100] sm:$0xff]
        %v565 = vld [vmem:[%s526 + $0x108] sm:$0xff]
        %v566 = vld [vmem:[%s526 + $0x110] sm:$0xff]
        %v567 = vld [vmem:[%s526 + $0x118] sm:$0xff]
        %v568 = vld [vmem:[%s526 + $0x120] sm:$0xff]
        %v569 = vld [vmem:[%s526 + $0x128] sm:$0xff]
        %v570 = vld [vmem:[%s526 + $0x130] sm:$0xff]
        %v571 = vld [vmem:[%s526 + $0x138] sm:$0xff]
        %v572 = vld [vmem:[%s526 + $0x140] sm:$0xff]
        %v573 = vld [vmem:[%s526 + $0x148] sm:$0xff]
        %v574 = vld [vmem:[%s526 + $0x150] sm:$0xff]
        %v575 = vld [vmem:[%s526 + $0x158] sm:$0xff]
        %v576 = vld [vmem:[%s526 + $0x160] sm:$0xff]
        %v577 = vld [vmem:[%s526 + $0x168] sm:$0xff]
        %v578 = vld [vmem:[%s526 + $0x170] sm:$0xff]
        %v579 = vld [vmem:[%s526 + $0x178] sm:$0xff]
        %v580 = vld [vmem:[%s526 + $0x180] sm:$0xff]
        %v581 = vld [vmem:[%s526 + $0x188] sm:$0xff]
        %v582 = vld [vmem:[%s526 + $0x190] sm:$0xff]
        %v583 = vld [vmem:[%s526 + $0x198] sm:$0xff]
        %v584 = vld [vmem:[%s526 + $0x1a0] sm:$0xff]
        %v585 = vld [vmem:[%s526 + $0x1a8] sm:$0xff]
        %v586 = vld [vmem:[%s526 + $0x1b0] sm:$0xff]
        %v587 = vld [vmem:[%s526 + $0x1b8] sm:$0xff]
        %v588 = vld [vmem:[%s526 + $0x1c0] sm:$0xff]
        %v589 = vld [vmem:[%s526 + $0x1c8] sm:$0xff]
        %v590 = vld [vmem:[%s526 + $0x1d0] sm:$0xff]
        %v591 = vld [vmem:[%s526 + $0x1d8] sm:$0xff]
        %v592 = vld [vmem:[%s526 + $0x1e0] sm:$0xff]
        %v593 = vld [vmem:[%s526 + $0x1e8] sm:$0xff]
        %v594 = vld [vmem:[%s526 + $0x1f0] sm:$0xff]
        %v595 = vld [vmem:[%s526 + $0x1f8] sm:$0xff]
        %v596 = vld [vmem:[%s526 + $0x200] sm:$0xff]
        %v597 = vld [vmem:[%s526 + $0x208] sm:$0xff]
        %v598 = vld [vmem:[%s526 + $0x210] sm:$0xff]
        %v599 = vld [vmem:[%s526 + $0x218] sm:$0xff]
        %v600 = vld [vmem:[%s526 + $0x220] sm:$0xff]
        %v601 = vld [vmem:[%s526 + $0x228] sm:$0xff]
        %v602 = vld [vmem:[%s526 + $0x230] sm:$0xff]
        %v603 = vld [vmem:[%s526 + $0x238] sm:$0xff]
        %v604 = vld [vmem:[%s526 + $0x240] sm:$0xff]
        %v605 = vld [vmem:[%s526 + $0x248] sm:$0xff]
        %v606 = vld [vmem:[%s526 + $0x250] sm:$0xff]
        %v607 = vld [vmem:[%s526 + $0x258] sm:$0xff]
        %v608 = vld [vmem:[%s526 + $0x260] sm:$0xff]
        %v609 = vld [vmem:[%s526 + $0x268] sm:$0xff]
        %v610 = vld [vmem:[%s526 + $0x270] sm:$0xff]
        %v611 = vld [vmem:[%s526 + $0x278] sm:$0xff]
        %v612 = vld [vmem:[%s526 + $0x280] sm:$0xff]
        %v613 = vld [vmem:[%s526 + $0x288] sm:$0xff]
        %v614 = vld [vmem:[%s526 + $0x290] sm:$0xff]
        %v615 = vld [vmem:[%s526 + $0x298] sm:$0xff]
        %v616 = vld [vmem:[%s526 + $0x2a0] sm:$0xff]
        %v617 = vld [vmem:[%s526 + $0x2a8] sm:$0xff]
        %v618 = vld [vmem:[%s526 + $0x2b0] sm:$0xff]
        %v619 = vld [vmem:[%s526 + $0x2b8] sm:$0xff]
        %v620 = vld [vmem:[%s526 + $0x2c0] sm:$0xff]
        %v621 = vld [vmem:[%s526 + $0x2c8] sm:$0xff]
        %v622 = vld [vmem:[%s526 + $0x2d0] sm:$0xff]
        %v623 = vld [vmem:[%s526 + $0x2d8] sm:$0xff]
        %v624 = vld [vmem:[%s526 + $0x2e0] sm:$0xff]
        %v625 = vld [vmem:[%s526 + $0x2e8] sm:$0xff]
        %v626 = vld [vmem:[%s526 + $0x2f0] sm:$0xff]
        %v627 = vld [vmem:[%s526 + $0x2f8] sm:$0xff]
        %v628 = vld [vmem:[%s526 + $0x300] sm:$0xff]
        %v629 = vld [vmem:[%s526 + $0x308] sm:$0xff]
        %v630 = vld [vmem:[%s526 + $0x310] sm:$0xff]
        %v631 = vld [vmem:[%s526 + $0x318] sm:$0xff]
        %v632 = vld [vmem:[%s526 + $0x320] sm:$0xff]
        %v633 = vld [vmem:[%s526 + $0x328] sm:$0xff]
        %v634 = vld [vmem:[%s526 + $0x330] sm:$0xff]
        %v635 = vld [vmem:[%s526 + $0x338] sm:$0xff]
        %v636 = vld [vmem:[%s526 + $0x340] sm:$0xff]
        %v637 = vld [vmem:[%s526 + $0x348] sm:$0xff]
        %v638 = vld [vmem:[%s526 + $0x350] sm:$0xff]
        %v639 = vld [vmem:[%s526 + $0x358] sm:$0xff]
        %v640 = vld [vmem:[%s526 + $0x360] sm:$0xff]
        %v641 = vld [vmem:[%s526 + $0x368] sm:$0xff]
        %v642 = vld [vmem:[%s526 + $0x370] sm:$0xff]
        %v643 = vld [vmem:[%s526 + $0x378] sm:$0xff]
        %v644 = vld [vmem:[%s526 + $0x380] sm:$0xff]
        %v645 = vld [vmem:[%s526 + $0x388] sm:$0xff]
        %v646 = vld [vmem:[%s526 + $0x390] sm:$0xff]
        %v647 = vld [vmem:[%s526 + $0x398] sm:$0xff]
        %v648 = vld [vmem:[%s526 + $0x3a0] sm:$0xff]
        %v649 = vld [vmem:[%s526 + $0x3a8] sm:$0xff]
        %v650 = vld [vmem:[%s526 + $0x3b0] sm:$0xff]
        %v651 = vld [vmem:[%s526 + $0x3b8] sm:$0xff]
        %v652 = vld [vmem:[%s526 + $0x3c0] sm:$0xff]
        %v653 = vld [vmem:[%s526 + $0x3c8] sm:$0xff]
        %v654 = vld [vmem:[%s526 + $0x3d0] sm:$0xff]
        %v655 = vld [vmem:[%s526 + $0x3d8] sm:$0xff]
        %v656 = vld [vmem:[%s526 + $0x3e0] sm:$0xff]
        %v657 = vld [vmem:[%s1] sm:$0xff]
        %v658 = vld [vmem:[%s1 + $0x8] sm:$0xff]
        %v659 = vld [vmem:[%s1 + $0x10] sm:$0xff]
        %v660 = vld [vmem:[%s1 + $0x18] sm:$0xff]
        %v661 = vld [vmem:[%s1 + $0x20] sm:$0xff]
        %v662 = vld [vmem:[%s1 + $0x28] sm:$0xff]
        %v663 = vld [vmem:[%s1 + $0x30] sm:$0xff]
        %v664 = vld [vmem:[%s1 + $0x38] sm:$0xff]
        %v665 = vld [vmem:[%s1 + $0x40] sm:$0xff]
        %v666 = vld [vmem:[%s1 + $0x48] sm:$0xff]
        %v667 = vld [vmem:[%s1 + $0x50] sm:$0xff]
        %v668 = vld [vmem:[%s1 + $0x58] sm:$0xff]
        %v669 = vld [vmem:[%s1 + $0x60] sm:$0xff]
        %v670 = vld [vmem:[%s1 + $0x68] sm:$0xff]
        %v671 = vld [vmem:[%s1 + $0x70] sm:$0xff]
        %v672 = vld [vmem:[%s1 + $0x78] sm:$0xff]
        %v673 = vld [vmem:[%s1 + $0x80] sm:$0xff]
        %v674 = vld [vmem:[%s1 + $0x88] sm:$0xff]
        %v675 = vld [vmem:[%s1 + $0x90] sm:$0xff]
        %v676 = vld [vmem:[%s1 + $0x98] sm:$0xff]
        %v677 = vld [vmem:[%s1 + $0xa0] sm:$0xff]
        %v678 = vld [vmem:[%s1 + $0xa8] sm:$0xff]
        %v679 = vld [vmem:[%s1 + $0xb0] sm:$0xff]
        %v680 = vld [vmem:[%s1 + $0xb8] sm:$0xff]
        %v681 = vld [vmem:[%s1 + $0xc0] sm:$0xff]
        %v682 = vld [vmem:[%s1 + $0xc8] sm:$0xff]
        %v683 = vld [vmem:[%s1 + $0xd0] sm:$0xff]
        %v684 = vld [vmem:[%s1 + $0xd8] sm:$0xff]
        %v685 = vld [vmem:[%s1 + $0xe0] sm:$0xff]
        %v686 = vld [vmem:[%s1 + $0xe8] sm:$0xff]
        %v687 = vld [vmem:[%s1 + $0xf0] sm:$0xff]
        %v688 = vld [vmem:[%s1 + $0xf8] sm:$0xff]
        %v689 = vld [vmem:[%s1 + $0x100] sm:$0xff]
        %v690 = vld [vmem:[%s1 + $0x108] sm:$0xff]
        %v691 = vld [vmem:[%s1 + $0x110] sm:$0xff]
        %v692 = vld [vmem:[%s1 + $0x118] sm:$0xff]
        %v693 = vld [vmem:[%s1 + $0x120] sm:$0xff]
        %v694 = vld [vmem:[%s1 + $0x128] sm:$0xff]
        %v695 = vld [vmem:[%s1 + $0x130] sm:$0xff]
        %v696 = vld [vmem:[%s1 + $0x138] sm:$0xff]
        %v697 = vld [vmem:[%s1 + $0x140] sm:$0xff]
        %v698 = vld [vmem:[%s1 + $0x148] sm:$0xff]
        %v699 = vld [vmem:[%s1 + $0x150] sm:$0xff]
        %v700 = vld [vmem:[%s1 + $0x158] sm:$0xff]
        %v701 = vld [vmem:[%s1 + $0x160] sm:$0xff]
        %v702 = vld [vmem:[%s1 + $0x168] sm:$0xff]
        %v703 = vld [vmem:[%s1 + $0x170] sm:$0xff]
        %v704 = vld [vmem:[%s1 + $0x178] sm:$0xff]
        %v705 = vld [vmem:[%s1 + $0x180] sm:$0xff]
        %v706 = vld [vmem:[%s1 + $0x188] sm:$0xff]
        %v707 = vld [vmem:[%s1 + $0x190] sm:$0xff]
        %v708 = vld [vmem:[%s1 + $0x198] sm:$0xff]
        %v709 = vld [vmem:[%s1 + $0x1a0] sm:$0xff]
        %v710 = vld [vmem:[%s1 + $0x1a8] sm:$0xff]
        %v711 = vld [vmem:[%s1 + $0x1b0] sm:$0xff]
        %v712 = vld [vmem:[%s1 + $0x1b8] sm:$0xff]
        %v713 = vld [vmem:[%s1 + $0x1c0] sm:$0xff]
        %v714 = vld [vmem:[%s1 + $0x1c8] sm:$0xff]
        %v715 = vld [vmem:[%s1 + $0x1d0] sm:$0xff]
        %v716 = vld [vmem:[%s1 + $0x1d8] sm:$0xff]
        %v717 = vld [vmem:[%s1 + $0x1e0] sm:$0xff]
        %v718 = vld [vmem:[%s1 + $0x1e8] sm:$0xff]
        %v719 = vld [vmem:[%s1 + $0x1f0] sm:$0xff]
        %v720 = vld [vmem:[%s1 + $0x1f8] sm:$0xff]
        %v721 = vld [vmem:[%s1 + $0x200] sm:$0xff]
        %v722 = vld [vmem:[%s2] sm:$0x1]
        %v724 = vlaneseq
        %v725 = vshrl.u32 %v724, 7
        %v726 = vsub.s32 0, %v725
        %v727 = vrot.slane %v722, %v726
        %vm729 = vcmask 64512
        %v731 = vsel %vm729, %v536, 0
        %v734 = vsel %vm729, %v541, 0
        %v737 = vsel %vm729, %v546, 0
        %v740 = vsel %vm729, %v551, 0
        %v743 = vsel %vm729, %v556, 0
        %v746 = vsel %vm729, %v561, 0
        %v749 = vsel %vm729, %v566, 0
        %v752 = vsel %vm729, %v571, 0
        %v755 = vsel %vm729, %v576, 0
        %v758 = vsel %vm729, %v581, 0
        %v761 = vsel %vm729, %v586, 0
        %v764 = vsel %vm729, %v591, 0
        %v767 = vsel %vm729, %v596, 0
        %v770 = vsel %vm729, %v601, 0
        %v773 = vsel %vm729, %v606, 0
        %v776 = vsel %vm729, %v611, 0
        %v779 = vsel %vm729, %v616, 0
        %v782 = vsel %vm729, %v621, 0
        %v785 = vsel %vm729, %v626, 0
        %v788 = vsel %vm729, %v631, 0
        %v791 = vsel %vm729, %v636, 0
        %v794 = vsel %vm729, %v641, 0
        %v797 = vsel %vm729, %v646, 0
        %v800 = vsel %vm729, %v651, 0
        %v803 = vsel %vm729, %v656, 0
        %805 = vmatprep.subr.mxu0 0.0
        %806 = vmatpush1.msra.mxu0 %v657
        %807 = vmatprep.subr.mxu0 0.0
        %808 = vmatpush1.msra.mxu0 %v658
        %809 = vmatprep.subr.mxu0 0.0
        %810 = vmatpush1.msra.mxu0 %v659
        %811 = vmatprep.subr.mxu0 0.0
        %812 = vmatpush1.msra.mxu0 %v660
        %813 = vmatprep.subr.mxu0 0.0
        %814 = vmatpush1.msra.mxu0 %v661
        %815 = vmatprep.subr.mxu0 0.0
        %816 = vmatpush1.msra.mxu0 %v662
        %817 = vmatprep.subr.mxu0 0.0
        %818 = vmatpush1.msra.mxu0 %v663
        %819 = vmatprep.subr.mxu0 0.0
        %820 = vmatpush1.msra.mxu0 %v664
        %821 = vmatprep.subr.mxu0 0.0
        %822 = vmatpush1.msra.mxu0 %v665
        %823 = vmatprep.subr.mxu0 0.0
        %824 = vmatpush1.msra.mxu0 %v666
        %825 = vmatprep.subr.mxu0 0.0
        %826 = vmatpush1.msra.mxu0 %v667
        %827 = vmatprep.subr.mxu0 0.0
        %828 = vmatpush1.msra.mxu0 %v668
        %829 = vmatprep.subr.mxu0 0.0
        %830 = vmatpush1.msra.mxu0 %v669
        %831 = vmatprep.subr.mxu0 0.0
        %832 = vmatpush1.msra.mxu0 %v670
        %833 = vmatprep.subr.mxu0 0.0
        %834 = vmatpush1.msra.mxu0 %v671
        %835 = vmatprep.subr.mxu0 0.0
        %836 = vmatpush1.msra.mxu0 %v672
        %837 = vmatprep.subr.mxu0 0.0
        %838 = vmatpush1.msra.mxu0 %v673
        %839 = vmatprep.subr.mxu0 0.0
        %840 = vmatpush1.msra.mxu0 %v674
        %841 = vmatprep.subr.mxu0 0.0
        %842 = vmatpush1.msra.mxu0 %v675
        %843 = vmatprep.subr.mxu0 0.0
        %844 = vmatpush1.msra.mxu0 %v676
        %845 = vmatprep.subr.mxu0 0.0
        %846 = vmatpush1.msra.mxu0 %v677
        %847 = vmatprep.subr.mxu0 0.0
        %848 = vmatpush1.msra.mxu0 %v678
        %849 = vmatprep.subr.mxu0 0.0
        %850 = vmatpush1.msra.mxu0 %v679
        %851 = vmatprep.subr.mxu0 0.0
        %852 = vmatpush1.msra.mxu0 %v680
        %853 = vmatprep.subr.mxu0 0.0
        %854 = vmatpush1.msra.mxu0 %v681
        %855 = vmatprep.subr.mxu0 0.0
        %856 = vmatpush1.msra.mxu0 %v682
        %857 = vmatprep.subr.mxu0 0.0
        %858 = vmatpush1.msra.mxu0 %v683
        %859 = vmatprep.subr.mxu0 0.0
        %860 = vmatpush1.msra.mxu0 %v684
        %861 = vmatprep.subr.mxu0 0.0
        %862 = vmatpush1.msra.mxu0 %v685
        %863 = vmatprep.subr.mxu0 0.0
        %864 = vmatpush1.msra.mxu0 %v686
        %865 = vmatprep.subr.mxu0 0.0
        %866 = vmatpush1.msra.mxu0 %v687
        %867 = vmatprep.subr.mxu0 0.0
        %868 = vmatpush1.msra.mxu0 %v688
        %869 = vmatprep.mubr.f32.mxu0 %v533
        %870 = vmatmul.mubr.f32.gmra.mrb[0].mxu0 %v532
        %v871 = vpop.f32.mrb[0].mxu0
        %v872 = vadd.f32 %v727, %v871
        %v873 = vpop.f32.mrb[0].mxu0
        %874 = vmatprep.mubr.f32.mxu0 %v538
        %875 = vmatmul.mubr.f32.gmra.mrb[0].mxu0 %v537
        %v876 = vpop.f32.mrb[0].mxu0
        %v877 = vadd.f32 %v727, %v876
        %v878 = vpop.f32.mrb[0].mxu0
        %879 = vmatprep.mubr.f32.mxu0 %v543
        %880 = vmatmul.mubr.f32.gmra.mrb[0].mxu0 %v542
        %v881 = vpop.f32.mrb[0].mxu0
        %v882 = vadd.f32 %v727, %v881
        %v883 = vpop.f32.mrb[0].mxu0
        %884 = vmatprep.mubr.f32.mxu0 %v548
        %885 = vmatmul.mubr.f32.gmra.mrb[0].mxu0 %v547
        %v886 = vpop.f32.mrb[0].mxu0
        %v887 = vadd.f32 %v727, %v886
        %v888 = vpop.f32.mrb[0].mxu0
        %889 = vmatprep.mubr.f32.mxu0 %v553
        %890 = vmatmul.mubr.f32.gmra.mrb[0].mxu0 %v552
        %v891 = vpop.f32.mrb[0].mxu0
        %v892 = vadd.f32 %v727, %v891
        %v893 = vpop.f32.mrb[0].mxu0
        %894 = vmatprep.mubr.f32.mxu0 %v558
        %895 = vmatmul.mubr.f32.gmra.mrb[0].mxu0 %v557
        %v896 = vpop.f32.mrb[0].mxu0
        %v897 = vadd.f32 %v727, %v896
        %v898 = vpop.f32.mrb[0].mxu0
        %899 = vmatprep.mubr.f32.mxu0 %v563
        %900 = vmatmul.mubr.f32.gmra.mrb[0].mxu0 %v562
        %v901 = vpop.f32.mrb[0].mxu0
        %v902 = vadd.f32 %v727, %v901
        %v903 = vpop.f32.mrb[0].mxu0
        %904 = vmatprep.mubr.f32.mxu0 %v568
        %905 = vmatmul.mubr.f32.gmra.mrb[0].mxu0 %v567
        %v906 = vpop.f32.mrb[0].mxu0
        %v907 = vadd.f32 %v727, %v906
        %v908 = vpop.f32.mrb[0].mxu0
        %909 = vmatprep.mubr.f32.mxu0 %v573
        %910 = vmatmul.mubr.f32.gmra.mrb[0].mxu0 %v572
        %v911 = vpop.f32.mrb[0].mxu0
        %v912 = vadd.f32 %v727, %v911
        %v913 = vpop.f32.mrb[0].mxu0
        %914 = vmatprep.mubr.f32.mxu0 %v578
        %915 = vmatmul.mubr.f32.gmra.mrb[0].mxu0 %v577
        %v916 = vpop.f32.mrb[0].mxu0
        %v917 = vadd.f32 %v727, %v916
        %v918 = vpop.f32.mrb[0].mxu0
        %919 = vmatprep.mubr.f32.mxu0 %v583
        %920 = vmatmul.mubr.f32.gmra.mrb[0].mxu0 %v582
        %v921 = vpop.f32.mrb[0].mxu0
        %v922 = vadd.f32 %v727, %v921
        %v923 = vpop.f32.mrb[0].mxu0
        %924 = vmatprep.mubr.f32.mxu0 %v588
        %925 = vmatmul.mubr.f32.gmra.mrb[0].mxu0 %v587
        %v926 = vpop.f32.mrb[0].mxu0
        %v927 = vadd.f32 %v727, %v926
        %v928 = vpop.f32.mrb[0].mxu0
        %929 = vmatprep.mubr.f32.mxu0 %v593
        %930 = vmatmul.mubr.f32.gmra.mrb[0].mxu0 %v592
        %v931 = vpop.f32.mrb[0].mxu0
        %v932 = vadd.f32 %v727, %v931
        %v933 = vpop.f32.mrb[0].mxu0
        %934 = vmatprep.mubr.f32.mxu0 %v598
        %935 = vmatmul.mubr.f32.gmra.mrb[0].mxu0 %v597
        %v936 = vpop.f32.mrb[0].mxu0
        %v937 = vadd.f32 %v727, %v936
        %v938 = vpop.f32.mrb[0].mxu0
        %939 = vmatprep.mubr.f32.mxu0 %v603
        %940 = vmatmul.mubr.f32.gmra.mrb[0].mxu0 %v602
        %v941 = vpop.f32.mrb[0].mxu0
        %v942 = vadd.f32 %v727, %v941
        %v943 = vpop.f32.mrb[0].mxu0
        %944 = vmatprep.mubr.f32.mxu0 %v608
        %945 = vmatmul.mubr.f32.gmra.mrb[0].mxu0 %v607
        %v946 = vpop.f32.mrb[0].mxu0
        %v947 = vadd.f32 %v727, %v946
        %v948 = vpop.f32.mrb[0].mxu0
        %949 = vmatprep.mubr.f32.mxu0 %v613
        %950 = vmatmul.mubr.f32.gmra.mrb[0].mxu0 %v612
        %v951 = vpop.f32.mrb[0].mxu0
        %v952 = vadd.f32 %v727, %v951
        %v953 = vpop.f32.mrb[0].mxu0
        %954 = vmatprep.mubr.f32.mxu0 %v618
        %955 = vmatmul.mubr.f32.gmra.mrb[0].mxu0 %v617
        %v956 = vpop.f32.mrb[0].mxu0
        %v957 = vadd.f32 %v727, %v956
        %v958 = vpop.f32.mrb[0].mxu0
        %959 = vmatprep.mubr.f32.mxu0 %v623
        %960 = vmatmul.mubr.f32.gmra.mrb[0].mxu0 %v622
        %v961 = vpop.f32.mrb[0].mxu0
        %v962 = vadd.f32 %v727, %v961
        %v963 = vpop.f32.mrb[0].mxu0
        %964 = vmatprep.mubr.f32.mxu0 %v628
        %965 = vmatmul.mubr.f32.gmra.mrb[0].mxu0 %v627
        %v966 = vpop.f32.mrb[0].mxu0
        %v967 = vadd.f32 %v727, %v966
        %v968 = vpop.f32.mrb[0].mxu0
        %969 = vmatprep.mubr.f32.mxu0 %v633
        %970 = vmatmul.mubr.f32.gmra.mrb[0].mxu0 %v632
        %v971 = vpop.f32.mrb[0].mxu0
        %v972 = vadd.f32 %v727, %v971
        %v973 = vpop.f32.mrb[0].mxu0
        %974 = vmatprep.mubr.f32.mxu0 %v638
        %975 = vmatmul.mubr.f32.gmra.mrb[0].mxu0 %v637
        %v976 = vpop.f32.mrb[0].mxu0
        %v977 = vadd.f32 %v727, %v976
        %v978 = vpop.f32.mrb[0].mxu0
        %979 = vmatprep.mubr.f32.mxu0 %v643
        %980 = vmatmul.mubr.f32.gmra.mrb[0].mxu0 %v642
        %v981 = vpop.f32.mrb[0].mxu0
        %v982 = vadd.f32 %v727, %v981
        %v983 = vpop.f32.mrb[0].mxu0
        %984 = vmatprep.mubr.f32.mxu0 %v648
        %985 = vmatmul.mubr.f32.gmra.mrb[0].mxu0 %v647
        %v986 = vpop.f32.mrb[0].mxu0
        %v987 = vadd.f32 %v727, %v986
        %v988 = vpop.f32.mrb[0].mxu0
        %989 = vmatprep.mubr.f32.mxu0 %v653
        %990 = vmatmul.mubr.f32.gmra.mrb[0].mxu0 %v652
        %v991 = vpop.f32.mrb[0].mxu0
        %v992 = vadd.f32 %v727, %v991
        %v993 = vpop.f32.mrb[0].mxu0
        %994 = vdwg.mxu0
        %995 = vmatprep.subr.mxu0 0.0
        %996 = vmatpush1.msra.mxu0 %v689
        %997 = vmatprep.subr.mxu0 0.0
        %998 = vmatpush1.msra.mxu0 %v690
        %999 = vmatprep.subr.mxu0 0.0
        %1000 = vmatpush1.msra.mxu0 %v691
        %1001 = vmatprep.subr.mxu0 0.0
        %1002 = vmatpush1.msra.mxu0 %v692
        %1003 = vmatprep.subr.mxu0 0.0
        %1004 = vmatpush1.msra.mxu0 %v693
        %1005 = vmatprep.subr.mxu0 0.0
        %1006 = vmatpush1.msra.mxu0 %v694
        %1007 = vmatprep.subr.mxu0 0.0
        %1008 = vmatpush1.msra.mxu0 %v695
        %1009 = vmatprep.subr.mxu0 0.0
        %1010 = vmatpush1.msra.mxu0 %v696
        %1011 = vmatprep.subr.mxu0 0.0
        %1012 = vmatpush1.msra.mxu0 %v697
        %1013 = vmatprep.subr.mxu0 0.0
        %1014 = vmatpush1.msra.mxu0 %v698
        %1015 = vmatprep.subr.mxu0 0.0
        %1016 = vmatpush1.msra.mxu0 %v699
        %1017 = vmatprep.subr.mxu0 0.0
        %1018 = vmatpush1.msra.mxu0 %v700
        %1019 = vmatprep.subr.mxu0 0.0
        %1020 = vmatpush1.msra.mxu0 %v701
        %1021 = vmatprep.subr.mxu0 0.0
        %1022 = vmatpush1.msra.mxu0 %v702
        %1023 = vmatprep.subr.mxu0 0.0
        %1024 = vmatpush1.msra.mxu0 %v703
        %1025 = vmatprep.subr.mxu0 0.0
        %1026 = vmatpush1.msra.mxu0 %v704
        %1027 = vmatprep.subr.mxu0 0.0
        %1028 = vmatpush1.msra.mxu0 %v705
        %1029 = vmatprep.subr.mxu0 0.0
        %1030 = vmatpush1.msra.mxu0 %v706
        %1031 = vmatprep.subr.mxu0 0.0
        %1032 = vmatpush1.msra.mxu0 %v707
        %1033 = vmatprep.subr.mxu0 0.0
        %1034 = vmatpush1.msra.mxu0 %v708
        %1035 = vmatprep.subr.mxu0 0.0
        %1036 = vmatpush1.msra.mxu0 %v709
        %1037 = vmatprep.subr.mxu0 0.0
        %1038 = vmatpush1.msra.mxu0 %v710
        %1039 = vmatprep.subr.mxu0 0.0
        %1040 = vmatpush1.msra.mxu0 %v711
        %1041 = vmatprep.subr.mxu0 0.0
        %1042 = vmatpush1.msra.mxu0 %v712
        %1043 = vmatprep.subr.mxu0 0.0
        %1044 = vmatpush1.msra.mxu0 %v713
        %1045 = vmatprep.subr.mxu0 0.0
        %1046 = vmatpush1.msra.mxu0 %v714
        %1047 = vmatprep.subr.mxu0 0.0
        %1048 = vmatpush1.msra.mxu0 %v715
        %1049 = vmatprep.subr.mxu0 0.0
        %1050 = vmatpush1.msra.mxu0 %v716
        %1051 = vmatprep.subr.mxu0 0.0
        %1052 = vmatpush1.msra.mxu0 %v717
        %1053 = vmatprep.subr.mxu0 0.0
        %1054 = vmatpush1.msra.mxu0 %v718
        %1055 = vmatprep.subr.mxu0 0.0
        %1056 = vmatpush1.msra.mxu0 %v719
        %1057 = vmatprep.subr.mxu0 0.0
        %1058 = vmatpush1.msra.mxu0 %v720
        %1059 = vmatprep.mubr.f32.mxu0 %v535
        %1060 = vmatmul.mubr.f32.gmra.mrb[0].mxu0 %v534
        %v1061 = vpop.f32.mrb[0].mxu0
        %v1062 = vadd.f32 %v872, %v1061
        %v1063 = vpop.f32.mrb[0].mxu0
        %1064 = vmatprep.mubr.f32.mxu0 %v540
        %1065 = vmatmul.mubr.f32.gmra.mrb[0].mxu0 %v539
        %v1066 = vpop.f32.mrb[0].mxu0
        %v1067 = vadd.f32 %v877, %v1066
        %v1068 = vpop.f32.mrb[0].mxu0
        %1069 = vmatprep.mubr.f32.mxu0 %v545
        %1070 = vmatmul.mubr.f32.gmra.mrb[0].mxu0 %v544
        %v1071 = vpop.f32.mrb[0].mxu0
        %v1072 = vadd.f32 %v882, %v1071
        %v1073 = vpop.f32.mrb[0].mxu0
        %1074 = vmatprep.mubr.f32.mxu0 %v550
        %1075 = vmatmul.mubr.f32.gmra.mrb[0].mxu0 %v549
        %v1076 = vpop.f32.mrb[0].mxu0
        %v1077 = vadd.f32 %v887, %v1076
        %v1078 = vpop.f32.mrb[0].mxu0
        %1079 = vmatprep.mubr.f32.mxu0 %v555
        %1080 = vmatmul.mubr.f32.gmra.mrb[0].mxu0 %v554
        %v1081 = vpop.f32.mrb[0].mxu0
        %v1082 = vadd.f32 %v892, %v1081
        %v1083 = vpop.f32.mrb[0].mxu0
        %1084 = vmatprep.mubr.f32.mxu0 %v560
        %1085 = vmatmul.mubr.f32.gmra.mrb[0].mxu0 %v559
        %v1086 = vpop.f32.mrb[0].mxu0
        %v1087 = vadd.f32 %v897, %v1086
        %v1088 = vpop.f32.mrb[0].mxu0
        %1089 = vmatprep.mubr.f32.mxu0 %v565
        %1090 = vmatmul.mubr.f32.gmra.mrb[0].mxu0 %v564
        %v1091 = vpop.f32.mrb[0].mxu0
        %v1092 = vadd.f32 %v902, %v1091
        %v1093 = vpop.f32.mrb[0].mxu0
        %1094 = vmatprep.mubr.f32.mxu0 %v570
        %1095 = vmatmul.mubr.f32.gmra.mrb[0].mxu0 %v569
        %v1096 = vpop.f32.mrb[0].mxu0
        %v1097 = vadd.f32 %v907, %v1096
        %v1098 = vpop.f32.mrb[0].mxu0
        %1099 = vmatprep.mubr.f32.mxu0 %v575
        %1100 = vmatmul.mubr.f32.gmra.mrb[0].mxu0 %v574
        %v1101 = vpop.f32.mrb[0].mxu0
        %v1102 = vadd.f32 %v912, %v1101
        %v1103 = vpop.f32.mrb[0].mxu0
        %1104 = vmatprep.mubr.f32.mxu0 %v580
        %1105 = vmatmul.mubr.f32.gmra.mrb[0].mxu0 %v579
        %v1106 = vpop.f32.mrb[0].mxu0
        %v1107 = vadd.f32 %v917, %v1106
        %v1108 = vpop.f32.mrb[0].mxu0
        %1109 = vmatprep.mubr.f32.mxu0 %v585
        %1110 = vmatmul.mubr.f32.gmra.mrb[0].mxu0 %v584
        %v1111 = vpop.f32.mrb[0].mxu0
        %v1112 = vadd.f32 %v922, %v1111
        %v1113 = vpop.f32.mrb[0].mxu0
        %1114 = vmatprep.mubr.f32.mxu0 %v590
        %1115 = vmatmul.mubr.f32.gmra.mrb[0].mxu0 %v589
        %v1116 = vpop.f32.mrb[0].mxu0
        %v1117 = vadd.f32 %v927, %v1116
        %v1118 = vpop.f32.mrb[0].mxu0
        %1119 = vmatprep.mubr.f32.mxu0 %v595
        %1120 = vmatmul.mubr.f32.gmra.mrb[0].mxu0 %v594
        %v1121 = vpop.f32.mrb[0].mxu0
        %v1122 = vadd.f32 %v932, %v1121
        %v1123 = vpop.f32.mrb[0].mxu0
        %1124 = vmatprep.mubr.f32.mxu0 %v600
        %1125 = vmatmul.mubr.f32.gmra.mrb[0].mxu0 %v599
        %v1126 = vpop.f32.mrb[0].mxu0
        %v1127 = vadd.f32 %v937, %v1126
        %v1128 = vpop.f32.mrb[0].mxu0
        %1129 = vmatprep.mubr.f32.mxu0 %v605
        %1130 = vmatmul.mubr.f32.gmra.mrb[0].mxu0 %v604
        %v1131 = vpop.f32.mrb[0].mxu0
        %v1132 = vadd.f32 %v942, %v1131
        %v1133 = vpop.f32.mrb[0].mxu0
        %1134 = vmatprep.mubr.f32.mxu0 %v610
        %1135 = vmatmul.mubr.f32.gmra.mrb[0].mxu0 %v609
        %v1136 = vpop.f32.mrb[0].mxu0
        %v1137 = vadd.f32 %v947, %v1136
        %v1138 = vpop.f32.mrb[0].mxu0
        %1139 = vmatprep.mubr.f32.mxu0 %v615
        %1140 = vmatmul.mubr.f32.gmra.mrb[0].mxu0 %v614
        %v1141 = vpop.f32.mrb[0].mxu0
        %v1142 = vadd.f32 %v952, %v1141
        %v1143 = vpop.f32.mrb[0].mxu0
        %1144 = vmatprep.mubr.f32.mxu0 %v620
        %1145 = vmatmul.mubr.f32.gmra.mrb[0].mxu0 %v619
        %v1146 = vpop.f32.mrb[0].mxu0
        %v1147 = vadd.f32 %v957, %v1146
        %v1148 = vpop.f32.mrb[0].mxu0
        %1149 = vmatprep.mubr.f32.mxu0 %v625
        %1150 = vmatmul.mubr.f32.gmra.mrb[0].mxu0 %v624
        %v1151 = vpop.f32.mrb[0].mxu0
        %v1152 = vadd.f32 %v962, %v1151
        %v1153 = vpop.f32.mrb[0].mxu0
        %1154 = vmatprep.mubr.f32.mxu0 %v630
        %1155 = vmatmul.mubr.f32.gmra.mrb[0].mxu0 %v629
        %v1156 = vpop.f32.mrb[0].mxu0
        %v1157 = vadd.f32 %v967, %v1156
        %v1158 = vpop.f32.mrb[0].mxu0
        %1159 = vmatprep.mubr.f32.mxu0 %v635
        %1160 = vmatmul.mubr.f32.gmra.mrb[0].mxu0 %v634
        %v1161 = vpop.f32.mrb[0].mxu0
        %v1162 = vadd.f32 %v972, %v1161
        %v1163 = vpop.f32.mrb[0].mxu0
        %1164 = vmatprep.mubr.f32.mxu0 %v640
        %1165 = vmatmul.mubr.f32.gmra.mrb[0].mxu0 %v639
        %v1166 = vpop.f32.mrb[0].mxu0
        %v1167 = vadd.f32 %v977, %v1166
        %v1168 = vpop.f32.mrb[0].mxu0
        %1169 = vmatprep.mubr.f32.mxu0 %v645
        %1170 = vmatmul.mubr.f32.gmra.mrb[0].mxu0 %v644
        %v1171 = vpop.f32.mrb[0].mxu0
        %v1172 = vadd.f32 %v982, %v1171
        %v1173 = vpop.f32.mrb[0].mxu0
        %1174 = vmatprep.mubr.f32.mxu0 %v650
        %1175 = vmatmul.mubr.f32.gmra.mrb[0].mxu0 %v649
        %v1176 = vpop.f32.mrb[0].mxu0
        %v1177 = vadd.f32 %v987, %v1176
        %v1178 = vpop.f32.mrb[0].mxu0
        %1179 = vmatprep.mubr.f32.mxu0 %v655
        %1180 = vmatmul.mubr.f32.gmra.mrb[0].mxu0 %v654
        %v1181 = vpop.f32.mrb[0].mxu0
        %v1182 = vadd.f32 %v992, %v1181
        %v1183 = vpop.f32.mrb[0].mxu0
        %1184 = vdwg.mxu0
        %1185 = vmatprep.subr.mxu0 0.0
        %1186 = vmatpush1.msra.mxu0 %v721
        %1187 = vmatprep.subr.mxu0 0.0
        %1188 = vmatpush1.msra.mxu0 0.0
        %1189 = vmatprep.subr.mxu0 0.0
        %1190 = vmatpush1.msra.mxu0 0.0
        %1191 = vmatprep.subr.mxu0 0.0
        %1192 = vmatpush1.msra.mxu0 0.0
        %1193 = vmatprep.subr.mxu0 0.0
        %1194 = vmatpush1.msra.mxu0 0.0
        %1195 = vmatprep.subr.mxu0 0.0
        %1196 = vmatpush1.msra.mxu0 0.0
        %1197 = vmatprep.subr.mxu0 0.0
        %1198 = vmatpush1.msra.mxu0 0.0
        %1199 = vmatprep.subr.mxu0 0.0
        %1200 = vmatpush1.msra.mxu0 0.0
        %1201 = vmatprep.subr.mxu0 0.0
        %1202 = vmatpush1.msra.mxu0 0.0
        %1203 = vmatprep.subr.mxu0 0.0
        %1204 = vmatpush1.msra.mxu0 0.0
        %1205 = vmatprep.subr.mxu0 0.0
        %1206 = vmatpush1.msra.mxu0 0.0
        %1207 = vmatprep.subr.mxu0 0.0
        %1208 = vmatpush1.msra.mxu0 0.0
        %1209 = vmatprep.subr.mxu0 0.0
        %1210 = vmatpush1.msra.mxu0 0.0
        %1211 = vmatprep.subr.mxu0 0.0
        %1212 = vmatpush1.msra.mxu0 0.0
        %1213 = vmatprep.subr.mxu0 0.0
        %1214 = vmatpush1.msra.mxu0 0.0
        %1215 = vmatprep.subr.mxu0 0.0
        %1216 = vmatpush1.msra.mxu0 0.0
        %1217 = vmatprep.subr.mxu0 0.0
        %1218 = vmatpush1.msra.mxu0 0.0
        %1219 = vmatprep.subr.mxu0 0.0
        %1220 = vmatpush1.msra.mxu0 0.0
        %1221 = vmatprep.subr.mxu0 0.0
        %1222 = vmatpush1.msra.mxu0 0.0
        %1223 = vmatprep.subr.mxu0 0.0
        %1224 = vmatpush1.msra.mxu0 0.0
        %1225 = vmatprep.subr.mxu0 0.0
        %1226 = vmatpush1.msra.mxu0 0.0
        %1227 = vmatprep.subr.mxu0 0.0
        %1228 = vmatpush1.msra.mxu0 0.0
        %1229 = vmatprep.subr.mxu0 0.0
        %1230 = vmatpush1.msra.mxu0 0.0
        %1231 = vmatprep.subr.mxu0 0.0
        %1232 = vmatpush1.msra.mxu0 0.0
        %1233 = vmatprep.subr.mxu0 0.0
        %1234 = vmatpush1.msra.mxu0 0.0
        %1235 = vmatprep.subr.mxu0 0.0
        %1236 = vmatpush1.msra.mxu0 0.0
        %1237 = vmatprep.subr.mxu0 0.0
        %1238 = vmatpush1.msra.mxu0 0.0
        %1239 = vmatprep.subr.mxu0 0.0
        %1240 = vmatpush1.msra.mxu0 0.0
        %1241 = vmatprep.subr.mxu0 0.0
        %1242 = vmatpush1.msra.mxu0 0.0
        %1243 = vmatprep.subr.mxu0 0.0
        %1244 = vmatpush1.msra.mxu0 0.0
        %1245 = vmatprep.subr.mxu0 0.0
        %1246 = vmatpush1.msra.mxu0 0.0
        %1247 = vmatprep.subr.mxu0 0.0
        %1248 = vmatpush1.msra.mxu0 0.0
        %1249 = vmatprep.mubr.f32.mxu0 0.0
        %1250 = vmatmul.mubr.f32.gmra.mrb[0].mxu0 %v731
        %v1251 = vpop.f32.mrb[0].mxu0
        %v1252 = vadd.f32 %v1062, %v1251
        %v1253 = vpop.f32.mrb[0].mxu0
        %1254 = vmatprep.mubr.f32.mxu0 0.0
        %1255 = vmatmul.mubr.f32.gmra.mrb[0].mxu0 %v734
        %v1256 = vpop.f32.mrb[0].mxu0
        %v1257 = vadd.f32 %v1067, %v1256
        %v1258 = vpop.f32.mrb[0].mxu0
        %1259 = vmatprep.mubr.f32.mxu0 0.0
        %1260 = vmatmul.mubr.f32.gmra.mrb[0].mxu0 %v737
        %v1261 = vpop.f32.mrb[0].mxu0
        %v1262 = vadd.f32 %v1072, %v1261
        %v1263 = vpop.f32.mrb[0].mxu0
        %1264 = vmatprep.mubr.f32.mxu0 0.0
        %1265 = vmatmul.mubr.f32.gmra.mrb[0].mxu0 %v740
        %v1266 = vpop.f32.mrb[0].mxu0
        %v1267 = vadd.f32 %v1077, %v1266
        %v1268 = vpop.f32.mrb[0].mxu0
        %1269 = vmatprep.mubr.f32.mxu0 0.0
        %1270 = vmatmul.mubr.f32.gmra.mrb[0].mxu0 %v743
        %v1271 = vpop.f32.mrb[0].mxu0
        %v1272 = vadd.f32 %v1082, %v1271
        %v1273 = vpop.f32.mrb[0].mxu0
        %1274 = vmatprep.mubr.f32.mxu0 0.0
        %1275 = vmatmul.mubr.f32.gmra.mrb[0].mxu0 %v746
        %v1276 = vpop.f32.mrb[0].mxu0
        %v1277 = vadd.f32 %v1087, %v1276
        %v1278 = vpop.f32.mrb[0].mxu0
        %1279 = vmatprep.mubr.f32.mxu0 0.0
        %1280 = vmatmul.mubr.f32.gmra.mrb[0].mxu0 %v749
        %v1281 = vpop.f32.mrb[0].mxu0
        %v1282 = vadd.f32 %v1092, %v1281
        %v1283 = vpop.f32.mrb[0].mxu0
        %1284 = vmatprep.mubr.f32.mxu0 0.0
        %1285 = vmatmul.mubr.f32.gmra.mrb[0].mxu0 %v752
        %v1286 = vpop.f32.mrb[0].mxu0
        %v1287 = vadd.f32 %v1097, %v1286
        %v1288 = vpop.f32.mrb[0].mxu0
        %1289 = vmatprep.mubr.f32.mxu0 0.0
        %1290 = vmatmul.mubr.f32.gmra.mrb[0].mxu0 %v755
        %v1291 = vpop.f32.mrb[0].mxu0
        %v1292 = vadd.f32 %v1102, %v1291
        %v1293 = vpop.f32.mrb[0].mxu0
        %1294 = vmatprep.mubr.f32.mxu0 0.0
        %1295 = vmatmul.mubr.f32.gmra.mrb[0].mxu0 %v758
        %v1296 = vpop.f32.mrb[0].mxu0
        %v1297 = vadd.f32 %v1107, %v1296
        %v1298 = vpop.f32.mrb[0].mxu0
        %1299 = vmatprep.mubr.f32.mxu0 0.0
        %1300 = vmatmul.mubr.f32.gmra.mrb[0].mxu0 %v761
        %v1301 = vpop.f32.mrb[0].mxu0
        %v1302 = vadd.f32 %v1112, %v1301
        %v1303 = vpop.f32.mrb[0].mxu0
        %1304 = vmatprep.mubr.f32.mxu0 0.0
        %1305 = vmatmul.mubr.f32.gmra.mrb[0].mxu0 %v764
        %v1306 = vpop.f32.mrb[0].mxu0
        %v1307 = vadd.f32 %v1117, %v1306
        %v1308 = vpop.f32.mrb[0].mxu0
        %1309 = vmatprep.mubr.f32.mxu0 0.0
        %1310 = vmatmul.mubr.f32.gmra.mrb[0].mxu0 %v767
        %v1311 = vpop.f32.mrb[0].mxu0
        %v1312 = vadd.f32 %v1122, %v1311
        %v1313 = vpop.f32.mrb[0].mxu0
        %1314 = vmatprep.mubr.f32.mxu0 0.0
        %1315 = vmatmul.mubr.f32.gmra.mrb[0].mxu0 %v770
        %v1316 = vpop.f32.mrb[0].mxu0
        %v1317 = vadd.f32 %v1127, %v1316
        %v1318 = vpop.f32.mrb[0].mxu0
        %1319 = vmatprep.mubr.f32.mxu0 0.0
        %1320 = vmatmul.mubr.f32.gmra.mrb[0].mxu0 %v773
        %v1321 = vpop.f32.mrb[0].mxu0
        %v1322 = vadd.f32 %v1132, %v1321
        %v1323 = vpop.f32.mrb[0].mxu0
        %1324 = vmatprep.mubr.f32.mxu0 0.0
        %1325 = vmatmul.mubr.f32.gmra.mrb[0].mxu0 %v776
        %v1326 = vpop.f32.mrb[0].mxu0
        %v1327 = vadd.f32 %v1137, %v1326
        %v1328 = vpop.f32.mrb[0].mxu0
        %1329 = vmatprep.mubr.f32.mxu0 0.0
        %1330 = vmatmul.mubr.f32.gmra.mrb[0].mxu0 %v779
        %v1331 = vpop.f32.mrb[0].mxu0
        %v1332 = vadd.f32 %v1142, %v1331
        %v1333 = vpop.f32.mrb[0].mxu0
        %1334 = vmatprep.mubr.f32.mxu0 0.0
        %1335 = vmatmul.mubr.f32.gmra.mrb[0].mxu0 %v782
        %v1336 = vpop.f32.mrb[0].mxu0
        %v1337 = vadd.f32 %v1147, %v1336
        %v1338 = vpop.f32.mrb[0].mxu0
        %1339 = vmatprep.mubr.f32.mxu0 0.0
        %1340 = vmatmul.mubr.f32.gmra.mrb[0].mxu0 %v785
        %v1341 = vpop.f32.mrb[0].mxu0
        %v1342 = vadd.f32 %v1152, %v1341
        %v1343 = vpop.f32.mrb[0].mxu0
        %1344 = vmatprep.mubr.f32.mxu0 0.0
        %1345 = vmatmul.mubr.f32.gmra.mrb[0].mxu0 %v788
        %v1346 = vpop.f32.mrb[0].mxu0
        %v1347 = vadd.f32 %v1157, %v1346
        %v1348 = vpop.f32.mrb[0].mxu0
        %1349 = vmatprep.mubr.f32.mxu0 0.0
        %1350 = vmatmul.mubr.f32.gmra.mrb[0].mxu0 %v791
        %v1351 = vpop.f32.mrb[0].mxu0
        %v1352 = vadd.f32 %v1162, %v1351
        %v1353 = vpop.f32.mrb[0].mxu0
        %1354 = vmatprep.mubr.f32.mxu0 0.0
        %1355 = vmatmul.mubr.f32.gmra.mrb[0].mxu0 %v794
        %v1356 = vpop.f32.mrb[0].mxu0
        %v1357 = vadd.f32 %v1167, %v1356
        %v1358 = vpop.f32.mrb[0].mxu0
        %1359 = vmatprep.mubr.f32.mxu0 0.0
        %1360 = vmatmul.mubr.f32.gmra.mrb[0].mxu0 %v797
        %v1361 = vpop.f32.mrb[0].mxu0
        %v1362 = vadd.f32 %v1172, %v1361
        %v1363 = vpop.f32.mrb[0].mxu0
        %1364 = vmatprep.mubr.f32.mxu0 0.0
        %1365 = vmatmul.mubr.f32.gmra.mrb[0].mxu0 %v800
        %v1366 = vpop.f32.mrb[0].mxu0
        %v1367 = vadd.f32 %v1177, %v1366
        %v1368 = vpop.f32.mrb[0].mxu0
        %1369 = vmatprep.mubr.f32.mxu0 0.0
        %1370 = vmatmul.mubr.f32.gmra.mrb[0].mxu0 %v803
        %v1371 = vpop.f32.mrb[0].mxu0
        %v1372 = vadd.f32 %v1182, %v1371
        %v1373 = vpop.f32.mrb[0].mxu0
        %1374 = vdwg.mxu0
        %vm1375 = vcmp.gt.f32.partialorder %v1252, 0.0
        %vm1376 = vcmp.gt.f32.partialorder %v1257, 0.0
        %vm1377 = vcmp.gt.f32.partialorder %v1262, 0.0
        %vm1378 = vcmp.gt.f32.partialorder %v1267, 0.0
        %vm1379 = vcmp.gt.f32.partialorder %v1272, 0.0
        %vm1380 = vcmp.gt.f32.partialorder %v1277, 0.0
        %vm1381 = vcmp.gt.f32.partialorder %v1282, 0.0
        %vm1382 = vcmp.gt.f32.partialorder %v1287, 0.0
        %vm1383 = vcmp.gt.f32.partialorder %v1292, 0.0
        %vm1384 = vcmp.gt.f32.partialorder %v1297, 0.0
        %vm1385 = vcmp.gt.f32.partialorder %v1302, 0.0
        %vm1386 = vcmp.gt.f32.partialorder %v1307, 0.0
        %vm1387 = vcmp.gt.f32.partialorder %v1312, 0.0
        %vm1388 = vcmp.gt.f32.partialorder %v1317, 0.0
        %vm1389 = vcmp.gt.f32.partialorder %v1322, 0.0
        %vm1390 = vcmp.gt.f32.partialorder %v1327, 0.0
        %vm1391 = vcmp.gt.f32.partialorder %v1332, 0.0
        %vm1392 = vcmp.gt.f32.partialorder %v1337, 0.0
        %vm1393 = vcmp.gt.f32.partialorder %v1342, 0.0
        %vm1394 = vcmp.gt.f32.partialorder %v1347, 0.0
        %vm1395 = vcmp.gt.f32.partialorder %v1352, 0.0
        %vm1396 = vcmp.gt.f32.partialorder %v1357, 0.0
        %vm1397 = vcmp.gt.f32.partialorder %v1362, 0.0
        %vm1398 = vcmp.gt.f32.partialorder %v1367, 0.0
        %vm1399 = vcmp.gt.f32.partialorder %v1372, 0.0
        %v1400 = vmin.f32 %v1252, 0.0
        %v1401 = vmin.f32 %v1257, 0.0
        %v1402 = vmin.f32 %v1262, 0.0
        %v1403 = vmin.f32 %v1267, 0.0
        %v1404 = vmin.f32 %v1272, 0.0
        %v1405 = vmin.f32 %v1277, 0.0
        %v1406 = vmin.f32 %v1282, 0.0
        %v1407 = vmin.f32 %v1287, 0.0
        %v1408 = vmin.f32 %v1292, 0.0
        %v1409 = vmin.f32 %v1297, 0.0
        %v1410 = vmin.f32 %v1302, 0.0
        %v1411 = vmin.f32 %v1307, 0.0
        %v1412 = vmin.f32 %v1312, 0.0
        %v1413 = vmin.f32 %v1317, 0.0
        %v1414 = vmin.f32 %v1322, 0.0
        %v1415 = vmin.f32 %v1327, 0.0
        %v1416 = vmin.f32 %v1332, 0.0
        %v1417 = vmin.f32 %v1337, 0.0
        %v1418 = vmin.f32 %v1342, 0.0
        %v1419 = vmin.f32 %v1347, 0.0
        %v1420 = vmin.f32 %v1352, 0.0
        %v1421 = vmin.f32 %v1357, 0.0
        %v1422 = vmin.f32 %v1362, 0.0
        %v1423 = vmin.f32 %v1367, 0.0
        %v1424 = vmin.f32 %v1372, 0.0
        %v1425 = vmul.f32 %v1400, 1.442695
        %v1426 = vpow.pop %v1425
        %v1427 = vmul.f32 %v1401, 1.442695
        %v1428 = vpow.pop %v1427
        %v1429 = vmul.f32 %v1402, 1.442695
        %v1430 = vpow.pop %v1429
        %v1431 = vmul.f32 %v1403, 1.442695
        %v1432 = vpow.pop %v1431
        %v1433 = vmul.f32 %v1404, 1.442695
        %v1434 = vpow.pop %v1433
        %v1435 = vmul.f32 %v1405, 1.442695
        %v1436 = vpow.pop %v1435
        %v1437 = vmul.f32 %v1406, 1.442695
        %v1438 = vpow.pop %v1437
        %v1439 = vmul.f32 %v1407, 1.442695
        %v1440 = vpow.pop %v1439
        %v1441 = vmul.f32 %v1408, 1.442695
        %v1442 = vpow.pop %v1441
        %v1443 = vmul.f32 %v1409, 1.442695
        %v1444 = vpow.pop %v1443
        %v1445 = vmul.f32 %v1410, 1.442695
        %v1446 = vpow.pop %v1445
        %v1447 = vmul.f32 %v1411, 1.442695
        %v1448 = vpow.pop %v1447
        %v1449 = vmul.f32 %v1412, 1.442695
        %v1450 = vpow.pop %v1449
        %v1451 = vmul.f32 %v1413, 1.442695
        %v1452 = vpow.pop %v1451
        %v1453 = vmul.f32 %v1414, 1.442695
        %v1454 = vpow.pop %v1453
        %v1455 = vmul.f32 %v1415, 1.442695
        %v1456 = vpow.pop %v1455
        %v1457 = vmul.f32 %v1416, 1.442695
        %v1458 = vpow.pop %v1457
        %v1459 = vmul.f32 %v1417, 1.442695
        %v1460 = vpow.pop %v1459
        %v1461 = vmul.f32 %v1418, 1.442695
        %v1462 = vpow.pop %v1461
        %v1463 = vmul.f32 %v1419, 1.442695
        %v1464 = vpow.pop %v1463
        %v1465 = vmul.f32 %v1420, 1.442695
        %v1466 = vpow.pop %v1465
        %v1467 = vmul.f32 %v1421, 1.442695
        %v1468 = vpow.pop %v1467
        %v1469 = vmul.f32 %v1422, 1.442695
        %v1470 = vpow.pop %v1469
        %v1471 = vmul.f32 %v1423, 1.442695
        %v1472 = vpow.pop %v1471
        %v1473 = vmul.f32 %v1424, 1.442695
        %v1474 = vpow.pop %v1473
        %v1475 = vsub.f32 %v1426, 1.0
        %v1476 = vsub.f32 %v1428, 1.0
        %v1477 = vsub.f32 %v1430, 1.0
        %v1478 = vsub.f32 %v1432, 1.0
        %v1479 = vsub.f32 %v1434, 1.0
        %v1480 = vsub.f32 %v1436, 1.0
        %v1481 = vsub.f32 %v1438, 1.0
        %v1482 = vsub.f32 %v1440, 1.0
        %v1483 = vsub.f32 %v1442, 1.0
        %v1484 = vsub.f32 %v1444, 1.0
        %v1485 = vsub.f32 %v1446, 1.0
        %v1486 = vsub.f32 %v1448, 1.0
        %v1487 = vsub.f32 %v1450, 1.0
        %v1488 = vsub.f32 %v1452, 1.0
        %v1489 = vsub.f32 %v1454, 1.0
        %v1490 = vsub.f32 %v1456, 1.0
        %v1491 = vsub.f32 %v1458, 1.0
        %v1492 = vsub.f32 %v1460, 1.0
        %v1493 = vsub.f32 %v1462, 1.0
        %v1494 = vsub.f32 %v1464, 1.0
        %v1495 = vsub.f32 %v1466, 1.0
        %v1496 = vsub.f32 %v1468, 1.0
        %v1497 = vsub.f32 %v1470, 1.0
        %v1498 = vsub.f32 %v1472, 1.0
        %v1499 = vsub.f32 %v1474, 1.0
        %v1500 = vsel %vm1375, %v1252, %v1475
        %v1501 = vsel %vm1376, %v1257, %v1476
        %v1502 = vsel %vm1377, %v1262, %v1477
        %v1503 = vsel %vm1378, %v1267, %v1478
        %v1504 = vsel %vm1379, %v1272, %v1479
        %v1505 = vsel %vm1380, %v1277, %v1480
        %v1506 = vsel %vm1381, %v1282, %v1481
        %v1507 = vsel %vm1382, %v1287, %v1482
        %v1508 = vsel %vm1383, %v1292, %v1483
        %v1509 = vsel %vm1384, %v1297, %v1484
        %v1510 = vsel %vm1385, %v1302, %v1485
        %v1511 = vsel %vm1386, %v1307, %v1486
        %v1512 = vsel %vm1387, %v1312, %v1487
        %v1513 = vsel %vm1388, %v1317, %v1488
        %v1514 = vsel %vm1389, %v1322, %v1489
        %v1515 = vsel %vm1390, %v1327, %v1490
        %v1516 = vsel %vm1391, %v1332, %v1491
        %v1517 = vsel %vm1392, %v1337, %v1492
        %v1518 = vsel %vm1393, %v1342, %v1493
        %v1519 = vsel %vm1394, %v1347, %v1494
        %v1520 = vsel %vm1395, %v1352, %v1495
        %v1521 = vsel %vm1396, %v1357, %v1496
        %v1522 = vsel %vm1397, %v1362, %v1497
        %v1523 = vsel %vm1398, %v1367, %v1498
        %v1524 = vsel %vm1399, %v1372, %v1499
        %vm1525 = vcmask 326656
        %v1526 = vsel %vm1525, %v1500, 0.0
        %v1527 = vsel %vm1525, %v1501, 0.0
        %v1528 = vadd.f32 %v1526, %v1527
        %v1529 = vsel %vm1525, %v1502, 0.0
        %v1530 = vadd.f32 %v1528, %v1529
        %v1531 = vsel %vm1525, %v1503, 0.0
        %v1532 = vadd.f32 %v1530, %v1531
        %v1533 = vsel %vm1525, %v1504, 0.0
        %v1534 = vadd.f32 %v1532, %v1533
        %v1535 = vsel %vm1525, %v1505, 0.0
        %v1536 = vadd.f32 %v1534, %v1535
        %v1537 = vsel %vm1525, %v1506, 0.0
        %v1538 = vadd.f32 %v1536, %v1537
        %v1539 = vsel %vm1525, %v1507, 0.0
        %v1540 = vadd.f32 %v1538, %v1539
        %v1541 = vsel %vm1525, %v1508, 0.0
        %v1542 = vadd.f32 %v1540, %v1541
        %v1543 = vsel %vm1525, %v1509, 0.0
        %v1544 = vadd.f32 %v1542, %v1543
        %v1545 = vsel %vm1525, %v1510, 0.0
        %v1546 = vadd.f32 %v1544, %v1545
        %v1547 = vsel %vm1525, %v1511, 0.0
        %v1548 = vadd.f32 %v1546, %v1547
        %v1549 = vsel %vm1525, %v1512, 0.0
        %v1550 = vadd.f32 %v1548, %v1549
        %v1551 = vsel %vm1525, %v1513, 0.0
        %v1552 = vadd.f32 %v1550, %v1551
        %v1553 = vsel %vm1525, %v1514, 0.0
        %v1554 = vadd.f32 %v1552, %v1553
        %v1555 = vsel %vm1525, %v1515, 0.0
        %v1556 = vadd.f32 %v1554, %v1555
        %v1557 = vsel %vm1525, %v1516, 0.0
        %v1558 = vadd.f32 %v1556, %v1557
        %v1559 = vsel %vm1525, %v1517, 0.0
        %v1560 = vadd.f32 %v1558, %v1559
        %v1561 = vsel %vm1525, %v1518, 0.0
        %v1562 = vadd.f32 %v1560, %v1561
        %v1563 = vsel %vm1525, %v1519, 0.0
        %v1564 = vadd.f32 %v1562, %v1563
        %v1565 = vsel %vm1525, %v1520, 0.0
        %v1566 = vadd.f32 %v1564, %v1565
        %v1567 = vsel %vm1525, %v1521, 0.0
        %v1568 = vadd.f32 %v1566, %v1567
        %v1569 = vsel %vm1525, %v1522, 0.0
        %v1570 = vadd.f32 %v1568, %v1569
        %v1571 = vsel %vm1525, %v1523, 0.0
        %v1572 = vadd.f32 %v1570, %v1571
        %v1573 = vsel %vm1525, %v1524, 0.0
        %v1574 = vadd.f32 %v1572, %v1573
        %v1575 = vrot.slane %v1574, 4
        %v1576 = vadd.f32 %v1574, %v1575
        %v1577 = vrot.slane %v1576, 2
        %v1578 = vadd.f32 %v1576, %v1577
        %v1579 = vrot.slane %v1578, 1
        %v1580 = vadd.f32 %v1578, %v1579
        %v1581 = vrcp.pop 200.0
        %v1582 = vmul.f32 %v1580, %v1581
        %v1583 = vsub.f32 %v1500, %v1582
        %v1584 = vsub.f32 %v1501, %v1582
        %v1585 = vsub.f32 %v1502, %v1582
        %v1586 = vsub.f32 %v1503, %v1582
        %v1587 = vsub.f32 %v1504, %v1582
        %v1588 = vsub.f32 %v1505, %v1582
        %v1589 = vsub.f32 %v1506, %v1582
        %v1590 = vsub.f32 %v1507, %v1582
        %v1591 = vsub.f32 %v1508, %v1582
        %v1592 = vsub.f32 %v1509, %v1582
        %v1593 = vsub.f32 %v1510, %v1582
        %v1594 = vsub.f32 %v1511, %v1582
        %v1595 = vsub.f32 %v1512, %v1582
        %v1596 = vsub.f32 %v1513, %v1582
        %v1597 = vsub.f32 %v1514, %v1582
        %v1598 = vsub.f32 %v1515, %v1582
        %v1599 = vsub.f32 %v1516, %v1582
        %v1600 = vsub.f32 %v1517, %v1582
        %v1601 = vsub.f32 %v1518, %v1582
        %v1602 = vsub.f32 %v1519, %v1582
        %v1603 = vsub.f32 %v1520, %v1582
        %v1604 = vsub.f32 %v1521, %v1582
        %v1605 = vsub.f32 %v1522, %v1582
        %v1606 = vsub.f32 %v1523, %v1582
        %v1607 = vsub.f32 %v1524, %v1582
        %v1608 = vmul.f32 %v1583, %v1583
        %v1609 = vmul.f32 %v1584, %v1584
        %v1610 = vmul.f32 %v1585, %v1585
        %v1611 = vmul.f32 %v1586, %v1586
        %v1612 = vmul.f32 %v1587, %v1587
        %v1613 = vmul.f32 %v1588, %v1588
        %v1614 = vmul.f32 %v1589, %v1589
        %v1615 = vmul.f32 %v1590, %v1590
        %v1616 = vmul.f32 %v1591, %v1591
        %v1617 = vmul.f32 %v1592, %v1592
        %v1618 = vmul.f32 %v1593, %v1593
        %v1619 = vmul.f32 %v1594, %v1594
        %v1620 = vmul.f32 %v1595, %v1595
        %v1621 = vmul.f32 %v1596, %v1596
        %v1622 = vmul.f32 %v1597, %v1597
        %v1623 = vmul.f32 %v1598, %v1598
        %v1624 = vmul.f32 %v1599, %v1599
        %v1625 = vmul.f32 %v1600, %v1600
        %v1626 = vmul.f32 %v1601, %v1601
        %v1627 = vmul.f32 %v1602, %v1602
        %v1628 = vmul.f32 %v1603, %v1603
        %v1629 = vmul.f32 %v1604, %v1604
        %v1630 = vmul.f32 %v1605, %v1605
        %v1631 = vmul.f32 %v1606, %v1606
        %v1632 = vmul.f32 %v1607, %v1607
        %1658 = vrot.lane.b32.xlu0 %v1608, 40
        %v1659 = vpop.permute.xlu0 %1658
        %1660 = vrot.lane.b32.xlu0 %v1609, 40
        %v1661 = vpop.permute.xlu0 %1660
        %1662 = vrot.lane.b32.xlu0 %v1610, 40
        %v1663 = vpop.permute.xlu0 %1662
        %1664 = vrot.lane.b32.xlu0 %v1611, 40
        %v1665 = vpop.permute.xlu0 %1664
        %1666 = vrot.lane.b32.xlu0 %v1612, 40
        %v1667 = vpop.permute.xlu0 %1666
        %1668 = vrot.lane.b32.xlu0 %v1613, 40
        %v1669 = vpop.permute.xlu0 %1668
        %1670 = vrot.lane.b32.xlu0 %v1614, 40
        %v1671 = vpop.permute.xlu0 %1670
        %1672 = vrot.lane.b32.xlu0 %v1615, 40
        %v1673 = vpop.permute.xlu0 %1672
        %1674 = vrot.lane.b32.xlu0 %v1616, 40
        %v1675 = vpop.permute.xlu0 %1674
        %1676 = vrot.lane.b32.xlu0 %v1617, 40
        %v1677 = vpop.permute.xlu0 %1676
        %1678 = vrot.lane.b32.xlu0 %v1618, 40
        %v1679 = vpop.permute.xlu0 %1678
        %1680 = vrot.lane.b32.xlu0 %v1619, 40
        %v1681 = vpop.permute.xlu0 %1680
        %1682 = vrot.lane.b32.xlu0 %v1620, 40
        %v1683 = vpop.permute.xlu0 %1682
        %1684 = vrot.lane.b32.xlu0 %v1621, 40
        %v1685 = vpop.permute.xlu0 %1684
        %1686 = vrot.lane.b32.xlu0 %v1622, 40
        %v1687 = vpop.permute.xlu0 %1686
        %1688 = vrot.lane.b32.xlu0 %v1623, 40
        %v1689 = vpop.permute.xlu0 %1688
        %1690 = vrot.lane.b32.xlu0 %v1624, 40
        %v1691 = vpop.permute.xlu0 %1690
        %1692 = vrot.lane.b32.xlu0 %v1625, 40
        %v1693 = vpop.permute.xlu0 %1692
        %1694 = vrot.lane.b32.xlu0 %v1626, 40
        %v1695 = vpop.permute.xlu0 %1694
        %1696 = vrot.lane.b32.xlu0 %v1627, 40
        %v1697 = vpop.permute.xlu0 %1696
        %1698 = vrot.lane.b32.xlu0 %v1628, 40
        %v1699 = vpop.permute.xlu0 %1698
        %1700 = vrot.lane.b32.xlu0 %v1629, 40
        %v1701 = vpop.permute.xlu0 %1700
        %1702 = vrot.lane.b32.xlu0 %v1630, 40
        %v1703 = vpop.permute.xlu0 %1702
        %1704 = vrot.lane.b32.xlu0 %v1631, 40
        %v1705 = vpop.permute.xlu0 %1704
        %1706 = vrot.lane.b32.xlu0 %v1632, 40
        %v1707 = vpop.permute.xlu0 %1706
        %v1733 = vsel %vm1525, %v1583, %v1659
        %v1734 = vsel %vm1525, %v1584, %v1661
        %v1735 = vsel %vm1525, %v1585, %v1663
        %v1736 = vsel %vm1525, %v1586, %v1665
        %v1737 = vsel %vm1525, %v1587, %v1667
        %v1738 = vsel %vm1525, %v1588, %v1669
        %v1739 = vsel %vm1525, %v1589, %v1671
        %v1740 = vsel %vm1525, %v1590, %v1673
        %v1741 = vsel %vm1525, %v1591, %v1675
        %v1742 = vsel %vm1525, %v1592, %v1677
        %v1743 = vsel %vm1525, %v1593, %v1679
        %v1744 = vsel %vm1525, %v1594, %v1681
        %v1745 = vsel %vm1525, %v1595, %v1683
        %v1746 = vsel %vm1525, %v1596, %v1685
        %v1747 = vsel %vm1525, %v1597, %v1687
        %v1748 = vsel %vm1525, %v1598, %v1689
        %v1749 = vsel %vm1525, %v1599, %v1691
        %v1750 = vsel %vm1525, %v1600, %v1693
        %v1751 = vsel %vm1525, %v1601, %v1695
        %v1752 = vsel %vm1525, %v1602, %v1697
        %v1753 = vsel %vm1525, %v1603, %v1699
        %v1754 = vsel %vm1525, %v1604, %v1701
        %v1755 = vsel %vm1525, %v1605, %v1703
        %v1756 = vsel %vm1525, %v1606, %v1705
        %v1757 = vsel %vm1525, %v1607, %v1707
        %v1758 = vld [vmem:[%s3] sm:$0xff]
        %v1759 = vld [vmem:[%s3 + $0x8] sm:$0xff]
        %v1760 = vld [vmem:[%s3 + $0x10] sm:$0x7]
        %v1761 = vld [vmem:[%s3 + $0x18] sm:$0x7]
        %vm1762 = vcmask 588800
        %v1764 = vsel %vm1762, %v1759, 0
        %v1767 = vsel %vm1762, %v1761, 0
        %1769 = vmatprep.subr.mxu0 0.0
        %1770 = vmatpush1.msra.mxu0 %v1733
        %1771 = vmatprep.subr.mxu0 0.0
        %1772 = vmatpush1.msra.mxu0 %v1734
        %1773 = vmatprep.subr.mxu0 0.0
        %1774 = vmatpush1.msra.mxu0 %v1735
        %1775 = vmatprep.subr.mxu0 0.0
        %1776 = vmatpush1.msra.mxu0 %v1736
        %1777 = vmatprep.subr.mxu0 0.0
        %1778 = vmatpush1.msra.mxu0 %v1737
        %1779 = vmatprep.subr.mxu0 0.0
        %1780 = vmatpush1.msra.mxu0 %v1738
        %1781 = vmatprep.subr.mxu0 0.0
        %1782 = vmatpush1.msra.mxu0 %v1739
        %1783 = vmatprep.subr.mxu0 0.0
        %1784 = vmatpush1.msra.mxu0 %v1740
        %1785 = vmatprep.subr.mxu0 0.0
        %1786 = vmatpush1.msra.mxu0 %v1741
        %1787 = vmatprep.subr.mxu0 0.0
        %1788 = vmatpush1.msra.mxu0 %v1742
        %1789 = vmatprep.subr.mxu0 0.0
        %1790 = vmatpush1.msra.mxu0 %v1743
        %1791 = vmatprep.subr.mxu0 0.0
        %1792 = vmatpush1.msra.mxu0 %v1744
        %1793 = vmatprep.subr.mxu0 0.0
        %1794 = vmatpush1.msra.mxu0 %v1745
        %1795 = vmatprep.subr.mxu0 0.0
        %1796 = vmatpush1.msra.mxu0 %v1746
        %1797 = vmatprep.subr.mxu0 0.0
        %1798 = vmatpush1.msra.mxu0 %v1747
        %1799 = vmatprep.subr.mxu0 0.0
        %1800 = vmatpush1.msra.mxu0 %v1748
        %1801 = vmatprep.subr.mxu0 0.0
        %1802 = vmatpush1.msra.mxu0 %v1749
        %1803 = vmatprep.subr.mxu0 0.0
        %1804 = vmatpush1.msra.mxu0 %v1750
        %1805 = vmatprep.subr.mxu0 0.0
        %1806 = vmatpush1.msra.mxu0 %v1751
        %1807 = vmatprep.subr.mxu0 0.0
        %1808 = vmatpush1.msra.mxu0 %v1752
        %1809 = vmatprep.subr.mxu0 0.0
        %1810 = vmatpush1.msra.mxu0 %v1753
        %1811 = vmatprep.subr.mxu0 0.0
        %1812 = vmatpush1.msra.mxu0 %v1754
        %1813 = vmatprep.subr.mxu0 0.0
        %1814 = vmatpush1.msra.mxu0 %v1755
        %1815 = vmatprep.subr.mxu0 0.0
        %1816 = vmatpush1.msra.mxu0 %v1756
        %1817 = vmatprep.subr.mxu0 0.0
        %1818 = vmatpush1.msra.mxu0 %v1757
        %1819 = vmatprep.subr.mxu0 0.0
        %1820 = vmatpush1.msra.mxu0 0.0
        %1821 = vmatprep.subr.mxu0 0.0
        %1822 = vmatpush1.msra.mxu0 0.0
        %1823 = vmatprep.subr.mxu0 0.0
        %1824 = vmatpush1.msra.mxu0 0.0
        %1825 = vmatprep.subr.mxu0 0.0
        %1826 = vmatpush1.msra.mxu0 0.0
        %1827 = vmatprep.subr.mxu0 0.0
        %1828 = vmatpush1.msra.mxu0 0.0
        %1829 = vmatprep.subr.mxu0 0.0
        %1830 = vmatpush1.msra.mxu0 0.0
        %1831 = vmatprep.subr.mxu0 0.0
        %1832 = vmatpush1.msra.mxu0 0.0
        %1833 = vmatprep.mubr.f32.mxu0 %v1764
        %1834 = vmatmul.mubr.f32.gmra.mrb[0].mxu0 %v1758
        %v1835 = vpop.f32.mrb[0].mxu0
        %v1836 = vadd.f32 0.0, %v1835
        %v1837 = vpop.f32.mrb[0].mxu0
        %1838 = vmatprep.mubr.f32.mxu0 %v1767
        %1839 = vmatmul.mubr.f32.gmra.mrb[0].mxu0 %v1760
        %v1840 = vpop.f32.mrb[0].mxu0
        %v1841 = vadd.f32 0.0, %v1840
        %v1842 = vpop.f32.mrb[0].mxu0
        %1843 = vdwg.mxu0
        %v1844 = vadd.f32 %v1836, %v1582
        %v1845 = vadd.f32 %v1841, %v1582
        %v1846 = vmul.f32 %v1836, %v1836
        %v1847 = vmul.f32 %v1841, %v1841
        %1850 = vrot.lane.b32.xlu0 %v1846, 40
        %v1851 = vpop.permute.xlu0 %1850
        %1852 = vrot.lane.b32.xlu0 %v1847, 40
        %v1853 = vpop.permute.xlu0 %1852
        %v1856 = vsub.f32 %v1836, %v1851
        %v1857 = vsub.f32 %v1841, %v1853
        %v1858 = vmul.f32 %v1856, 1.0204082
        %v1859 = vmul.f32 %v1857, 1.0204082
        %v1860 = vmax.f32 %v1858, 1e-06
        %v1861 = vmax.f32 %v1859, 1e-06
        %v1862 = vmin.f32 %v1860, 1000000.0
        %v1863 = vmin.f32 %v1861, 1000000.0
        %v1864 = vlog2.pop %v1862
        %v1865 = vmul.f32 %v1864, 0.6931472
        %v1866 = vlog2.pop %v1863
        %v1867 = vmul.f32 %v1866, 0.6931472
        %vm1870 = vcmask 1042432
        %v1871 = vrot.slane %v1865, 5
        %v1872 = vrot.slane %v1867, 5
        %v1873 = vsel %vm1870, %v1871, %v1872
        %1874 = vrot.lane.b32.xlu0 %v1871, 88
        %v1875 = vpop.permute.xlu0 %1874
        %1876 = vrot.lane.b32.xlu0 %v1873, 88
        %v1877 = vpop.permute.xlu0 %1876
        %v1880 = vsel %vm1870, %v1845, %v1875
        %v1881 = vlaneseq
        %v1882 = vshrl.u32 %v1881, 7
        %v1883 = vadd.s32 %v1882, 8
        %v1884 = vadd.s32 %v1882, 16
        %v1885 = vlaneseq
        %v1886 = vand.u32 %v1885, 127
        %vm1887 = vcmp.ge.s32.totalorder %v1882, 11
        %vm1888 = vcmp.ge.s32.totalorder %v1883, 11
        %vm1889 = vcmp.ge.s32.totalorder %v1884, 11
        %vm1890 = vcmp.ge.s32.totalorder %v1886, 11
        %vm1891 = vmxor %vm1887, %vm1890
        %vm1892 = vmxor %vm1888, %vm1890
        %vm1893 = vmxor %vm1889, %vm1890
        %vm1894 = vmxor %vm1891, 1
        %vm1895 = vmxor %vm1892, 1
        %vm1896 = vmxor %vm1893, 1
        %v1897 = vsel %vm1894, 0.0, -1e+09
        %v1898 = vsel %vm1895, 0.0, -1e+09
        %v1899 = vsel %vm1896, 0.0, -1e+09
        %v1900 = vld [vmem:[%s10] sm:$0x3f]
        %v1901 = vsel %vm1525, %v1844, 0.0
        %1902 = vadd.xlane.f32.xlu0 %v1901
        %v1903 = vpop.xlane.xlu0 %1902
        %v1904 = vsel %vm1525, %v1880, 0.0
        %1905 = vadd.xlane.f32.xlu0 %v1904
        %v1906 = vpop.xlane.xlu0 %1905
        %vm1907 = vcmask 324608
        %v1908 = vsel %vm1907, %v1877, 0.0
        %1909 = vadd.xlane.f32.xlu0 %v1908
        %v1910 = vpop.xlane.xlu0 %1909
        %v1911 = vrcp.pop 40.0
        %v1912 = vmul.f32 %v1903, %v1911
        %v1913 = vmul.f32 %v1906, %v1911
        %v1914 = vmul.f32 %v1910, %v1911
        %v1915 = vsub.f32 %v1844, %v1912
        %v1916 = vsub.f32 %v1880, %v1913
        %v1917 = vsub.f32 %v1877, %v1914
        %v1918 = vmul.f32 %v1915, %v1915
        %v1919 = vmul.f32 %v1916, %v1916
        %v1920 = vmul.f32 %v1917, %v1917
        %v1921 = vsel %vm1525, %v1918, 0.0
        %1922 = vadd.xlane.f32.xlu0 %v1921
        %v1923 = vpop.xlane.xlu0 %1922
        %v1924 = vsel %vm1525, %v1919, 0.0
        %1925 = vadd.xlane.f32.xlu0 %v1924
        %v1926 = vpop.xlane.xlu0 %1925
        %v1927 = vsel %vm1907, %v1920, 0.0
        %1928 = vadd.xlane.f32.xlu0 %v1927
        %v1929 = vpop.xlane.xlu0 %1928
        %v1930 = vmul.f32 %v1923, %v1911
        %v1931 = vmul.f32 %v1926, %v1911
        %v1932 = vmul.f32 %v1929, %v1911
        %v1933 = vadd.f32 %v1930, 1e-05
        %v1934 = vadd.f32 %v1931, 1e-05
        %v1935 = vadd.f32 %v1932, 1e-05
        %v1936 = vrsqrt.pop %v1933
        %v1937 = vrsqrt.pop %v1934
        %v1938 = vrsqrt.pop %v1935
        %v1939 = vmul.f32 %v1915, %v1936
        %v1940 = vmul.f32 %v1916, %v1937
        %v1941 = vmul.f32 %v1917, %v1938
        %v1942 = vlaneseq
        %v1943 = vshrl.u32 %v1942, 7
        %v1944 = vsub.s32 0, %v1943
        %v1945 = vrot.slane %v1900, %v1944
        %v1946 = vmul.f32 %v1939, %v1945
        %v1947 = vmul.f32 %v1940, %v1945
        %v1948 = vmul.f32 %v1941, %v1945
        %v1949 = vlaneseq
        %v1950 = vshrl.u32 %v1949, 7
        %v1951 = vsub.s32 1, %v1950
        %v1952 = vrot.slane %v1900, %v1951
        %v1953 = vadd.f32 %v1946, %v1952
        %v1954 = vadd.f32 %v1947, %v1952
        %v1955 = vadd.f32 %v1948, %v1952
        %v1956 = vld [vmem:[%s4] sm:$0xff]
        %v1957 = vld [vmem:[%s4 + $0x8] sm:$0xff]
        %v1958 = vld [vmem:[%s4 + $0x10] sm:$0xff]
        %v1959 = vld [vmem:[%s4 + $0x18] sm:$0xff]
        %v1960 = vld [vmem:[%s4 + $0x20] sm:$0xff]
        %v1961 = vld [vmem:[%s5] sm:$0x1]
        %v1963 = vlaneseq
        %v1964 = vshrl.u32 %v1963, 7
        %v1965 = vsub.s32 0, %v1964
        %v1966 = vrot.slane %v1961, %v1965
        %v1969 = vsel %vm1525, %v1953, 0
        %v1972 = vsel %vm1525, %v1954, 0
        %v1975 = vsel %vm1525, %v1955, 0
        %1977 = vmatprep.subr.mxu0 0.0
        %1978 = vmatpush1.msra.mxu0 %v1956
        %1979 = vmatprep.subr.mxu0 0.0
        %1980 = vmatpush1.msra.mxu0 %v1957
        %1981 = vmatprep.subr.mxu0 0.0
        %1982 = vmatpush1.msra.mxu0 %v1958
        %1983 = vmatprep.subr.mxu0 0.0
        %1984 = vmatpush1.msra.mxu0 %v1959
        %1985 = vmatprep.subr.mxu0 0.0
        %1986 = vmatpush1.msra.mxu0 %v1960
        %1987 = vmatprep.subr.mxu0 0.0
        %1988 = vmatpush1.msra.mxu0 0.0
        %1989 = vmatprep.subr.mxu0 0.0
        %1990 = vmatpush1.msra.mxu0 0.0
        %1991 = vmatprep.subr.mxu0 0.0
        %1992 = vmatpush1.msra.mxu0 0.0
        %1993 = vmatprep.subr.mxu0 0.0
        %1994 = vmatpush1.msra.mxu0 0.0
        %1995 = vmatprep.subr.mxu0 0.0
        %1996 = vmatpush1.msra.mxu0 0.0
        %1997 = vmatprep.subr.mxu0 0.0
        %1998 = vmatpush1.msra.mxu0 0.0
        %1999 = vmatprep.subr.mxu0 0.0
        %2000 = vmatpush1.msra.mxu0 0.0
        %2001 = vmatprep.subr.mxu0 0.0
        %2002 = vmatpush1.msra.mxu0 0.0
        %2003 = vmatprep.subr.mxu0 0.0
        %2004 = vmatpush1.msra.mxu0 0.0
        %2005 = vmatprep.subr.mxu0 0.0
        %2006 = vmatpush1.msra.mxu0 0.0
        %2007 = vmatprep.subr.mxu0 0.0
        %2008 = vmatpush1.msra.mxu0 0.0
        %2009 = vmatprep.subr.mxu0 0.0
        %2010 = vmatpush1.msra.mxu0 0.0
        %2011 = vmatprep.subr.mxu0 0.0
        %2012 = vmatpush1.msra.mxu0 0.0
        %2013 = vmatprep.subr.mxu0 0.0
        %2014 = vmatpush1.msra.mxu0 0.0
        %2015 = vmatprep.subr.mxu0 0.0
        %2016 = vmatpush1.msra.mxu0 0.0
        %2017 = vmatprep.subr.mxu0 0.0
        %2018 = vmatpush1.msra.mxu0 0.0
        %2019 = vmatprep.subr.mxu0 0.0
        %2020 = vmatpush1.msra.mxu0 0.0
        %2021 = vmatprep.subr.mxu0 0.0
        %2022 = vmatpush1.msra.mxu0 0.0
        %2023 = vmatprep.subr.mxu0 0.0
        %2024 = vmatpush1.msra.mxu0 0.0
        %2025 = vmatprep.subr.mxu0 0.0
        %2026 = vmatpush1.msra.mxu0 0.0
        %2027 = vmatprep.subr.mxu0 0.0
        %2028 = vmatpush1.msra.mxu0 0.0
        %2029 = vmatprep.subr.mxu0 0.0
        %2030 = vmatpush1.msra.mxu0 0.0
        %2031 = vmatprep.subr.mxu0 0.0
        %2032 = vmatpush1.msra.mxu0 0.0
        %2033 = vmatprep.subr.mxu0 0.0
        %2034 = vmatpush1.msra.mxu0 0.0
        %2035 = vmatprep.subr.mxu0 0.0
        %2036 = vmatpush1.msra.mxu0 0.0
        %2037 = vmatprep.subr.mxu0 0.0
        %2038 = vmatpush1.msra.mxu0 0.0
        %2039 = vmatprep.subr.mxu0 0.0
        %2040 = vmatpush1.msra.mxu0 0.0
        %2041 = vmatprep.mubr.f32.mxu0 0.0
        %2042 = vmatmul.mubr.f32.gmra.mrb[0].mxu0 %v1969
        %v2043 = vpop.f32.mrb[0].mxu0
        %v2044 = vadd.f32 %v1966, %v2043
        %v2045 = vpop.f32.mrb[0].mxu0
        %2046 = vmatprep.mubr.f32.mxu0 0.0
        %2047 = vmatmul.mubr.f32.gmra.mrb[0].mxu0 %v1972
        %v2048 = vpop.f32.mrb[0].mxu0
        %v2049 = vadd.f32 %v1966, %v2048
        %v2050 = vpop.f32.mrb[0].mxu0
        %2051 = vmatprep.mubr.f32.mxu0 0.0
        %2052 = vmatmul.mubr.f32.gmra.mrb[0].mxu0 %v1975
        %v2053 = vpop.f32.mrb[0].mxu0
        %v2054 = vadd.f32 %v1966, %v2053
        %v2055 = vpop.f32.mrb[0].mxu0
        %2056 = vdwg.mxu0
        %2060 = vrot.lane.b32.xlu0 %v2044, 123
        %v2061 = vpop.permute.xlu0 %2060
        %2062 = vrot.lane.b32.xlu0 %v2049, 123
        %v2063 = vpop.permute.xlu0 %2062
        %2064 = vrot.lane.b32.xlu0 %v2054, 123
        %v2065 = vpop.permute.xlu0 %2064
        %2066 = vrot.lane.b32.xlu0 %v2044, 118
        %v2067 = vpop.permute.xlu0 %2066
        %2068 = vrot.lane.b32.xlu0 %v2049, 118
        %v2069 = vpop.permute.xlu0 %2068
        %2070 = vrot.lane.b32.xlu0 %v2054, 118
        %v2071 = vpop.permute.xlu0 %2070
        %2072 = vrot.lane.b32.xlu0 %v2044, 113
        %v2073 = vpop.permute.xlu0 %2072
        %2074 = vrot.lane.b32.xlu0 %v2049, 113
        %v2075 = vpop.permute.xlu0 %2074
        %2076 = vrot.lane.b32.xlu0 %v2054, 113
        %v2077 = vpop.permute.xlu0 %2076
        %2078 = vrot.lane.b32.xlu0 %v2044, 108
        %v2079 = vpop.permute.xlu0 %2078
        %2080 = vrot.lane.b32.xlu0 %v2049, 108
        %v2081 = vpop.permute.xlu0 %2080
        %2082 = vrot.lane.b32.xlu0 %v2054, 108
        %v2083 = vpop.permute.xlu0 %2082
        %2084 = vrot.lane.b32.xlu0 %v2044, 103
        %v2085 = vpop.permute.xlu0 %2084
        %2086 = vrot.lane.b32.xlu0 %v2049, 103
        %v2087 = vpop.permute.xlu0 %2086
        %2088 = vrot.lane.b32.xlu0 %v2054, 103
        %v2089 = vpop.permute.xlu0 %2088
        %2090 = vrot.lane.b32.xlu0 %v2044, 98
        %v2091 = vpop.permute.xlu0 %2090
        %2092 = vrot.lane.b32.xlu0 %v2049, 98
        %v2093 = vpop.permute.xlu0 %2092
        %2094 = vrot.lane.b32.xlu0 %v2054, 98
        %v2095 = vpop.permute.xlu0 %2094
        %2096 = vrot.lane.b32.xlu0 %v2044, 93
        %v2097 = vpop.permute.xlu0 %2096
        %2098 = vrot.lane.b32.xlu0 %v2049, 93
        %v2099 = vpop.permute.xlu0 %2098
        %2100 = vrot.lane.b32.xlu0 %v2054, 93
        %v2101 = vpop.permute.xlu0 %2100
        %2102 = vrot.lane.b32.xlu0 %v2044, 88
        %v2103 = vpop.permute.xlu0 %2102
        %2104 = vrot.lane.b32.xlu0 %v2049, 88
        %v2105 = vpop.permute.xlu0 %2104
        %2106 = vrot.lane.b32.xlu0 %v2054, 88
        %v2107 = vpop.permute.xlu0 %2106
        %vm2108 = vcmask 39936
        %v2109 = vsel %vm2108, %v2044, 0
        %v2111 = vsel %vm2108, %v2049, 0
        %v2113 = vsel %vm2108, %v2054, 0
        %v2115 = vsel %vm2108, %v2103, 0
        %v2117 = vsel %vm2108, %v2105, 0
        %v2119 = vsel %vm2108, %v2107, 0
        %2121 = vmatprep.subr.mxu0 0.0
        %2122 = vmatpush1.xpose.msra.mxu0 %v2115
        %2123 = vmatprep.subr.mxu0 0.0
        %2124 = vmatpush1.xpose.msra.mxu0 %v2117
        %2125 = vmatprep.subr.mxu0 0.0
        %2126 = vmatpush1.xpose.msra.mxu0 %v2119
        %2127 = vmatprep.subr.mxu0 0.0
        %2128 = vmatpush1.xpose.msra.mxu0 0.0
        %2129 = vmatprep.subr.mxu0 0.0
        %2130 = vmatpush1.xpose.msra.mxu0 0.0
        %2131 = vmatprep.subr.mxu0 0.0
        %2132 = vmatpush1.xpose.msra.mxu0 0.0
        %2133 = vmatprep.subr.mxu0 0.0
        %2134 = vmatpush1.xpose.msra.mxu0 0.0
        %2135 = vmatprep.subr.mxu0 0.0
        %2136 = vmatpush1.xpose.msra.mxu0 0.0
        %2137 = vmatprep.subr.mxu0 0.0
        %2138 = vmatpush1.xpose.msra.mxu0 0.0
        %2139 = vmatprep.subr.mxu0 0.0
        %2140 = vmatpush1.xpose.msra.mxu0 0.0
        %2141 = vmatprep.subr.mxu0 0.0
        %2142 = vmatpush1.xpose.msra.mxu0 0.0
        %2143 = vmatprep.subr.mxu0 0.0
        %2144 = vmatpush1.xpose.msra.mxu0 0.0
        %2145 = vmatprep.subr.mxu0 0.0
        %2146 = vmatpush1.xpose.msra.mxu0 0.0
        %2147 = vmatprep.subr.mxu0 0.0
        %2148 = vmatpush1.xpose.msra.mxu0 0.0
        %2149 = vmatprep.subr.mxu0 0.0
        %2150 = vmatpush1.xpose.msra.mxu0 0.0
        %2151 = vmatprep.subr.mxu0 0.0
        %2152 = vmatpush1.xpose.msra.mxu0 0.0
        %2153 = vmatprep.subr.mxu0 0.0
        %2154 = vmatpush1.xpose.msra.mxu0 0.0
        %2155 = vmatprep.subr.mxu0 0.0
        %2156 = vmatpush1.xpose.msra.mxu0 0.0
        %2157 = vmatprep.subr.mxu0 0.0
        %2158 = vmatpush1.xpose.msra.mxu0 0.0
        %2159 = vmatprep.subr.mxu0 0.0
        %2160 = vmatpush1.xpose.msra.mxu0 0.0
        %2161 = vmatprep.subr.mxu0 0.0
        %2162 = vmatpush1.xpose.msra.mxu0 0.0
        %2163 = vmatprep.subr.mxu0 0.0
        %2164 = vmatpush1.xpose.msra.mxu0 0.0
        %2165 = vmatprep.subr.mxu0 0.0
        %2166 = vmatpush1.xpose.msra.mxu0 0.0
        %2167 = vmatprep.subr.mxu0 0.0
        %2168 = vmatpush1.xpose.msra.mxu0 0.0
        %2169 = vmatprep.subr.mxu0 0.0
        %2170 = vmatpush1.xpose.msra.mxu0 0.0
        %2171 = vmatprep.subr.mxu0 0.0
        %2172 = vmatpush1.xpose.msra.mxu0 0.0
        %2173 = vmatprep.subr.mxu0 0.0
        %2174 = vmatpush1.xpose.msra.mxu0 0.0
        %2175 = vmatprep.subr.mxu0 0.0
        %2176 = vmatpush1.xpose.msra.mxu0 0.0
        %2177 = vmatprep.subr.mxu0 0.0
        %2178 = vmatpush1.xpose.msra.mxu0 0.0
        %2179 = vmatprep.subr.mxu0 0.0
        %2180 = vmatpush1.xpose.msra.mxu0 0.0
        %2181 = vmatprep.subr.mxu0 0.0
        %2182 = vmatpush1.xpose.msra.mxu0 0.0
        %2183 = vmatprep.subr.mxu0 0.0
        %2184 = vmatpush1.xpose.msra.mxu0 0.0
        %2185 = vmatprep.mubr.f32.mxu0 0.0
        %2186 = vmatmul.mubr.f32.gmra.mrb[0].mxu0 %v2109
        %v2187 = vpop.f32.mrb[0].mxu0
        %v2188 = vadd.f32 0.0, %v2187
        %v2189 = vpop.f32.mrb[0].mxu0
        %2190 = vmatprep.mubr.f32.mxu0 0.0
        %2191 = vmatmul.mubr.f32.gmra.mrb[0].mxu0 %v2111
        %v2192 = vpop.f32.mrb[0].mxu0
        %v2193 = vadd.f32 0.0, %v2192
        %v2194 = vpop.f32.mrb[0].mxu0
        %2195 = vmatprep.mubr.f32.mxu0 0.0
        %2196 = vmatmul.mubr.f32.gmra.mrb[0].mxu0 %v2113
        %v2197 = vpop.f32.mrb[0].mxu0
        %v2198 = vadd.f32 0.0, %v2197
        %v2199 = vpop.f32.mrb[0].mxu0
        %2200 = vdwg.mxu0
        %2201 = vrot.lane.b32.xlu0 %v2061, 88
        %v2202 = vpop.permute.xlu0 %2201
        %2203 = vrot.lane.b32.xlu0 %v2063, 88
        %v2204 = vpop.permute.xlu0 %2203
        %2205 = vrot.lane.b32.xlu0 %v2065, 88
        %v2206 = vpop.permute.xlu0 %2205
        %v2207 = vsel %vm2108, %v2061, 0
        %v2209 = vsel %vm2108, %v2063, 0
        %v2211 = vsel %vm2108, %v2065, 0
        %v2213 = vsel %vm2108, %v2202, 0
        %v2215 = vsel %vm2108, %v2204, 0
        %v2217 = vsel %vm2108, %v2206, 0
        %2219 = vmatprep.subr.mxu0 0.0
        %2220 = vmatpush1.xpose.msra.mxu0 %v2213
        %2221 = vmatprep.subr.mxu0 0.0
        %2222 = vmatpush1.xpose.msra.mxu0 %v2215
        %2223 = vmatprep.subr.mxu0 0.0
        %2224 = vmatpush1.xpose.msra.mxu0 %v2217
        %2225 = vmatprep.subr.mxu0 0.0
        %2226 = vmatpush1.xpose.msra.mxu0 0.0
        %2227 = vmatprep.subr.mxu0 0.0
        %2228 = vmatpush1.xpose.msra.mxu0 0.0
        %2229 = vmatprep.subr.mxu0 0.0
        %2230 = vmatpush1.xpose.msra.mxu0 0.0
        %2231 = vmatprep.subr.mxu0 0.0
        %2232 = vmatpush1.xpose.msra.mxu0 0.0
        %2233 = vmatprep.subr.mxu0 0.0
        %2234 = vmatpush1.xpose.msra.mxu0 0.0
        %2235 = vmatprep.subr.mxu0 0.0
        %2236 = vmatpush1.xpose.msra.mxu0 0.0
        %2237 = vmatprep.subr.mxu0 0.0
        %2238 = vmatpush1.xpose.msra.mxu0 0.0
        %2239 = vmatprep.subr.mxu0 0.0
        %2240 = vmatpush1.xpose.msra.mxu0 0.0
        %2241 = vmatprep.subr.mxu0 0.0
        %2242 = vmatpush1.xpose.msra.mxu0 0.0
        %2243 = vmatprep.subr.mxu0 0.0
        %2244 = vmatpush1.xpose.msra.mxu0 0.0
        %2245 = vmatprep.subr.mxu0 0.0
        %2246 = vmatpush1.xpose.msra.mxu0 0.0
        %2247 = vmatprep.subr.mxu0 0.0
        %2248 = vmatpush1.xpose.msra.mxu0 0.0
        %2249 = vmatprep.subr.mxu0 0.0
        %2250 = vmatpush1.xpose.msra.mxu0 0.0
        %2251 = vmatprep.subr.mxu0 0.0
        %2252 = vmatpush1.xpose.msra.mxu0 0.0
        %2253 = vmatprep.subr.mxu0 0.0
        %2254 = vmatpush1.xpose.msra.mxu0 0.0
        %2255 = vmatprep.subr.mxu0 0.0
        %2256 = vmatpush1.xpose.msra.mxu0 0.0
        %2257 = vmatprep.subr.mxu0 0.0
        %2258 = vmatpush1.xpose.msra.mxu0 0.0
        %2259 = vmatprep.subr.mxu0 0.0
        %2260 = vmatpush1.xpose.msra.mxu0 0.0
        %2261 = vmatprep.subr.mxu0 0.0
        %2262 = vmatpush1.xpose.msra.mxu0 0.0
        %2263 = vmatprep.subr.mxu0 0.0
        %2264 = vmatpush1.xpose.msra.mxu0 0.0
        %2265 = vmatprep.subr.mxu0 0.0
        %2266 = vmatpush1.xpose.msra.mxu0 0.0
        %2267 = vmatprep.subr.mxu0 0.0
        %2268 = vmatpush1.xpose.msra.mxu0 0.0
        %2269 = vmatprep.subr.mxu0 0.0
        %2270 = vmatpush1.xpose.msra.mxu0 0.0
        %2271 = vmatprep.subr.mxu0 0.0
        %2272 = vmatpush1.xpose.msra.mxu0 0.0
        %2273 = vmatprep.subr.mxu0 0.0
        %2274 = vmatpush1.xpose.msra.mxu0 0.0
        %2275 = vmatprep.subr.mxu0 0.0
        %2276 = vmatpush1.xpose.msra.mxu0 0.0
        %2277 = vmatprep.subr.mxu0 0.0
        %2278 = vmatpush1.xpose.msra.mxu0 0.0
        %2279 = vmatprep.subr.mxu0 0.0
        %2280 = vmatpush1.xpose.msra.mxu0 0.0
        %2281 = vmatprep.subr.mxu0 0.0
        %2282 = vmatpush1.xpose.msra.mxu0 0.0
        %2283 = vmatprep.mubr.f32.mxu0 0.0
        %2284 = vmatmul.mubr.f32.gmra.mrb[0].mxu0 %v2207
        %v2285 = vpop.f32.mrb[0].mxu0
        %v2286 = vadd.f32 0.0, %v2285
        %v2287 = vpop.f32.mrb[0].mxu0
        %2288 = vmatprep.mubr.f32.mxu0 0.0
        %2289 = vmatmul.mubr.f32.gmra.mrb[0].mxu0 %v2209
        %v2290 = vpop.f32.mrb[0].mxu0
        %v2291 = vadd.f32 0.0, %v2290
        %v2292 = vpop.f32.mrb[0].mxu0
        %2293 = vmatprep.mubr.f32.mxu0 0.0
        %2294 = vmatmul.mubr.f32.gmra.mrb[0].mxu0 %v2211
        %v2295 = vpop.f32.mrb[0].mxu0
        %v2296 = vadd.f32 0.0, %v2295
        %v2297 = vpop.f32.mrb[0].mxu0
        %2298 = vdwg.mxu0
        %2299 = vrot.lane.b32.xlu0 %v2067, 88
        %v2300 = vpop.permute.xlu0 %2299
        %2301 = vrot.lane.b32.xlu0 %v2069, 88
        %v2302 = vpop.permute.xlu0 %2301
        %2303 = vrot.lane.b32.xlu0 %v2071, 88
        %v2304 = vpop.permute.xlu0 %2303
        %v2305 = vsel %vm2108, %v2067, 0
        %v2307 = vsel %vm2108, %v2069, 0
        %v2309 = vsel %vm2108, %v2071, 0
        %v2311 = vsel %vm2108, %v2300, 0
        %v2313 = vsel %vm2108, %v2302, 0
        %v2315 = vsel %vm2108, %v2304, 0
        %2317 = vmatprep.subr.mxu0 0.0
        %2318 = vmatpush1.xpose.msra.mxu0 %v2311
        %2319 = vmatprep.subr.mxu0 0.0
        %2320 = vmatpush1.xpose.msra.mxu0 %v2313
        %2321 = vmatprep.subr.mxu0 0.0
        %2322 = vmatpush1.xpose.msra.mxu0 %v2315
        %2323 = vmatprep.subr.mxu0 0.0
        %2324 = vmatpush1.xpose.msra.mxu0 0.0
        %2325 = vmatprep.subr.mxu0 0.0
        %2326 = vmatpush1.xpose.msra.mxu0 0.0
        %2327 = vmatprep.subr.mxu0 0.0
        %2328 = vmatpush1.xpose.msra.mxu0 0.0
        %2329 = vmatprep.subr.mxu0 0.0
        %2330 = vmatpush1.xpose.msra.mxu0 0.0
        %2331 = vmatprep.subr.mxu0 0.0
        %2332 = vmatpush1.xpose.msra.mxu0 0.0
        %2333 = vmatprep.subr.mxu0 0.0
        %2334 = vmatpush1.xpose.msra.mxu0 0.0
        %2335 = vmatprep.subr.mxu0 0.0
        %2336 = vmatpush1.xpose.msra.mxu0 0.0
        %2337 = vmatprep.subr.mxu0 0.0
        %2338 = vmatpush1.xpose.msra.mxu0 0.0
        %2339 = vmatprep.subr.mxu0 0.0
        %2340 = vmatpush1.xpose.msra.mxu0 0.0
        %2341 = vmatprep.subr.mxu0 0.0
        %2342 = vmatpush1.xpose.msra.mxu0 0.0
        %2343 = vmatprep.subr.mxu0 0.0
        %2344 = vmatpush1.xpose.msra.mxu0 0.0
        %2345 = vmatprep.subr.mxu0 0.0
        %2346 = vmatpush1.xpose.msra.mxu0 0.0
        %2347 = vmatprep.subr.mxu0 0.0
        %2348 = vmatpush1.xpose.msra.mxu0 0.0
        %2349 = vmatprep.subr.mxu0 0.0
        %2350 = vmatpush1.xpose.msra.mxu0 0.0
        %2351 = vmatprep.subr.mxu0 0.0
        %2352 = vmatpush1.xpose.msra.mxu0 0.0
        %2353 = vmatprep.subr.mxu0 0.0
        %2354 = vmatpush1.xpose.msra.mxu0 0.0
        %2355 = vmatprep.subr.mxu0 0.0
        %2356 = vmatpush1.xpose.msra.mxu0 0.0
        %2357 = vmatprep.subr.mxu0 0.0
        %2358 = vmatpush1.xpose.msra.mxu0 0.0
        %2359 = vmatprep.subr.mxu0 0.0
        %2360 = vmatpush1.xpose.msra.mxu0 0.0
        %2361 = vmatprep.subr.mxu0 0.0
        %2362 = vmatpush1.xpose.msra.mxu0 0.0
        %2363 = vmatprep.subr.mxu0 0.0
        %2364 = vmatpush1.xpose.msra.mxu0 0.0
        %2365 = vmatprep.subr.mxu0 0.0
        %2366 = vmatpush1.xpose.msra.mxu0 0.0
        %2367 = vmatprep.subr.mxu0 0.0
        %2368 = vmatpush1.xpose.msra.mxu0 0.0
        %2369 = vmatprep.subr.mxu0 0.0
        %2370 = vmatpush1.xpose.msra.mxu0 0.0
        %2371 = vmatprep.subr.mxu0 0.0
        %2372 = vmatpush1.xpose.msra.mxu0 0.0
        %2373 = vmatprep.subr.mxu0 0.0
        %2374 = vmatpush1.xpose.msra.mxu0 0.0
        %2375 = vmatprep.subr.mxu0 0.0
        %2376 = vmatpush1.xpose.msra.mxu0 0.0
        %2377 = vmatprep.subr.mxu0 0.0
        %2378 = vmatpush1.xpose.msra.mxu0 0.0
        %2379 = vmatprep.subr.mxu0 0.0
        %2380 = vmatpush1.xpose.msra.mxu0 0.0
        %2381 = vmatprep.mubr.f32.mxu0 0.0
        %2382 = vmatmul.mubr.f32.gmra.mrb[0].mxu0 %v2305
        %v2383 = vpop.f32.mrb[0].mxu0
        %v2384 = vadd.f32 0.0, %v2383
        %v2385 = vpop.f32.mrb[0].mxu0
        %2386 = vmatprep.mubr.f32.mxu0 0.0
        %2387 = vmatmul.mubr.f32.gmra.mrb[0].mxu0 %v2307
        %v2388 = vpop.f32.mrb[0].mxu0
        %v2389 = vadd.f32 0.0, %v2388
        %v2390 = vpop.f32.mrb[0].mxu0
        %2391 = vmatprep.mubr.f32.mxu0 0.0
        %2392 = vmatmul.mubr.f32.gmra.mrb[0].mxu0 %v2309
        %v2393 = vpop.f32.mrb[0].mxu0
        %v2394 = vadd.f32 0.0, %v2393
        %v2395 = vpop.f32.mrb[0].mxu0
        %2396 = vdwg.mxu0
        %2397 = vrot.lane.b32.xlu0 %v2073, 88
        %v2398 = vpop.permute.xlu0 %2397
        %2399 = vrot.lane.b32.xlu0 %v2075, 88
        %v2400 = vpop.permute.xlu0 %2399
        %2401 = vrot.lane.b32.xlu0 %v2077, 88
        %v2402 = vpop.permute.xlu0 %2401
        %v2403 = vsel %vm2108, %v2073, 0
        %v2405 = vsel %vm2108, %v2075, 0
        %v2407 = vsel %vm2108, %v2077, 0
        %v2409 = vsel %vm2108, %v2398, 0
        %v2411 = vsel %vm2108, %v2400, 0
        %v2413 = vsel %vm2108, %v2402, 0
        %2415 = vmatprep.subr.mxu0 0.0
        %2416 = vmatpush1.xpose.msra.mxu0 %v2409
        %2417 = vmatprep.subr.mxu0 0.0
        %2418 = vmatpush1.xpose.msra.mxu0 %v2411
        %2419 = vmatprep.subr.mxu0 0.0
        %2420 = vmatpush1.xpose.msra.mxu0 %v2413
        %2421 = vmatprep.subr.mxu0 0.0
        %2422 = vmatpush1.xpose.msra.mxu0 0.0
        %2423 = vmatprep.subr.mxu0 0.0
        %2424 = vmatpush1.xpose.msra.mxu0 0.0
        %2425 = vmatprep.subr.mxu0 0.0
        %2426 = vmatpush1.xpose.msra.mxu0 0.0
        %2427 = vmatprep.subr.mxu0 0.0
        %2428 = vmatpush1.xpose.msra.mxu0 0.0
        %2429 = vmatprep.subr.mxu0 0.0
        %2430 = vmatpush1.xpose.msra.mxu0 0.0
        %2431 = vmatprep.subr.mxu0 0.0
        %2432 = vmatpush1.xpose.msra.mxu0 0.0
        %2433 = vmatprep.subr.mxu0 0.0
        %2434 = vmatpush1.xpose.msra.mxu0 0.0
        %2435 = vmatprep.subr.mxu0 0.0
        %2436 = vmatpush1.xpose.msra.mxu0 0.0
        %2437 = vmatprep.subr.mxu0 0.0
        %2438 = vmatpush1.xpose.msra.mxu0 0.0
        %2439 = vmatprep.subr.mxu0 0.0
        %2440 = vmatpush1.xpose.msra.mxu0 0.0
        %2441 = vmatprep.subr.mxu0 0.0
        %2442 = vmatpush1.xpose.msra.mxu0 0.0
        %2443 = vmatprep.subr.mxu0 0.0
        %2444 = vmatpush1.xpose.msra.mxu0 0.0
        %2445 = vmatprep.subr.mxu0 0.0
        %2446 = vmatpush1.xpose.msra.mxu0 0.0
        %2447 = vmatprep.subr.mxu0 0.0
        %2448 = vmatpush1.xpose.msra.mxu0 0.0
        %2449 = vmatprep.subr.mxu0 0.0
        %2450 = vmatpush1.xpose.msra.mxu0 0.0
        %2451 = vmatprep.subr.mxu0 0.0
        %2452 = vmatpush1.xpose.msra.mxu0 0.0
        %2453 = vmatprep.subr.mxu0 0.0
        %2454 = vmatpush1.xpose.msra.mxu0 0.0
        %2455 = vmatprep.subr.mxu0 0.0
        %2456 = vmatpush1.xpose.msra.mxu0 0.0
        %2457 = vmatprep.subr.mxu0 0.0
        %2458 = vmatpush1.xpose.msra.mxu0 0.0
        %2459 = vmatprep.subr.mxu0 0.0
        %2460 = vmatpush1.xpose.msra.mxu0 0.0
        %2461 = vmatprep.subr.mxu0 0.0
        %2462 = vmatpush1.xpose.msra.mxu0 0.0
        %2463 = vmatprep.subr.mxu0 0.0
        %2464 = vmatpush1.xpose.msra.mxu0 0.0
        %2465 = vmatprep.subr.mxu0 0.0
        %2466 = vmatpush1.xpose.msra.mxu0 0.0
        %2467 = vmatprep.subr.mxu0 0.0
        %2468 = vmatpush1.xpose.msra.mxu0 0.0
        %2469 = vmatprep.subr.mxu0 0.0
        %2470 = vmatpush1.xpose.msra.mxu0 0.0
        %2471 = vmatprep.subr.mxu0 0.0
        %2472 = vmatpush1.xpose.msra.mxu0 0.0
        %2473 = vmatprep.subr.mxu0 0.0
        %2474 = vmatpush1.xpose.msra.mxu0 0.0
        %2475 = vmatprep.subr.mxu0 0.0
        %2476 = vmatpush1.xpose.msra.mxu0 0.0
        %2477 = vmatprep.subr.mxu0 0.0
        %2478 = vmatpush1.xpose.msra.mxu0 0.0
        %2479 = vmatprep.mubr.f32.mxu0 0.0
        %2480 = vmatmul.mubr.f32.gmra.mrb[0].mxu0 %v2403
        %v2481 = vpop.f32.mrb[0].mxu0
        %v2482 = vadd.f32 0.0, %v2481
        %v2483 = vpop.f32.mrb[0].mxu0
        %2484 = vmatprep.mubr.f32.mxu0 0.0
        %2485 = vmatmul.mubr.f32.gmra.mrb[0].mxu0 %v2405
        %v2486 = vpop.f32.mrb[0].mxu0
        %v2487 = vadd.f32 0.0, %v2486
        %v2488 = vpop.f32.mrb[0].mxu0
        %2489 = vmatprep.mubr.f32.mxu0 0.0
        %2490 = vmatmul.mubr.f32.gmra.mrb[0].mxu0 %v2407
        %v2491 = vpop.f32.mrb[0].mxu0
        %v2492 = vadd.f32 0.0, %v2491
        %v2493 = vpop.f32.mrb[0].mxu0
        %2494 = vdwg.mxu0
        %2495 = vrot.lane.b32.xlu0 %v2079, 88
        %v2496 = vpop.permute.xlu0 %2495
        %2497 = vrot.lane.b32.xlu0 %v2081, 88
        %v2498 = vpop.permute.xlu0 %2497
        %2499 = vrot.lane.b32.xlu0 %v2083, 88
        %v2500 = vpop.permute.xlu0 %2499
        %v2501 = vsel %vm2108, %v2079, 0
        %v2503 = vsel %vm2108, %v2081, 0
        %v2505 = vsel %vm2108, %v2083, 0
        %v2507 = vsel %vm2108, %v2496, 0
        %v2509 = vsel %vm2108, %v2498, 0
        %v2511 = vsel %vm2108, %v2500, 0
        %2513 = vmatprep.subr.mxu0 0.0
        %2514 = vmatpush1.xpose.msra.mxu0 %v2507
        %2515 = vmatprep.subr.mxu0 0.0
        %2516 = vmatpush1.xpose.msra.mxu0 %v2509
        %2517 = vmatprep.subr.mxu0 0.0
        %2518 = vmatpush1.xpose.msra.mxu0 %v2511
        %2519 = vmatprep.subr.mxu0 0.0
        %2520 = vmatpush1.xpose.msra.mxu0 0.0
        %2521 = vmatprep.subr.mxu0 0.0
        %2522 = vmatpush1.xpose.msra.mxu0 0.0
        %2523 = vmatprep.subr.mxu0 0.0
        %2524 = vmatpush1.xpose.msra.mxu0 0.0
        %2525 = vmatprep.subr.mxu0 0.0
        %2526 = vmatpush1.xpose.msra.mxu0 0.0
        %2527 = vmatprep.subr.mxu0 0.0
        %2528 = vmatpush1.xpose.msra.mxu0 0.0
        %2529 = vmatprep.subr.mxu0 0.0
        %2530 = vmatpush1.xpose.msra.mxu0 0.0
        %2531 = vmatprep.subr.mxu0 0.0
        %2532 = vmatpush1.xpose.msra.mxu0 0.0
        %2533 = vmatprep.subr.mxu0 0.0
        %2534 = vmatpush1.xpose.msra.mxu0 0.0
        %2535 = vmatprep.subr.mxu0 0.0
        %2536 = vmatpush1.xpose.msra.mxu0 0.0
        %2537 = vmatprep.subr.mxu0 0.0
        %2538 = vmatpush1.xpose.msra.mxu0 0.0
        %2539 = vmatprep.subr.mxu0 0.0
        %2540 = vmatpush1.xpose.msra.mxu0 0.0
        %2541 = vmatprep.subr.mxu0 0.0
        %2542 = vmatpush1.xpose.msra.mxu0 0.0
        %2543 = vmatprep.subr.mxu0 0.0
        %2544 = vmatpush1.xpose.msra.mxu0 0.0
        %2545 = vmatprep.subr.mxu0 0.0
        %2546 = vmatpush1.xpose.msra.mxu0 0.0
        %2547 = vmatprep.subr.mxu0 0.0
        %2548 = vmatpush1.xpose.msra.mxu0 0.0
        %2549 = vmatprep.subr.mxu0 0.0
        %2550 = vmatpush1.xpose.msra.mxu0 0.0
        %2551 = vmatprep.subr.mxu0 0.0
        %2552 = vmatpush1.xpose.msra.mxu0 0.0
        %2553 = vmatprep.subr.mxu0 0.0
        %2554 = vmatpush1.xpose.msra.mxu0 0.0
        %2555 = vmatprep.subr.mxu0 0.0
        %2556 = vmatpush1.xpose.msra.mxu0 0.0
        %2557 = vmatprep.subr.mxu0 0.0
        %2558 = vmatpush1.xpose.msra.mxu0 0.0
        %2559 = vmatprep.subr.mxu0 0.0
        %2560 = vmatpush1.xpose.msra.mxu0 0.0
        %2561 = vmatprep.subr.mxu0 0.0
        %2562 = vmatpush1.xpose.msra.mxu0 0.0
        %2563 = vmatprep.subr.mxu0 0.0
        %2564 = vmatpush1.xpose.msra.mxu0 0.0
        %2565 = vmatprep.subr.mxu0 0.0
        %2566 = vmatpush1.xpose.msra.mxu0 0.0
        %2567 = vmatprep.subr.mxu0 0.0
        %2568 = vmatpush1.xpose.msra.mxu0 0.0
        %2569 = vmatprep.subr.mxu0 0.0
        %2570 = vmatpush1.xpose.msra.mxu0 0.0
        %2571 = vmatprep.subr.mxu0 0.0
        %2572 = vmatpush1.xpose.msra.mxu0 0.0
        %2573 = vmatprep.subr.mxu0 0.0
        %2574 = vmatpush1.xpose.msra.mxu0 0.0
        %2575 = vmatprep.subr.mxu0 0.0
        %2576 = vmatpush1.xpose.msra.mxu0 0.0
        %2577 = vmatprep.mubr.f32.mxu0 0.0
        %2578 = vmatmul.mubr.f32.gmra.mrb[0].mxu0 %v2501
        %v2579 = vpop.f32.mrb[0].mxu0
        %v2580 = vadd.f32 0.0, %v2579
        %v2581 = vpop.f32.mrb[0].mxu0
        %2582 = vmatprep.mubr.f32.mxu0 0.0
        %2583 = vmatmul.mubr.f32.gmra.mrb[0].mxu0 %v2503
        %v2584 = vpop.f32.mrb[0].mxu0
        %v2585 = vadd.f32 0.0, %v2584
        %v2586 = vpop.f32.mrb[0].mxu0
        %2587 = vmatprep.mubr.f32.mxu0 0.0
        %2588 = vmatmul.mubr.f32.gmra.mrb[0].mxu0 %v2505
        %v2589 = vpop.f32.mrb[0].mxu0
        %v2590 = vadd.f32 0.0, %v2589
        %v2591 = vpop.f32.mrb[0].mxu0
        %2592 = vdwg.mxu0
        %2593 = vrot.lane.b32.xlu0 %v2085, 88
        %v2594 = vpop.permute.xlu0 %2593
        %2595 = vrot.lane.b32.xlu0 %v2087, 88
        %v2596 = vpop.permute.xlu0 %2595
        %2597 = vrot.lane.b32.xlu0 %v2089, 88
        %v2598 = vpop.permute.xlu0 %2597
        %v2599 = vsel %vm2108, %v2085, 0
        %v2601 = vsel %vm2108, %v2087, 0
        %v2603 = vsel %vm2108, %v2089, 0
        %v2605 = vsel %vm2108, %v2594, 0
        %v2607 = vsel %vm2108, %v2596, 0
        %v2609 = vsel %vm2108, %v2598, 0
        %2611 = vmatprep.subr.mxu0 0.0
        %2612 = vmatpush1.xpose.msra.mxu0 %v2605
        %2613 = vmatprep.subr.mxu0 0.0
        %2614 = vmatpush1.xpose.msra.mxu0 %v2607
        %2615 = vmatprep.subr.mxu0 0.0
        %2616 = vmatpush1.xpose.msra.mxu0 %v2609
        %2617 = vmatprep.subr.mxu0 0.0
        %2618 = vmatpush1.xpose.msra.mxu0 0.0
        %2619 = vmatprep.subr.mxu0 0.0
        %2620 = vmatpush1.xpose.msra.mxu0 0.0
        %2621 = vmatprep.subr.mxu0 0.0
        %2622 = vmatpush1.xpose.msra.mxu0 0.0
        %2623 = vmatprep.subr.mxu0 0.0
        %2624 = vmatpush1.xpose.msra.mxu0 0.0
        %2625 = vmatprep.subr.mxu0 0.0
        %2626 = vmatpush1.xpose.msra.mxu0 0.0
        %2627 = vmatprep.subr.mxu0 0.0
        %2628 = vmatpush1.xpose.msra.mxu0 0.0
        %2629 = vmatprep.subr.mxu0 0.0
        %2630 = vmatpush1.xpose.msra.mxu0 0.0
        %2631 = vmatprep.subr.mxu0 0.0
        %2632 = vmatpush1.xpose.msra.mxu0 0.0
        %2633 = vmatprep.subr.mxu0 0.0
        %2634 = vmatpush1.xpose.msra.mxu0 0.0
        %2635 = vmatprep.subr.mxu0 0.0
        %2636 = vmatpush1.xpose.msra.mxu0 0.0
        %2637 = vmatprep.subr.mxu0 0.0
        %2638 = vmatpush1.xpose.msra.mxu0 0.0
        %2639 = vmatprep.subr.mxu0 0.0
        %2640 = vmatpush1.xpose.msra.mxu0 0.0
        %2641 = vmatprep.subr.mxu0 0.0
        %2642 = vmatpush1.xpose.msra.mxu0 0.0
        %2643 = vmatprep.subr.mxu0 0.0
        %2644 = vmatpush1.xpose.msra.mxu0 0.0
        %2645 = vmatprep.subr.mxu0 0.0
        %2646 = vmatpush1.xpose.msra.mxu0 0.0
        %2647 = vmatprep.subr.mxu0 0.0
        %2648 = vmatpush1.xpose.msra.mxu0 0.0
        %2649 = vmatprep.subr.mxu0 0.0
        %2650 = vmatpush1.xpose.msra.mxu0 0.0
        %2651 = vmatprep.subr.mxu0 0.0
        %2652 = vmatpush1.xpose.msra.mxu0 0.0
        %2653 = vmatprep.subr.mxu0 0.0
        %2654 = vmatpush1.xpose.msra.mxu0 0.0
        %2655 = vmatprep.subr.mxu0 0.0
        %2656 = vmatpush1.xpose.msra.mxu0 0.0
        %2657 = vmatprep.subr.mxu0 0.0
        %2658 = vmatpush1.xpose.msra.mxu0 0.0
        %2659 = vmatprep.subr.mxu0 0.0
        %2660 = vmatpush1.xpose.msra.mxu0 0.0
        %2661 = vmatprep.subr.mxu0 0.0
        %2662 = vmatpush1.xpose.msra.mxu0 0.0
        %2663 = vmatprep.subr.mxu0 0.0
        %2664 = vmatpush1.xpose.msra.mxu0 0.0
        %2665 = vmatprep.subr.mxu0 0.0
        %2666 = vmatpush1.xpose.msra.mxu0 0.0
        %2667 = vmatprep.subr.mxu0 0.0
        %2668 = vmatpush1.xpose.msra.mxu0 0.0
        %2669 = vmatprep.subr.mxu0 0.0
        %2670 = vmatpush1.xpose.msra.mxu0 0.0
        %2671 = vmatprep.subr.mxu0 0.0
        %2672 = vmatpush1.xpose.msra.mxu0 0.0
        %2673 = vmatprep.subr.mxu0 0.0
        %2674 = vmatpush1.xpose.msra.mxu0 0.0
        %2675 = vmatprep.mubr.f32.mxu0 0.0
        %2676 = vmatmul.mubr.f32.gmra.mrb[0].mxu0 %v2599
        %v2677 = vpop.f32.mrb[0].mxu0
        %v2678 = vadd.f32 0.0, %v2677
        %v2679 = vpop.f32.mrb[0].mxu0
        %2680 = vmatprep.mubr.f32.mxu0 0.0
        %2681 = vmatmul.mubr.f32.gmra.mrb[0].mxu0 %v2601
        %v2682 = vpop.f32.mrb[0].mxu0
        %v2683 = vadd.f32 0.0, %v2682
        %v2684 = vpop.f32.mrb[0].mxu0
        %2685 = vmatprep.mubr.f32.mxu0 0.0
        %2686 = vmatmul.mubr.f32.gmra.mrb[0].mxu0 %v2603
        %v2687 = vpop.f32.mrb[0].mxu0
        %v2688 = vadd.f32 0.0, %v2687
        %v2689 = vpop.f32.mrb[0].mxu0
        %2690 = vdwg.mxu0
        %2691 = vrot.lane.b32.xlu0 %v2091, 88
        %v2692 = vpop.permute.xlu0 %2691
        %2693 = vrot.lane.b32.xlu0 %v2093, 88
        %v2694 = vpop.permute.xlu0 %2693
        %2695 = vrot.lane.b32.xlu0 %v2095, 88
        %v2696 = vpop.permute.xlu0 %2695
        %v2697 = vsel %vm2108, %v2091, 0
        %v2699 = vsel %vm2108, %v2093, 0
        %v2701 = vsel %vm2108, %v2095, 0
        %v2703 = vsel %vm2108, %v2692, 0
        %v2705 = vsel %vm2108, %v2694, 0
        %v2707 = vsel %vm2108, %v2696, 0
        %2709 = vmatprep.subr.mxu0 0.0
        %2710 = vmatpush1.xpose.msra.mxu0 %v2703
        %2711 = vmatprep.subr.mxu0 0.0
        %2712 = vmatpush1.xpose.msra.mxu0 %v2705
        %2713 = vmatprep.subr.mxu0 0.0
        %2714 = vmatpush1.xpose.msra.mxu0 %v2707
        %2715 = vmatprep.subr.mxu0 0.0
        %2716 = vmatpush1.xpose.msra.mxu0 0.0
        %2717 = vmatprep.subr.mxu0 0.0
        %2718 = vmatpush1.xpose.msra.mxu0 0.0
        %2719 = vmatprep.subr.mxu0 0.0
        %2720 = vmatpush1.xpose.msra.mxu0 0.0
        %2721 = vmatprep.subr.mxu0 0.0
        %2722 = vmatpush1.xpose.msra.mxu0 0.0
        %2723 = vmatprep.subr.mxu0 0.0
        %2724 = vmatpush1.xpose.msra.mxu0 0.0
        %2725 = vmatprep.subr.mxu0 0.0
        %2726 = vmatpush1.xpose.msra.mxu0 0.0
        %2727 = vmatprep.subr.mxu0 0.0
        %2728 = vmatpush1.xpose.msra.mxu0 0.0
        %2729 = vmatprep.subr.mxu0 0.0
        %2730 = vmatpush1.xpose.msra.mxu0 0.0
        %2731 = vmatprep.subr.mxu0 0.0
        %2732 = vmatpush1.xpose.msra.mxu0 0.0
        %2733 = vmatprep.subr.mxu0 0.0
        %2734 = vmatpush1.xpose.msra.mxu0 0.0
        %2735 = vmatprep.subr.mxu0 0.0
        %2736 = vmatpush1.xpose.msra.mxu0 0.0
        %2737 = vmatprep.subr.mxu0 0.0
        %2738 = vmatpush1.xpose.msra.mxu0 0.0
        %2739 = vmatprep.subr.mxu0 0.0
        %2740 = vmatpush1.xpose.msra.mxu0 0.0
        %2741 = vmatprep.subr.mxu0 0.0
        %2742 = vmatpush1.xpose.msra.mxu0 0.0
        %2743 = vmatprep.subr.mxu0 0.0
        %2744 = vmatpush1.xpose.msra.mxu0 0.0
        %2745 = vmatprep.subr.mxu0 0.0
        %2746 = vmatpush1.xpose.msra.mxu0 0.0
        %2747 = vmatprep.subr.mxu0 0.0
        %2748 = vmatpush1.xpose.msra.mxu0 0.0
        %2749 = vmatprep.subr.mxu0 0.0
        %2750 = vmatpush1.xpose.msra.mxu0 0.0
        %2751 = vmatprep.subr.mxu0 0.0
        %2752 = vmatpush1.xpose.msra.mxu0 0.0
        %2753 = vmatprep.subr.mxu0 0.0
        %2754 = vmatpush1.xpose.msra.mxu0 0.0
        %2755 = vmatprep.subr.mxu0 0.0
        %2756 = vmatpush1.xpose.msra.mxu0 0.0
        %2757 = vmatprep.subr.mxu0 0.0
        %2758 = vmatpush1.xpose.msra.mxu0 0.0
        %2759 = vmatprep.subr.mxu0 0.0
        %2760 = vmatpush1.xpose.msra.mxu0 0.0
        %2761 = vmatprep.subr.mxu0 0.0
        %2762 = vmatpush1.xpose.msra.mxu0 0.0
        %2763 = vmatprep.subr.mxu0 0.0
        %2764 = vmatpush1.xpose.msra.mxu0 0.0
        %2765 = vmatprep.subr.mxu0 0.0
        %2766 = vmatpush1.xpose.msra.mxu0 0.0
        %2767 = vmatprep.subr.mxu0 0.0
        %2768 = vmatpush1.xpose.msra.mxu0 0.0
        %2769 = vmatprep.subr.mxu0 0.0
        %2770 = vmatpush1.xpose.msra.mxu0 0.0
        %2771 = vmatprep.subr.mxu0 0.0
        %2772 = vmatpush1.xpose.msra.mxu0 0.0
        %2773 = vmatprep.mubr.f32.mxu0 0.0
        %2774 = vmatmul.mubr.f32.gmra.mrb[0].mxu0 %v2697
        %v2775 = vpop.f32.mrb[0].mxu0
        %v2776 = vadd.f32 0.0, %v2775
        %v2777 = vpop.f32.mrb[0].mxu0
        %2778 = vmatprep.mubr.f32.mxu0 0.0
        %2779 = vmatmul.mubr.f32.gmra.mrb[0].mxu0 %v2699
        %v2780 = vpop.f32.mrb[0].mxu0
        %v2781 = vadd.f32 0.0, %v2780
        %v2782 = vpop.f32.mrb[0].mxu0
        %2783 = vmatprep.mubr.f32.mxu0 0.0
        %2784 = vmatmul.mubr.f32.gmra.mrb[0].mxu0 %v2701
        %v2785 = vpop.f32.mrb[0].mxu0
        %v2786 = vadd.f32 0.0, %v2785
        %v2787 = vpop.f32.mrb[0].mxu0
        %2788 = vdwg.mxu0
        %2789 = vrot.lane.b32.xlu0 %v2097, 88
        %v2790 = vpop.permute.xlu0 %2789
        %2791 = vrot.lane.b32.xlu0 %v2099, 88
        %v2792 = vpop.permute.xlu0 %2791
        %2793 = vrot.lane.b32.xlu0 %v2101, 88
        %v2794 = vpop.permute.xlu0 %2793
        %v2795 = vsel %vm2108, %v2097, 0
        %v2797 = vsel %vm2108, %v2099, 0
        %v2799 = vsel %vm2108, %v2101, 0
        %v2801 = vsel %vm2108, %v2790, 0
        %v2803 = vsel %vm2108, %v2792, 0
        %v2805 = vsel %vm2108, %v2794, 0
        %2807 = vmatprep.subr.mxu0 0.0
        %2808 = vmatpush1.xpose.msra.mxu0 %v2801
        %2809 = vmatprep.subr.mxu0 0.0
        %2810 = vmatpush1.xpose.msra.mxu0 %v2803
        %2811 = vmatprep.subr.mxu0 0.0
        %2812 = vmatpush1.xpose.msra.mxu0 %v2805
        %2813 = vmatprep.subr.mxu0 0.0
        %2814 = vmatpush1.xpose.msra.mxu0 0.0
        %2815 = vmatprep.subr.mxu0 0.0
        %2816 = vmatpush1.xpose.msra.mxu0 0.0
        %2817 = vmatprep.subr.mxu0 0.0
        %2818 = vmatpush1.xpose.msra.mxu0 0.0
        %2819 = vmatprep.subr.mxu0 0.0
        %2820 = vmatpush1.xpose.msra.mxu0 0.0
        %2821 = vmatprep.subr.mxu0 0.0
        %2822 = vmatpush1.xpose.msra.mxu0 0.0
        %2823 = vmatprep.subr.mxu0 0.0
        %2824 = vmatpush1.xpose.msra.mxu0 0.0
        %2825 = vmatprep.subr.mxu0 0.0
        %2826 = vmatpush1.xpose.msra.mxu0 0.0
        %2827 = vmatprep.subr.mxu0 0.0
        %2828 = vmatpush1.xpose.msra.mxu0 0.0
        %2829 = vmatprep.subr.mxu0 0.0
        %2830 = vmatpush1.xpose.msra.mxu0 0.0
        %2831 = vmatprep.subr.mxu0 0.0
        %2832 = vmatpush1.xpose.msra.mxu0 0.0
        %2833 = vmatprep.subr.mxu0 0.0
        %2834 = vmatpush1.xpose.msra.mxu0 0.0
        %2835 = vmatprep.subr.mxu0 0.0
        %2836 = vmatpush1.xpose.msra.mxu0 0.0
        %2837 = vmatprep.subr.mxu0 0.0
        %2838 = vmatpush1.xpose.msra.mxu0 0.0
        %2839 = vmatprep.subr.mxu0 0.0
        %2840 = vmatpush1.xpose.msra.mxu0 0.0
        %2841 = vmatprep.subr.mxu0 0.0
        %2842 = vmatpush1.xpose.msra.mxu0 0.0
        %2843 = vmatprep.subr.mxu0 0.0
        %2844 = vmatpush1.xpose.msra.mxu0 0.0
        %2845 = vmatprep.subr.mxu0 0.0
        %2846 = vmatpush1.xpose.msra.mxu0 0.0
        %2847 = vmatprep.subr.mxu0 0.0
        %2848 = vmatpush1.xpose.msra.mxu0 0.0
        %2849 = vmatprep.subr.mxu0 0.0
        %2850 = vmatpush1.xpose.msra.mxu0 0.0
        %2851 = vmatprep.subr.mxu0 0.0
        %2852 = vmatpush1.xpose.msra.mxu0 0.0
        %2853 = vmatprep.subr.mxu0 0.0
        %2854 = vmatpush1.xpose.msra.mxu0 0.0
        %2855 = vmatprep.subr.mxu0 0.0
        %2856 = vmatpush1.xpose.msra.mxu0 0.0
        %2857 = vmatprep.subr.mxu0 0.0
        %2858 = vmatpush1.xpose.msra.mxu0 0.0
        %2859 = vmatprep.subr.mxu0 0.0
        %2860 = vmatpush1.xpose.msra.mxu0 0.0
        %2861 = vmatprep.subr.mxu0 0.0
        %2862 = vmatpush1.xpose.msra.mxu0 0.0
        %2863 = vmatprep.subr.mxu0 0.0
        %2864 = vmatpush1.xpose.msra.mxu0 0.0
        %2865 = vmatprep.subr.mxu0 0.0
        %2866 = vmatpush1.xpose.msra.mxu0 0.0
        %2867 = vmatprep.subr.mxu0 0.0
        %2868 = vmatpush1.xpose.msra.mxu0 0.0
        %2869 = vmatprep.subr.mxu0 0.0
        %2870 = vmatpush1.xpose.msra.mxu0 0.0
        %2871 = vmatprep.mubr.f32.mxu0 0.0
        %2872 = vmatmul.mubr.f32.gmra.mrb[0].mxu0 %v2795
        %v2873 = vpop.f32.mrb[0].mxu0
        %v2874 = vadd.f32 0.0, %v2873
        %v2875 = vpop.f32.mrb[0].mxu0
        %2876 = vmatprep.mubr.f32.mxu0 0.0
        %2877 = vmatmul.mubr.f32.gmra.mrb[0].mxu0 %v2797
        %v2878 = vpop.f32.mrb[0].mxu0
        %v2879 = vadd.f32 0.0, %v2878
        %v2880 = vpop.f32.mrb[0].mxu0
        %2881 = vmatprep.mubr.f32.mxu0 0.0
        %2882 = vmatmul.mubr.f32.gmra.mrb[0].mxu0 %v2799
        %v2883 = vpop.f32.mrb[0].mxu0
        %v2884 = vadd.f32 0.0, %v2883
        %v2885 = vpop.f32.mrb[0].mxu0
        %2886 = vdwg.mxu0
        %v2887 = vmul.f32 %v2188, 0.4472136
        %v2888 = vmul.f32 %v2193, 0.4472136
        %v2889 = vmul.f32 %v2198, 0.4472136
        %v2890 = vmul.f32 %v2286, 0.4472136
        %v2891 = vmul.f32 %v2291, 0.4472136
        %v2892 = vmul.f32 %v2296, 0.4472136
        %v2893 = vmul.f32 %v2384, 0.4472136
        %v2894 = vmul.f32 %v2389, 0.4472136
        %v2895 = vmul.f32 %v2394, 0.4472136
        %v2896 = vmul.f32 %v2482, 0.4472136
        %v2897 = vmul.f32 %v2487, 0.4472136
        %v2898 = vmul.f32 %v2492, 0.4472136
        %v2899 = vmul.f32 %v2580, 0.4472136
        %v2900 = vmul.f32 %v2585, 0.4472136
        %v2901 = vmul.f32 %v2590, 0.4472136
        %v2902 = vmul.f32 %v2678, 0.4472136
        %v2903 = vmul.f32 %v2683, 0.4472136
        %v2904 = vmul.f32 %v2688, 0.4472136
        %v2905 = vmul.f32 %v2776, 0.4472136
        %v2906 = vmul.f32 %v2781, 0.4472136
        %v2907 = vmul.f32 %v2786, 0.4472136
        %v2908 = vmul.f32 %v2874, 0.4472136
        %v2909 = vmul.f32 %v2879, 0.4472136
        %v2910 = vmul.f32 %v2884, 0.4472136
        %v2911 = vadd.f32 %v2887, %v1897
        %v2912 = vadd.f32 %v2888, %v1898
        %v2913 = vadd.f32 %v2889, %v1899
        %v2914 = vadd.f32 %v2890, %v1897
        %v2915 = vadd.f32 %v2891, %v1898
        %v2916 = vadd.f32 %v2892, %v1899
        %v2917 = vadd.f32 %v2893, %v1897
        %v2918 = vadd.f32 %v2894, %v1898
        %v2919 = vadd.f32 %v2895, %v1899
        %v2920 = vadd.f32 %v2896, %v1897
        %v2921 = vadd.f32 %v2897, %v1898
        %v2922 = vadd.f32 %v2898, %v1899
        %v2923 = vadd.f32 %v2899, %v1897
        %v2924 = vadd.f32 %v2900, %v1898
        %v2925 = vadd.f32 %v2901, %v1899
        %v2926 = vadd.f32 %v2902, %v1897
        %v2927 = vadd.f32 %v2903, %v1898
        %v2928 = vadd.f32 %v2904, %v1899
        %v2929 = vadd.f32 %v2905, %v1897
        %v2930 = vadd.f32 %v2906, %v1898
        %v2931 = vadd.f32 %v2907, %v1899
        %v2932 = vadd.f32 %v2908, %v1897
        %v2933 = vadd.f32 %v2909, %v1898
        %v2934 = vadd.f32 %v2910, %v1899
        %vm2935 = vcmask 179200
        %v2936 = vsel %vm2935, %v2911, -inf
        %2937 = vmax.xlane.f32.xlu0 %v2936
        %v2938 = vpop.xlane.xlu0 %2937
        %v2939 = vsel %vm2935, %v2912, -inf
        %2940 = vmax.xlane.f32.xlu0 %v2939
        %v2941 = vpop.xlane.xlu0 %2940
        %vm2942 = vcmask 177152
        %v2943 = vsel %vm2942, %v2913, -inf
        %2944 = vmax.xlane.f32.xlu0 %v2943
        %v2945 = vpop.xlane.xlu0 %2944
        %v2946 = vsel %vm2935, %v2914, -inf
        %2947 = vmax.xlane.f32.xlu0 %v2946
        %v2948 = vpop.xlane.xlu0 %2947
        %v2949 = vsel %vm2935, %v2915, -inf
        %2950 = vmax.xlane.f32.xlu0 %v2949
        %v2951 = vpop.xlane.xlu0 %2950
        %v2952 = vsel %vm2942, %v2916, -inf
        %2953 = vmax.xlane.f32.xlu0 %v2952
        %v2954 = vpop.xlane.xlu0 %2953
        %v2955 = vsel %vm2935, %v2917, -inf
        %2956 = vmax.xlane.f32.xlu0 %v2955
        %v2957 = vpop.xlane.xlu0 %2956
        %v2958 = vsel %vm2935, %v2918, -inf
        %2959 = vmax.xlane.f32.xlu0 %v2958
        %v2960 = vpop.xlane.xlu0 %2959
        %v2961 = vsel %vm2942, %v2919, -inf
        %2962 = vmax.xlane.f32.xlu0 %v2961
        %v2963 = vpop.xlane.xlu0 %2962
        %v2964 = vsel %vm2935, %v2920, -inf
        %2965 = vmax.xlane.f32.xlu0 %v2964
        %v2966 = vpop.xlane.xlu0 %2965
        %v2967 = vsel %vm2935, %v2921, -inf
        %2968 = vmax.xlane.f32.xlu0 %v2967
        %v2969 = vpop.xlane.xlu0 %2968
        %v2970 = vsel %vm2942, %v2922, -inf
        %2971 = vmax.xlane.f32.xlu0 %v2970
        %v2972 = vpop.xlane.xlu0 %2971
        %v2973 = vsel %vm2935, %v2923, -inf
        %2974 = vmax.xlane.f32.xlu0 %v2973
        %v2975 = vpop.xlane.xlu0 %2974
        %v2976 = vsel %vm2935, %v2924, -inf
        %2977 = vmax.xlane.f32.xlu0 %v2976
        %v2978 = vpop.xlane.xlu0 %2977
        %v2979 = vsel %vm2942, %v2925, -inf
        %2980 = vmax.xlane.f32.xlu0 %v2979
        %v2981 = vpop.xlane.xlu0 %2980
        %v2982 = vsel %vm2935, %v2926, -inf
        %2983 = vmax.xlane.f32.xlu0 %v2982
        %v2984 = vpop.xlane.xlu0 %2983
        %v2985 = vsel %vm2935, %v2927, -inf
        %2986 = vmax.xlane.f32.xlu0 %v2985
        %v2987 = vpop.xlane.xlu0 %2986
        %v2988 = vsel %vm2942, %v2928, -inf
        %2989 = vmax.xlane.f32.xlu0 %v2988
        %v2990 = vpop.xlane.xlu0 %2989
        %v2991 = vsel %vm2935, %v2929, -inf
        %2992 = vmax.xlane.f32.xlu0 %v2991
        %v2993 = vpop.xlane.xlu0 %2992
        %v2994 = vsel %vm2935, %v2930, -inf
        %2995 = vmax.xlane.f32.xlu0 %v2994
        %v2996 = vpop.xlane.xlu0 %2995
        %v2997 = vsel %vm2942, %v2931, -inf
        %2998 = vmax.xlane.f32.xlu0 %v2997
        %v2999 = vpop.xlane.xlu0 %2998
        %v3000 = vsel %vm2935, %v2932, -inf
        %3001 = vmax.xlane.f32.xlu0 %v3000
        %v3002 = vpop.xlane.xlu0 %3001
        %v3003 = vsel %vm2935, %v2933, -inf
        %3004 = vmax.xlane.f32.xlu0 %v3003
        %v3005 = vpop.xlane.xlu0 %3004
        %v3006 = vsel %vm2942, %v2934, -inf
        %3007 = vmax.xlane.f32.xlu0 %v3006
        %v3008 = vpop.xlane.xlu0 %3007
        %v3009 = vsub.f32 %v2911, %v2938
        %v3010 = vsub.f32 %v2912, %v2941
        %v3011 = vsub.f32 %v2913, %v2945
        %v3012 = vsub.f32 %v2914, %v2948
        %v3013 = vsub.f32 %v2915, %v2951
        %v3014 = vsub.f32 %v2916, %v2954
        %v3015 = vsub.f32 %v2917, %v2957
        %v3016 = vsub.f32 %v2918, %v2960
        %v3017 = vsub.f32 %v2919, %v2963
        %v3018 = vsub.f32 %v2920, %v2966
        %v3019 = vsub.f32 %v2921, %v2969
        %v3020 = vsub.f32 %v2922, %v2972
        %v3021 = vsub.f32 %v2923, %v2975
        %v3022 = vsub.f32 %v2924, %v2978
        %v3023 = vsub.f32 %v2925, %v2981
        %v3024 = vsub.f32 %v2926, %v2984
        %v3025 = vsub.f32 %v2927, %v2987
        %v3026 = vsub.f32 %v2928, %v2990
        %v3027 = vsub.f32 %v2929, %v2993
        %v3028 = vsub.f32 %v2930, %v2996
        %v3029 = vsub.f32 %v2931, %v2999
        %v3030 = vsub.f32 %v2932, %v3002
        %v3031 = vsub.f32 %v2933, %v3005
        %v3032 = vsub.f32 %v2934, %v3008
        %v3033 = vmul.f32 %v3009, 1.442695
        %v3034 = vpow.pop %v3033
        %v3035 = vmul.f32 %v3010, 1.442695
        %v3036 = vpow.pop %v3035
        %v3037 = vmul.f32 %v3011, 1.442695
        %v3038 = vpow.pop %v3037
        %v3039 = vmul.f32 %v3012, 1.442695
        %v3040 = vpow.pop %v3039
        %v3041 = vmul.f32 %v3013, 1.442695
        %v3042 = vpow.pop %v3041
        %v3043 = vmul.f32 %v3014, 1.442695
        %v3044 = vpow.pop %v3043
        %v3045 = vmul.f32 %v3015, 1.442695
        %v3046 = vpow.pop %v3045
        %v3047 = vmul.f32 %v3016, 1.442695
        %v3048 = vpow.pop %v3047
        %v3049 = vmul.f32 %v3017, 1.442695
        %v3050 = vpow.pop %v3049
        %v3051 = vmul.f32 %v3018, 1.442695
        %v3052 = vpow.pop %v3051
        %v3053 = vmul.f32 %v3019, 1.442695
        %v3054 = vpow.pop %v3053
        %v3055 = vmul.f32 %v3020, 1.442695
        %v3056 = vpow.pop %v3055
        %v3057 = vmul.f32 %v3021, 1.442695
        %v3058 = vpow.pop %v3057
        %v3059 = vmul.f32 %v3022, 1.442695
        %v3060 = vpow.pop %v3059
        %v3061 = vmul.f32 %v3023, 1.442695
        %v3062 = vpow.pop %v3061
        %v3063 = vmul.f32 %v3024, 1.442695
        %v3064 = vpow.pop %v3063
        %v3065 = vmul.f32 %v3025, 1.442695
        %v3066 = vpow.pop %v3065
        %v3067 = vmul.f32 %v3026, 1.442695
        %v3068 = vpow.pop %v3067
        %v3069 = vmul.f32 %v3027, 1.442695
        %v3070 = vpow.pop %v3069
        %v3071 = vmul.f32 %v3028, 1.442695
        %v3072 = vpow.pop %v3071
        %v3073 = vmul.f32 %v3029, 1.442695
        %v3074 = vpow.pop %v3073
        %v3075 = vmul.f32 %v3030, 1.442695
        %v3076 = vpow.pop %v3075
        %v3077 = vmul.f32 %v3031, 1.442695
        %v3078 = vpow.pop %v3077
        %v3079 = vmul.f32 %v3032, 1.442695
        %v3080 = vpow.pop %v3079
        %v3081 = vsel %vm2935, %v3034, 0.0
        %3082 = vadd.xlane.f32.xlu0 %v3081
        %v3083 = vpop.xlane.xlu0 %3082
        %v3084 = vsel %vm2935, %v3036, 0.0
        %3085 = vadd.xlane.f32.xlu0 %v3084
        %v3086 = vpop.xlane.xlu0 %3085
        %v3087 = vsel %vm2942, %v3038, 0.0
        %3088 = vadd.xlane.f32.xlu0 %v3087
        %v3089 = vpop.xlane.xlu0 %3088
        %v3090 = vsel %vm2935, %v3040, 0.0
        %3091 = vadd.xlane.f32.xlu0 %v3090
        %v3092 = vpop.xlane.xlu0 %3091
        %v3093 = vsel %vm2935, %v3042, 0.0
        %3094 = vadd.xlane.f32.xlu0 %v3093
        %v3095 = vpop.xlane.xlu0 %3094
        %v3096 = vsel %vm2942, %v3044, 0.0
        %3097 = vadd.xlane.f32.xlu0 %v3096
        %v3098 = vpop.xlane.xlu0 %3097
        %v3099 = vsel %vm2935, %v3046, 0.0
        %3100 = vadd.xlane.f32.xlu0 %v3099
        %v3101 = vpop.xlane.xlu0 %3100
        %v3102 = vsel %vm2935, %v3048, 0.0
        %3103 = vadd.xlane.f32.xlu0 %v3102
        %v3104 = vpop.xlane.xlu0 %3103
        %v3105 = vsel %vm2942, %v3050, 0.0
        %3106 = vadd.xlane.f32.xlu0 %v3105
        %v3107 = vpop.xlane.xlu0 %3106
        %v3108 = vsel %vm2935, %v3052, 0.0
        %3109 = vadd.xlane.f32.xlu0 %v3108
        %v3110 = vpop.xlane.xlu0 %3109
        %v3111 = vsel %vm2935, %v3054, 0.0
        %3112 = vadd.xlane.f32.xlu0 %v3111
        %v3113 = vpop.xlane.xlu0 %3112
        %v3114 = vsel %vm2942, %v3056, 0.0
        %3115 = vadd.xlane.f32.xlu0 %v3114
        %v3116 = vpop.xlane.xlu0 %3115
        %v3117 = vsel %vm2935, %v3058, 0.0
        %3118 = vadd.xlane.f32.xlu0 %v3117
        %v3119 = vpop.xlane.xlu0 %3118
        %v3120 = vsel %vm2935, %v3060, 0.0
        %3121 = vadd.xlane.f32.xlu0 %v3120
        %v3122 = vpop.xlane.xlu0 %3121
        %v3123 = vsel %vm2942, %v3062, 0.0
        %3124 = vadd.xlane.f32.xlu0 %v3123
        %v3125 = vpop.xlane.xlu0 %3124
        %v3126 = vsel %vm2935, %v3064, 0.0
        %3127 = vadd.xlane.f32.xlu0 %v3126
        %v3128 = vpop.xlane.xlu0 %3127
        %v3129 = vsel %vm2935, %v3066, 0.0
        %3130 = vadd.xlane.f32.xlu0 %v3129
        %v3131 = vpop.xlane.xlu0 %3130
        %v3132 = vsel %vm2942, %v3068, 0.0
        %3133 = vadd.xlane.f32.xlu0 %v3132
        %v3134 = vpop.xlane.xlu0 %3133
        %v3135 = vsel %vm2935, %v3070, 0.0
        %3136 = vadd.xlane.f32.xlu0 %v3135
        %v3137 = vpop.xlane.xlu0 %3136
        %v3138 = vsel %vm2935, %v3072, 0.0
        %3139 = vadd.xlane.f32.xlu0 %v3138
        %v3140 = vpop.xlane.xlu0 %3139
        %v3141 = vsel %vm2942, %v3074, 0.0
        %3142 = vadd.xlane.f32.xlu0 %v3141
        %v3143 = vpop.xlane.xlu0 %3142
        %v3144 = vsel %vm2935, %v3076, 0.0
        %3145 = vadd.xlane.f32.xlu0 %v3144
        %v3146 = vpop.xlane.xlu0 %3145
        %v3147 = vsel %vm2935, %v3078, 0.0
        %3148 = vadd.xlane.f32.xlu0 %v3147
        %v3149 = vpop.xlane.xlu0 %3148
        %v3150 = vsel %vm2942, %v3080, 0.0
        %3151 = vadd.xlane.f32.xlu0 %v3150
        %v3152 = vpop.xlane.xlu0 %3151
        %v3153 = vrcp.pop %v3083
        %v3154 = vmul.f32 %v3034, %v3153
        %v3155 = vrcp.pop %v3086
        %v3156 = vmul.f32 %v3036, %v3155
        %v3157 = vrcp.pop %v3089
        %v3158 = vmul.f32 %v3038, %v3157
        %v3159 = vrcp.pop %v3092
        %v3160 = vmul.f32 %v3040, %v3159
        %v3161 = vrcp.pop %v3095
        %v3162 = vmul.f32 %v3042, %v3161
        %v3163 = vrcp.pop %v3098
        %v3164 = vmul.f32 %v3044, %v3163
        %v3165 = vrcp.pop %v3101
        %v3166 = vmul.f32 %v3046, %v3165
        %v3167 = vrcp.pop %v3104
        %v3168 = vmul.f32 %v3048, %v3167
        %v3169 = vrcp.pop %v3107
        %v3170 = vmul.f32 %v3050, %v3169
        %v3171 = vrcp.pop %v3110
        %v3172 = vmul.f32 %v3052, %v3171
        %v3173 = vrcp.pop %v3113
        %v3174 = vmul.f32 %v3054, %v3173
        %v3175 = vrcp.pop %v3116
        %v3176 = vmul.f32 %v3056, %v3175
        %v3177 = vrcp.pop %v3119
        %v3178 = vmul.f32 %v3058, %v3177
        %v3179 = vrcp.pop %v3122
        %v3180 = vmul.f32 %v3060, %v3179
        %v3181 = vrcp.pop %v3125
        %v3182 = vmul.f32 %v3062, %v3181
        %v3183 = vrcp.pop %v3128
        %v3184 = vmul.f32 %v3064, %v3183
        %v3185 = vrcp.pop %v3131
        %v3186 = vmul.f32 %v3066, %v3185
        %v3187 = vrcp.pop %v3134
        %v3188 = vmul.f32 %v3068, %v3187
        %v3189 = vrcp.pop %v3137
        %v3190 = vmul.f32 %v3070, %v3189
        %v3191 = vrcp.pop %v3140
        %v3192 = vmul.f32 %v3072, %v3191
        %v3193 = vrcp.pop %v3143
        %v3194 = vmul.f32 %v3074, %v3193
        %v3195 = vrcp.pop %v3146
        %v3196 = vmul.f32 %v3076, %v3195
        %v3197 = vrcp.pop %v3149
        %v3198 = vmul.f32 %v3078, %v3197
        %v3199 = vrcp.pop %v3152
        %v3200 = vmul.f32 %v3080, %v3199
        %3201 = vrot.lane.b32.xlu0 %v2044, 48
        %v3202 = vpop.permute.xlu0 %3201
        %3203 = vrot.lane.b32.xlu0 %v2049, 48
        %v3204 = vpop.permute.xlu0 %3203
        %3205 = vrot.lane.b32.xlu0 %v2054, 48
        %v3206 = vpop.permute.xlu0 %3205
        %v3210 = vsel %vm2935, %v3154, 0
        %v3213 = vsel %vm2935, %v3156, 0
        %v3216 = vsel %vm2935, %v3158, 0
        %vm3218 = vcmask 1045504
        %v3219 = vsel %vm3218, %v3206, 0
        %3221 = vmatprep.subr.mxu0 0.0
        %3222 = vmatpush1.msra.mxu0 %v3202
        %3223 = vmatprep.subr.mxu0 0.0
        %3224 = vmatpush1.msra.mxu0 %v3204
        %3225 = vmatprep.subr.mxu0 0.0
        %3226 = vmatpush1.msra.mxu0 %v3219
        %3227 = vmatprep.subr.mxu0 0.0
        %3228 = vmatpush1.msra.mxu0 0.0
        %3229 = vmatprep.subr.mxu0 0.0
        %3230 = vmatpush1.msra.mxu0 0.0
        %3231 = vmatprep.subr.mxu0 0.0
        %3232 = vmatpush1.msra.mxu0 0.0
        %3233 = vmatprep.subr.mxu0 0.0
        %3234 = vmatpush1.msra.mxu0 0.0
        %3235 = vmatprep.subr.mxu0 0.0
        %3236 = vmatpush1.msra.mxu0 0.0
        %3237 = vmatprep.subr.mxu0 0.0
        %3238 = vmatpush1.msra.mxu0 0.0
        %3239 = vmatprep.subr.mxu0 0.0
        %3240 = vmatpush1.msra.mxu0 0.0
        %3241 = vmatprep.subr.mxu0 0.0
        %3242 = vmatpush1.msra.mxu0 0.0
        %3243 = vmatprep.subr.mxu0 0.0
        %3244 = vmatpush1.msra.mxu0 0.0
        %3245 = vmatprep.subr.mxu0 0.0
        %3246 = vmatpush1.msra.mxu0 0.0
        %3247 = vmatprep.subr.mxu0 0.0
        %3248 = vmatpush1.msra.mxu0 0.0
        %3249 = vmatprep.subr.mxu0 0.0
        %3250 = vmatpush1.msra.mxu0 0.0
        %3251 = vmatprep.subr.mxu0 0.0
        %3252 = vmatpush1.msra.mxu0 0.0
        %3253 = vmatprep.subr.mxu0 0.0
        %3254 = vmatpush1.msra.mxu0 0.0
        %3255 = vmatprep.subr.mxu0 0.0
        %3256 = vmatpush1.msra.mxu0 0.0
        %3257 = vmatprep.subr.mxu0 0.0
        %3258 = vmatpush1.msra.mxu0 0.0
        %3259 = vmatprep.subr.mxu0 0.0
        %3260 = vmatpush1.msra.mxu0 0.0
        %3261 = vmatprep.subr.mxu0 0.0
        %3262 = vmatpush1.msra.mxu0 0.0
        %3263 = vmatprep.subr.mxu0 0.0
        %3264 = vmatpush1.msra.mxu0 0.0
        %3265 = vmatprep.subr.mxu0 0.0
        %3266 = vmatpush1.msra.mxu0 0.0
        %3267 = vmatprep.subr.mxu0 0.0
        %3268 = vmatpush1.msra.mxu0 0.0
        %3269 = vmatprep.subr.mxu0 0.0
        %3270 = vmatpush1.msra.mxu0 0.0
        %3271 = vmatprep.subr.mxu0 0.0
        %3272 = vmatpush1.msra.mxu0 0.0
        %3273 = vmatprep.subr.mxu0 0.0
        %3274 = vmatpush1.msra.mxu0 0.0
        %3275 = vmatprep.subr.mxu0 0.0
        %3276 = vmatpush1.msra.mxu0 0.0
        %3277 = vmatprep.subr.mxu0 0.0
        %3278 = vmatpush1.msra.mxu0 0.0
        %3279 = vmatprep.subr.mxu0 0.0
        %3280 = vmatpush1.msra.mxu0 0.0
        %3281 = vmatprep.subr.mxu0 0.0
        %3282 = vmatpush1.msra.mxu0 0.0
        %3283 = vmatprep.subr.mxu0 0.0
        %3284 = vmatpush1.msra.mxu0 0.0
        %3285 = vmatprep.mubr.f32.mxu0 0.0
        %3286 = vmatmul.mubr.f32.gmra.mrb[0].mxu0 %v3210
        %v3287 = vpop.f32.mrb[0].mxu0
        %v3288 = vadd.f32 0.0, %v3287
        %v3289 = vpop.f32.mrb[0].mxu0
        %3290 = vmatprep.mubr.f32.mxu0 0.0
        %3291 = vmatmul.mubr.f32.gmra.mrb[0].mxu0 %v3213
        %v3292 = vpop.f32.mrb[0].mxu0
        %v3293 = vadd.f32 0.0, %v3292
        %v3294 = vpop.f32.mrb[0].mxu0
        %3295 = vmatprep.mubr.f32.mxu0 0.0
        %3296 = vmatmul.mubr.f32.gmra.mrb[0].mxu0 %v3216
        %v3297 = vpop.f32.mrb[0].mxu0
        %v3298 = vadd.f32 0.0, %v3297
        %v3299 = vpop.f32.mrb[0].mxu0
        %3300 = vdwg.mxu0
        %3301 = vrot.lane.b32.xlu0 %v2061, 48
        %v3302 = vpop.permute.xlu0 %3301
        %3303 = vrot.lane.b32.xlu0 %v2063, 48
        %v3304 = vpop.permute.xlu0 %3303
        %3305 = vrot.lane.b32.xlu0 %v2065, 48
        %v3306 = vpop.permute.xlu0 %3305
        %v3310 = vsel %vm2935, %v3160, 0
        %v3313 = vsel %vm2935, %v3162, 0
        %v3316 = vsel %vm2935, %v3164, 0
        %v3318 = vsel %vm3218, %v3306, 0
        %3320 = vmatprep.subr.mxu0 0.0
        %3321 = vmatpush1.msra.mxu0 %v3302
        %3322 = vmatprep.subr.mxu0 0.0
        %3323 = vmatpush1.msra.mxu0 %v3304
        %3324 = vmatprep.subr.mxu0 0.0
        %3325 = vmatpush1.msra.mxu0 %v3318
        %3326 = vmatprep.subr.mxu0 0.0
        %3327 = vmatpush1.msra.mxu0 0.0
        %3328 = vmatprep.subr.mxu0 0.0
        %3329 = vmatpush1.msra.mxu0 0.0
        %3330 = vmatprep.subr.mxu0 0.0
        %3331 = vmatpush1.msra.mxu0 0.0
        %3332 = vmatprep.subr.mxu0 0.0
        %3333 = vmatpush1.msra.mxu0 0.0
        %3334 = vmatprep.subr.mxu0 0.0
        %3335 = vmatpush1.msra.mxu0 0.0
        %3336 = vmatprep.subr.mxu0 0.0
        %3337 = vmatpush1.msra.mxu0 0.0
        %3338 = vmatprep.subr.mxu0 0.0
        %3339 = vmatpush1.msra.mxu0 0.0
        %3340 = vmatprep.subr.mxu0 0.0
        %3341 = vmatpush1.msra.mxu0 0.0
        %3342 = vmatprep.subr.mxu0 0.0
        %3343 = vmatpush1.msra.mxu0 0.0
        %3344 = vmatprep.subr.mxu0 0.0
        %3345 = vmatpush1.msra.mxu0 0.0
        %3346 = vmatprep.subr.mxu0 0.0
        %3347 = vmatpush1.msra.mxu0 0.0
        %3348 = vmatprep.subr.mxu0 0.0
        %3349 = vmatpush1.msra.mxu0 0.0
        %3350 = vmatprep.subr.mxu0 0.0
        %3351 = vmatpush1.msra.mxu0 0.0
        %3352 = vmatprep.subr.mxu0 0.0
        %3353 = vmatpush1.msra.mxu0 0.0
        %3354 = vmatprep.subr.mxu0 0.0
        %3355 = vmatpush1.msra.mxu0 0.0
        %3356 = vmatprep.subr.mxu0 0.0
        %3357 = vmatpush1.msra.mxu0 0.0
        %3358 = vmatprep.subr.mxu0 0.0
        %3359 = vmatpush1.msra.mxu0 0.0
        %3360 = vmatprep.subr.mxu0 0.0
        %3361 = vmatpush1.msra.mxu0 0.0
        %3362 = vmatprep.subr.mxu0 0.0
        %3363 = vmatpush1.msra.mxu0 0.0
        %3364 = vmatprep.subr.mxu0 0.0
        %3365 = vmatpush1.msra.mxu0 0.0
        %3366 = vmatprep.subr.mxu0 0.0
        %3367 = vmatpush1.msra.mxu0 0.0
        %3368 = vmatprep.subr.mxu0 0.0
        %3369 = vmatpush1.msra.mxu0 0.0
        %3370 = vmatprep.subr.mxu0 0.0
        %3371 = vmatpush1.msra.mxu0 0.0
        %3372 = vmatprep.subr.mxu0 0.0
        %3373 = vmatpush1.msra.mxu0 0.0
        %3374 = vmatprep.subr.mxu0 0.0
        %3375 = vmatpush1.msra.mxu0 0.0
        %3376 = vmatprep.subr.mxu0 0.0
        %3377 = vmatpush1.msra.mxu0 0.0
        %3378 = vmatprep.subr.mxu0 0.0
        %3379 = vmatpush1.msra.mxu0 0.0
        %3380 = vmatprep.subr.mxu0 0.0
        %3381 = vmatpush1.msra.mxu0 0.0
        %3382 = vmatprep.subr.mxu0 0.0
        %3383 = vmatpush1.msra.mxu0 0.0
        %3384 = vmatprep.mubr.f32.mxu0 0.0
        %3385 = vmatmul.mubr.f32.gmra.mrb[0].mxu0 %v3310
        %v3386 = vpop.f32.mrb[0].mxu0
        %v3387 = vadd.f32 0.0, %v3386
        %v3388 = vpop.f32.mrb[0].mxu0
        %3389 = vmatprep.mubr.f32.mxu0 0.0
        %3390 = vmatmul.mubr.f32.gmra.mrb[0].mxu0 %v3313
        %v3391 = vpop.f32.mrb[0].mxu0
        %v3392 = vadd.f32 0.0, %v3391
        %v3393 = vpop.f32.mrb[0].mxu0
        %3394 = vmatprep.mubr.f32.mxu0 0.0
        %3395 = vmatmul.mubr.f32.gmra.mrb[0].mxu0 %v3316
        %v3396 = vpop.f32.mrb[0].mxu0
        %v3397 = vadd.f32 0.0, %v3396
        %v3398 = vpop.f32.mrb[0].mxu0
        %3399 = vdwg.mxu0
        %3400 = vrot.lane.b32.xlu0 %v2067, 48
        %v3401 = vpop.permute.xlu0 %3400
        %3402 = vrot.lane.b32.xlu0 %v2069, 48
        %v3403 = vpop.permute.xlu0 %3402
        %3404 = vrot.lane.b32.xlu0 %v2071, 48
        %v3405 = vpop.permute.xlu0 %3404
        %v3409 = vsel %vm2935, %v3166, 0
        %v3412 = vsel %vm2935, %v3168, 0
        %v3415 = vsel %vm2935, %v3170, 0
        %v3417 = vsel %vm3218, %v3405, 0
        %3419 = vmatprep.subr.mxu0 0.0
        %3420 = vmatpush1.msra.mxu0 %v3401
        %3421 = vmatprep.subr.mxu0 0.0
        %3422 = vmatpush1.msra.mxu0 %v3403
        %3423 = vmatprep.subr.mxu0 0.0
        %3424 = vmatpush1.msra.mxu0 %v3417
        %3425 = vmatprep.subr.mxu0 0.0
        %3426 = vmatpush1.msra.mxu0 0.0
        %3427 = vmatprep.subr.mxu0 0.0
        %3428 = vmatpush1.msra.mxu0 0.0
        %3429 = vmatprep.subr.mxu0 0.0
        %3430 = vmatpush1.msra.mxu0 0.0
        %3431 = vmatprep.subr.mxu0 0.0
        %3432 = vmatpush1.msra.mxu0 0.0
        %3433 = vmatprep.subr.mxu0 0.0
        %3434 = vmatpush1.msra.mxu0 0.0
        %3435 = vmatprep.subr.mxu0 0.0
        %3436 = vmatpush1.msra.mxu0 0.0
        %3437 = vmatprep.subr.mxu0 0.0
        %3438 = vmatpush1.msra.mxu0 0.0
        %3439 = vmatprep.subr.mxu0 0.0
        %3440 = vmatpush1.msra.mxu0 0.0
        %3441 = vmatprep.subr.mxu0 0.0
        %3442 = vmatpush1.msra.mxu0 0.0
        %3443 = vmatprep.subr.mxu0 0.0
        %3444 = vmatpush1.msra.mxu0 0.0
        %3445 = vmatprep.subr.mxu0 0.0
        %3446 = vmatpush1.msra.mxu0 0.0
        %3447 = vmatprep.subr.mxu0 0.0
        %3448 = vmatpush1.msra.mxu0 0.0
        %3449 = vmatprep.subr.mxu0 0.0
        %3450 = vmatpush1.msra.mxu0 0.0
        %3451 = vmatprep.subr.mxu0 0.0
        %3452 = vmatpush1.msra.mxu0 0.0
        %3453 = vmatprep.subr.mxu0 0.0
        %3454 = vmatpush1.msra.mxu0 0.0
        %3455 = vmatprep.subr.mxu0 0.0
        %3456 = vmatpush1.msra.mxu0 0.0
        %3457 = vmatprep.subr.mxu0 0.0
        %3458 = vmatpush1.msra.mxu0 0.0
        %3459 = vmatprep.subr.mxu0 0.0
        %3460 = vmatpush1.msra.mxu0 0.0
        %3461 = vmatprep.subr.mxu0 0.0
        %3462 = vmatpush1.msra.mxu0 0.0
        %3463 = vmatprep.subr.mxu0 0.0
        %3464 = vmatpush1.msra.mxu0 0.0
        %3465 = vmatprep.subr.mxu0 0.0
        %3466 = vmatpush1.msra.mxu0 0.0
        %3467 = vmatprep.subr.mxu0 0.0
        %3468 = vmatpush1.msra.mxu0 0.0
        %3469 = vmatprep.subr.mxu0 0.0
        %3470 = vmatpush1.msra.mxu0 0.0
        %3471 = vmatprep.subr.mxu0 0.0
        %3472 = vmatpush1.msra.mxu0 0.0
        %3473 = vmatprep.subr.mxu0 0.0
        %3474 = vmatpush1.msra.mxu0 0.0
        %3475 = vmatprep.subr.mxu0 0.0
        %3476 = vmatpush1.msra.mxu0 0.0
        %3477 = vmatprep.subr.mxu0 0.0
        %3478 = vmatpush1.msra.mxu0 0.0
        %3479 = vmatprep.subr.mxu0 0.0
        %3480 = vmatpush1.msra.mxu0 0.0
        %3481 = vmatprep.subr.mxu0 0.0
        %3482 = vmatpush1.msra.mxu0 0.0
        %3483 = vmatprep.mubr.f32.mxu0 0.0
        %3484 = vmatmul.mubr.f32.gmra.mrb[0].mxu0 %v3409
        %v3485 = vpop.f32.mrb[0].mxu0
        %v3486 = vadd.f32 0.0, %v3485
        %v3487 = vpop.f32.mrb[0].mxu0
        %3488 = vmatprep.mubr.f32.mxu0 0.0
        %3489 = vmatmul.mubr.f32.gmra.mrb[0].mxu0 %v3412
        %v3490 = vpop.f32.mrb[0].mxu0
        %v3491 = vadd.f32 0.0, %v3490
        %v3492 = vpop.f32.mrb[0].mxu0
        %3493 = vmatprep.mubr.f32.mxu0 0.0
        %3494 = vmatmul.mubr.f32.gmra.mrb[0].mxu0 %v3415
        %v3495 = vpop.f32.mrb[0].mxu0
        %v3496 = vadd.f32 0.0, %v3495
        %v3497 = vpop.f32.mrb[0].mxu0
        %3498 = vdwg.mxu0
        %3499 = vrot.lane.b32.xlu0 %v2073, 48
        %v3500 = vpop.permute.xlu0 %3499
        %3501 = vrot.lane.b32.xlu0 %v2075, 48
        %v3502 = vpop.permute.xlu0 %3501
        %3503 = vrot.lane.b32.xlu0 %v2077, 48
        %v3504 = vpop.permute.xlu0 %3503
        %v3508 = vsel %vm2935, %v3172, 0
        %v3511 = vsel %vm2935, %v3174, 0
        %v3514 = vsel %vm2935, %v3176, 0
        %v3516 = vsel %vm3218, %v3504, 0
        %3518 = vmatprep.subr.mxu0 0.0
        %3519 = vmatpush1.msra.mxu0 %v3500
        %3520 = vmatprep.subr.mxu0 0.0
        %3521 = vmatpush1.msra.mxu0 %v3502
        %3522 = vmatprep.subr.mxu0 0.0
        %3523 = vmatpush1.msra.mxu0 %v3516
        %3524 = vmatprep.subr.mxu0 0.0
        %3525 = vmatpush1.msra.mxu0 0.0
        %3526 = vmatprep.subr.mxu0 0.0
        %3527 = vmatpush1.msra.mxu0 0.0
        %3528 = vmatprep.subr.mxu0 0.0
        %3529 = vmatpush1.msra.mxu0 0.0
        %3530 = vmatprep.subr.mxu0 0.0
        %3531 = vmatpush1.msra.mxu0 0.0
        %3532 = vmatprep.subr.mxu0 0.0
        %3533 = vmatpush1.msra.mxu0 0.0
        %3534 = vmatprep.subr.mxu0 0.0
        %3535 = vmatpush1.msra.mxu0 0.0
        %3536 = vmatprep.subr.mxu0 0.0
        %3537 = vmatpush1.msra.mxu0 0.0
        %3538 = vmatprep.subr.mxu0 0.0
        %3539 = vmatpush1.msra.mxu0 0.0
        %3540 = vmatprep.subr.mxu0 0.0
        %3541 = vmatpush1.msra.mxu0 0.0
        %3542 = vmatprep.subr.mxu0 0.0
        %3543 = vmatpush1.msra.mxu0 0.0
        %3544 = vmatprep.subr.mxu0 0.0
        %3545 = vmatpush1.msra.mxu0 0.0
        %3546 = vmatprep.subr.mxu0 0.0
        %3547 = vmatpush1.msra.mxu0 0.0
        %3548 = vmatprep.subr.mxu0 0.0
        %3549 = vmatpush1.msra.mxu0 0.0
        %3550 = vmatprep.subr.mxu0 0.0
        %3551 = vmatpush1.msra.mxu0 0.0
        %3552 = vmatprep.subr.mxu0 0.0
        %3553 = vmatpush1.msra.mxu0 0.0
        %3554 = vmatprep.subr.mxu0 0.0
        %3555 = vmatpush1.msra.mxu0 0.0
        %3556 = vmatprep.subr.mxu0 0.0
        %3557 = vmatpush1.msra.mxu0 0.0
        %3558 = vmatprep.subr.mxu0 0.0
        %3559 = vmatpush1.msra.mxu0 0.0
        %3560 = vmatprep.subr.mxu0 0.0
        %3561 = vmatpush1.msra.mxu0 0.0
        %3562 = vmatprep.subr.mxu0 0.0
        %3563 = vmatpush1.msra.mxu0 0.0
        %3564 = vmatprep.subr.mxu0 0.0
        %3565 = vmatpush1.msra.mxu0 0.0
        %3566 = vmatprep.subr.mxu0 0.0
        %3567 = vmatpush1.msra.mxu0 0.0
        %3568 = vmatprep.subr.mxu0 0.0
        %3569 = vmatpush1.msra.mxu0 0.0
        %3570 = vmatprep.subr.mxu0 0.0
        %3571 = vmatpush1.msra.mxu0 0.0
        %3572 = vmatprep.subr.mxu0 0.0
        %3573 = vmatpush1.msra.mxu0 0.0
        %3574 = vmatprep.subr.mxu0 0.0
        %3575 = vmatpush1.msra.mxu0 0.0
        %3576 = vmatprep.subr.mxu0 0.0
        %3577 = vmatpush1.msra.mxu0 0.0
        %3578 = vmatprep.subr.mxu0 0.0
        %3579 = vmatpush1.msra.mxu0 0.0
        %3580 = vmatprep.subr.mxu0 0.0
        %3581 = vmatpush1.msra.mxu0 0.0
        %3582 = vmatprep.mubr.f32.mxu0 0.0
        %3583 = vmatmul.mubr.f32.gmra.mrb[0].mxu0 %v3508
        %v3584 = vpop.f32.mrb[0].mxu0
        %v3585 = vadd.f32 0.0, %v3584
        %v3586 = vpop.f32.mrb[0].mxu0
        %3587 = vmatprep.mubr.f32.mxu0 0.0
        %3588 = vmatmul.mubr.f32.gmra.mrb[0].mxu0 %v3511
        %v3589 = vpop.f32.mrb[0].mxu0
        %v3590 = vadd.f32 0.0, %v3589
        %v3591 = vpop.f32.mrb[0].mxu0
        %3592 = vmatprep.mubr.f32.mxu0 0.0
        %3593 = vmatmul.mubr.f32.gmra.mrb[0].mxu0 %v3514
        %v3594 = vpop.f32.mrb[0].mxu0
        %v3595 = vadd.f32 0.0, %v3594
        %v3596 = vpop.f32.mrb[0].mxu0
        %3597 = vdwg.mxu0
        %3598 = vrot.lane.b32.xlu0 %v2079, 48
        %v3599 = vpop.permute.xlu0 %3598
        %3600 = vrot.lane.b32.xlu0 %v2081, 48
        %v3601 = vpop.permute.xlu0 %3600
        %3602 = vrot.lane.b32.xlu0 %v2083, 48
        %v3603 = vpop.permute.xlu0 %3602
        %v3607 = vsel %vm2935, %v3178, 0
        %v3610 = vsel %vm2935, %v3180, 0
        %v3613 = vsel %vm2935, %v3182, 0
        %v3615 = vsel %vm3218, %v3603, 0
        %3617 = vmatprep.subr.mxu0 0.0
        %3618 = vmatpush1.msra.mxu0 %v3599
        %3619 = vmatprep.subr.mxu0 0.0
        %3620 = vmatpush1.msra.mxu0 %v3601
        %3621 = vmatprep.subr.mxu0 0.0
        %3622 = vmatpush1.msra.mxu0 %v3615
        %3623 = vmatprep.subr.mxu0 0.0
        %3624 = vmatpush1.msra.mxu0 0.0
        %3625 = vmatprep.subr.mxu0 0.0
        %3626 = vmatpush1.msra.mxu0 0.0
        %3627 = vmatprep.subr.mxu0 0.0
        %3628 = vmatpush1.msra.mxu0 0.0
        %3629 = vmatprep.subr.mxu0 0.0
        %3630 = vmatpush1.msra.mxu0 0.0
        %3631 = vmatprep.subr.mxu0 0.0
        %3632 = vmatpush1.msra.mxu0 0.0
        %3633 = vmatprep.subr.mxu0 0.0
        %3634 = vmatpush1.msra.mxu0 0.0
        %3635 = vmatprep.subr.mxu0 0.0
        %3636 = vmatpush1.msra.mxu0 0.0
        %3637 = vmatprep.subr.mxu0 0.0
        %3638 = vmatpush1.msra.mxu0 0.0
        %3639 = vmatprep.subr.mxu0 0.0
        %3640 = vmatpush1.msra.mxu0 0.0
        %3641 = vmatprep.subr.mxu0 0.0
        %3642 = vmatpush1.msra.mxu0 0.0
        %3643 = vmatprep.subr.mxu0 0.0
        %3644 = vmatpush1.msra.mxu0 0.0
        %3645 = vmatprep.subr.mxu0 0.0
        %3646 = vmatpush1.msra.mxu0 0.0
        %3647 = vmatprep.subr.mxu0 0.0
        %3648 = vmatpush1.msra.mxu0 0.0
        %3649 = vmatprep.subr.mxu0 0.0
        %3650 = vmatpush1.msra.mxu0 0.0
        %3651 = vmatprep.subr.mxu0 0.0
        %3652 = vmatpush1.msra.mxu0 0.0
        %3653 = vmatprep.subr.mxu0 0.0
        %3654 = vmatpush1.msra.mxu0 0.0
        %3655 = vmatprep.subr.mxu0 0.0
        %3656 = vmatpush1.msra.mxu0 0.0
        %3657 = vmatprep.subr.mxu0 0.0
        %3658 = vmatpush1.msra.mxu0 0.0
        %3659 = vmatprep.subr.mxu0 0.0
        %3660 = vmatpush1.msra.mxu0 0.0
        %3661 = vmatprep.subr.mxu0 0.0
        %3662 = vmatpush1.msra.mxu0 0.0
        %3663 = vmatprep.subr.mxu0 0.0
        %3664 = vmatpush1.msra.mxu0 0.0
        %3665 = vmatprep.subr.mxu0 0.0
        %3666 = vmatpush1.msra.mxu0 0.0
        %3667 = vmatprep.subr.mxu0 0.0
        %3668 = vmatpush1.msra.mxu0 0.0
        %3669 = vmatprep.subr.mxu0 0.0
        %3670 = vmatpush1.msra.mxu0 0.0
        %3671 = vmatprep.subr.mxu0 0.0
        %3672 = vmatpush1.msra.mxu0 0.0
        %3673 = vmatprep.subr.mxu0 0.0
        %3674 = vmatpush1.msra.mxu0 0.0
        %3675 = vmatprep.subr.mxu0 0.0
        %3676 = vmatpush1.msra.mxu0 0.0
        %3677 = vmatprep.subr.mxu0 0.0
        %3678 = vmatpush1.msra.mxu0 0.0
        %3679 = vmatprep.subr.mxu0 0.0
        %3680 = vmatpush1.msra.mxu0 0.0
        %3681 = vmatprep.mubr.f32.mxu0 0.0
        %3682 = vmatmul.mubr.f32.gmra.mrb[0].mxu0 %v3607
        %v3683 = vpop.f32.mrb[0].mxu0
        %v3684 = vadd.f32 0.0, %v3683
        %v3685 = vpop.f32.mrb[0].mxu0
        %3686 = vmatprep.mubr.f32.mxu0 0.0
        %3687 = vmatmul.mubr.f32.gmra.mrb[0].mxu0 %v3610
        %v3688 = vpop.f32.mrb[0].mxu0
        %v3689 = vadd.f32 0.0, %v3688
        %v3690 = vpop.f32.mrb[0].mxu0
        %3691 = vmatprep.mubr.f32.mxu0 0.0
        %3692 = vmatmul.mubr.f32.gmra.mrb[0].mxu0 %v3613
        %v3693 = vpop.f32.mrb[0].mxu0
        %v3694 = vadd.f32 0.0, %v3693
        %v3695 = vpop.f32.mrb[0].mxu0
        %3696 = vdwg.mxu0
        %3697 = vrot.lane.b32.xlu0 %v2085, 48
        %v3698 = vpop.permute.xlu0 %3697
        %3699 = vrot.lane.b32.xlu0 %v2087, 48
        %v3700 = vpop.permute.xlu0 %3699
        %3701 = vrot.lane.b32.xlu0 %v2089, 48
        %v3702 = vpop.permute.xlu0 %3701
        %v3706 = vsel %vm2935, %v3184, 0
        %v3709 = vsel %vm2935, %v3186, 0
        %v3712 = vsel %vm2935, %v3188, 0
        %v3714 = vsel %vm3218, %v3702, 0
        %3716 = vmatprep.subr.mxu0 0.0
        %3717 = vmatpush1.msra.mxu0 %v3698
        %3718 = vmatprep.subr.mxu0 0.0
        %3719 = vmatpush1.msra.mxu0 %v3700
        %3720 = vmatprep.subr.mxu0 0.0
        %3721 = vmatpush1.msra.mxu0 %v3714
        %3722 = vmatprep.subr.mxu0 0.0
        %3723 = vmatpush1.msra.mxu0 0.0
        %3724 = vmatprep.subr.mxu0 0.0
        %3725 = vmatpush1.msra.mxu0 0.0
        %3726 = vmatprep.subr.mxu0 0.0
        %3727 = vmatpush1.msra.mxu0 0.0
        %3728 = vmatprep.subr.mxu0 0.0
        %3729 = vmatpush1.msra.mxu0 0.0
        %3730 = vmatprep.subr.mxu0 0.0
        %3731 = vmatpush1.msra.mxu0 0.0
        %3732 = vmatprep.subr.mxu0 0.0
        %3733 = vmatpush1.msra.mxu0 0.0
        %3734 = vmatprep.subr.mxu0 0.0
        %3735 = vmatpush1.msra.mxu0 0.0
        %3736 = vmatprep.subr.mxu0 0.0
        %3737 = vmatpush1.msra.mxu0 0.0
        %3738 = vmatprep.subr.mxu0 0.0
        %3739 = vmatpush1.msra.mxu0 0.0
        %3740 = vmatprep.subr.mxu0 0.0
        %3741 = vmatpush1.msra.mxu0 0.0
        %3742 = vmatprep.subr.mxu0 0.0
        %3743 = vmatpush1.msra.mxu0 0.0
        %3744 = vmatprep.subr.mxu0 0.0
        %3745 = vmatpush1.msra.mxu0 0.0
        %3746 = vmatprep.subr.mxu0 0.0
        %3747 = vmatpush1.msra.mxu0 0.0
        %3748 = vmatprep.subr.mxu0 0.0
        %3749 = vmatpush1.msra.mxu0 0.0
        %3750 = vmatprep.subr.mxu0 0.0
        %3751 = vmatpush1.msra.mxu0 0.0
        %3752 = vmatprep.subr.mxu0 0.0
        %3753 = vmatpush1.msra.mxu0 0.0
        %3754 = vmatprep.subr.mxu0 0.0
        %3755 = vmatpush1.msra.mxu0 0.0
        %3756 = vmatprep.subr.mxu0 0.0
        %3757 = vmatpush1.msra.mxu0 0.0
        %3758 = vmatprep.subr.mxu0 0.0
        %3759 = vmatpush1.msra.mxu0 0.0
        %3760 = vmatprep.subr.mxu0 0.0
        %3761 = vmatpush1.msra.mxu0 0.0
        %3762 = vmatprep.subr.mxu0 0.0
        %3763 = vmatpush1.msra.mxu0 0.0
        %3764 = vmatprep.subr.mxu0 0.0
        %3765 = vmatpush1.msra.mxu0 0.0
        %3766 = vmatprep.subr.mxu0 0.0
        %3767 = vmatpush1.msra.mxu0 0.0
        %3768 = vmatprep.subr.mxu0 0.0
        %3769 = vmatpush1.msra.mxu0 0.0
        %3770 = vmatprep.subr.mxu0 0.0
        %3771 = vmatpush1.msra.mxu0 0.0
        %3772 = vmatprep.subr.mxu0 0.0
        %3773 = vmatpush1.msra.mxu0 0.0
        %3774 = vmatprep.subr.mxu0 0.0
        %3775 = vmatpush1.msra.mxu0 0.0
        %3776 = vmatprep.subr.mxu0 0.0
        %3777 = vmatpush1.msra.mxu0 0.0
        %3778 = vmatprep.subr.mxu0 0.0
        %3779 = vmatpush1.msra.mxu0 0.0
        %3780 = vmatprep.mubr.f32.mxu0 0.0
        %3781 = vmatmul.mubr.f32.gmra.mrb[0].mxu0 %v3706
        %v3782 = vpop.f32.mrb[0].mxu0
        %v3783 = vadd.f32 0.0, %v3782
        %v3784 = vpop.f32.mrb[0].mxu0
        %3785 = vmatprep.mubr.f32.mxu0 0.0
        %3786 = vmatmul.mubr.f32.gmra.mrb[0].mxu0 %v3709
        %v3787 = vpop.f32.mrb[0].mxu0
        %v3788 = vadd.f32 0.0, %v3787
        %v3789 = vpop.f32.mrb[0].mxu0
        %3790 = vmatprep.mubr.f32.mxu0 0.0
        %3791 = vmatmul.mubr.f32.gmra.mrb[0].mxu0 %v3712
        %v3792 = vpop.f32.mrb[0].mxu0
        %v3793 = vadd.f32 0.0, %v3792
        %v3794 = vpop.f32.mrb[0].mxu0
        %3795 = vdwg.mxu0
        %3796 = vrot.lane.b32.xlu0 %v2091, 48
        %v3797 = vpop.permute.xlu0 %3796
        %3798 = vrot.lane.b32.xlu0 %v2093, 48
        %v3799 = vpop.permute.xlu0 %3798
        %3800 = vrot.lane.b32.xlu0 %v2095, 48
        %v3801 = vpop.permute.xlu0 %3800
        %v3805 = vsel %vm2935, %v3190, 0
        %v3808 = vsel %vm2935, %v3192, 0
        %v3811 = vsel %vm2935, %v3194, 0
        %v3813 = vsel %vm3218, %v3801, 0
        %3815 = vmatprep.subr.mxu0 0.0
        %3816 = vmatpush1.msra.mxu0 %v3797
        %3817 = vmatprep.subr.mxu0 0.0
        %3818 = vmatpush1.msra.mxu0 %v3799
        %3819 = vmatprep.subr.mxu0 0.0
        %3820 = vmatpush1.msra.mxu0 %v3813
        %3821 = vmatprep.subr.mxu0 0.0
        %3822 = vmatpush1.msra.mxu0 0.0
        %3823 = vmatprep.subr.mxu0 0.0
        %3824 = vmatpush1.msra.mxu0 0.0
        %3825 = vmatprep.subr.mxu0 0.0
        %3826 = vmatpush1.msra.mxu0 0.0
        %3827 = vmatprep.subr.mxu0 0.0
        %3828 = vmatpush1.msra.mxu0 0.0
        %3829 = vmatprep.subr.mxu0 0.0
        %3830 = vmatpush1.msra.mxu0 0.0
        %3831 = vmatprep.subr.mxu0 0.0
        %3832 = vmatpush1.msra.mxu0 0.0
        %3833 = vmatprep.subr.mxu0 0.0
        %3834 = vmatpush1.msra.mxu0 0.0
        %3835 = vmatprep.subr.mxu0 0.0
        %3836 = vmatpush1.msra.mxu0 0.0
        %3837 = vmatprep.subr.mxu0 0.0
        %3838 = vmatpush1.msra.mxu0 0.0
        %3839 = vmatprep.subr.mxu0 0.0
        %3840 = vmatpush1.msra.mxu0 0.0
        %3841 = vmatprep.subr.mxu0 0.0
        %3842 = vmatpush1.msra.mxu0 0.0
        %3843 = vmatprep.subr.mxu0 0.0
        %3844 = vmatpush1.msra.mxu0 0.0
        %3845 = vmatprep.subr.mxu0 0.0
        %3846 = vmatpush1.msra.mxu0 0.0
        %3847 = vmatprep.subr.mxu0 0.0
        %3848 = vmatpush1.msra.mxu0 0.0
        %3849 = vmatprep.subr.mxu0 0.0
        %3850 = vmatpush1.msra.mxu0 0.0
        %3851 = vmatprep.subr.mxu0 0.0
        %3852 = vmatpush1.msra.mxu0 0.0
        %3853 = vmatprep.subr.mxu0 0.0
        %3854 = vmatpush1.msra.mxu0 0.0
        %3855 = vmatprep.subr.mxu0 0.0
        %3856 = vmatpush1.msra.mxu0 0.0
        %3857 = vmatprep.subr.mxu0 0.0
        %3858 = vmatpush1.msra.mxu0 0.0
        %3859 = vmatprep.subr.mxu0 0.0
        %3860 = vmatpush1.msra.mxu0 0.0
        %3861 = vmatprep.subr.mxu0 0.0
        %3862 = vmatpush1.msra.mxu0 0.0
        %3863 = vmatprep.subr.mxu0 0.0
        %3864 = vmatpush1.msra.mxu0 0.0
        %3865 = vmatprep.subr.mxu0 0.0
        %3866 = vmatpush1.msra.mxu0 0.0
        %3867 = vmatprep.subr.mxu0 0.0
        %3868 = vmatpush1.msra.mxu0 0.0
        %3869 = vmatprep.subr.mxu0 0.0
        %3870 = vmatpush1.msra.mxu0 0.0
        %3871 = vmatprep.subr.mxu0 0.0
        %3872 = vmatpush1.msra.mxu0 0.0
        %3873 = vmatprep.subr.mxu0 0.0
        %3874 = vmatpush1.msra.mxu0 0.0
        %3875 = vmatprep.subr.mxu0 0.0
        %3876 = vmatpush1.msra.mxu0 0.0
        %3877 = vmatprep.subr.mxu0 0.0
        %3878 = vmatpush1.msra.mxu0 0.0
        %3879 = vmatprep.mubr.f32.mxu0 0.0
        %3880 = vmatmul.mubr.f32.gmra.mrb[0].mxu0 %v3805
        %v3881 = vpop.f32.mrb[0].mxu0
        %v3882 = vadd.f32 0.0, %v3881
        %v3883 = vpop.f32.mrb[0].mxu0
        %3884 = vmatprep.mubr.f32.mxu0 0.0
        %3885 = vmatmul.mubr.f32.gmra.mrb[0].mxu0 %v3808
        %v3886 = vpop.f32.mrb[0].mxu0
        %v3887 = vadd.f32 0.0, %v3886
        %v3888 = vpop.f32.mrb[0].mxu0
        %3889 = vmatprep.mubr.f32.mxu0 0.0
        %3890 = vmatmul.mubr.f32.gmra.mrb[0].mxu0 %v3811
        %v3891 = vpop.f32.mrb[0].mxu0
        %v3892 = vadd.f32 0.0, %v3891
        %v3893 = vpop.f32.mrb[0].mxu0
        %3894 = vdwg.mxu0
        %3895 = vrot.lane.b32.xlu0 %v2097, 48
        %v3896 = vpop.permute.xlu0 %3895
        %3897 = vrot.lane.b32.xlu0 %v2099, 48
        %v3898 = vpop.permute.xlu0 %3897
        %3899 = vrot.lane.b32.xlu0 %v2101, 48
        %v3900 = vpop.permute.xlu0 %3899
        %v3904 = vsel %vm2935, %v3196, 0
        %v3907 = vsel %vm2935, %v3198, 0
        %v3910 = vsel %vm2935, %v3200, 0
        %v3912 = vsel %vm3218, %v3900, 0
        %3914 = vmatprep.subr.mxu0 0.0
        %3915 = vmatpush1.msra.mxu0 %v3896
        %3916 = vmatprep.subr.mxu0 0.0
        %3917 = vmatpush1.msra.mxu0 %v3898
        %3918 = vmatprep.subr.mxu0 0.0
        %3919 = vmatpush1.msra.mxu0 %v3912
        %3920 = vmatprep.subr.mxu0 0.0
        %3921 = vmatpush1.msra.mxu0 0.0
        %3922 = vmatprep.subr.mxu0 0.0
        %3923 = vmatpush1.msra.mxu0 0.0
        %3924 = vmatprep.subr.mxu0 0.0
        %3925 = vmatpush1.msra.mxu0 0.0
        %3926 = vmatprep.subr.mxu0 0.0
        %3927 = vmatpush1.msra.mxu0 0.0
        %3928 = vmatprep.subr.mxu0 0.0
        %3929 = vmatpush1.msra.mxu0 0.0
        %3930 = vmatprep.subr.mxu0 0.0
        %3931 = vmatpush1.msra.mxu0 0.0
        %3932 = vmatprep.subr.mxu0 0.0
        %3933 = vmatpush1.msra.mxu0 0.0
        %3934 = vmatprep.subr.mxu0 0.0
        %3935 = vmatpush1.msra.mxu0 0.0
        %3936 = vmatprep.subr.mxu0 0.0
        %3937 = vmatpush1.msra.mxu0 0.0
        %3938 = vmatprep.subr.mxu0 0.0
        %3939 = vmatpush1.msra.mxu0 0.0
        %3940 = vmatprep.subr.mxu0 0.0
        %3941 = vmatpush1.msra.mxu0 0.0
        %3942 = vmatprep.subr.mxu0 0.0
        %3943 = vmatpush1.msra.mxu0 0.0
        %3944 = vmatprep.subr.mxu0 0.0
        %3945 = vmatpush1.msra.mxu0 0.0
        %3946 = vmatprep.subr.mxu0 0.0
        %3947 = vmatpush1.msra.mxu0 0.0
        %3948 = vmatprep.subr.mxu0 0.0
        %3949 = vmatpush1.msra.mxu0 0.0
        %3950 = vmatprep.subr.mxu0 0.0
        %3951 = vmatpush1.msra.mxu0 0.0
        %3952 = vmatprep.subr.mxu0 0.0
        %3953 = vmatpush1.msra.mxu0 0.0
        %3954 = vmatprep.subr.mxu0 0.0
        %3955 = vmatpush1.msra.mxu0 0.0
        %3956 = vmatprep.subr.mxu0 0.0
        %3957 = vmatpush1.msra.mxu0 0.0
        %3958 = vmatprep.subr.mxu0 0.0
        %3959 = vmatpush1.msra.mxu0 0.0
        %3960 = vmatprep.subr.mxu0 0.0
        %3961 = vmatpush1.msra.mxu0 0.0
        %3962 = vmatprep.subr.mxu0 0.0
        %3963 = vmatpush1.msra.mxu0 0.0
        %3964 = vmatprep.subr.mxu0 0.0
        %3965 = vmatpush1.msra.mxu0 0.0
        %3966 = vmatprep.subr.mxu0 0.0
        %3967 = vmatpush1.msra.mxu0 0.0
        %3968 = vmatprep.subr.mxu0 0.0
        %3969 = vmatpush1.msra.mxu0 0.0
        %3970 = vmatprep.subr.mxu0 0.0
        %3971 = vmatpush1.msra.mxu0 0.0
        %3972 = vmatprep.subr.mxu0 0.0
        %3973 = vmatpush1.msra.mxu0 0.0
        %3974 = vmatprep.subr.mxu0 0.0
        %3975 = vmatpush1.msra.mxu0 0.0
        %3976 = vmatprep.subr.mxu0 0.0
        %3977 = vmatpush1.msra.mxu0 0.0
        %3978 = vmatprep.mubr.f32.mxu0 0.0
        %3979 = vmatmul.mubr.f32.gmra.mrb[0].mxu0 %v3904
        %v3980 = vpop.f32.mrb[0].mxu0
        %v3981 = vadd.f32 0.0, %v3980
        %v3982 = vpop.f32.mrb[0].mxu0
        %3983 = vmatprep.mubr.f32.mxu0 0.0
        %3984 = vmatmul.mubr.f32.gmra.mrb[0].mxu0 %v3907
        %v3985 = vpop.f32.mrb[0].mxu0
        %v3986 = vadd.f32 0.0, %v3985
        %v3987 = vpop.f32.mrb[0].mxu0
        %3988 = vmatprep.mubr.f32.mxu0 0.0
        %3989 = vmatmul.mubr.f32.gmra.mrb[0].mxu0 %v3910
        %v3990 = vpop.f32.mrb[0].mxu0
        %v3991 = vadd.f32 0.0, %v3990
        %v3992 = vpop.f32.mrb[0].mxu0
        %3993 = vdwg.mxu0
        %3997 = vrot.lane.b32.xlu0 %v3387, 5
        %v3998 = vpop.permute.xlu0 %3997
        %3999 = vrot.lane.b32.xlu0 %v3392, 5
        %v4000 = vpop.permute.xlu0 %3999
        %4001 = vrot.lane.b32.xlu0 %v3397, 5
        %v4002 = vpop.permute.xlu0 %4001
        %4009 = vrot.lane.b32.xlu0 %v3486, 10
        %v4010 = vpop.permute.xlu0 %4009
        %4011 = vrot.lane.b32.xlu0 %v3491, 10
        %v4012 = vpop.permute.xlu0 %4011
        %4013 = vrot.lane.b32.xlu0 %v3496, 10
        %v4014 = vpop.permute.xlu0 %4013
        %4021 = vrot.lane.b32.xlu0 %v3585, 15
        %v4022 = vpop.permute.xlu0 %4021
        %4023 = vrot.lane.b32.xlu0 %v3590, 15
        %v4024 = vpop.permute.xlu0 %4023
        %4025 = vrot.lane.b32.xlu0 %v3595, 15
        %v4026 = vpop.permute.xlu0 %4025
        %4033 = vrot.lane.b32.xlu0 %v3684, 20
        %v4034 = vpop.permute.xlu0 %4033
        %4035 = vrot.lane.b32.xlu0 %v3689, 20
        %v4036 = vpop.permute.xlu0 %4035
        %4037 = vrot.lane.b32.xlu0 %v3694, 20
        %v4038 = vpop.permute.xlu0 %4037
        %4045 = vrot.lane.b32.xlu0 %v3783, 25
        %v4046 = vpop.permute.xlu0 %4045
        %4047 = vrot.lane.b32.xlu0 %v3788, 25
        %v4048 = vpop.permute.xlu0 %4047
        %4049 = vrot.lane.b32.xlu0 %v3793, 25
        %v4050 = vpop.permute.xlu0 %4049
        %4057 = vrot.lane.b32.xlu0 %v3882, 30
        %v4058 = vpop.permute.xlu0 %4057
        %4059 = vrot.lane.b32.xlu0 %v3887, 30
        %v4060 = vpop.permute.xlu0 %4059
        %4061 = vrot.lane.b32.xlu0 %v3892, 30
        %v4062 = vpop.permute.xlu0 %4061
        %4069 = vrot.lane.b32.xlu0 %v3981, 35
        %v4070 = vpop.permute.xlu0 %4069
        %4071 = vrot.lane.b32.xlu0 %v3986, 35
        %v4072 = vpop.permute.xlu0 %4071
        %4073 = vrot.lane.b32.xlu0 %v3991, 35
        %v4074 = vpop.permute.xlu0 %4073
        %v4078 = vsel %vm2108, %v3288, %v3998
        %v4079 = vsel %vm2108, %v3293, %v4000
        %v4080 = vsel %vm2108, %v3298, %v4002
        %vm4081 = vcmask 80896
        %v4082 = vsel %vm4081, %v4078, %v4010
        %v4083 = vsel %vm4081, %v4079, %v4012
        %v4084 = vsel %vm4081, %v4080, %v4014
        %vm4085 = vcmask 121856
        %v4086 = vsel %vm4085, %v4082, %v4022
        %v4087 = vsel %vm4085, %v4083, %v4024
        %v4088 = vsel %vm4085, %v4084, %v4026
        %vm4089 = vcmask 162816
        %v4090 = vsel %vm4089, %v4086, %v4034
        %v4091 = vsel %vm4089, %v4087, %v4036
        %v4092 = vsel %vm4089, %v4088, %v4038
        %vm4093 = vcmask 203776
        %v4094 = vsel %vm4093, %v4090, %v4046
        %v4095 = vsel %vm4093, %v4091, %v4048
        %v4096 = vsel %vm4093, %v4092, %v4050
        %vm4097 = vcmask 244736
        %v4098 = vsel %vm4097, %v4094, %v4058
        %v4099 = vsel %vm4097, %v4095, %v4060
        %v4100 = vsel %vm4097, %v4096, %v4062
        %vm4101 = vcmask 285696
        %v4102 = vsel %vm4101, %v4098, %v4070
        %v4103 = vsel %vm4101, %v4099, %v4072
        %v4104 = vsel %vm4101, %v4100, %v4074
        %v4105 = vld [vmem:[%s6] sm:$0xff]
        %v4106 = vld [vmem:[%s6 + $0x8] sm:$0xff]
        %v4107 = vld [vmem:[%s6 + $0x10] sm:$0xff]
        %v4108 = vld [vmem:[%s6 + $0x18] sm:$0xff]
        %v4109 = vld [vmem:[%s6 + $0x20] sm:$0xff]
        %v4110 = vlaneseq
        %v4111 = vshrl.u32 %v4110, 7
        %v4112 = vsub.s32 4, %v4111
        %v4113 = vrot.slane %v1900, %v4112
        %v4115 = vsel %vm1525, %v4102, 0
        %v4118 = vsel %vm1525, %v4103, 0
        %v4121 = vsel %vm1525, %v4104, 0
        %4123 = vmatprep.subr.mxu0 0.0
        %4124 = vmatpush1.msra.mxu0 %v4105
        %4125 = vmatprep.subr.mxu0 0.0
        %4126 = vmatpush1.msra.mxu0 %v4106
        %4127 = vmatprep.subr.mxu0 0.0
        %4128 = vmatpush1.msra.mxu0 %v4107
        %4129 = vmatprep.subr.mxu0 0.0
        %4130 = vmatpush1.msra.mxu0 %v4108
        %4131 = vmatprep.subr.mxu0 0.0
        %4132 = vmatpush1.msra.mxu0 %v4109
        %4133 = vmatprep.subr.mxu0 0.0
        %4134 = vmatpush1.msra.mxu0 0.0
        %4135 = vmatprep.subr.mxu0 0.0
        %4136 = vmatpush1.msra.mxu0 0.0
        %4137 = vmatprep.subr.mxu0 0.0
        %4138 = vmatpush1.msra.mxu0 0.0
        %4139 = vmatprep.subr.mxu0 0.0
        %4140 = vmatpush1.msra.mxu0 0.0
        %4141 = vmatprep.subr.mxu0 0.0
        %4142 = vmatpush1.msra.mxu0 0.0
        %4143 = vmatprep.subr.mxu0 0.0
        %4144 = vmatpush1.msra.mxu0 0.0
        %4145 = vmatprep.subr.mxu0 0.0
        %4146 = vmatpush1.msra.mxu0 0.0
        %4147 = vmatprep.subr.mxu0 0.0
        %4148 = vmatpush1.msra.mxu0 0.0
        %4149 = vmatprep.subr.mxu0 0.0
        %4150 = vmatpush1.msra.mxu0 0.0
        %4151 = vmatprep.subr.mxu0 0.0
        %4152 = vmatpush1.msra.mxu0 0.0
        %4153 = vmatprep.subr.mxu0 0.0
        %4154 = vmatpush1.msra.mxu0 0.0
        %4155 = vmatprep.subr.mxu0 0.0
        %4156 = vmatpush1.msra.mxu0 0.0
        %4157 = vmatprep.subr.mxu0 0.0
        %4158 = vmatpush1.msra.mxu0 0.0
        %4159 = vmatprep.subr.mxu0 0.0
        %4160 = vmatpush1.msra.mxu0 0.0
        %4161 = vmatprep.subr.mxu0 0.0
        %4162 = vmatpush1.msra.mxu0 0.0
        %4163 = vmatprep.subr.mxu0 0.0
        %4164 = vmatpush1.msra.mxu0 0.0
        %4165 = vmatprep.subr.mxu0 0.0
        %4166 = vmatpush1.msra.mxu0 0.0
        %4167 = vmatprep.subr.mxu0 0.0
        %4168 = vmatpush1.msra.mxu0 0.0
        %4169 = vmatprep.subr.mxu0 0.0
        %4170 = vmatpush1.msra.mxu0 0.0
        %4171 = vmatprep.subr.mxu0 0.0
        %4172 = vmatpush1.msra.mxu0 0.0
        %4173 = vmatprep.subr.mxu0 0.0
        %4174 = vmatpush1.msra.mxu0 0.0
        %4175 = vmatprep.subr.mxu0 0.0
        %4176 = vmatpush1.msra.mxu0 0.0
        %4177 = vmatprep.subr.mxu0 0.0
        %4178 = vmatpush1.msra.mxu0 0.0
        %4179 = vmatprep.subr.mxu0 0.0
        %4180 = vmatpush1.msra.mxu0 0.0
        %4181 = vmatprep.subr.mxu0 0.0
        %4182 = vmatpush1.msra.mxu0 0.0
        %4183 = vmatprep.subr.mxu0 0.0
        %4184 = vmatpush1.msra.mxu0 0.0
        %4185 = vmatprep.subr.mxu0 0.0
        %4186 = vmatpush1.msra.mxu0 0.0
        %4187 = vmatprep.mubr.f32.mxu0 0.0
        %4188 = vmatmul.mubr.f32.gmra.mrb[0].mxu0 %v4115
        %v4189 = vpop.f32.mrb[0].mxu0
        %v4190 = vadd.f32 %v4113, %v4189
        %v4191 = vpop.f32.mrb[0].mxu0
        %4192 = vmatprep.mubr.f32.mxu0 0.0
        %4193 = vmatmul.mubr.f32.gmra.mrb[0].mxu0 %v4118
        %v4194 = vpop.f32.mrb[0].mxu0
        %v4195 = vadd.f32 %v4113, %v4194
        %v4196 = vpop.f32.mrb[0].mxu0
        %4197 = vmatprep.mubr.f32.mxu0 0.0
        %4198 = vmatmul.mubr.f32.gmra.mrb[0].mxu0 %v4121
        %v4199 = vpop.f32.mrb[0].mxu0
        %v4200 = vadd.f32 %v4113, %v4199
        %v4201 = vpop.f32.mrb[0].mxu0
        %4202 = vdwg.mxu0
        %v4203 = vadd.f32 %v1844, %v4190
        %v4204 = vadd.f32 %v1880, %v4195
        %v4205 = vadd.f32 %v1877, %v4200
        %v4206 = vsel %vm1525, %v4203, 0.0
        %4207 = vadd.xlane.f32.xlu0 %v4206
        %v4208 = vpop.xlane.xlu0 %4207
        %v4209 = vsel %vm1525, %v4204, 0.0
        %4210 = vadd.xlane.f32.xlu0 %v4209
        %v4211 = vpop.xlane.xlu0 %4210
        %v4212 = vsel %vm1907, %v4205, 0.0
        %4213 = vadd.xlane.f32.xlu0 %v4212
        %v4214 = vpop.xlane.xlu0 %4213
        %v4215 = vmul.f32 %v4208, %v1911
        %v4216 = vmul.f32 %v4211, %v1911
        %v4217 = vmul.f32 %v4214, %v1911
        %v4218 = vsub.f32 %v4203, %v4215
        %v4219 = vsub.f32 %v4204, %v4216
        %v4220 = vsub.f32 %v4205, %v4217
        %v4221 = vmul.f32 %v4218, %v4218
        %v4222 = vmul.f32 %v4219, %v4219
        %v4223 = vmul.f32 %v4220, %v4220
        %v4224 = vsel %vm1525, %v4221, 0.0
        %4225 = vadd.xlane.f32.xlu0 %v4224
        %v4226 = vpop.xlane.xlu0 %4225
        %v4227 = vsel %vm1525, %v4222, 0.0
        %4228 = vadd.xlane.f32.xlu0 %v4227
        %v4229 = vpop.xlane.xlu0 %4228
        %v4230 = vsel %vm1907, %v4223, 0.0
        %4231 = vadd.xlane.f32.xlu0 %v4230
        %v4232 = vpop.xlane.xlu0 %4231
        %v4233 = vmul.f32 %v4226, %v1911
        %v4234 = vmul.f32 %v4229, %v1911
        %v4235 = vmul.f32 %v4232, %v1911
        %v4236 = vadd.f32 %v4233, 1e-05
        %v4237 = vadd.f32 %v4234, 1e-05
        %v4238 = vadd.f32 %v4235, 1e-05
        %v4239 = vrsqrt.pop %v4236
        %v4240 = vrsqrt.pop %v4237
        %v4241 = vrsqrt.pop %v4238
        %v4242 = vmul.f32 %v4218, %v4239
        %v4243 = vmul.f32 %v4219, %v4240
        %v4244 = vmul.f32 %v4220, %v4241
        %v4245 = vlaneseq
        %v4246 = vshrl.u32 %v4245, 7
        %v4247 = vsub.s32 2, %v4246
        %v4248 = vrot.slane %v1900, %v4247
        %v4249 = vmul.f32 %v4242, %v4248
        %v4250 = vmul.f32 %v4243, %v4248
        %v4251 = vmul.f32 %v4244, %v4248
        %v4252 = vlaneseq
        %v4253 = vshrl.u32 %v4252, 7
        %v4254 = vsub.s32 3, %v4253
        %v4255 = vrot.slane %v1900, %v4254
        %v4256 = vadd.f32 %v4249, %v4255
        %v4257 = vadd.f32 %v4250, %v4255
        %v4258 = vadd.f32 %v4251, %v4255
        %v4259 = vld [vmem:[%s7] sm:$0xff]
        %v4260 = vld [vmem:[%s7 + $0x8] sm:$0xff]
        %v4261 = vld [vmem:[%s7 + $0x10] sm:$0xff]
        %v4262 = vld [vmem:[%s7 + $0x18] sm:$0xff]
        %v4263 = vld [vmem:[%s7 + $0x20] sm:$0xff]
        %v4264 = vld [vmem:[%s7 + $0x28] sm:$0xff]
        %v4265 = vld [vmem:[%s7 + $0x30] sm:$0xff]
        %v4266 = vld [vmem:[%s7 + $0x38] sm:$0xff]
        %v4267 = vld [vmem:[%s7 + $0x40] sm:$0xff]
        %v4268 = vld [vmem:[%s7 + $0x48] sm:$0xff]
        %v4269 = vld [vmem:[%s8] sm:$0x3]
        %v4271 = vlaneseq
        %v4272 = vshrl.u32 %v4271, 7
        %v4273 = vsub.s32 0, %v4272
        %v4274 = vrot.slane %v4269, %v4273
        %v4275 = vlaneseq
        %v4276 = vshrl.u32 %v4275, 7
        %v4277 = vsub.s32 1, %v4276
        %v4278 = vrot.slane %v4269, %v4277
        %v4282 = vsel %vm1525, %v4256, 0
        %v4285 = vsel %vm1525, %v4257, 0
        %v4288 = vsel %vm1525, %v4258, 0
        %4290 = vmatprep.subr.mxu0 %v4260
        %4291 = vmatpush1.msra.mxu0 %v4259
        %4292 = vmatprep.subr.mxu0 %v4262
        %4293 = vmatpush1.msra.mxu0 %v4261
        %4294 = vmatprep.subr.mxu0 %v4264
        %4295 = vmatpush1.msra.mxu0 %v4263
        %4296 = vmatprep.subr.mxu0 %v4266
        %4297 = vmatpush1.msra.mxu0 %v4265
        %4298 = vmatprep.subr.mxu0 %v4268
        %4299 = vmatpush1.msra.mxu0 %v4267
        %4300 = vmatprep.subr.mxu0 0.0
        %4301 = vmatpush1.msra.mxu0 0.0
        %4302 = vmatprep.subr.mxu0 0.0
        %4303 = vmatpush1.msra.mxu0 0.0
        %4304 = vmatprep.subr.mxu0 0.0
        %4305 = vmatpush1.msra.mxu0 0.0
        %4306 = vmatprep.subr.mxu0 0.0
        %4307 = vmatpush1.msra.mxu0 0.0
        %4308 = vmatprep.subr.mxu0 0.0
        %4309 = vmatpush1.msra.mxu0 0.0
        %4310 = vmatprep.subr.mxu0 0.0
        %4311 = vmatpush1.msra.mxu0 0.0
        %4312 = vmatprep.subr.mxu0 0.0
        %4313 = vmatpush1.msra.mxu0 0.0
        %4314 = vmatprep.subr.mxu0 0.0
        %4315 = vmatpush1.msra.mxu0 0.0
        %4316 = vmatprep.subr.mxu0 0.0
        %4317 = vmatpush1.msra.mxu0 0.0
        %4318 = vmatprep.subr.mxu0 0.0
        %4319 = vmatpush1.msra.mxu0 0.0
        %4320 = vmatprep.subr.mxu0 0.0
        %4321 = vmatpush1.msra.mxu0 0.0
        %4322 = vmatprep.subr.mxu0 0.0
        %4323 = vmatpush1.msra.mxu0 0.0
        %4324 = vmatprep.subr.mxu0 0.0
        %4325 = vmatpush1.msra.mxu0 0.0
        %4326 = vmatprep.subr.mxu0 0.0
        %4327 = vmatpush1.msra.mxu0 0.0
        %4328 = vmatprep.subr.mxu0 0.0
        %4329 = vmatpush1.msra.mxu0 0.0
        %4330 = vmatprep.subr.mxu0 0.0
        %4331 = vmatpush1.msra.mxu0 0.0
        %4332 = vmatprep.subr.mxu0 0.0
        %4333 = vmatpush1.msra.mxu0 0.0
        %4334 = vmatprep.subr.mxu0 0.0
        %4335 = vmatpush1.msra.mxu0 0.0
        %4336 = vmatprep.subr.mxu0 0.0
        %4337 = vmatpush1.msra.mxu0 0.0
        %4338 = vmatprep.subr.mxu0 0.0
        %4339 = vmatpush1.msra.mxu0 0.0
        %4340 = vmatprep.subr.mxu0 0.0
        %4341 = vmatpush1.msra.mxu0 0.0
        %4342 = vmatprep.subr.mxu0 0.0
        %4343 = vmatpush1.msra.mxu0 0.0
        %4344 = vmatprep.subr.mxu0 0.0
        %4345 = vmatpush1.msra.mxu0 0.0
        %4346 = vmatprep.subr.mxu0 0.0
        %4347 = vmatpush1.msra.mxu0 0.0
        %4348 = vmatprep.subr.mxu0 0.0
        %4349 = vmatpush1.msra.mxu0 0.0
        %4350 = vmatprep.subr.mxu0 0.0
        %4351 = vmatpush1.msra.mxu0 0.0
        %4352 = vmatprep.subr.mxu0 0.0
        %4353 = vmatpush1.msra.mxu0 0.0
        %4354 = vmatprep.mubr.f32.mxu0 0.0
        %4355 = vmatmul.mubr.f32.gmra.mrb[0].mxu0 %v4282
        %v4356 = vpop.f32.mrb[0].mxu0
        %v4357 = vadd.f32 %v4274, %v4356
        %v4358 = vpop.f32.mrb[0].mxu0
        %v4359 = vadd.f32 %v4278, %v4358
        %4360 = vmatprep.mubr.f32.mxu0 0.0
        %4361 = vmatmul.mubr.f32.gmra.mrb[0].mxu0 %v4285
        %v4362 = vpop.f32.mrb[0].mxu0
        %v4363 = vadd.f32 %v4274, %v4362
        %v4364 = vpop.f32.mrb[0].mxu0
        %v4365 = vadd.f32 %v4278, %v4364
        %4366 = vmatprep.mubr.f32.mxu0 0.0
        %4367 = vmatmul.mubr.f32.gmra.mrb[0].mxu0 %v4288
        %v4368 = vpop.f32.mrb[0].mxu0
        %v4369 = vadd.f32 %v4274, %v4368
        %v4370 = vpop.f32.mrb[0].mxu0
        %v4371 = vadd.f32 %v4278, %v4370
        %4372 = vdwg.mxu0
        %v4373 = vmul.f32 %v4357, 0.5
        %v4374 = vmul.f32 %v4359, 0.5
        %v4375 = vmul.f32 %v4363, 0.5
        %v4376 = vmul.f32 %v4365, 0.5
        %v4377 = vmul.f32 %v4369, 0.5
        %v4378 = vmul.f32 %v4371, 0.5
        %v4379 = vmul.f32 %v4357, 0.70710677
        %v4380 = vmul.f32 %v4359, 0.70710677
        %v4381 = vmul.f32 %v4363, 0.70710677
        %v4382 = vmul.f32 %v4365, 0.70710677
        %v4383 = vmul.f32 %v4369, 0.70710677
        %v4384 = vmul.f32 %v4371, 0.70710677
        %v4385 = verf.f32.pop %v4379
        %v4386 = verf.f32.pop %v4380
        %v4387 = verf.f32.pop %v4381
        %v4388 = verf.f32.pop %v4382
        %v4389 = verf.f32.pop %v4383
        %v4390 = verf.f32.pop %v4384
        %v4391 = vadd.f32 %v4385, 1.0
        %v4392 = vadd.f32 %v4386, 1.0
        %v4393 = vadd.f32 %v4387, 1.0
        %v4394 = vadd.f32 %v4388, 1.0
        %v4395 = vadd.f32 %v4389, 1.0
        %v4396 = vadd.f32 %v4390, 1.0
        %v4397 = vmul.f32 %v4373, %v4391
        %v4398 = vmul.f32 %v4374, %v4392
        %v4399 = vmul.f32 %v4375, %v4393
        %v4400 = vmul.f32 %v4376, %v4394
        %v4401 = vmul.f32 %v4377, %v4395
        %v4402 = vmul.f32 %v4378, %v4396
        %v4403 = vld [vmem:[%s9] sm:$0xff]
        %v4404 = vld [vmem:[%s9 + $0x8] sm:$0xff]
        %v4405 = vld [vmem:[%s9 + $0x10] sm:$0xff]
        %v4406 = vld [vmem:[%s9 + $0x18] sm:$0xff]
        %v4407 = vld [vmem:[%s9 + $0x20] sm:$0xff]
        %v4408 = vld [vmem:[%s9 + $0x28] sm:$0xff]
        %v4409 = vld [vmem:[%s9 + $0x30] sm:$0xff]
        %v4410 = vld [vmem:[%s9 + $0x38] sm:$0xff]
        %v4411 = vld [vmem:[%s9 + $0x40] sm:$0xff]
        %v4412 = vld [vmem:[%s9 + $0x48] sm:$0xff]
        %v4413 = vld [vmem:[%s9 + $0x50] sm:$0xff]
        %v4414 = vld [vmem:[%s9 + $0x58] sm:$0xff]
        %v4415 = vld [vmem:[%s9 + $0x60] sm:$0xff]
        %v4416 = vld [vmem:[%s9 + $0x68] sm:$0xff]
        %v4417 = vld [vmem:[%s9 + $0x70] sm:$0xff]
        %v4418 = vld [vmem:[%s9 + $0x78] sm:$0xff]
        %v4419 = vld [vmem:[%s9 + $0x80] sm:$0xff]
        %v4420 = vld [vmem:[%s9 + $0x88] sm:$0xff]
        %v4421 = vld [vmem:[%s9 + $0x90] sm:$0xff]
        %v4422 = vld [vmem:[%s9 + $0x98] sm:$0xff]
        %v4423 = vlaneseq
        %v4424 = vshrl.u32 %v4423, 7
        %v4425 = vsub.s32 5, %v4424
        %v4426 = vrot.slane %v1900, %v4425
        %vm4427 = vcmask 261120
        %v4429 = vsel %vm4427, %v4398, 0
        %v4432 = vsel %vm4427, %v4400, 0
        %v4435 = vsel %vm4427, %v4402, 0
        %4437 = vmatprep.subr.mxu0 0.0
        %4438 = vmatpush1.msra.mxu0 %v4403
        %4439 = vmatprep.subr.mxu0 0.0
        %4440 = vmatpush1.msra.mxu0 %v4404
        %4441 = vmatprep.subr.mxu0 0.0
        %4442 = vmatpush1.msra.mxu0 %v4405
        %4443 = vmatprep.subr.mxu0 0.0
        %4444 = vmatpush1.msra.mxu0 %v4406
        %4445 = vmatprep.subr.mxu0 0.0
        %4446 = vmatpush1.msra.mxu0 %v4407
        %4447 = vmatprep.subr.mxu0 0.0
        %4448 = vmatpush1.msra.mxu0 %v4408
        %4449 = vmatprep.subr.mxu0 0.0
        %4450 = vmatpush1.msra.mxu0 %v4409
        %4451 = vmatprep.subr.mxu0 0.0
        %4452 = vmatpush1.msra.mxu0 %v4410
        %4453 = vmatprep.subr.mxu0 0.0
        %4454 = vmatpush1.msra.mxu0 %v4411
        %4455 = vmatprep.subr.mxu0 0.0
        %4456 = vmatpush1.msra.mxu0 %v4412
        %4457 = vmatprep.subr.mxu0 0.0
        %4458 = vmatpush1.msra.mxu0 %v4413
        %4459 = vmatprep.subr.mxu0 0.0
        %4460 = vmatpush1.msra.mxu0 %v4414
        %4461 = vmatprep.subr.mxu0 0.0
        %4462 = vmatpush1.msra.mxu0 %v4415
        %4463 = vmatprep.subr.mxu0 0.0
        %4464 = vmatpush1.msra.mxu0 %v4416
        %4465 = vmatprep.subr.mxu0 0.0
        %4466 = vmatpush1.msra.mxu0 %v4417
        %4467 = vmatprep.subr.mxu0 0.0
        %4468 = vmatpush1.msra.mxu0 %v4418
        %4469 = vmatprep.subr.mxu0 0.0
        %4470 = vmatpush1.msra.mxu0 %v4419
        %4471 = vmatprep.subr.mxu0 0.0
        %4472 = vmatpush1.msra.mxu0 %v4420
        %4473 = vmatprep.subr.mxu0 0.0
        %4474 = vmatpush1.msra.mxu0 %v4421
        %4475 = vmatprep.subr.mxu0 0.0
        %4476 = vmatpush1.msra.mxu0 %v4422
        %4477 = vmatprep.subr.mxu0 0.0
        %4478 = vmatpush1.msra.mxu0 0.0
        %4479 = vmatprep.subr.mxu0 0.0
        %4480 = vmatpush1.msra.mxu0 0.0
        %4481 = vmatprep.subr.mxu0 0.0
        %4482 = vmatpush1.msra.mxu0 0.0
        %4483 = vmatprep.subr.mxu0 0.0
        %4484 = vmatpush1.msra.mxu0 0.0
        %4485 = vmatprep.subr.mxu0 0.0
        %4486 = vmatpush1.msra.mxu0 0.0
        %4487 = vmatprep.subr.mxu0 0.0
        %4488 = vmatpush1.msra.mxu0 0.0
        %4489 = vmatprep.subr.mxu0 0.0
        %4490 = vmatpush1.msra.mxu0 0.0
        %4491 = vmatprep.subr.mxu0 0.0
        %4492 = vmatpush1.msra.mxu0 0.0
        %4493 = vmatprep.subr.mxu0 0.0
        %4494 = vmatpush1.msra.mxu0 0.0
        %4495 = vmatprep.subr.mxu0 0.0
        %4496 = vmatpush1.msra.mxu0 0.0
        %4497 = vmatprep.subr.mxu0 0.0
        %4498 = vmatpush1.msra.mxu0 0.0
        %4499 = vmatprep.subr.mxu0 0.0
        %4500 = vmatpush1.msra.mxu0 0.0
        %4501 = vmatprep.mubr.f32.mxu0 %v4429
        %4502 = vmatmul.mubr.f32.gmra.mrb[0].mxu0 %v4397
        %v4503 = vpop.f32.mrb[0].mxu0
        %v4504 = vadd.f32 %v4426, %v4503
        %v4505 = vpop.f32.mrb[0].mxu0
        %4506 = vmatprep.mubr.f32.mxu0 %v4432
        %4507 = vmatmul.mubr.f32.gmra.mrb[0].mxu0 %v4399
        %v4508 = vpop.f32.mrb[0].mxu0
        %v4509 = vadd.f32 %v4426, %v4508
        %v4510 = vpop.f32.mrb[0].mxu0
        %4511 = vmatprep.mubr.f32.mxu0 %v4435
        %4512 = vmatmul.mubr.f32.gmra.mrb[0].mxu0 %v4401
        %v4513 = vpop.f32.mrb[0].mxu0
        %v4514 = vadd.f32 %v4426, %v4513
        %v4515 = vpop.f32.mrb[0].mxu0
        %4516 = vdwg.mxu0
        %v4517 = vadd.f32 %v4203, %v4504
        %v4518 = vadd.f32 %v4204, %v4509
        %v4519 = vadd.f32 %v4205, %v4514
        %s4520 = scalar_lea.vmem %s10, 8
        %v4521 = vld [vmem:[%s4520] sm:$0x3f]
        %v4522 = vsel %vm1525, %v4517, 0.0
        %4523 = vadd.xlane.f32.xlu0 %v4522
        %v4524 = vpop.xlane.xlu0 %4523
        %v4525 = vsel %vm1525, %v4518, 0.0
        %4526 = vadd.xlane.f32.xlu0 %v4525
        %v4527 = vpop.xlane.xlu0 %4526
        %v4528 = vsel %vm1907, %v4519, 0.0
        %4529 = vadd.xlane.f32.xlu0 %v4528
        %v4530 = vpop.xlane.xlu0 %4529
        %v4531 = vmul.f32 %v4524, %v1911
        %v4532 = vmul.f32 %v4527, %v1911
        %v4533 = vmul.f32 %v4530, %v1911
        %v4534 = vsub.f32 %v4517, %v4531
        %v4535 = vsub.f32 %v4518, %v4532
        %v4536 = vsub.f32 %v4519, %v4533
        %v4537 = vmul.f32 %v4534, %v4534
        %v4538 = vmul.f32 %v4535, %v4535
        %v4539 = vmul.f32 %v4536, %v4536
        %v4540 = vsel %vm1525, %v4537, 0.0
        %4541 = vadd.xlane.f32.xlu0 %v4540
        %v4542 = vpop.xlane.xlu0 %4541
        %v4543 = vsel %vm1525, %v4538, 0.0
        %4544 = vadd.xlane.f32.xlu0 %v4543
        %v4545 = vpop.xlane.xlu0 %4544
        %v4546 = vsel %vm1907, %v4539, 0.0
        %4547 = vadd.xlane.f32.xlu0 %v4546
        %v4548 = vpop.xlane.xlu0 %4547
        %v4549 = vmul.f32 %v4542, %v1911
        %v4550 = vmul.f32 %v4545, %v1911
        %v4551 = vmul.f32 %v4548, %v1911
        %v4552 = vadd.f32 %v4549, 1e-05
        %v4553 = vadd.f32 %v4550, 1e-05
        %v4554 = vadd.f32 %v4551, 1e-05
        %v4555 = vrsqrt.pop %v4552
        %v4556 = vrsqrt.pop %v4553
        %v4557 = vrsqrt.pop %v4554
        %v4558 = vmul.f32 %v4534, %v4555
        %v4559 = vmul.f32 %v4535, %v4556
        %v4560 = vmul.f32 %v4536, %v4557
        %v4561 = vlaneseq
        %v4562 = vshrl.u32 %v4561, 7
        %v4563 = vsub.s32 0, %v4562
        %v4564 = vrot.slane %v4521, %v4563
        %v4565 = vmul.f32 %v4558, %v4564
        %v4566 = vmul.f32 %v4559, %v4564
        %v4567 = vmul.f32 %v4560, %v4564
        %v4568 = vlaneseq
        %v4569 = vshrl.u32 %v4568, 7
        %v4570 = vsub.s32 1, %v4569
        %v4571 = vrot.slane %v4521, %v4570
        %v4572 = vadd.f32 %v4565, %v4571
        %v4573 = vadd.f32 %v4566, %v4571
        %v4574 = vadd.f32 %v4567, %v4571
        %s4575 = scalar_lea.vmem %s4, 40
        %v4576 = vld [vmem:[%s4575] sm:$0xff]
        %v4577 = vld [vmem:[%s4575 + $0x8] sm:$0xff]
        %v4578 = vld [vmem:[%s4575 + $0x10] sm:$0xff]
        %v4579 = vld [vmem:[%s4575 + $0x18] sm:$0xff]
        %v4580 = vld [vmem:[%s4575 + $0x20] sm:$0xff]
        %s4581 = scalar_lea.vmem %s5, 1
        %v4582 = vld [vmem:[%s4581] sm:$0x1]
        %v4584 = vlaneseq
        %v4585 = vshrl.u32 %v4584, 7
        %v4586 = vsub.s32 0, %v4585
        %v4587 = vrot.slane %v4582, %v4586
        %v4590 = vsel %vm1525, %v4572, 0
        %v4593 = vsel %vm1525, %v4573, 0
        %v4596 = vsel %vm1525, %v4574, 0
        %4598 = vmatprep.subr.mxu0 0.0
        %4599 = vmatpush1.msra.mxu0 %v4576
        %4600 = vmatprep.subr.mxu0 0.0
        %4601 = vmatpush1.msra.mxu0 %v4577
        %4602 = vmatprep.subr.mxu0 0.0
        %4603 = vmatpush1.msra.mxu0 %v4578
        %4604 = vmatprep.subr.mxu0 0.0
        %4605 = vmatpush1.msra.mxu0 %v4579
        %4606 = vmatprep.subr.mxu0 0.0
        %4607 = vmatpush1.msra.mxu0 %v4580
        %4608 = vmatprep.subr.mxu0 0.0
        %4609 = vmatpush1.msra.mxu0 0.0
        %4610 = vmatprep.subr.mxu0 0.0
        %4611 = vmatpush1.msra.mxu0 0.0
        %4612 = vmatprep.subr.mxu0 0.0
        %4613 = vmatpush1.msra.mxu0 0.0
        %4614 = vmatprep.subr.mxu0 0.0
        %4615 = vmatpush1.msra.mxu0 0.0
        %4616 = vmatprep.subr.mxu0 0.0
        %4617 = vmatpush1.msra.mxu0 0.0
        %4618 = vmatprep.subr.mxu0 0.0
        %4619 = vmatpush1.msra.mxu0 0.0
        %4620 = vmatprep.subr.mxu0 0.0
        %4621 = vmatpush1.msra.mxu0 0.0
        %4622 = vmatprep.subr.mxu0 0.0
        %4623 = vmatpush1.msra.mxu0 0.0
        %4624 = vmatprep.subr.mxu0 0.0
        %4625 = vmatpush1.msra.mxu0 0.0
        %4626 = vmatprep.subr.mxu0 0.0
        %4627 = vmatpush1.msra.mxu0 0.0
        %4628 = vmatprep.subr.mxu0 0.0
        %4629 = vmatpush1.msra.mxu0 0.0
        %4630 = vmatprep.subr.mxu0 0.0
        %4631 = vmatpush1.msra.mxu0 0.0
        %4632 = vmatprep.subr.mxu0 0.0
        %4633 = vmatpush1.msra.mxu0 0.0
        %4634 = vmatprep.subr.mxu0 0.0
        %4635 = vmatpush1.msra.mxu0 0.0
        %4636 = vmatprep.subr.mxu0 0.0
        %4637 = vmatpush1.msra.mxu0 0.0
        %4638 = vmatprep.subr.mxu0 0.0
        %4639 = vmatpush1.msra.mxu0 0.0
        %4640 = vmatprep.subr.mxu0 0.0
        %4641 = vmatpush1.msra.mxu0 0.0
        %4642 = vmatprep.subr.mxu0 0.0
        %4643 = vmatpush1.msra.mxu0 0.0
        %4644 = vmatprep.subr.mxu0 0.0
        %4645 = vmatpush1.msra.mxu0 0.0
        %4646 = vmatprep.subr.mxu0 0.0
        %4647 = vmatpush1.msra.mxu0 0.0
        %4648 = vmatprep.subr.mxu0 0.0
        %4649 = vmatpush1.msra.mxu0 0.0
        %4650 = vmatprep.subr.mxu0 0.0
        %4651 = vmatpush1.msra.mxu0 0.0
        %4652 = vmatprep.subr.mxu0 0.0
        %4653 = vmatpush1.msra.mxu0 0.0
        %4654 = vmatprep.subr.mxu0 0.0
        %4655 = vmatpush1.msra.mxu0 0.0
        %4656 = vmatprep.subr.mxu0 0.0
        %4657 = vmatpush1.msra.mxu0 0.0
        %4658 = vmatprep.subr.mxu0 0.0
        %4659 = vmatpush1.msra.mxu0 0.0
        %4660 = vmatprep.subr.mxu0 0.0
        %4661 = vmatpush1.msra.mxu0 0.0
        %4662 = vmatprep.mubr.f32.mxu0 0.0
        %4663 = vmatmul.mubr.f32.gmra.mrb[0].mxu0 %v4590
        %v4664 = vpop.f32.mrb[0].mxu0
        %v4665 = vadd.f32 %v4587, %v4664
        %v4666 = vpop.f32.mrb[0].mxu0
        %4667 = vmatprep.mubr.f32.mxu0 0.0
        %4668 = vmatmul.mubr.f32.gmra.mrb[0].mxu0 %v4593
        %v4669 = vpop.f32.mrb[0].mxu0
        %v4670 = vadd.f32 %v4587, %v4669
        %v4671 = vpop.f32.mrb[0].mxu0
        %4672 = vmatprep.mubr.f32.mxu0 0.0
        %4673 = vmatmul.mubr.f32.gmra.mrb[0].mxu0 %v4596
        %v4674 = vpop.f32.mrb[0].mxu0
        %v4675 = vadd.f32 %v4587, %v4674
        %v4676 = vpop.f32.mrb[0].mxu0
        %4677 = vdwg.mxu0
        %4681 = vrot.lane.b32.xlu0 %v4665, 123
        %v4682 = vpop.permute.xlu0 %4681
        %4683 = vrot.lane.b32.xlu0 %v4670, 123
        %v4684 = vpop.permute.xlu0 %4683
        %4685 = vrot.lane.b32.xlu0 %v4675, 123
        %v4686 = vpop.permute.xlu0 %4685
        %4687 = vrot.lane.b32.xlu0 %v4665, 118
        %v4688 = vpop.permute.xlu0 %4687
        %4689 = vrot.lane.b32.xlu0 %v4670, 118
        %v4690 = vpop.permute.xlu0 %4689
        %4691 = vrot.lane.b32.xlu0 %v4675, 118
        %v4692 = vpop.permute.xlu0 %4691
        %4693 = vrot.lane.b32.xlu0 %v4665, 113
        %v4694 = vpop.permute.xlu0 %4693
        %4695 = vrot.lane.b32.xlu0 %v4670, 113
        %v4696 = vpop.permute.xlu0 %4695
        %4697 = vrot.lane.b32.xlu0 %v4675, 113
        %v4698 = vpop.permute.xlu0 %4697
        %4699 = vrot.lane.b32.xlu0 %v4665, 108
        %v4700 = vpop.permute.xlu0 %4699
        %4701 = vrot.lane.b32.xlu0 %v4670, 108
        %v4702 = vpop.permute.xlu0 %4701
        %4703 = vrot.lane.b32.xlu0 %v4675, 108
        %v4704 = vpop.permute.xlu0 %4703
        %4705 = vrot.lane.b32.xlu0 %v4665, 103
        %v4706 = vpop.permute.xlu0 %4705
        %4707 = vrot.lane.b32.xlu0 %v4670, 103
        %v4708 = vpop.permute.xlu0 %4707
        %4709 = vrot.lane.b32.xlu0 %v4675, 103
        %v4710 = vpop.permute.xlu0 %4709
        %4711 = vrot.lane.b32.xlu0 %v4665, 98
        %v4712 = vpop.permute.xlu0 %4711
        %4713 = vrot.lane.b32.xlu0 %v4670, 98
        %v4714 = vpop.permute.xlu0 %4713
        %4715 = vrot.lane.b32.xlu0 %v4675, 98
        %v4716 = vpop.permute.xlu0 %4715
        %4717 = vrot.lane.b32.xlu0 %v4665, 93
        %v4718 = vpop.permute.xlu0 %4717
        %4719 = vrot.lane.b32.xlu0 %v4670, 93
        %v4720 = vpop.permute.xlu0 %4719
        %4721 = vrot.lane.b32.xlu0 %v4675, 93
        %v4722 = vpop.permute.xlu0 %4721
        %4723 = vrot.lane.b32.xlu0 %v4665, 88
        %v4724 = vpop.permute.xlu0 %4723
        %4725 = vrot.lane.b32.xlu0 %v4670, 88
        %v4726 = vpop.permute.xlu0 %4725
        %4727 = vrot.lane.b32.xlu0 %v4675, 88
        %v4728 = vpop.permute.xlu0 %4727
        %v4729 = vsel %vm2108, %v4665, 0
        %v4731 = vsel %vm2108, %v4670, 0
        %v4733 = vsel %vm2108, %v4675, 0
        %v4735 = vsel %vm2108, %v4724, 0
        %v4737 = vsel %vm2108, %v4726, 0
        %v4739 = vsel %vm2108, %v4728, 0
        %4741 = vmatprep.subr.mxu0 0.0
        %4742 = vmatpush1.xpose.msra.mxu0 %v4735
        %4743 = vmatprep.subr.mxu0 0.0
        %4744 = vmatpush1.xpose.msra.mxu0 %v4737
        %4745 = vmatprep.subr.mxu0 0.0
        %4746 = vmatpush1.xpose.msra.mxu0 %v4739
        %4747 = vmatprep.subr.mxu0 0.0
        %4748 = vmatpush1.xpose.msra.mxu0 0.0
        %4749 = vmatprep.subr.mxu0 0.0
        %4750 = vmatpush1.xpose.msra.mxu0 0.0
        %4751 = vmatprep.subr.mxu0 0.0
        %4752 = vmatpush1.xpose.msra.mxu0 0.0
        %4753 = vmatprep.subr.mxu0 0.0
        %4754 = vmatpush1.xpose.msra.mxu0 0.0
        %4755 = vmatprep.subr.mxu0 0.0
        %4756 = vmatpush1.xpose.msra.mxu0 0.0
        %4757 = vmatprep.subr.mxu0 0.0
        %4758 = vmatpush1.xpose.msra.mxu0 0.0
        %4759 = vmatprep.subr.mxu0 0.0
        %4760 = vmatpush1.xpose.msra.mxu0 0.0
        %4761 = vmatprep.subr.mxu0 0.0
        %4762 = vmatpush1.xpose.msra.mxu0 0.0
        %4763 = vmatprep.subr.mxu0 0.0
        %4764 = vmatpush1.xpose.msra.mxu0 0.0
        %4765 = vmatprep.subr.mxu0 0.0
        %4766 = vmatpush1.xpose.msra.mxu0 0.0
        %4767 = vmatprep.subr.mxu0 0.0
        %4768 = vmatpush1.xpose.msra.mxu0 0.0
        %4769 = vmatprep.subr.mxu0 0.0
        %4770 = vmatpush1.xpose.msra.mxu0 0.0
        %4771 = vmatprep.subr.mxu0 0.0
        %4772 = vmatpush1.xpose.msra.mxu0 0.0
        %4773 = vmatprep.subr.mxu0 0.0
        %4774 = vmatpush1.xpose.msra.mxu0 0.0
        %4775 = vmatprep.subr.mxu0 0.0
        %4776 = vmatpush1.xpose.msra.mxu0 0.0
        %4777 = vmatprep.subr.mxu0 0.0
        %4778 = vmatpush1.xpose.msra.mxu0 0.0
        %4779 = vmatprep.subr.mxu0 0.0
        %4780 = vmatpush1.xpose.msra.mxu0 0.0
        %4781 = vmatprep.subr.mxu0 0.0
        %4782 = vmatpush1.xpose.msra.mxu0 0.0
        %4783 = vmatprep.subr.mxu0 0.0
        %4784 = vmatpush1.xpose.msra.mxu0 0.0
        %4785 = vmatprep.subr.mxu0 0.0
        %4786 = vmatpush1.xpose.msra.mxu0 0.0
        %4787 = vmatprep.subr.mxu0 0.0
        %4788 = vmatpush1.xpose.msra.mxu0 0.0
        %4789 = vmatprep.subr.mxu0 0.0
        %4790 = vmatpush1.xpose.msra.mxu0 0.0
        %4791 = vmatprep.subr.mxu0 0.0
        %4792 = vmatpush1.xpose.msra.mxu0 0.0
        %4793 = vmatprep.subr.mxu0 0.0
        %4794 = vmatpush1.xpose.msra.mxu0 0.0
        %4795 = vmatprep.subr.mxu0 0.0
        %4796 = vmatpush1.xpose.msra.mxu0 0.0
        %4797 = vmatprep.subr.mxu0 0.0
        %4798 = vmatpush1.xpose.msra.mxu0 0.0
        %4799 = vmatprep.subr.mxu0 0.0
        %4800 = vmatpush1.xpose.msra.mxu0 0.0
        %4801 = vmatprep.subr.mxu0 0.0
        %4802 = vmatpush1.xpose.msra.mxu0 0.0
        %4803 = vmatprep.subr.mxu0 0.0
        %4804 = vmatpush1.xpose.msra.mxu0 0.0
        %4805 = vmatprep.mubr.f32.mxu0 0.0
        %4806 = vmatmul.mubr.f32.gmra.mrb[0].mxu0 %v4729
        %v4807 = vpop.f32.mrb[0].mxu0
        %v4808 = vadd.f32 0.0, %v4807
        %v4809 = vpop.f32.mrb[0].mxu0
        %4810 = vmatprep.mubr.f32.mxu0 0.0
        %4811 = vmatmul.mubr.f32.gmra.mrb[0].mxu0 %v4731
        %v4812 = vpop.f32.mrb[0].mxu0
        %v4813 = vadd.f32 0.0, %v4812
        %v4814 = vpop.f32.mrb[0].mxu0
        %4815 = vmatprep.mubr.f32.mxu0 0.0
        %4816 = vmatmul.mubr.f32.gmra.mrb[0].mxu0 %v4733
        %v4817 = vpop.f32.mrb[0].mxu0
        %v4818 = vadd.f32 0.0, %v4817
        %v4819 = vpop.f32.mrb[0].mxu0
        %4820 = vdwg.mxu0
        %4821 = vrot.lane.b32.xlu0 %v4682, 88
        %v4822 = vpop.permute.xlu0 %4821
        %4823 = vrot.lane.b32.xlu0 %v4684, 88
        %v4824 = vpop.permute.xlu0 %4823
        %4825 = vrot.lane.b32.xlu0 %v4686, 88
        %v4826 = vpop.permute.xlu0 %4825
        %v4827 = vsel %vm2108, %v4682, 0
        %v4829 = vsel %vm2108, %v4684, 0
        %v4831 = vsel %vm2108, %v4686, 0
        %v4833 = vsel %vm2108, %v4822, 0
        %v4835 = vsel %vm2108, %v4824, 0
        %v4837 = vsel %vm2108, %v4826, 0
        %4839 = vmatprep.subr.mxu0 0.0
        %4840 = vmatpush1.xpose.msra.mxu0 %v4833
        %4841 = vmatprep.subr.mxu0 0.0
        %4842 = vmatpush1.xpose.msra.mxu0 %v4835
        %4843 = vmatprep.subr.mxu0 0.0
        %4844 = vmatpush1.xpose.msra.mxu0 %v4837
        %4845 = vmatprep.subr.mxu0 0.0
        %4846 = vmatpush1.xpose.msra.mxu0 0.0
        %4847 = vmatprep.subr.mxu0 0.0
        %4848 = vmatpush1.xpose.msra.mxu0 0.0
        %4849 = vmatprep.subr.mxu0 0.0
        %4850 = vmatpush1.xpose.msra.mxu0 0.0
        %4851 = vmatprep.subr.mxu0 0.0
        %4852 = vmatpush1.xpose.msra.mxu0 0.0
        %4853 = vmatprep.subr.mxu0 0.0
        %4854 = vmatpush1.xpose.msra.mxu0 0.0
        %4855 = vmatprep.subr.mxu0 0.0
        %4856 = vmatpush1.xpose.msra.mxu0 0.0
        %4857 = vmatprep.subr.mxu0 0.0
        %4858 = vmatpush1.xpose.msra.mxu0 0.0
        %4859 = vmatprep.subr.mxu0 0.0
        %4860 = vmatpush1.xpose.msra.mxu0 0.0
        %4861 = vmatprep.subr.mxu0 0.0
        %4862 = vmatpush1.xpose.msra.mxu0 0.0
        %4863 = vmatprep.subr.mxu0 0.0
        %4864 = vmatpush1.xpose.msra.mxu0 0.0
        %4865 = vmatprep.subr.mxu0 0.0
        %4866 = vmatpush1.xpose.msra.mxu0 0.0
        %4867 = vmatprep.subr.mxu0 0.0
        %4868 = vmatpush1.xpose.msra.mxu0 0.0
        %4869 = vmatprep.subr.mxu0 0.0
        %4870 = vmatpush1.xpose.msra.mxu0 0.0
        %4871 = vmatprep.subr.mxu0 0.0
        %4872 = vmatpush1.xpose.msra.mxu0 0.0
        %4873 = vmatprep.subr.mxu0 0.0
        %4874 = vmatpush1.xpose.msra.mxu0 0.0
        %4875 = vmatprep.subr.mxu0 0.0
        %4876 = vmatpush1.xpose.msra.mxu0 0.0
        %4877 = vmatprep.subr.mxu0 0.0
        %4878 = vmatpush1.xpose.msra.mxu0 0.0
        %4879 = vmatprep.subr.mxu0 0.0
        %4880 = vmatpush1.xpose.msra.mxu0 0.0
        %4881 = vmatprep.subr.mxu0 0.0
        %4882 = vmatpush1.xpose.msra.mxu0 0.0
        %4883 = vmatprep.subr.mxu0 0.0
        %4884 = vmatpush1.xpose.msra.mxu0 0.0
        %4885 = vmatprep.subr.mxu0 0.0
        %4886 = vmatpush1.xpose.msra.mxu0 0.0
        %4887 = vmatprep.subr.mxu0 0.0
        %4888 = vmatpush1.xpose.msra.mxu0 0.0
        %4889 = vmatprep.subr.mxu0 0.0
        %4890 = vmatpush1.xpose.msra.mxu0 0.0
        %4891 = vmatprep.subr.mxu0 0.0
        %4892 = vmatpush1.xpose.msra.mxu0 0.0
        %4893 = vmatprep.subr.mxu0 0.0
        %4894 = vmatpush1.xpose.msra.mxu0 0.0
        %4895 = vmatprep.subr.mxu0 0.0
        %4896 = vmatpush1.xpose.msra.mxu0 0.0
        %4897 = vmatprep.subr.mxu0 0.0
        %4898 = vmatpush1.xpose.msra.mxu0 0.0
        %4899 = vmatprep.subr.mxu0 0.0
        %4900 = vmatpush1.xpose.msra.mxu0 0.0
        %4901 = vmatprep.subr.mxu0 0.0
        %4902 = vmatpush1.xpose.msra.mxu0 0.0
        %4903 = vmatprep.mubr.f32.mxu0 0.0
        %4904 = vmatmul.mubr.f32.gmra.mrb[0].mxu0 %v4827
        %v4905 = vpop.f32.mrb[0].mxu0
        %v4906 = vadd.f32 0.0, %v4905
        %v4907 = vpop.f32.mrb[0].mxu0
        %4908 = vmatprep.mubr.f32.mxu0 0.0
        %4909 = vmatmul.mubr.f32.gmra.mrb[0].mxu0 %v4829
        %v4910 = vpop.f32.mrb[0].mxu0
        %v4911 = vadd.f32 0.0, %v4910
        %v4912 = vpop.f32.mrb[0].mxu0
        %4913 = vmatprep.mubr.f32.mxu0 0.0
        %4914 = vmatmul.mubr.f32.gmra.mrb[0].mxu0 %v4831
        %v4915 = vpop.f32.mrb[0].mxu0
        %v4916 = vadd.f32 0.0, %v4915
        %v4917 = vpop.f32.mrb[0].mxu0
        %4918 = vdwg.mxu0
        %4919 = vrot.lane.b32.xlu0 %v4688, 88
        %v4920 = vpop.permute.xlu0 %4919
        %4921 = vrot.lane.b32.xlu0 %v4690, 88
        %v4922 = vpop.permute.xlu0 %4921
        %4923 = vrot.lane.b32.xlu0 %v4692, 88
        %v4924 = vpop.permute.xlu0 %4923
        %v4925 = vsel %vm2108, %v4688, 0
        %v4927 = vsel %vm2108, %v4690, 0
        %v4929 = vsel %vm2108, %v4692, 0
        %v4931 = vsel %vm2108, %v4920, 0
        %v4933 = vsel %vm2108, %v4922, 0
        %v4935 = vsel %vm2108, %v4924, 0
        %4937 = vmatprep.subr.mxu0 0.0
        %4938 = vmatpush1.xpose.msra.mxu0 %v4931
        %4939 = vmatprep.subr.mxu0 0.0
        %4940 = vmatpush1.xpose.msra.mxu0 %v4933
        %4941 = vmatprep.subr.mxu0 0.0
        %4942 = vmatpush1.xpose.msra.mxu0 %v4935
        %4943 = vmatprep.subr.mxu0 0.0
        %4944 = vmatpush1.xpose.msra.mxu0 0.0
        %4945 = vmatprep.subr.mxu0 0.0
        %4946 = vmatpush1.xpose.msra.mxu0 0.0
        %4947 = vmatprep.subr.mxu0 0.0
        %4948 = vmatpush1.xpose.msra.mxu0 0.0
        %4949 = vmatprep.subr.mxu0 0.0
        %4950 = vmatpush1.xpose.msra.mxu0 0.0
        %4951 = vmatprep.subr.mxu0 0.0
        %4952 = vmatpush1.xpose.msra.mxu0 0.0
        %4953 = vmatprep.subr.mxu0 0.0
        %4954 = vmatpush1.xpose.msra.mxu0 0.0
        %4955 = vmatprep.subr.mxu0 0.0
        %4956 = vmatpush1.xpose.msra.mxu0 0.0
        %4957 = vmatprep.subr.mxu0 0.0
        %4958 = vmatpush1.xpose.msra.mxu0 0.0
        %4959 = vmatprep.subr.mxu0 0.0
        %4960 = vmatpush1.xpose.msra.mxu0 0.0
        %4961 = vmatprep.subr.mxu0 0.0
        %4962 = vmatpush1.xpose.msra.mxu0 0.0
        %4963 = vmatprep.subr.mxu0 0.0
        %4964 = vmatpush1.xpose.msra.mxu0 0.0
        %4965 = vmatprep.subr.mxu0 0.0
        %4966 = vmatpush1.xpose.msra.mxu0 0.0
        %4967 = vmatprep.subr.mxu0 0.0
        %4968 = vmatpush1.xpose.msra.mxu0 0.0
        %4969 = vmatprep.subr.mxu0 0.0
        %4970 = vmatpush1.xpose.msra.mxu0 0.0
        %4971 = vmatprep.subr.mxu0 0.0
        %4972 = vmatpush1.xpose.msra.mxu0 0.0
        %4973 = vmatprep.subr.mxu0 0.0
        %4974 = vmatpush1.xpose.msra.mxu0 0.0
        %4975 = vmatprep.subr.mxu0 0.0
        %4976 = vmatpush1.xpose.msra.mxu0 0.0
        %4977 = vmatprep.subr.mxu0 0.0
        %4978 = vmatpush1.xpose.msra.mxu0 0.0
        %4979 = vmatprep.subr.mxu0 0.0
        %4980 = vmatpush1.xpose.msra.mxu0 0.0
        %4981 = vmatprep.subr.mxu0 0.0
        %4982 = vmatpush1.xpose.msra.mxu0 0.0
        %4983 = vmatprep.subr.mxu0 0.0
        %4984 = vmatpush1.xpose.msra.mxu0 0.0
        %4985 = vmatprep.subr.mxu0 0.0
        %4986 = vmatpush1.xpose.msra.mxu0 0.0
        %4987 = vmatprep.subr.mxu0 0.0
        %4988 = vmatpush1.xpose.msra.mxu0 0.0
        %4989 = vmatprep.subr.mxu0 0.0
        %4990 = vmatpush1.xpose.msra.mxu0 0.0
        %4991 = vmatprep.subr.mxu0 0.0
        %4992 = vmatpush1.xpose.msra.mxu0 0.0
        %4993 = vmatprep.subr.mxu0 0.0
        %4994 = vmatpush1.xpose.msra.mxu0 0.0
        %4995 = vmatprep.subr.mxu0 0.0
        %4996 = vmatpush1.xpose.msra.mxu0 0.0
        %4997 = vmatprep.subr.mxu0 0.0
        %4998 = vmatpush1.xpose.msra.mxu0 0.0
        %4999 = vmatprep.subr.mxu0 0.0
        %5000 = vmatpush1.xpose.msra.mxu0 0.0
        %5001 = vmatprep.mubr.f32.mxu0 0.0
        %5002 = vmatmul.mubr.f32.gmra.mrb[0].mxu0 %v4925
        %v5003 = vpop.f32.mrb[0].mxu0
        %v5004 = vadd.f32 0.0, %v5003
        %v5005 = vpop.f32.mrb[0].mxu0
        %5006 = vmatprep.mubr.f32.mxu0 0.0
        %5007 = vmatmul.mubr.f32.gmra.mrb[0].mxu0 %v4927
        %v5008 = vpop.f32.mrb[0].mxu0
        %v5009 = vadd.f32 0.0, %v5008
        %v5010 = vpop.f32.mrb[0].mxu0
        %5011 = vmatprep.mubr.f32.mxu0 0.0
        %5012 = vmatmul.mubr.f32.gmra.mrb[0].mxu0 %v4929
        %v5013 = vpop.f32.mrb[0].mxu0
        %v5014 = vadd.f32 0.0, %v5013
        %v5015 = vpop.f32.mrb[0].mxu0
        %5016 = vdwg.mxu0
        %5017 = vrot.lane.b32.xlu0 %v4694, 88
        %v5018 = vpop.permute.xlu0 %5017
        %5019 = vrot.lane.b32.xlu0 %v4696, 88
        %v5020 = vpop.permute.xlu0 %5019
        %5021 = vrot.lane.b32.xlu0 %v4698, 88
        %v5022 = vpop.permute.xlu0 %5021
        %v5023 = vsel %vm2108, %v4694, 0
        %v5025 = vsel %vm2108, %v4696, 0
        %v5027 = vsel %vm2108, %v4698, 0
        %v5029 = vsel %vm2108, %v5018, 0
        %v5031 = vsel %vm2108, %v5020, 0
        %v5033 = vsel %vm2108, %v5022, 0
        %5035 = vmatprep.subr.mxu0 0.0
        %5036 = vmatpush1.xpose.msra.mxu0 %v5029
        %5037 = vmatprep.subr.mxu0 0.0
        %5038 = vmatpush1.xpose.msra.mxu0 %v5031
        %5039 = vmatprep.subr.mxu0 0.0
        %5040 = vmatpush1.xpose.msra.mxu0 %v5033
        %5041 = vmatprep.subr.mxu0 0.0
        %5042 = vmatpush1.xpose.msra.mxu0 0.0
        %5043 = vmatprep.subr.mxu0 0.0
        %5044 = vmatpush1.xpose.msra.mxu0 0.0
        %5045 = vmatprep.subr.mxu0 0.0
        %5046 = vmatpush1.xpose.msra.mxu0 0.0
        %5047 = vmatprep.subr.mxu0 0.0
        %5048 = vmatpush1.xpose.msra.mxu0 0.0
        %5049 = vmatprep.subr.mxu0 0.0
        %5050 = vmatpush1.xpose.msra.mxu0 0.0
        %5051 = vmatprep.subr.mxu0 0.0
        %5052 = vmatpush1.xpose.msra.mxu0 0.0
        %5053 = vmatprep.subr.mxu0 0.0
        %5054 = vmatpush1.xpose.msra.mxu0 0.0
        %5055 = vmatprep.subr.mxu0 0.0
        %5056 = vmatpush1.xpose.msra.mxu0 0.0
        %5057 = vmatprep.subr.mxu0 0.0
        %5058 = vmatpush1.xpose.msra.mxu0 0.0
        %5059 = vmatprep.subr.mxu0 0.0
        %5060 = vmatpush1.xpose.msra.mxu0 0.0
        %5061 = vmatprep.subr.mxu0 0.0
        %5062 = vmatpush1.xpose.msra.mxu0 0.0
        %5063 = vmatprep.subr.mxu0 0.0
        %5064 = vmatpush1.xpose.msra.mxu0 0.0
        %5065 = vmatprep.subr.mxu0 0.0
        %5066 = vmatpush1.xpose.msra.mxu0 0.0
        %5067 = vmatprep.subr.mxu0 0.0
        %5068 = vmatpush1.xpose.msra.mxu0 0.0
        %5069 = vmatprep.subr.mxu0 0.0
        %5070 = vmatpush1.xpose.msra.mxu0 0.0
        %5071 = vmatprep.subr.mxu0 0.0
        %5072 = vmatpush1.xpose.msra.mxu0 0.0
        %5073 = vmatprep.subr.mxu0 0.0
        %5074 = vmatpush1.xpose.msra.mxu0 0.0
        %5075 = vmatprep.subr.mxu0 0.0
        %5076 = vmatpush1.xpose.msra.mxu0 0.0
        %5077 = vmatprep.subr.mxu0 0.0
        %5078 = vmatpush1.xpose.msra.mxu0 0.0
        %5079 = vmatprep.subr.mxu0 0.0
        %5080 = vmatpush1.xpose.msra.mxu0 0.0
        %5081 = vmatprep.subr.mxu0 0.0
        %5082 = vmatpush1.xpose.msra.mxu0 0.0
        %5083 = vmatprep.subr.mxu0 0.0
        %5084 = vmatpush1.xpose.msra.mxu0 0.0
        %5085 = vmatprep.subr.mxu0 0.0
        %5086 = vmatpush1.xpose.msra.mxu0 0.0
        %5087 = vmatprep.subr.mxu0 0.0
        %5088 = vmatpush1.xpose.msra.mxu0 0.0
        %5089 = vmatprep.subr.mxu0 0.0
        %5090 = vmatpush1.xpose.msra.mxu0 0.0
        %5091 = vmatprep.subr.mxu0 0.0
        %5092 = vmatpush1.xpose.msra.mxu0 0.0
        %5093 = vmatprep.subr.mxu0 0.0
        %5094 = vmatpush1.xpose.msra.mxu0 0.0
        %5095 = vmatprep.subr.mxu0 0.0
        %5096 = vmatpush1.xpose.msra.mxu0 0.0
        %5097 = vmatprep.subr.mxu0 0.0
        %5098 = vmatpush1.xpose.msra.mxu0 0.0
        %5099 = vmatprep.mubr.f32.mxu0 0.0
        %5100 = vmatmul.mubr.f32.gmra.mrb[0].mxu0 %v5023
        %v5101 = vpop.f32.mrb[0].mxu0
        %v5102 = vadd.f32 0.0, %v5101
        %v5103 = vpop.f32.mrb[0].mxu0
        %5104 = vmatprep.mubr.f32.mxu0 0.0
        %5105 = vmatmul.mubr.f32.gmra.mrb[0].mxu0 %v5025
        %v5106 = vpop.f32.mrb[0].mxu0
        %v5107 = vadd.f32 0.0, %v5106
        %v5108 = vpop.f32.mrb[0].mxu0
        %5109 = vmatprep.mubr.f32.mxu0 0.0
        %5110 = vmatmul.mubr.f32.gmra.mrb[0].mxu0 %v5027
        %v5111 = vpop.f32.mrb[0].mxu0
        %v5112 = vadd.f32 0.0, %v5111
        %v5113 = vpop.f32.mrb[0].mxu0
        %5114 = vdwg.mxu0
        %5115 = vrot.lane.b32.xlu0 %v4700, 88
        %v5116 = vpop.permute.xlu0 %5115
        %5117 = vrot.lane.b32.xlu0 %v4702, 88
        %v5118 = vpop.permute.xlu0 %5117
        %5119 = vrot.lane.b32.xlu0 %v4704, 88
        %v5120 = vpop.permute.xlu0 %5119
        %v5121 = vsel %vm2108, %v4700, 0
        %v5123 = vsel %vm2108, %v4702, 0
        %v5125 = vsel %vm2108, %v4704, 0
        %v5127 = vsel %vm2108, %v5116, 0
        %v5129 = vsel %vm2108, %v5118, 0
        %v5131 = vsel %vm2108, %v5120, 0
        %5133 = vmatprep.subr.mxu0 0.0
        %5134 = vmatpush1.xpose.msra.mxu0 %v5127
        %5135 = vmatprep.subr.mxu0 0.0
        %5136 = vmatpush1.xpose.msra.mxu0 %v5129
        %5137 = vmatprep.subr.mxu0 0.0
        %5138 = vmatpush1.xpose.msra.mxu0 %v5131
        %5139 = vmatprep.subr.mxu0 0.0
        %5140 = vmatpush1.xpose.msra.mxu0 0.0
        %5141 = vmatprep.subr.mxu0 0.0
        %5142 = vmatpush1.xpose.msra.mxu0 0.0
        %5143 = vmatprep.subr.mxu0 0.0
        %5144 = vmatpush1.xpose.msra.mxu0 0.0
        %5145 = vmatprep.subr.mxu0 0.0
        %5146 = vmatpush1.xpose.msra.mxu0 0.0
        %5147 = vmatprep.subr.mxu0 0.0
        %5148 = vmatpush1.xpose.msra.mxu0 0.0
        %5149 = vmatprep.subr.mxu0 0.0
        %5150 = vmatpush1.xpose.msra.mxu0 0.0
        %5151 = vmatprep.subr.mxu0 0.0
        %5152 = vmatpush1.xpose.msra.mxu0 0.0
        %5153 = vmatprep.subr.mxu0 0.0
        %5154 = vmatpush1.xpose.msra.mxu0 0.0
        %5155 = vmatprep.subr.mxu0 0.0
        %5156 = vmatpush1.xpose.msra.mxu0 0.0
        %5157 = vmatprep.subr.mxu0 0.0
        %5158 = vmatpush1.xpose.msra.mxu0 0.0
        %5159 = vmatprep.subr.mxu0 0.0
        %5160 = vmatpush1.xpose.msra.mxu0 0.0
        %5161 = vmatprep.subr.mxu0 0.0
        %5162 = vmatpush1.xpose.msra.mxu0 0.0
        %5163 = vmatprep.subr.mxu0 0.0
        %5164 = vmatpush1.xpose.msra.mxu0 0.0
        %5165 = vmatprep.subr.mxu0 0.0
        %5166 = vmatpush1.xpose.msra.mxu0 0.0
        %5167 = vmatprep.subr.mxu0 0.0
        %5168 = vmatpush1.xpose.msra.mxu0 0.0
        %5169 = vmatprep.subr.mxu0 0.0
        %5170 = vmatpush1.xpose.msra.mxu0 0.0
        %5171 = vmatprep.subr.mxu0 0.0
        %5172 = vmatpush1.xpose.msra.mxu0 0.0
        %5173 = vmatprep.subr.mxu0 0.0
        %5174 = vmatpush1.xpose.msra.mxu0 0.0
        %5175 = vmatprep.subr.mxu0 0.0
        %5176 = vmatpush1.xpose.msra.mxu0 0.0
        %5177 = vmatprep.subr.mxu0 0.0
        %5178 = vmatpush1.xpose.msra.mxu0 0.0
        %5179 = vmatprep.subr.mxu0 0.0
        %5180 = vmatpush1.xpose.msra.mxu0 0.0
        %5181 = vmatprep.subr.mxu0 0.0
        %5182 = vmatpush1.xpose.msra.mxu0 0.0
        %5183 = vmatprep.subr.mxu0 0.0
        %5184 = vmatpush1.xpose.msra.mxu0 0.0
        %5185 = vmatprep.subr.mxu0 0.0
        %5186 = vmatpush1.xpose.msra.mxu0 0.0
        %5187 = vmatprep.subr.mxu0 0.0
        %5188 = vmatpush1.xpose.msra.mxu0 0.0
        %5189 = vmatprep.subr.mxu0 0.0
        %5190 = vmatpush1.xpose.msra.mxu0 0.0
        %5191 = vmatprep.subr.mxu0 0.0
        %5192 = vmatpush1.xpose.msra.mxu0 0.0
        %5193 = vmatprep.subr.mxu0 0.0
        %5194 = vmatpush1.xpose.msra.mxu0 0.0
        %5195 = vmatprep.subr.mxu0 0.0
        %5196 = vmatpush1.xpose.msra.mxu0 0.0
        %5197 = vmatprep.mubr.f32.mxu0 0.0
        %5198 = vmatmul.mubr.f32.gmra.mrb[0].mxu0 %v5121
        %v5199 = vpop.f32.mrb[0].mxu0
        %v5200 = vadd.f32 0.0, %v5199
        %v5201 = vpop.f32.mrb[0].mxu0
        %5202 = vmatprep.mubr.f32.mxu0 0.0
        %5203 = vmatmul.mubr.f32.gmra.mrb[0].mxu0 %v5123
        %v5204 = vpop.f32.mrb[0].mxu0
        %v5205 = vadd.f32 0.0, %v5204
        %v5206 = vpop.f32.mrb[0].mxu0
        %5207 = vmatprep.mubr.f32.mxu0 0.0
        %5208 = vmatmul.mubr.f32.gmra.mrb[0].mxu0 %v5125
        %v5209 = vpop.f32.mrb[0].mxu0
        %v5210 = vadd.f32 0.0, %v5209
        %v5211 = vpop.f32.mrb[0].mxu0
        %5212 = vdwg.mxu0
        %5213 = vrot.lane.b32.xlu0 %v4706, 88
        %v5214 = vpop.permute.xlu0 %5213
        %5215 = vrot.lane.b32.xlu0 %v4708, 88
        %v5216 = vpop.permute.xlu0 %5215
        %5217 = vrot.lane.b32.xlu0 %v4710, 88
        %v5218 = vpop.permute.xlu0 %5217
        %v5219 = vsel %vm2108, %v4706, 0
        %v5221 = vsel %vm2108, %v4708, 0
        %v5223 = vsel %vm2108, %v4710, 0
        %v5225 = vsel %vm2108, %v5214, 0
        %v5227 = vsel %vm2108, %v5216, 0
        %v5229 = vsel %vm2108, %v5218, 0
        %5231 = vmatprep.subr.mxu0 0.0
        %5232 = vmatpush1.xpose.msra.mxu0 %v5225
        %5233 = vmatprep.subr.mxu0 0.0
        %5234 = vmatpush1.xpose.msra.mxu0 %v5227
        %5235 = vmatprep.subr.mxu0 0.0
        %5236 = vmatpush1.xpose.msra.mxu0 %v5229
        %5237 = vmatprep.subr.mxu0 0.0
        %5238 = vmatpush1.xpose.msra.mxu0 0.0
        %5239 = vmatprep.subr.mxu0 0.0
        %5240 = vmatpush1.xpose.msra.mxu0 0.0
        %5241 = vmatprep.subr.mxu0 0.0
        %5242 = vmatpush1.xpose.msra.mxu0 0.0
        %5243 = vmatprep.subr.mxu0 0.0
        %5244 = vmatpush1.xpose.msra.mxu0 0.0
        %5245 = vmatprep.subr.mxu0 0.0
        %5246 = vmatpush1.xpose.msra.mxu0 0.0
        %5247 = vmatprep.subr.mxu0 0.0
        %5248 = vmatpush1.xpose.msra.mxu0 0.0
        %5249 = vmatprep.subr.mxu0 0.0
        %5250 = vmatpush1.xpose.msra.mxu0 0.0
        %5251 = vmatprep.subr.mxu0 0.0
        %5252 = vmatpush1.xpose.msra.mxu0 0.0
        %5253 = vmatprep.subr.mxu0 0.0
        %5254 = vmatpush1.xpose.msra.mxu0 0.0
        %5255 = vmatprep.subr.mxu0 0.0
        %5256 = vmatpush1.xpose.msra.mxu0 0.0
        %5257 = vmatprep.subr.mxu0 0.0
        %5258 = vmatpush1.xpose.msra.mxu0 0.0
        %5259 = vmatprep.subr.mxu0 0.0
        %5260 = vmatpush1.xpose.msra.mxu0 0.0
        %5261 = vmatprep.subr.mxu0 0.0
        %5262 = vmatpush1.xpose.msra.mxu0 0.0
        %5263 = vmatprep.subr.mxu0 0.0
        %5264 = vmatpush1.xpose.msra.mxu0 0.0
        %5265 = vmatprep.subr.mxu0 0.0
        %5266 = vmatpush1.xpose.msra.mxu0 0.0
        %5267 = vmatprep.subr.mxu0 0.0
        %5268 = vmatpush1.xpose.msra.mxu0 0.0
        %5269 = vmatprep.subr.mxu0 0.0
        %5270 = vmatpush1.xpose.msra.mxu0 0.0
        %5271 = vmatprep.subr.mxu0 0.0
        %5272 = vmatpush1.xpose.msra.mxu0 0.0
        %5273 = vmatprep.subr.mxu0 0.0
        %5274 = vmatpush1.xpose.msra.mxu0 0.0
        %5275 = vmatprep.subr.mxu0 0.0
        %5276 = vmatpush1.xpose.msra.mxu0 0.0
        %5277 = vmatprep.subr.mxu0 0.0
        %5278 = vmatpush1.xpose.msra.mxu0 0.0
        %5279 = vmatprep.subr.mxu0 0.0
        %5280 = vmatpush1.xpose.msra.mxu0 0.0
        %5281 = vmatprep.subr.mxu0 0.0
        %5282 = vmatpush1.xpose.msra.mxu0 0.0
        %5283 = vmatprep.subr.mxu0 0.0
        %5284 = vmatpush1.xpose.msra.mxu0 0.0
        %5285 = vmatprep.subr.mxu0 0.0
        %5286 = vmatpush1.xpose.msra.mxu0 0.0
        %5287 = vmatprep.subr.mxu0 0.0
        %5288 = vmatpush1.xpose.msra.mxu0 0.0
        %5289 = vmatprep.subr.mxu0 0.0
        %5290 = vmatpush1.xpose.msra.mxu0 0.0
        %5291 = vmatprep.subr.mxu0 0.0
        %5292 = vmatpush1.xpose.msra.mxu0 0.0
        %5293 = vmatprep.subr.mxu0 0.0
        %5294 = vmatpush1.xpose.msra.mxu0 0.0
        %5295 = vmatprep.mubr.f32.mxu0 0.0
        %5296 = vmatmul.mubr.f32.gmra.mrb[0].mxu0 %v5219
        %v5297 = vpop.f32.mrb[0].mxu0
        %v5298 = vadd.f32 0.0, %v5297
        %v5299 = vpop.f32.mrb[0].mxu0
        %5300 = vmatprep.mubr.f32.mxu0 0.0
        %5301 = vmatmul.mubr.f32.gmra.mrb[0].mxu0 %v5221
        %v5302 = vpop.f32.mrb[0].mxu0
        %v5303 = vadd.f32 0.0, %v5302
        %v5304 = vpop.f32.mrb[0].mxu0
        %5305 = vmatprep.mubr.f32.mxu0 0.0
        %5306 = vmatmul.mubr.f32.gmra.mrb[0].mxu0 %v5223
        %v5307 = vpop.f32.mrb[0].mxu0
        %v5308 = vadd.f32 0.0, %v5307
        %v5309 = vpop.f32.mrb[0].mxu0
        %5310 = vdwg.mxu0
        %5311 = vrot.lane.b32.xlu0 %v4712, 88
        %v5312 = vpop.permute.xlu0 %5311
        %5313 = vrot.lane.b32.xlu0 %v4714, 88
        %v5314 = vpop.permute.xlu0 %5313
        %5315 = vrot.lane.b32.xlu0 %v4716, 88
        %v5316 = vpop.permute.xlu0 %5315
        %v5317 = vsel %vm2108, %v4712, 0
        %v5319 = vsel %vm2108, %v4714, 0
        %v5321 = vsel %vm2108, %v4716, 0
        %v5323 = vsel %vm2108, %v5312, 0
        %v5325 = vsel %vm2108, %v5314, 0
        %v5327 = vsel %vm2108, %v5316, 0
        %5329 = vmatprep.subr.mxu0 0.0
        %5330 = vmatpush1.xpose.msra.mxu0 %v5323
        %5331 = vmatprep.subr.mxu0 0.0
        %5332 = vmatpush1.xpose.msra.mxu0 %v5325
        %5333 = vmatprep.subr.mxu0 0.0
        %5334 = vmatpush1.xpose.msra.mxu0 %v5327
        %5335 = vmatprep.subr.mxu0 0.0
        %5336 = vmatpush1.xpose.msra.mxu0 0.0
        %5337 = vmatprep.subr.mxu0 0.0
        %5338 = vmatpush1.xpose.msra.mxu0 0.0
        %5339 = vmatprep.subr.mxu0 0.0
        %5340 = vmatpush1.xpose.msra.mxu0 0.0
        %5341 = vmatprep.subr.mxu0 0.0
        %5342 = vmatpush1.xpose.msra.mxu0 0.0
        %5343 = vmatprep.subr.mxu0 0.0
        %5344 = vmatpush1.xpose.msra.mxu0 0.0
        %5345 = vmatprep.subr.mxu0 0.0
        %5346 = vmatpush1.xpose.msra.mxu0 0.0
        %5347 = vmatprep.subr.mxu0 0.0
        %5348 = vmatpush1.xpose.msra.mxu0 0.0
        %5349 = vmatprep.subr.mxu0 0.0
        %5350 = vmatpush1.xpose.msra.mxu0 0.0
        %5351 = vmatprep.subr.mxu0 0.0
        %5352 = vmatpush1.xpose.msra.mxu0 0.0
        %5353 = vmatprep.subr.mxu0 0.0
        %5354 = vmatpush1.xpose.msra.mxu0 0.0
        %5355 = vmatprep.subr.mxu0 0.0
        %5356 = vmatpush1.xpose.msra.mxu0 0.0
        %5357 = vmatprep.subr.mxu0 0.0
        %5358 = vmatpush1.xpose.msra.mxu0 0.0
        %5359 = vmatprep.subr.mxu0 0.0
        %5360 = vmatpush1.xpose.msra.mxu0 0.0
        %5361 = vmatprep.subr.mxu0 0.0
        %5362 = vmatpush1.xpose.msra.mxu0 0.0
        %5363 = vmatprep.subr.mxu0 0.0
        %5364 = vmatpush1.xpose.msra.mxu0 0.0
        %5365 = vmatprep.subr.mxu0 0.0
        %5366 = vmatpush1.xpose.msra.mxu0 0.0
        %5367 = vmatprep.subr.mxu0 0.0
        %5368 = vmatpush1.xpose.msra.mxu0 0.0
        %5369 = vmatprep.subr.mxu0 0.0
        %5370 = vmatpush1.xpose.msra.mxu0 0.0
        %5371 = vmatprep.subr.mxu0 0.0
        %5372 = vmatpush1.xpose.msra.mxu0 0.0
        %5373 = vmatprep.subr.mxu0 0.0
        %5374 = vmatpush1.xpose.msra.mxu0 0.0
        %5375 = vmatprep.subr.mxu0 0.0
        %5376 = vmatpush1.xpose.msra.mxu0 0.0
        %5377 = vmatprep.subr.mxu0 0.0
        %5378 = vmatpush1.xpose.msra.mxu0 0.0
        %5379 = vmatprep.subr.mxu0 0.0
        %5380 = vmatpush1.xpose.msra.mxu0 0.0
        %5381 = vmatprep.subr.mxu0 0.0
        %5382 = vmatpush1.xpose.msra.mxu0 0.0
        %5383 = vmatprep.subr.mxu0 0.0
        %5384 = vmatpush1.xpose.msra.mxu0 0.0
        %5385 = vmatprep.subr.mxu0 0.0
        %5386 = vmatpush1.xpose.msra.mxu0 0.0
        %5387 = vmatprep.subr.mxu0 0.0
        %5388 = vmatpush1.xpose.msra.mxu0 0.0
        %5389 = vmatprep.subr.mxu0 0.0
        %5390 = vmatpush1.xpose.msra.mxu0 0.0
        %5391 = vmatprep.subr.mxu0 0.0
        %5392 = vmatpush1.xpose.msra.mxu0 0.0
        %5393 = vmatprep.mubr.f32.mxu0 0.0
        %5394 = vmatmul.mubr.f32.gmra.mrb[0].mxu0 %v5317
        %v5395 = vpop.f32.mrb[0].mxu0
        %v5396 = vadd.f32 0.0, %v5395
        %v5397 = vpop.f32.mrb[0].mxu0
        %5398 = vmatprep.mubr.f32.mxu0 0.0
        %5399 = vmatmul.mubr.f32.gmra.mrb[0].mxu0 %v5319
        %v5400 = vpop.f32.mrb[0].mxu0
        %v5401 = vadd.f32 0.0, %v5400
        %v5402 = vpop.f32.mrb[0].mxu0
        %5403 = vmatprep.mubr.f32.mxu0 0.0
        %5404 = vmatmul.mubr.f32.gmra.mrb[0].mxu0 %v5321
        %v5405 = vpop.f32.mrb[0].mxu0
        %v5406 = vadd.f32 0.0, %v5405
        %v5407 = vpop.f32.mrb[0].mxu0
        %5408 = vdwg.mxu0
        %5409 = vrot.lane.b32.xlu0 %v4718, 88
        %v5410 = vpop.permute.xlu0 %5409
        %5411 = vrot.lane.b32.xlu0 %v4720, 88
        %v5412 = vpop.permute.xlu0 %5411
        %5413 = vrot.lane.b32.xlu0 %v4722, 88
        %v5414 = vpop.permute.xlu0 %5413
        %v5415 = vsel %vm2108, %v4718, 0
        %v5417 = vsel %vm2108, %v4720, 0
        %v5419 = vsel %vm2108, %v4722, 0
        %v5421 = vsel %vm2108, %v5410, 0
        %v5423 = vsel %vm2108, %v5412, 0
        %v5425 = vsel %vm2108, %v5414, 0
        %5427 = vmatprep.subr.mxu0 0.0
        %5428 = vmatpush1.xpose.msra.mxu0 %v5421
        %5429 = vmatprep.subr.mxu0 0.0
        %5430 = vmatpush1.xpose.msra.mxu0 %v5423
        %5431 = vmatprep.subr.mxu0 0.0
        %5432 = vmatpush1.xpose.msra.mxu0 %v5425
        %5433 = vmatprep.subr.mxu0 0.0
        %5434 = vmatpush1.xpose.msra.mxu0 0.0
        %5435 = vmatprep.subr.mxu0 0.0
        %5436 = vmatpush1.xpose.msra.mxu0 0.0
        %5437 = vmatprep.subr.mxu0 0.0
        %5438 = vmatpush1.xpose.msra.mxu0 0.0
        %5439 = vmatprep.subr.mxu0 0.0
        %5440 = vmatpush1.xpose.msra.mxu0 0.0
        %5441 = vmatprep.subr.mxu0 0.0
        %5442 = vmatpush1.xpose.msra.mxu0 0.0
        %5443 = vmatprep.subr.mxu0 0.0
        %5444 = vmatpush1.xpose.msra.mxu0 0.0
        %5445 = vmatprep.subr.mxu0 0.0
        %5446 = vmatpush1.xpose.msra.mxu0 0.0
        %5447 = vmatprep.subr.mxu0 0.0
        %5448 = vmatpush1.xpose.msra.mxu0 0.0
        %5449 = vmatprep.subr.mxu0 0.0
        %5450 = vmatpush1.xpose.msra.mxu0 0.0
        %5451 = vmatprep.subr.mxu0 0.0
        %5452 = vmatpush1.xpose.msra.mxu0 0.0
        %5453 = vmatprep.subr.mxu0 0.0
        %5454 = vmatpush1.xpose.msra.mxu0 0.0
        %5455 = vmatprep.subr.mxu0 0.0
        %5456 = vmatpush1.xpose.msra.mxu0 0.0
        %5457 = vmatprep.subr.mxu0 0.0
        %5458 = vmatpush1.xpose.msra.mxu0 0.0
        %5459 = vmatprep.subr.mxu0 0.0
        %5460 = vmatpush1.xpose.msra.mxu0 0.0
        %5461 = vmatprep.subr.mxu0 0.0
        %5462 = vmatpush1.xpose.msra.mxu0 0.0
        %5463 = vmatprep.subr.mxu0 0.0
        %5464 = vmatpush1.xpose.msra.mxu0 0.0
        %5465 = vmatprep.subr.mxu0 0.0
        %5466 = vmatpush1.xpose.msra.mxu0 0.0
        %5467 = vmatprep.subr.mxu0 0.0
        %5468 = vmatpush1.xpose.msra.mxu0 0.0
        %5469 = vmatprep.subr.mxu0 0.0
        %5470 = vmatpush1.xpose.msra.mxu0 0.0
        %5471 = vmatprep.subr.mxu0 0.0
        %5472 = vmatpush1.xpose.msra.mxu0 0.0
        %5473 = vmatprep.subr.mxu0 0.0
        %5474 = vmatpush1.xpose.msra.mxu0 0.0
        %5475 = vmatprep.subr.mxu0 0.0
        %5476 = vmatpush1.xpose.msra.mxu0 0.0
        %5477 = vmatprep.subr.mxu0 0.0
        %5478 = vmatpush1.xpose.msra.mxu0 0.0
        %5479 = vmatprep.subr.mxu0 0.0
        %5480 = vmatpush1.xpose.msra.mxu0 0.0
        %5481 = vmatprep.subr.mxu0 0.0
        %5482 = vmatpush1.xpose.msra.mxu0 0.0
        %5483 = vmatprep.subr.mxu0 0.0
        %5484 = vmatpush1.xpose.msra.mxu0 0.0
        %5485 = vmatprep.subr.mxu0 0.0
        %5486 = vmatpush1.xpose.msra.mxu0 0.0
        %5487 = vmatprep.subr.mxu0 0.0
        %5488 = vmatpush1.xpose.msra.mxu0 0.0
        %5489 = vmatprep.subr.mxu0 0.0
        %5490 = vmatpush1.xpose.msra.mxu0 0.0
        %5491 = vmatprep.mubr.f32.mxu0 0.0
        %5492 = vmatmul.mubr.f32.gmra.mrb[0].mxu0 %v5415
        %v5493 = vpop.f32.mrb[0].mxu0
        %v5494 = vadd.f32 0.0, %v5493
        %v5495 = vpop.f32.mrb[0].mxu0
        %5496 = vmatprep.mubr.f32.mxu0 0.0
        %5497 = vmatmul.mubr.f32.gmra.mrb[0].mxu0 %v5417
        %v5498 = vpop.f32.mrb[0].mxu0
        %v5499 = vadd.f32 0.0, %v5498
        %v5500 = vpop.f32.mrb[0].mxu0
        %5501 = vmatprep.mubr.f32.mxu0 0.0
        %5502 = vmatmul.mubr.f32.gmra.mrb[0].mxu0 %v5419
        %v5503 = vpop.f32.mrb[0].mxu0
        %v5504 = vadd.f32 0.0, %v5503
        %v5505 = vpop.f32.mrb[0].mxu0
        %5506 = vdwg.mxu0
        %v5507 = vmul.f32 %v4808, 0.4472136
        %v5508 = vmul.f32 %v4813, 0.4472136
        %v5509 = vmul.f32 %v4818, 0.4472136
        %v5510 = vmul.f32 %v4906, 0.4472136
        %v5511 = vmul.f32 %v4911, 0.4472136
        %v5512 = vmul.f32 %v4916, 0.4472136
        %v5513 = vmul.f32 %v5004, 0.4472136
        %v5514 = vmul.f32 %v5009, 0.4472136
        %v5515 = vmul.f32 %v5014, 0.4472136
        %v5516 = vmul.f32 %v5102, 0.4472136
        %v5517 = vmul.f32 %v5107, 0.4472136
        %v5518 = vmul.f32 %v5112, 0.4472136
        %v5519 = vmul.f32 %v5200, 0.4472136
        %v5520 = vmul.f32 %v5205, 0.4472136
        %v5521 = vmul.f32 %v5210, 0.4472136
        %v5522 = vmul.f32 %v5298, 0.4472136
        %v5523 = vmul.f32 %v5303, 0.4472136
        %v5524 = vmul.f32 %v5308, 0.4472136
        %v5525 = vmul.f32 %v5396, 0.4472136
        %v5526 = vmul.f32 %v5401, 0.4472136
        %v5527 = vmul.f32 %v5406, 0.4472136
        %v5528 = vmul.f32 %v5494, 0.4472136
        %v5529 = vmul.f32 %v5499, 0.4472136
        %v5530 = vmul.f32 %v5504, 0.4472136
        %v5531 = vadd.f32 %v5507, %v1897
        %v5532 = vadd.f32 %v5508, %v1898
        %v5533 = vadd.f32 %v5509, %v1899
        %v5534 = vadd.f32 %v5510, %v1897
        %v5535 = vadd.f32 %v5511, %v1898
        %v5536 = vadd.f32 %v5512, %v1899
        %v5537 = vadd.f32 %v5513, %v1897
        %v5538 = vadd.f32 %v5514, %v1898
        %v5539 = vadd.f32 %v5515, %v1899
        %v5540 = vadd.f32 %v5516, %v1897
        %v5541 = vadd.f32 %v5517, %v1898
        %v5542 = vadd.f32 %v5518, %v1899
        %v5543 = vadd.f32 %v5519, %v1897
        %v5544 = vadd.f32 %v5520, %v1898
        %v5545 = vadd.f32 %v5521, %v1899
        %v5546 = vadd.f32 %v5522, %v1897
        %v5547 = vadd.f32 %v5523, %v1898
        %v5548 = vadd.f32 %v5524, %v1899
        %v5549 = vadd.f32 %v5525, %v1897
        %v5550 = vadd.f32 %v5526, %v1898
        %v5551 = vadd.f32 %v5527, %v1899
        %v5552 = vadd.f32 %v5528, %v1897
        %v5553 = vadd.f32 %v5529, %v1898
        %v5554 = vadd.f32 %v5530, %v1899
        %v5555 = vsel %vm2935, %v5531, -inf
        %5556 = vmax.xlane.f32.xlu0 %v5555
        %v5557 = vpop.xlane.xlu0 %5556
        %v5558 = vsel %vm2935, %v5532, -inf
        %5559 = vmax.xlane.f32.xlu0 %v5558
        %v5560 = vpop.xlane.xlu0 %5559
        %v5561 = vsel %vm2942, %v5533, -inf
        %5562 = vmax.xlane.f32.xlu0 %v5561
        %v5563 = vpop.xlane.xlu0 %5562
        %v5564 = vsel %vm2935, %v5534, -inf
        %5565 = vmax.xlane.f32.xlu0 %v5564
        %v5566 = vpop.xlane.xlu0 %5565
        %v5567 = vsel %vm2935, %v5535, -inf
        %5568 = vmax.xlane.f32.xlu0 %v5567
        %v5569 = vpop.xlane.xlu0 %5568
        %v5570 = vsel %vm2942, %v5536, -inf
        %5571 = vmax.xlane.f32.xlu0 %v5570
        %v5572 = vpop.xlane.xlu0 %5571
        %v5573 = vsel %vm2935, %v5537, -inf
        %5574 = vmax.xlane.f32.xlu0 %v5573
        %v5575 = vpop.xlane.xlu0 %5574
        %v5576 = vsel %vm2935, %v5538, -inf
        %5577 = vmax.xlane.f32.xlu0 %v5576
        %v5578 = vpop.xlane.xlu0 %5577
        %v5579 = vsel %vm2942, %v5539, -inf
        %5580 = vmax.xlane.f32.xlu0 %v5579
        %v5581 = vpop.xlane.xlu0 %5580
        %v5582 = vsel %vm2935, %v5540, -inf
        %5583 = vmax.xlane.f32.xlu0 %v5582
        %v5584 = vpop.xlane.xlu0 %5583
        %v5585 = vsel %vm2935, %v5541, -inf
        %5586 = vmax.xlane.f32.xlu0 %v5585
        %v5587 = vpop.xlane.xlu0 %5586
        %v5588 = vsel %vm2942, %v5542, -inf
        %5589 = vmax.xlane.f32.xlu0 %v5588
        %v5590 = vpop.xlane.xlu0 %5589
        %v5591 = vsel %vm2935, %v5543, -inf
        %5592 = vmax.xlane.f32.xlu0 %v5591
        %v5593 = vpop.xlane.xlu0 %5592
        %v5594 = vsel %vm2935, %v5544, -inf
        %5595 = vmax.xlane.f32.xlu0 %v5594
        %v5596 = vpop.xlane.xlu0 %5595
        %v5597 = vsel %vm2942, %v5545, -inf
        %5598 = vmax.xlane.f32.xlu0 %v5597
        %v5599 = vpop.xlane.xlu0 %5598
        %v5600 = vsel %vm2935, %v5546, -inf
        %5601 = vmax.xlane.f32.xlu0 %v5600
        %v5602 = vpop.xlane.xlu0 %5601
        %v5603 = vsel %vm2935, %v5547, -inf
        %5604 = vmax.xlane.f32.xlu0 %v5603
        %v5605 = vpop.xlane.xlu0 %5604
        %v5606 = vsel %vm2942, %v5548, -inf
        %5607 = vmax.xlane.f32.xlu0 %v5606
        %v5608 = vpop.xlane.xlu0 %5607
        %v5609 = vsel %vm2935, %v5549, -inf
        %5610 = vmax.xlane.f32.xlu0 %v5609
        %v5611 = vpop.xlane.xlu0 %5610
        %v5612 = vsel %vm2935, %v5550, -inf
        %5613 = vmax.xlane.f32.xlu0 %v5612
        %v5614 = vpop.xlane.xlu0 %5613
        %v5615 = vsel %vm2942, %v5551, -inf
        %5616 = vmax.xlane.f32.xlu0 %v5615
        %v5617 = vpop.xlane.xlu0 %5616
        %v5618 = vsel %vm2935, %v5552, -inf
        %5619 = vmax.xlane.f32.xlu0 %v5618
        %v5620 = vpop.xlane.xlu0 %5619
        %v5621 = vsel %vm2935, %v5553, -inf
        %5622 = vmax.xlane.f32.xlu0 %v5621
        %v5623 = vpop.xlane.xlu0 %5622
        %v5624 = vsel %vm2942, %v5554, -inf
        %5625 = vmax.xlane.f32.xlu0 %v5624
        %v5626 = vpop.xlane.xlu0 %5625
        %v5627 = vsub.f32 %v5531, %v5557
        %v5628 = vsub.f32 %v5532, %v5560
        %v5629 = vsub.f32 %v5533, %v5563
        %v5630 = vsub.f32 %v5534, %v5566
        %v5631 = vsub.f32 %v5535, %v5569
        %v5632 = vsub.f32 %v5536, %v5572
        %v5633 = vsub.f32 %v5537, %v5575
        %v5634 = vsub.f32 %v5538, %v5578
        %v5635 = vsub.f32 %v5539, %v5581
        %v5636 = vsub.f32 %v5540, %v5584
        %v5637 = vsub.f32 %v5541, %v5587
        %v5638 = vsub.f32 %v5542, %v5590
        %v5639 = vsub.f32 %v5543, %v5593
        %v5640 = vsub.f32 %v5544, %v5596
        %v5641 = vsub.f32 %v5545, %v5599
        %v5642 = vsub.f32 %v5546, %v5602
        %v5643 = vsub.f32 %v5547, %v5605
        %v5644 = vsub.f32 %v5548, %v5608
        %v5645 = vsub.f32 %v5549, %v5611
        %v5646 = vsub.f32 %v5550, %v5614
        %v5647 = vsub.f32 %v5551, %v5617
        %v5648 = vsub.f32 %v5552, %v5620
        %v5649 = vsub.f32 %v5553, %v5623
        %v5650 = vsub.f32 %v5554, %v5626
        %v5651 = vmul.f32 %v5627, 1.442695
        %v5652 = vpow.pop %v5651
        %v5653 = vmul.f32 %v5628, 1.442695
        %v5654 = vpow.pop %v5653
        %v5655 = vmul.f32 %v5629, 1.442695
        %v5656 = vpow.pop %v5655
        %v5657 = vmul.f32 %v5630, 1.442695
        %v5658 = vpow.pop %v5657
        %v5659 = vmul.f32 %v5631, 1.442695
        %v5660 = vpow.pop %v5659
        %v5661 = vmul.f32 %v5632, 1.442695
        %v5662 = vpow.pop %v5661
        %v5663 = vmul.f32 %v5633, 1.442695
        %v5664 = vpow.pop %v5663
        %v5665 = vmul.f32 %v5634, 1.442695
        %v5666 = vpow.pop %v5665
        %v5667 = vmul.f32 %v5635, 1.442695
        %v5668 = vpow.pop %v5667
        %v5669 = vmul.f32 %v5636, 1.442695
        %v5670 = vpow.pop %v5669
        %v5671 = vmul.f32 %v5637, 1.442695
        %v5672 = vpow.pop %v5671
        %v5673 = vmul.f32 %v5638, 1.442695
        %v5674 = vpow.pop %v5673
        %v5675 = vmul.f32 %v5639, 1.442695
        %v5676 = vpow.pop %v5675
        %v5677 = vmul.f32 %v5640, 1.442695
        %v5678 = vpow.pop %v5677
        %v5679 = vmul.f32 %v5641, 1.442695
        %v5680 = vpow.pop %v5679
        %v5681 = vmul.f32 %v5642, 1.442695
        %v5682 = vpow.pop %v5681
        %v5683 = vmul.f32 %v5643, 1.442695
        %v5684 = vpow.pop %v5683
        %v5685 = vmul.f32 %v5644, 1.442695
        %v5686 = vpow.pop %v5685
        %v5687 = vmul.f32 %v5645, 1.442695
        %v5688 = vpow.pop %v5687
        %v5689 = vmul.f32 %v5646, 1.442695
        %v5690 = vpow.pop %v5689
        %v5691 = vmul.f32 %v5647, 1.442695
        %v5692 = vpow.pop %v5691
        %v5693 = vmul.f32 %v5648, 1.442695
        %v5694 = vpow.pop %v5693
        %v5695 = vmul.f32 %v5649, 1.442695
        %v5696 = vpow.pop %v5695
        %v5697 = vmul.f32 %v5650, 1.442695
        %v5698 = vpow.pop %v5697
        %v5699 = vsel %vm2935, %v5652, 0.0
        %5700 = vadd.xlane.f32.xlu0 %v5699
        %v5701 = vpop.xlane.xlu0 %5700
        %v5702 = vsel %vm2935, %v5654, 0.0
        %5703 = vadd.xlane.f32.xlu0 %v5702
        %v5704 = vpop.xlane.xlu0 %5703
        %v5705 = vsel %vm2942, %v5656, 0.0
        %5706 = vadd.xlane.f32.xlu0 %v5705
        %v5707 = vpop.xlane.xlu0 %5706
        %v5708 = vsel %vm2935, %v5658, 0.0
        %5709 = vadd.xlane.f32.xlu0 %v5708
        %v5710 = vpop.xlane.xlu0 %5709
        %v5711 = vsel %vm2935, %v5660, 0.0
        %5712 = vadd.xlane.f32.xlu0 %v5711
        %v5713 = vpop.xlane.xlu0 %5712
        %v5714 = vsel %vm2942, %v5662, 0.0
        %5715 = vadd.xlane.f32.xlu0 %v5714
        %v5716 = vpop.xlane.xlu0 %5715
        %v5717 = vsel %vm2935, %v5664, 0.0
        %5718 = vadd.xlane.f32.xlu0 %v5717
        %v5719 = vpop.xlane.xlu0 %5718
        %v5720 = vsel %vm2935, %v5666, 0.0
        %5721 = vadd.xlane.f32.xlu0 %v5720
        %v5722 = vpop.xlane.xlu0 %5721
        %v5723 = vsel %vm2942, %v5668, 0.0
        %5724 = vadd.xlane.f32.xlu0 %v5723
        %v5725 = vpop.xlane.xlu0 %5724
        %v5726 = vsel %vm2935, %v5670, 0.0
        %5727 = vadd.xlane.f32.xlu0 %v5726
        %v5728 = vpop.xlane.xlu0 %5727
        %v5729 = vsel %vm2935, %v5672, 0.0
        %5730 = vadd.xlane.f32.xlu0 %v5729
        %v5731 = vpop.xlane.xlu0 %5730
        %v5732 = vsel %vm2942, %v5674, 0.0
        %5733 = vadd.xlane.f32.xlu0 %v5732
        %v5734 = vpop.xlane.xlu0 %5733
        %v5735 = vsel %vm2935, %v5676, 0.0
        %5736 = vadd.xlane.f32.xlu0 %v5735
        %v5737 = vpop.xlane.xlu0 %5736
        %v5738 = vsel %vm2935, %v5678, 0.0
        %5739 = vadd.xlane.f32.xlu0 %v5738
        %v5740 = vpop.xlane.xlu0 %5739
        %v5741 = vsel %vm2942, %v5680, 0.0
        %5742 = vadd.xlane.f32.xlu0 %v5741
        %v5743 = vpop.xlane.xlu0 %5742
        %v5744 = vsel %vm2935, %v5682, 0.0
        %5745 = vadd.xlane.f32.xlu0 %v5744
        %v5746 = vpop.xlane.xlu0 %5745
        %v5747 = vsel %vm2935, %v5684, 0.0
        %5748 = vadd.xlane.f32.xlu0 %v5747
        %v5749 = vpop.xlane.xlu0 %5748
        %v5750 = vsel %vm2942, %v5686, 0.0
        %5751 = vadd.xlane.f32.xlu0 %v5750
        %v5752 = vpop.xlane.xlu0 %5751
        %v5753 = vsel %vm2935, %v5688, 0.0
        %5754 = vadd.xlane.f32.xlu0 %v5753
        %v5755 = vpop.xlane.xlu0 %5754
        %v5756 = vsel %vm2935, %v5690, 0.0
        %5757 = vadd.xlane.f32.xlu0 %v5756
        %v5758 = vpop.xlane.xlu0 %5757
        %v5759 = vsel %vm2942, %v5692, 0.0
        %5760 = vadd.xlane.f32.xlu0 %v5759
        %v5761 = vpop.xlane.xlu0 %5760
        %v5762 = vsel %vm2935, %v5694, 0.0
        %5763 = vadd.xlane.f32.xlu0 %v5762
        %v5764 = vpop.xlane.xlu0 %5763
        %v5765 = vsel %vm2935, %v5696, 0.0
        %5766 = vadd.xlane.f32.xlu0 %v5765
        %v5767 = vpop.xlane.xlu0 %5766
        %v5768 = vsel %vm2942, %v5698, 0.0
        %5769 = vadd.xlane.f32.xlu0 %v5768
        %v5770 = vpop.xlane.xlu0 %5769
        %v5771 = vrcp.pop %v5701
        %v5772 = vmul.f32 %v5652, %v5771
        %v5773 = vrcp.pop %v5704
        %v5774 = vmul.f32 %v5654, %v5773
        %v5775 = vrcp.pop %v5707
        %v5776 = vmul.f32 %v5656, %v5775
        %v5777 = vrcp.pop %v5710
        %v5778 = vmul.f32 %v5658, %v5777
        %v5779 = vrcp.pop %v5713
        %v5780 = vmul.f32 %v5660, %v5779
        %v5781 = vrcp.pop %v5716
        %v5782 = vmul.f32 %v5662, %v5781
        %v5783 = vrcp.pop %v5719
        %v5784 = vmul.f32 %v5664, %v5783
        %v5785 = vrcp.pop %v5722
        %v5786 = vmul.f32 %v5666, %v5785
        %v5787 = vrcp.pop %v5725
        %v5788 = vmul.f32 %v5668, %v5787
        %v5789 = vrcp.pop %v5728
        %v5790 = vmul.f32 %v5670, %v5789
        %v5791 = vrcp.pop %v5731
        %v5792 = vmul.f32 %v5672, %v5791
        %v5793 = vrcp.pop %v5734
        %v5794 = vmul.f32 %v5674, %v5793
        %v5795 = vrcp.pop %v5737
        %v5796 = vmul.f32 %v5676, %v5795
        %v5797 = vrcp.pop %v5740
        %v5798 = vmul.f32 %v5678, %v5797
        %v5799 = vrcp.pop %v5743
        %v5800 = vmul.f32 %v5680, %v5799
        %v5801 = vrcp.pop %v5746
        %v5802 = vmul.f32 %v5682, %v5801
        %v5803 = vrcp.pop %v5749
        %v5804 = vmul.f32 %v5684, %v5803
        %v5805 = vrcp.pop %v5752
        %v5806 = vmul.f32 %v5686, %v5805
        %v5807 = vrcp.pop %v5755
        %v5808 = vmul.f32 %v5688, %v5807
        %v5809 = vrcp.pop %v5758
        %v5810 = vmul.f32 %v5690, %v5809
        %v5811 = vrcp.pop %v5761
        %v5812 = vmul.f32 %v5692, %v5811
        %v5813 = vrcp.pop %v5764
        %v5814 = vmul.f32 %v5694, %v5813
        %v5815 = vrcp.pop %v5767
        %v5816 = vmul.f32 %v5696, %v5815
        %v5817 = vrcp.pop %v5770
        %v5818 = vmul.f32 %v5698, %v5817
        %5819 = vrot.lane.b32.xlu0 %v4665, 48
        %v5820 = vpop.permute.xlu0 %5819
        %5821 = vrot.lane.b32.xlu0 %v4670, 48
        %v5822 = vpop.permute.xlu0 %5821
        %5823 = vrot.lane.b32.xlu0 %v4675, 48
        %v5824 = vpop.permute.xlu0 %5823
        %v5828 = vsel %vm2935, %v5772, 0
        %v5831 = vsel %vm2935, %v5774, 0
        %v5834 = vsel %vm2935, %v5776, 0
        %v5836 = vsel %vm3218, %v5824, 0
        %5838 = vmatprep.subr.mxu0 0.0
        %5839 = vmatpush1.msra.mxu0 %v5820
        %5840 = vmatprep.subr.mxu0 0.0
        %5841 = vmatpush1.msra.mxu0 %v5822
        %5842 = vmatprep.subr.mxu0 0.0
        %5843 = vmatpush1.msra.mxu0 %v5836
        %5844 = vmatprep.subr.mxu0 0.0
        %5845 = vmatpush1.msra.mxu0 0.0
        %5846 = vmatprep.subr.mxu0 0.0
        %5847 = vmatpush1.msra.mxu0 0.0
        %5848 = vmatprep.subr.mxu0 0.0
        %5849 = vmatpush1.msra.mxu0 0.0
        %5850 = vmatprep.subr.mxu0 0.0
        %5851 = vmatpush1.msra.mxu0 0.0
        %5852 = vmatprep.subr.mxu0 0.0
        %5853 = vmatpush1.msra.mxu0 0.0
        %5854 = vmatprep.subr.mxu0 0.0
        %5855 = vmatpush1.msra.mxu0 0.0
        %5856 = vmatprep.subr.mxu0 0.0
        %5857 = vmatpush1.msra.mxu0 0.0
        %5858 = vmatprep.subr.mxu0 0.0
        %5859 = vmatpush1.msra.mxu0 0.0
        %5860 = vmatprep.subr.mxu0 0.0
        %5861 = vmatpush1.msra.mxu0 0.0
        %5862 = vmatprep.subr.mxu0 0.0
        %5863 = vmatpush1.msra.mxu0 0.0
        %5864 = vmatprep.subr.mxu0 0.0
        %5865 = vmatpush1.msra.mxu0 0.0
        %5866 = vmatprep.subr.mxu0 0.0
        %5867 = vmatpush1.msra.mxu0 0.0
        %5868 = vmatprep.subr.mxu0 0.0
        %5869 = vmatpush1.msra.mxu0 0.0
        %5870 = vmatprep.subr.mxu0 0.0
        %5871 = vmatpush1.msra.mxu0 0.0
        %5872 = vmatprep.subr.mxu0 0.0
        %5873 = vmatpush1.msra.mxu0 0.0
        %5874 = vmatprep.subr.mxu0 0.0
        %5875 = vmatpush1.msra.mxu0 0.0
        %5876 = vmatprep.subr.mxu0 0.0
        %5877 = vmatpush1.msra.mxu0 0.0
        %5878 = vmatprep.subr.mxu0 0.0
        %5879 = vmatpush1.msra.mxu0 0.0
        %5880 = vmatprep.subr.mxu0 0.0
        %5881 = vmatpush1.msra.mxu0 0.0
        %5882 = vmatprep.subr.mxu0 0.0
        %5883 = vmatpush1.msra.mxu0 0.0
        %5884 = vmatprep.subr.mxu0 0.0
        %5885 = vmatpush1.msra.mxu0 0.0
        %5886 = vmatprep.subr.mxu0 0.0
        %5887 = vmatpush1.msra.mxu0 0.0
        %5888 = vmatprep.subr.mxu0 0.0
        %5889 = vmatpush1.msra.mxu0 0.0
        %5890 = vmatprep.subr.mxu0 0.0
        %5891 = vmatpush1.msra.mxu0 0.0
        %5892 = vmatprep.subr.mxu0 0.0
        %5893 = vmatpush1.msra.mxu0 0.0
        %5894 = vmatprep.subr.mxu0 0.0
        %5895 = vmatpush1.msra.mxu0 0.0
        %5896 = vmatprep.subr.mxu0 0.0
        %5897 = vmatpush1.msra.mxu0 0.0
        %5898 = vmatprep.subr.mxu0 0.0
        %5899 = vmatpush1.msra.mxu0 0.0
        %5900 = vmatprep.subr.mxu0 0.0
        %5901 = vmatpush1.msra.mxu0 0.0
        %5902 = vmatprep.mubr.f32.mxu0 0.0
        %5903 = vmatmul.mubr.f32.gmra.mrb[0].mxu0 %v5828
        %v5904 = vpop.f32.mrb[0].mxu0
        %v5905 = vadd.f32 0.0, %v5904
        %v5906 = vpop.f32.mrb[0].mxu0
        %5907 = vmatprep.mubr.f32.mxu0 0.0
        %5908 = vmatmul.mubr.f32.gmra.mrb[0].mxu0 %v5831
        %v5909 = vpop.f32.mrb[0].mxu0
        %v5910 = vadd.f32 0.0, %v5909
        %v5911 = vpop.f32.mrb[0].mxu0
        %5912 = vmatprep.mubr.f32.mxu0 0.0
        %5913 = vmatmul.mubr.f32.gmra.mrb[0].mxu0 %v5834
        %v5914 = vpop.f32.mrb[0].mxu0
        %v5915 = vadd.f32 0.0, %v5914
        %v5916 = vpop.f32.mrb[0].mxu0
        %5917 = vdwg.mxu0
        %5918 = vrot.lane.b32.xlu0 %v4682, 48
        %v5919 = vpop.permute.xlu0 %5918
        %5920 = vrot.lane.b32.xlu0 %v4684, 48
        %v5921 = vpop.permute.xlu0 %5920
        %5922 = vrot.lane.b32.xlu0 %v4686, 48
        %v5923 = vpop.permute.xlu0 %5922
        %v5927 = vsel %vm2935, %v5778, 0
        %v5930 = vsel %vm2935, %v5780, 0
        %v5933 = vsel %vm2935, %v5782, 0
        %v5935 = vsel %vm3218, %v5923, 0
        %5937 = vmatprep.subr.mxu0 0.0
        %5938 = vmatpush1.msra.mxu0 %v5919
        %5939 = vmatprep.subr.mxu0 0.0
        %5940 = vmatpush1.msra.mxu0 %v5921
        %5941 = vmatprep.subr.mxu0 0.0
        %5942 = vmatpush1.msra.mxu0 %v5935
        %5943 = vmatprep.subr.mxu0 0.0
        %5944 = vmatpush1.msra.mxu0 0.0
        %5945 = vmatprep.subr.mxu0 0.0
        %5946 = vmatpush1.msra.mxu0 0.0
        %5947 = vmatprep.subr.mxu0 0.0
        %5948 = vmatpush1.msra.mxu0 0.0
        %5949 = vmatprep.subr.mxu0 0.0
        %5950 = vmatpush1.msra.mxu0 0.0
        %5951 = vmatprep.subr.mxu0 0.0
        %5952 = vmatpush1.msra.mxu0 0.0
        %5953 = vmatprep.subr.mxu0 0.0
        %5954 = vmatpush1.msra.mxu0 0.0
        %5955 = vmatprep.subr.mxu0 0.0
        %5956 = vmatpush1.msra.mxu0 0.0
        %5957 = vmatprep.subr.mxu0 0.0
        %5958 = vmatpush1.msra.mxu0 0.0
        %5959 = vmatprep.subr.mxu0 0.0
        %5960 = vmatpush1.msra.mxu0 0.0
        %5961 = vmatprep.subr.mxu0 0.0
        %5962 = vmatpush1.msra.mxu0 0.0
        %5963 = vmatprep.subr.mxu0 0.0
        %5964 = vmatpush1.msra.mxu0 0.0
        %5965 = vmatprep.subr.mxu0 0.0
        %5966 = vmatpush1.msra.mxu0 0.0
        %5967 = vmatprep.subr.mxu0 0.0
        %5968 = vmatpush1.msra.mxu0 0.0
        %5969 = vmatprep.subr.mxu0 0.0
        %5970 = vmatpush1.msra.mxu0 0.0
        %5971 = vmatprep.subr.mxu0 0.0
        %5972 = vmatpush1.msra.mxu0 0.0
        %5973 = vmatprep.subr.mxu0 0.0
        %5974 = vmatpush1.msra.mxu0 0.0
        %5975 = vmatprep.subr.mxu0 0.0
        %5976 = vmatpush1.msra.mxu0 0.0
        %5977 = vmatprep.subr.mxu0 0.0
        %5978 = vmatpush1.msra.mxu0 0.0
        %5979 = vmatprep.subr.mxu0 0.0
        %5980 = vmatpush1.msra.mxu0 0.0
        %5981 = vmatprep.subr.mxu0 0.0
        %5982 = vmatpush1.msra.mxu0 0.0
        %5983 = vmatprep.subr.mxu0 0.0
        %5984 = vmatpush1.msra.mxu0 0.0
        %5985 = vmatprep.subr.mxu0 0.0
        %5986 = vmatpush1.msra.mxu0 0.0
        %5987 = vmatprep.subr.mxu0 0.0
        %5988 = vmatpush1.msra.mxu0 0.0
        %5989 = vmatprep.subr.mxu0 0.0
        %5990 = vmatpush1.msra.mxu0 0.0
        %5991 = vmatprep.subr.mxu0 0.0
        %5992 = vmatpush1.msra.mxu0 0.0
        %5993 = vmatprep.subr.mxu0 0.0
        %5994 = vmatpush1.msra.mxu0 0.0
        %5995 = vmatprep.subr.mxu0 0.0
        %5996 = vmatpush1.msra.mxu0 0.0
        %5997 = vmatprep.subr.mxu0 0.0
        %5998 = vmatpush1.msra.mxu0 0.0
        %5999 = vmatprep.subr.mxu0 0.0
        %6000 = vmatpush1.msra.mxu0 0.0
        %6001 = vmatprep.mubr.f32.mxu0 0.0
        %6002 = vmatmul.mubr.f32.gmra.mrb[0].mxu0 %v5927
        %v6003 = vpop.f32.mrb[0].mxu0
        %v6004 = vadd.f32 0.0, %v6003
        %v6005 = vpop.f32.mrb[0].mxu0
        %6006 = vmatprep.mubr.f32.mxu0 0.0
        %6007 = vmatmul.mubr.f32.gmra.mrb[0].mxu0 %v5930
        %v6008 = vpop.f32.mrb[0].mxu0
        %v6009 = vadd.f32 0.0, %v6008
        %v6010 = vpop.f32.mrb[0].mxu0
        %6011 = vmatprep.mubr.f32.mxu0 0.0
        %6012 = vmatmul.mubr.f32.gmra.mrb[0].mxu0 %v5933
        %v6013 = vpop.f32.mrb[0].mxu0
        %v6014 = vadd.f32 0.0, %v6013
        %v6015 = vpop.f32.mrb[0].mxu0
        %6016 = vdwg.mxu0
        %6017 = vrot.lane.b32.xlu0 %v4688, 48
        %v6018 = vpop.permute.xlu0 %6017
        %6019 = vrot.lane.b32.xlu0 %v4690, 48
        %v6020 = vpop.permute.xlu0 %6019
        %6021 = vrot.lane.b32.xlu0 %v4692, 48
        %v6022 = vpop.permute.xlu0 %6021
        %v6026 = vsel %vm2935, %v5784, 0
        %v6029 = vsel %vm2935, %v5786, 0
        %v6032 = vsel %vm2935, %v5788, 0
        %v6034 = vsel %vm3218, %v6022, 0
        %6036 = vmatprep.subr.mxu0 0.0
        %6037 = vmatpush1.msra.mxu0 %v6018
        %6038 = vmatprep.subr.mxu0 0.0
        %6039 = vmatpush1.msra.mxu0 %v6020
        %6040 = vmatprep.subr.mxu0 0.0
        %6041 = vmatpush1.msra.mxu0 %v6034
        %6042 = vmatprep.subr.mxu0 0.0
        %6043 = vmatpush1.msra.mxu0 0.0
        %6044 = vmatprep.subr.mxu0 0.0
        %6045 = vmatpush1.msra.mxu0 0.0
        %6046 = vmatprep.subr.mxu0 0.0
        %6047 = vmatpush1.msra.mxu0 0.0
        %6048 = vmatprep.subr.mxu0 0.0
        %6049 = vmatpush1.msra.mxu0 0.0
        %6050 = vmatprep.subr.mxu0 0.0
        %6051 = vmatpush1.msra.mxu0 0.0
        %6052 = vmatprep.subr.mxu0 0.0
        %6053 = vmatpush1.msra.mxu0 0.0
        %6054 = vmatprep.subr.mxu0 0.0
        %6055 = vmatpush1.msra.mxu0 0.0
        %6056 = vmatprep.subr.mxu0 0.0
        %6057 = vmatpush1.msra.mxu0 0.0
        %6058 = vmatprep.subr.mxu0 0.0
        %6059 = vmatpush1.msra.mxu0 0.0
        %6060 = vmatprep.subr.mxu0 0.0
        %6061 = vmatpush1.msra.mxu0 0.0
        %6062 = vmatprep.subr.mxu0 0.0
        %6063 = vmatpush1.msra.mxu0 0.0
        %6064 = vmatprep.subr.mxu0 0.0
        %6065 = vmatpush1.msra.mxu0 0.0
        %6066 = vmatprep.subr.mxu0 0.0
        %6067 = vmatpush1.msra.mxu0 0.0
        %6068 = vmatprep.subr.mxu0 0.0
        %6069 = vmatpush1.msra.mxu0 0.0
        %6070 = vmatprep.subr.mxu0 0.0
        %6071 = vmatpush1.msra.mxu0 0.0
        %6072 = vmatprep.subr.mxu0 0.0
        %6073 = vmatpush1.msra.mxu0 0.0
        %6074 = vmatprep.subr.mxu0 0.0
        %6075 = vmatpush1.msra.mxu0 0.0
        %6076 = vmatprep.subr.mxu0 0.0
        %6077 = vmatpush1.msra.mxu0 0.0
        %6078 = vmatprep.subr.mxu0 0.0
        %6079 = vmatpush1.msra.mxu0 0.0
        %6080 = vmatprep.subr.mxu0 0.0
        %6081 = vmatpush1.msra.mxu0 0.0
        %6082 = vmatprep.subr.mxu0 0.0
        %6083 = vmatpush1.msra.mxu0 0.0
        %6084 = vmatprep.subr.mxu0 0.0
        %6085 = vmatpush1.msra.mxu0 0.0
        %6086 = vmatprep.subr.mxu0 0.0
        %6087 = vmatpush1.msra.mxu0 0.0
        %6088 = vmatprep.subr.mxu0 0.0
        %6089 = vmatpush1.msra.mxu0 0.0
        %6090 = vmatprep.subr.mxu0 0.0
        %6091 = vmatpush1.msra.mxu0 0.0
        %6092 = vmatprep.subr.mxu0 0.0
        %6093 = vmatpush1.msra.mxu0 0.0
        %6094 = vmatprep.subr.mxu0 0.0
        %6095 = vmatpush1.msra.mxu0 0.0
        %6096 = vmatprep.subr.mxu0 0.0
        %6097 = vmatpush1.msra.mxu0 0.0
        %6098 = vmatprep.subr.mxu0 0.0
        %6099 = vmatpush1.msra.mxu0 0.0
        %6100 = vmatprep.mubr.f32.mxu0 0.0
        %6101 = vmatmul.mubr.f32.gmra.mrb[0].mxu0 %v6026
        %v6102 = vpop.f32.mrb[0].mxu0
        %v6103 = vadd.f32 0.0, %v6102
        %v6104 = vpop.f32.mrb[0].mxu0
        %6105 = vmatprep.mubr.f32.mxu0 0.0
        %6106 = vmatmul.mubr.f32.gmra.mrb[0].mxu0 %v6029
        %v6107 = vpop.f32.mrb[0].mxu0
        %v6108 = vadd.f32 0.0, %v6107
        %v6109 = vpop.f32.mrb[0].mxu0
        %6110 = vmatprep.mubr.f32.mxu0 0.0
        %6111 = vmatmul.mubr.f32.gmra.mrb[0].mxu0 %v6032
        %v6112 = vpop.f32.mrb[0].mxu0
        %v6113 = vadd.f32 0.0, %v6112
        %v6114 = vpop.f32.mrb[0].mxu0
        %6115 = vdwg.mxu0
        %6116 = vrot.lane.b32.xlu0 %v4694, 48
        %v6117 = vpop.permute.xlu0 %6116
        %6118 = vrot.lane.b32.xlu0 %v4696, 48
        %v6119 = vpop.permute.xlu0 %6118
        %6120 = vrot.lane.b32.xlu0 %v4698, 48
        %v6121 = vpop.permute.xlu0 %6120
        %v6125 = vsel %vm2935, %v5790, 0
        %v6128 = vsel %vm2935, %v5792, 0
        %v6131 = vsel %vm2935, %v5794, 0
        %v6133 = vsel %vm3218, %v6121, 0
        %6135 = vmatprep.subr.mxu0 0.0
        %6136 = vmatpush1.msra.mxu0 %v6117
        %6137 = vmatprep.subr.mxu0 0.0
        %6138 = vmatpush1.msra.mxu0 %v6119
        %6139 = vmatprep.subr.mxu0 0.0
        %6140 = vmatpush1.msra.mxu0 %v6133
        %6141 = vmatprep.subr.mxu0 0.0
        %6142 = vmatpush1.msra.mxu0 0.0
        %6143 = vmatprep.subr.mxu0 0.0
        %6144 = vmatpush1.msra.mxu0 0.0
        %6145 = vmatprep.subr.mxu0 0.0
        %6146 = vmatpush1.msra.mxu0 0.0
        %6147 = vmatprep.subr.mxu0 0.0
        %6148 = vmatpush1.msra.mxu0 0.0
        %6149 = vmatprep.subr.mxu0 0.0
        %6150 = vmatpush1.msra.mxu0 0.0
        %6151 = vmatprep.subr.mxu0 0.0
        %6152 = vmatpush1.msra.mxu0 0.0
        %6153 = vmatprep.subr.mxu0 0.0
        %6154 = vmatpush1.msra.mxu0 0.0
        %6155 = vmatprep.subr.mxu0 0.0
        %6156 = vmatpush1.msra.mxu0 0.0
        %6157 = vmatprep.subr.mxu0 0.0
        %6158 = vmatpush1.msra.mxu0 0.0
        %6159 = vmatprep.subr.mxu0 0.0
        %6160 = vmatpush1.msra.mxu0 0.0
        %6161 = vmatprep.subr.mxu0 0.0
        %6162 = vmatpush1.msra.mxu0 0.0
        %6163 = vmatprep.subr.mxu0 0.0
        %6164 = vmatpush1.msra.mxu0 0.0
        %6165 = vmatprep.subr.mxu0 0.0
        %6166 = vmatpush1.msra.mxu0 0.0
        %6167 = vmatprep.subr.mxu0 0.0
        %6168 = vmatpush1.msra.mxu0 0.0
        %6169 = vmatprep.subr.mxu0 0.0
        %6170 = vmatpush1.msra.mxu0 0.0
        %6171 = vmatprep.subr.mxu0 0.0
        %6172 = vmatpush1.msra.mxu0 0.0
        %6173 = vmatprep.subr.mxu0 0.0
        %6174 = vmatpush1.msra.mxu0 0.0
        %6175 = vmatprep.subr.mxu0 0.0
        %6176 = vmatpush1.msra.mxu0 0.0
        %6177 = vmatprep.subr.mxu0 0.0
        %6178 = vmatpush1.msra.mxu0 0.0
        %6179 = vmatprep.subr.mxu0 0.0
        %6180 = vmatpush1.msra.mxu0 0.0
        %6181 = vmatprep.subr.mxu0 0.0
        %6182 = vmatpush1.msra.mxu0 0.0
        %6183 = vmatprep.subr.mxu0 0.0
        %6184 = vmatpush1.msra.mxu0 0.0
        %6185 = vmatprep.subr.mxu0 0.0
        %6186 = vmatpush1.msra.mxu0 0.0
        %6187 = vmatprep.subr.mxu0 0.0
        %6188 = vmatpush1.msra.mxu0 0.0
        %6189 = vmatprep.subr.mxu0 0.0
        %6190 = vmatpush1.msra.mxu0 0.0
        %6191 = vmatprep.subr.mxu0 0.0
        %6192 = vmatpush1.msra.mxu0 0.0
        %6193 = vmatprep.subr.mxu0 0.0
        %6194 = vmatpush1.msra.mxu0 0.0
        %6195 = vmatprep.subr.mxu0 0.0
        %6196 = vmatpush1.msra.mxu0 0.0
        %6197 = vmatprep.subr.mxu0 0.0
        %6198 = vmatpush1.msra.mxu0 0.0
        %6199 = vmatprep.mubr.f32.mxu0 0.0
        %6200 = vmatmul.mubr.f32.gmra.mrb[0].mxu0 %v6125
        %v6201 = vpop.f32.mrb[0].mxu0
        %v6202 = vadd.f32 0.0, %v6201
        %v6203 = vpop.f32.mrb[0].mxu0
        %6204 = vmatprep.mubr.f32.mxu0 0.0
        %6205 = vmatmul.mubr.f32.gmra.mrb[0].mxu0 %v6128
        %v6206 = vpop.f32.mrb[0].mxu0
        %v6207 = vadd.f32 0.0, %v6206
        %v6208 = vpop.f32.mrb[0].mxu0
        %6209 = vmatprep.mubr.f32.mxu0 0.0
        %6210 = vmatmul.mubr.f32.gmra.mrb[0].mxu0 %v6131
        %v6211 = vpop.f32.mrb[0].mxu0
        %v6212 = vadd.f32 0.0, %v6211
        %v6213 = vpop.f32.mrb[0].mxu0
        %6214 = vdwg.mxu0
        %6215 = vrot.lane.b32.xlu0 %v4700, 48
        %v6216 = vpop.permute.xlu0 %6215
        %6217 = vrot.lane.b32.xlu0 %v4702, 48
        %v6218 = vpop.permute.xlu0 %6217
        %6219 = vrot.lane.b32.xlu0 %v4704, 48
        %v6220 = vpop.permute.xlu0 %6219
        %v6224 = vsel %vm2935, %v5796, 0
        %v6227 = vsel %vm2935, %v5798, 0
        %v6230 = vsel %vm2935, %v5800, 0
        %v6232 = vsel %vm3218, %v6220, 0
        %6234 = vmatprep.subr.mxu0 0.0
        %6235 = vmatpush1.msra.mxu0 %v6216
        %6236 = vmatprep.subr.mxu0 0.0
        %6237 = vmatpush1.msra.mxu0 %v6218
        %6238 = vmatprep.subr.mxu0 0.0
        %6239 = vmatpush1.msra.mxu0 %v6232
        %6240 = vmatprep.subr.mxu0 0.0
        %6241 = vmatpush1.msra.mxu0 0.0
        %6242 = vmatprep.subr.mxu0 0.0
        %6243 = vmatpush1.msra.mxu0 0.0
        %6244 = vmatprep.subr.mxu0 0.0
        %6245 = vmatpush1.msra.mxu0 0.0
        %6246 = vmatprep.subr.mxu0 0.0
        %6247 = vmatpush1.msra.mxu0 0.0
        %6248 = vmatprep.subr.mxu0 0.0
        %6249 = vmatpush1.msra.mxu0 0.0
        %6250 = vmatprep.subr.mxu0 0.0
        %6251 = vmatpush1.msra.mxu0 0.0
        %6252 = vmatprep.subr.mxu0 0.0
        %6253 = vmatpush1.msra.mxu0 0.0
        %6254 = vmatprep.subr.mxu0 0.0
        %6255 = vmatpush1.msra.mxu0 0.0
        %6256 = vmatprep.subr.mxu0 0.0
        %6257 = vmatpush1.msra.mxu0 0.0
        %6258 = vmatprep.subr.mxu0 0.0
        %6259 = vmatpush1.msra.mxu0 0.0
        %6260 = vmatprep.subr.mxu0 0.0
        %6261 = vmatpush1.msra.mxu0 0.0
        %6262 = vmatprep.subr.mxu0 0.0
        %6263 = vmatpush1.msra.mxu0 0.0
        %6264 = vmatprep.subr.mxu0 0.0
        %6265 = vmatpush1.msra.mxu0 0.0
        %6266 = vmatprep.subr.mxu0 0.0
        %6267 = vmatpush1.msra.mxu0 0.0
        %6268 = vmatprep.subr.mxu0 0.0
        %6269 = vmatpush1.msra.mxu0 0.0
        %6270 = vmatprep.subr.mxu0 0.0
        %6271 = vmatpush1.msra.mxu0 0.0
        %6272 = vmatprep.subr.mxu0 0.0
        %6273 = vmatpush1.msra.mxu0 0.0
        %6274 = vmatprep.subr.mxu0 0.0
        %6275 = vmatpush1.msra.mxu0 0.0
        %6276 = vmatprep.subr.mxu0 0.0
        %6277 = vmatpush1.msra.mxu0 0.0
        %6278 = vmatprep.subr.mxu0 0.0
        %6279 = vmatpush1.msra.mxu0 0.0
        %6280 = vmatprep.subr.mxu0 0.0
        %6281 = vmatpush1.msra.mxu0 0.0
        %6282 = vmatprep.subr.mxu0 0.0
        %6283 = vmatpush1.msra.mxu0 0.0
        %6284 = vmatprep.subr.mxu0 0.0
        %6285 = vmatpush1.msra.mxu0 0.0
        %6286 = vmatprep.subr.mxu0 0.0
        %6287 = vmatpush1.msra.mxu0 0.0
        %6288 = vmatprep.subr.mxu0 0.0
        %6289 = vmatpush1.msra.mxu0 0.0
        %6290 = vmatprep.subr.mxu0 0.0
        %6291 = vmatpush1.msra.mxu0 0.0
        %6292 = vmatprep.subr.mxu0 0.0
        %6293 = vmatpush1.msra.mxu0 0.0
        %6294 = vmatprep.subr.mxu0 0.0
        %6295 = vmatpush1.msra.mxu0 0.0
        %6296 = vmatprep.subr.mxu0 0.0
        %6297 = vmatpush1.msra.mxu0 0.0
        %6298 = vmatprep.mubr.f32.mxu0 0.0
        %6299 = vmatmul.mubr.f32.gmra.mrb[0].mxu0 %v6224
        %v6300 = vpop.f32.mrb[0].mxu0
        %v6301 = vadd.f32 0.0, %v6300
        %v6302 = vpop.f32.mrb[0].mxu0
        %6303 = vmatprep.mubr.f32.mxu0 0.0
        %6304 = vmatmul.mubr.f32.gmra.mrb[0].mxu0 %v6227
        %v6305 = vpop.f32.mrb[0].mxu0
        %v6306 = vadd.f32 0.0, %v6305
        %v6307 = vpop.f32.mrb[0].mxu0
        %6308 = vmatprep.mubr.f32.mxu0 0.0
        %6309 = vmatmul.mubr.f32.gmra.mrb[0].mxu0 %v6230
        %v6310 = vpop.f32.mrb[0].mxu0
        %v6311 = vadd.f32 0.0, %v6310
        %v6312 = vpop.f32.mrb[0].mxu0
        %6313 = vdwg.mxu0
        %6314 = vrot.lane.b32.xlu0 %v4706, 48
        %v6315 = vpop.permute.xlu0 %6314
        %6316 = vrot.lane.b32.xlu0 %v4708, 48
        %v6317 = vpop.permute.xlu0 %6316
        %6318 = vrot.lane.b32.xlu0 %v4710, 48
        %v6319 = vpop.permute.xlu0 %6318
        %v6323 = vsel %vm2935, %v5802, 0
        %v6326 = vsel %vm2935, %v5804, 0
        %v6329 = vsel %vm2935, %v5806, 0
        %v6331 = vsel %vm3218, %v6319, 0
        %6333 = vmatprep.subr.mxu0 0.0
        %6334 = vmatpush1.msra.mxu0 %v6315
        %6335 = vmatprep.subr.mxu0 0.0
        %6336 = vmatpush1.msra.mxu0 %v6317
        %6337 = vmatprep.subr.mxu0 0.0
        %6338 = vmatpush1.msra.mxu0 %v6331
        %6339 = vmatprep.subr.mxu0 0.0
        %6340 = vmatpush1.msra.mxu0 0.0
        %6341 = vmatprep.subr.mxu0 0.0
        %6342 = vmatpush1.msra.mxu0 0.0
        %6343 = vmatprep.subr.mxu0 0.0
        %6344 = vmatpush1.msra.mxu0 0.0
        %6345 = vmatprep.subr.mxu0 0.0
        %6346 = vmatpush1.msra.mxu0 0.0
        %6347 = vmatprep.subr.mxu0 0.0
        %6348 = vmatpush1.msra.mxu0 0.0
        %6349 = vmatprep.subr.mxu0 0.0
        %6350 = vmatpush1.msra.mxu0 0.0
        %6351 = vmatprep.subr.mxu0 0.0
        %6352 = vmatpush1.msra.mxu0 0.0
        %6353 = vmatprep.subr.mxu0 0.0
        %6354 = vmatpush1.msra.mxu0 0.0
        %6355 = vmatprep.subr.mxu0 0.0
        %6356 = vmatpush1.msra.mxu0 0.0
        %6357 = vmatprep.subr.mxu0 0.0
        %6358 = vmatpush1.msra.mxu0 0.0
        %6359 = vmatprep.subr.mxu0 0.0
        %6360 = vmatpush1.msra.mxu0 0.0
        %6361 = vmatprep.subr.mxu0 0.0
        %6362 = vmatpush1.msra.mxu0 0.0
        %6363 = vmatprep.subr.mxu0 0.0
        %6364 = vmatpush1.msra.mxu0 0.0
        %6365 = vmatprep.subr.mxu0 0.0
        %6366 = vmatpush1.msra.mxu0 0.0
        %6367 = vmatprep.subr.mxu0 0.0
        %6368 = vmatpush1.msra.mxu0 0.0
        %6369 = vmatprep.subr.mxu0 0.0
        %6370 = vmatpush1.msra.mxu0 0.0
        %6371 = vmatprep.subr.mxu0 0.0
        %6372 = vmatpush1.msra.mxu0 0.0
        %6373 = vmatprep.subr.mxu0 0.0
        %6374 = vmatpush1.msra.mxu0 0.0
        %6375 = vmatprep.subr.mxu0 0.0
        %6376 = vmatpush1.msra.mxu0 0.0
        %6377 = vmatprep.subr.mxu0 0.0
        %6378 = vmatpush1.msra.mxu0 0.0
        %6379 = vmatprep.subr.mxu0 0.0
        %6380 = vmatpush1.msra.mxu0 0.0
        %6381 = vmatprep.subr.mxu0 0.0
        %6382 = vmatpush1.msra.mxu0 0.0
        %6383 = vmatprep.subr.mxu0 0.0
        %6384 = vmatpush1.msra.mxu0 0.0
        %6385 = vmatprep.subr.mxu0 0.0
        %6386 = vmatpush1.msra.mxu0 0.0
        %6387 = vmatprep.subr.mxu0 0.0
        %6388 = vmatpush1.msra.mxu0 0.0
        %6389 = vmatprep.subr.mxu0 0.0
        %6390 = vmatpush1.msra.mxu0 0.0
        %6391 = vmatprep.subr.mxu0 0.0
        %6392 = vmatpush1.msra.mxu0 0.0
        %6393 = vmatprep.subr.mxu0 0.0
        %6394 = vmatpush1.msra.mxu0 0.0
        %6395 = vmatprep.subr.mxu0 0.0
        %6396 = vmatpush1.msra.mxu0 0.0
        %6397 = vmatprep.mubr.f32.mxu0 0.0
        %6398 = vmatmul.mubr.f32.gmra.mrb[0].mxu0 %v6323
        %v6399 = vpop.f32.mrb[0].mxu0
        %v6400 = vadd.f32 0.0, %v6399
        %v6401 = vpop.f32.mrb[0].mxu0
        %6402 = vmatprep.mubr.f32.mxu0 0.0
        %6403 = vmatmul.mubr.f32.gmra.mrb[0].mxu0 %v6326
        %v6404 = vpop.f32.mrb[0].mxu0
        %v6405 = vadd.f32 0.0, %v6404
        %v6406 = vpop.f32.mrb[0].mxu0
        %6407 = vmatprep.mubr.f32.mxu0 0.0
        %6408 = vmatmul.mubr.f32.gmra.mrb[0].mxu0 %v6329
        %v6409 = vpop.f32.mrb[0].mxu0
        %v6410 = vadd.f32 0.0, %v6409
        %v6411 = vpop.f32.mrb[0].mxu0
        %6412 = vdwg.mxu0
        %6413 = vrot.lane.b32.xlu0 %v4712, 48
        %v6414 = vpop.permute.xlu0 %6413
        %6415 = vrot.lane.b32.xlu0 %v4714, 48
        %v6416 = vpop.permute.xlu0 %6415
        %6417 = vrot.lane.b32.xlu0 %v4716, 48
        %v6418 = vpop.permute.xlu0 %6417
        %v6422 = vsel %vm2935, %v5808, 0
        %v6425 = vsel %vm2935, %v5810, 0
        %v6428 = vsel %vm2935, %v5812, 0
        %v6430 = vsel %vm3218, %v6418, 0
        %6432 = vmatprep.subr.mxu0 0.0
        %6433 = vmatpush1.msra.mxu0 %v6414
        %6434 = vmatprep.subr.mxu0 0.0
        %6435 = vmatpush1.msra.mxu0 %v6416
        %6436 = vmatprep.subr.mxu0 0.0
        %6437 = vmatpush1.msra.mxu0 %v6430
        %6438 = vmatprep.subr.mxu0 0.0
        %6439 = vmatpush1.msra.mxu0 0.0
        %6440 = vmatprep.subr.mxu0 0.0
        %6441 = vmatpush1.msra.mxu0 0.0
        %6442 = vmatprep.subr.mxu0 0.0
        %6443 = vmatpush1.msra.mxu0 0.0
        %6444 = vmatprep.subr.mxu0 0.0
        %6445 = vmatpush1.msra.mxu0 0.0
        %6446 = vmatprep.subr.mxu0 0.0
        %6447 = vmatpush1.msra.mxu0 0.0
        %6448 = vmatprep.subr.mxu0 0.0
        %6449 = vmatpush1.msra.mxu0 0.0
        %6450 = vmatprep.subr.mxu0 0.0
        %6451 = vmatpush1.msra.mxu0 0.0
        %6452 = vmatprep.subr.mxu0 0.0
        %6453 = vmatpush1.msra.mxu0 0.0
        %6454 = vmatprep.subr.mxu0 0.0
        %6455 = vmatpush1.msra.mxu0 0.0
        %6456 = vmatprep.subr.mxu0 0.0
        %6457 = vmatpush1.msra.mxu0 0.0
        %6458 = vmatprep.subr.mxu0 0.0
        %6459 = vmatpush1.msra.mxu0 0.0
        %6460 = vmatprep.subr.mxu0 0.0
        %6461 = vmatpush1.msra.mxu0 0.0
        %6462 = vmatprep.subr.mxu0 0.0
        %6463 = vmatpush1.msra.mxu0 0.0
        %6464 = vmatprep.subr.mxu0 0.0
        %6465 = vmatpush1.msra.mxu0 0.0
        %6466 = vmatprep.subr.mxu0 0.0
        %6467 = vmatpush1.msra.mxu0 0.0
        %6468 = vmatprep.subr.mxu0 0.0
        %6469 = vmatpush1.msra.mxu0 0.0
        %6470 = vmatprep.subr.mxu0 0.0
        %6471 = vmatpush1.msra.mxu0 0.0
        %6472 = vmatprep.subr.mxu0 0.0
        %6473 = vmatpush1.msra.mxu0 0.0
        %6474 = vmatprep.subr.mxu0 0.0
        %6475 = vmatpush1.msra.mxu0 0.0
        %6476 = vmatprep.subr.mxu0 0.0
        %6477 = vmatpush1.msra.mxu0 0.0
        %6478 = vmatprep.subr.mxu0 0.0
        %6479 = vmatpush1.msra.mxu0 0.0
        %6480 = vmatprep.subr.mxu0 0.0
        %6481 = vmatpush1.msra.mxu0 0.0
        %6482 = vmatprep.subr.mxu0 0.0
        %6483 = vmatpush1.msra.mxu0 0.0
        %6484 = vmatprep.subr.mxu0 0.0
        %6485 = vmatpush1.msra.mxu0 0.0
        %6486 = vmatprep.subr.mxu0 0.0
        %6487 = vmatpush1.msra.mxu0 0.0
        %6488 = vmatprep.subr.mxu0 0.0
        %6489 = vmatpush1.msra.mxu0 0.0
        %6490 = vmatprep.subr.mxu0 0.0
        %6491 = vmatpush1.msra.mxu0 0.0
        %6492 = vmatprep.subr.mxu0 0.0
        %6493 = vmatpush1.msra.mxu0 0.0
        %6494 = vmatprep.subr.mxu0 0.0
        %6495 = vmatpush1.msra.mxu0 0.0
        %6496 = vmatprep.mubr.f32.mxu0 0.0
        %6497 = vmatmul.mubr.f32.gmra.mrb[0].mxu0 %v6422
        %v6498 = vpop.f32.mrb[0].mxu0
        %v6499 = vadd.f32 0.0, %v6498
        %v6500 = vpop.f32.mrb[0].mxu0
        %6501 = vmatprep.mubr.f32.mxu0 0.0
        %6502 = vmatmul.mubr.f32.gmra.mrb[0].mxu0 %v6425
        %v6503 = vpop.f32.mrb[0].mxu0
        %v6504 = vadd.f32 0.0, %v6503
        %v6505 = vpop.f32.mrb[0].mxu0
        %6506 = vmatprep.mubr.f32.mxu0 0.0
        %6507 = vmatmul.mubr.f32.gmra.mrb[0].mxu0 %v6428
        %v6508 = vpop.f32.mrb[0].mxu0
        %v6509 = vadd.f32 0.0, %v6508
        %v6510 = vpop.f32.mrb[0].mxu0
        %6511 = vdwg.mxu0
        %6512 = vrot.lane.b32.xlu0 %v4718, 48
        %v6513 = vpop.permute.xlu0 %6512
        %6514 = vrot.lane.b32.xlu0 %v4720, 48
        %v6515 = vpop.permute.xlu0 %6514
        %6516 = vrot.lane.b32.xlu0 %v4722, 48
        %v6517 = vpop.permute.xlu0 %6516
        %v6521 = vsel %vm2935, %v5814, 0
        %v6524 = vsel %vm2935, %v5816, 0
        %v6527 = vsel %vm2935, %v5818, 0
        %v6529 = vsel %vm3218, %v6517, 0
        %6531 = vmatprep.subr.mxu0 0.0
        %6532 = vmatpush1.msra.mxu0 %v6513
        %6533 = vmatprep.subr.mxu0 0.0
        %6534 = vmatpush1.msra.mxu0 %v6515
        %6535 = vmatprep.subr.mxu0 0.0
        %6536 = vmatpush1.msra.mxu0 %v6529
        %6537 = vmatprep.subr.mxu0 0.0
        %6538 = vmatpush1.msra.mxu0 0.0
        %6539 = vmatprep.subr.mxu0 0.0
        %6540 = vmatpush1.msra.mxu0 0.0
        %6541 = vmatprep.subr.mxu0 0.0
        %6542 = vmatpush1.msra.mxu0 0.0
        %6543 = vmatprep.subr.mxu0 0.0
        %6544 = vmatpush1.msra.mxu0 0.0
        %6545 = vmatprep.subr.mxu0 0.0
        %6546 = vmatpush1.msra.mxu0 0.0
        %6547 = vmatprep.subr.mxu0 0.0
        %6548 = vmatpush1.msra.mxu0 0.0
        %6549 = vmatprep.subr.mxu0 0.0
        %6550 = vmatpush1.msra.mxu0 0.0
        %6551 = vmatprep.subr.mxu0 0.0
        %6552 = vmatpush1.msra.mxu0 0.0
        %6553 = vmatprep.subr.mxu0 0.0
        %6554 = vmatpush1.msra.mxu0 0.0
        %6555 = vmatprep.subr.mxu0 0.0
        %6556 = vmatpush1.msra.mxu0 0.0
        %6557 = vmatprep.subr.mxu0 0.0
        %6558 = vmatpush1.msra.mxu0 0.0
        %6559 = vmatprep.subr.mxu0 0.0
        %6560 = vmatpush1.msra.mxu0 0.0
        %6561 = vmatprep.subr.mxu0 0.0
        %6562 = vmatpush1.msra.mxu0 0.0
        %6563 = vmatprep.subr.mxu0 0.0
        %6564 = vmatpush1.msra.mxu0 0.0
        %6565 = vmatprep.subr.mxu0 0.0
        %6566 = vmatpush1.msra.mxu0 0.0
        %6567 = vmatprep.subr.mxu0 0.0
        %6568 = vmatpush1.msra.mxu0 0.0
        %6569 = vmatprep.subr.mxu0 0.0
        %6570 = vmatpush1.msra.mxu0 0.0
        %6571 = vmatprep.subr.mxu0 0.0
        %6572 = vmatpush1.msra.mxu0 0.0
        %6573 = vmatprep.subr.mxu0 0.0
        %6574 = vmatpush1.msra.mxu0 0.0
        %6575 = vmatprep.subr.mxu0 0.0
        %6576 = vmatpush1.msra.mxu0 0.0
        %6577 = vmatprep.subr.mxu0 0.0
        %6578 = vmatpush1.msra.mxu0 0.0
        %6579 = vmatprep.subr.mxu0 0.0
        %6580 = vmatpush1.msra.mxu0 0.0
        %6581 = vmatprep.subr.mxu0 0.0
        %6582 = vmatpush1.msra.mxu0 0.0
        %6583 = vmatprep.subr.mxu0 0.0
        %6584 = vmatpush1.msra.mxu0 0.0
        %6585 = vmatprep.subr.mxu0 0.0
        %6586 = vmatpush1.msra.mxu0 0.0
        %6587 = vmatprep.subr.mxu0 0.0
        %6588 = vmatpush1.msra.mxu0 0.0
        %6589 = vmatprep.subr.mxu0 0.0
        %6590 = vmatpush1.msra.mxu0 0.0
        %6591 = vmatprep.subr.mxu0 0.0
        %6592 = vmatpush1.msra.mxu0 0.0
        %6593 = vmatprep.subr.mxu0 0.0
        %6594 = vmatpush1.msra.mxu0 0.0
        %6595 = vmatprep.mubr.f32.mxu0 0.0
        %6596 = vmatmul.mubr.f32.gmra.mrb[0].mxu0 %v6521
        %v6597 = vpop.f32.mrb[0].mxu0
        %v6598 = vadd.f32 0.0, %v6597
        %v6599 = vpop.f32.mrb[0].mxu0
        %6600 = vmatprep.mubr.f32.mxu0 0.0
        %6601 = vmatmul.mubr.f32.gmra.mrb[0].mxu0 %v6524
        %v6602 = vpop.f32.mrb[0].mxu0
        %v6603 = vadd.f32 0.0, %v6602
        %v6604 = vpop.f32.mrb[0].mxu0
        %6605 = vmatprep.mubr.f32.mxu0 0.0
        %6606 = vmatmul.mubr.f32.gmra.mrb[0].mxu0 %v6527
        %v6607 = vpop.f32.mrb[0].mxu0
        %v6608 = vadd.f32 0.0, %v6607
        %v6609 = vpop.f32.mrb[0].mxu0
        %6610 = vdwg.mxu0
        %6614 = vrot.lane.b32.xlu0 %v6004, 5
        %v6615 = vpop.permute.xlu0 %6614
        %6616 = vrot.lane.b32.xlu0 %v6009, 5
        %v6617 = vpop.permute.xlu0 %6616
        %6618 = vrot.lane.b32.xlu0 %v6014, 5
        %v6619 = vpop.permute.xlu0 %6618
        %6626 = vrot.lane.b32.xlu0 %v6103, 10
        %v6627 = vpop.permute.xlu0 %6626
        %6628 = vrot.lane.b32.xlu0 %v6108, 10
        %v6629 = vpop.permute.xlu0 %6628
        %6630 = vrot.lane.b32.xlu0 %v6113, 10
        %v6631 = vpop.permute.xlu0 %6630
        %6638 = vrot.lane.b32.xlu0 %v6202, 15
        %v6639 = vpop.permute.xlu0 %6638
        %6640 = vrot.lane.b32.xlu0 %v6207, 15
        %v6641 = vpop.permute.xlu0 %6640
        %6642 = vrot.lane.b32.xlu0 %v6212, 15
        %v6643 = vpop.permute.xlu0 %6642
        %6650 = vrot.lane.b32.xlu0 %v6301, 20
        %v6651 = vpop.permute.xlu0 %6650
        %6652 = vrot.lane.b32.xlu0 %v6306, 20
        %v6653 = vpop.permute.xlu0 %6652
        %6654 = vrot.lane.b32.xlu0 %v6311, 20
        %v6655 = vpop.permute.xlu0 %6654
        %6662 = vrot.lane.b32.xlu0 %v6400, 25
        %v6663 = vpop.permute.xlu0 %6662
        %6664 = vrot.lane.b32.xlu0 %v6405, 25
        %v6665 = vpop.permute.xlu0 %6664
        %6666 = vrot.lane.b32.xlu0 %v6410, 25
        %v6667 = vpop.permute.xlu0 %6666
        %6674 = vrot.lane.b32.xlu0 %v6499, 30
        %v6675 = vpop.permute.xlu0 %6674
        %6676 = vrot.lane.b32.xlu0 %v6504, 30
        %v6677 = vpop.permute.xlu0 %6676
        %6678 = vrot.lane.b32.xlu0 %v6509, 30
        %v6679 = vpop.permute.xlu0 %6678
        %6686 = vrot.lane.b32.xlu0 %v6598, 35
        %v6687 = vpop.permute.xlu0 %6686
        %6688 = vrot.lane.b32.xlu0 %v6603, 35
        %v6689 = vpop.permute.xlu0 %6688
        %6690 = vrot.lane.b32.xlu0 %v6608, 35
        %v6691 = vpop.permute.xlu0 %6690
        %v6695 = vsel %vm2108, %v5905, %v6615
        %v6696 = vsel %vm2108, %v5910, %v6617
        %v6697 = vsel %vm2108, %v5915, %v6619
        %v6698 = vsel %vm4081, %v6695, %v6627
        %v6699 = vsel %vm4081, %v6696, %v6629
        %v6700 = vsel %vm4081, %v6697, %v6631
        %v6701 = vsel %vm4085, %v6698, %v6639
        %v6702 = vsel %vm4085, %v6699, %v6641
        %v6703 = vsel %vm4085, %v6700, %v6643
        %v6704 = vsel %vm4089, %v6701, %v6651
        %v6705 = vsel %vm4089, %v6702, %v6653
        %v6706 = vsel %vm4089, %v6703, %v6655
        %v6707 = vsel %vm4093, %v6704, %v6663
        %v6708 = vsel %vm4093, %v6705, %v6665
        %v6709 = vsel %vm4093, %v6706, %v6667
        %v6710 = vsel %vm4097, %v6707, %v6675
        %v6711 = vsel %vm4097, %v6708, %v6677
        %v6712 = vsel %vm4097, %v6709, %v6679
        %v6713 = vsel %vm4101, %v6710, %v6687
        %v6714 = vsel %vm4101, %v6711, %v6689
        %v6715 = vsel %vm4101, %v6712, %v6691
        %s6716 = scalar_lea.vmem %s6, 40
        %v6717 = vld [vmem:[%s6716] sm:$0xff]
        %v6718 = vld [vmem:[%s6716 + $0x8] sm:$0xff]
        %v6719 = vld [vmem:[%s6716 + $0x10] sm:$0xff]
        %v6720 = vld [vmem:[%s6716 + $0x18] sm:$0xff]
        %v6721 = vld [vmem:[%s6716 + $0x20] sm:$0xff]
        %v6722 = vlaneseq
        %v6723 = vshrl.u32 %v6722, 7
        %v6724 = vsub.s32 4, %v6723
        %v6725 = vrot.slane %v4521, %v6724
        %v6727 = vsel %vm1525, %v6713, 0
        %v6730 = vsel %vm1525, %v6714, 0
        %v6733 = vsel %vm1525, %v6715, 0
        %6735 = vmatprep.subr.mxu0 0.0
        %6736 = vmatpush1.msra.mxu0 %v6717
        %6737 = vmatprep.subr.mxu0 0.0
        %6738 = vmatpush1.msra.mxu0 %v6718
        %6739 = vmatprep.subr.mxu0 0.0
        %6740 = vmatpush1.msra.mxu0 %v6719
        %6741 = vmatprep.subr.mxu0 0.0
        %6742 = vmatpush1.msra.mxu0 %v6720
        %6743 = vmatprep.subr.mxu0 0.0
        %6744 = vmatpush1.msra.mxu0 %v6721
        %6745 = vmatprep.subr.mxu0 0.0
        %6746 = vmatpush1.msra.mxu0 0.0
        %6747 = vmatprep.subr.mxu0 0.0
        %6748 = vmatpush1.msra.mxu0 0.0
        %6749 = vmatprep.subr.mxu0 0.0
        %6750 = vmatpush1.msra.mxu0 0.0
        %6751 = vmatprep.subr.mxu0 0.0
        %6752 = vmatpush1.msra.mxu0 0.0
        %6753 = vmatprep.subr.mxu0 0.0
        %6754 = vmatpush1.msra.mxu0 0.0
        %6755 = vmatprep.subr.mxu0 0.0
        %6756 = vmatpush1.msra.mxu0 0.0
        %6757 = vmatprep.subr.mxu0 0.0
        %6758 = vmatpush1.msra.mxu0 0.0
        %6759 = vmatprep.subr.mxu0 0.0
        %6760 = vmatpush1.msra.mxu0 0.0
        %6761 = vmatprep.subr.mxu0 0.0
        %6762 = vmatpush1.msra.mxu0 0.0
        %6763 = vmatprep.subr.mxu0 0.0
        %6764 = vmatpush1.msra.mxu0 0.0
        %6765 = vmatprep.subr.mxu0 0.0
        %6766 = vmatpush1.msra.mxu0 0.0
        %6767 = vmatprep.subr.mxu0 0.0
        %6768 = vmatpush1.msra.mxu0 0.0
        %6769 = vmatprep.subr.mxu0 0.0
        %6770 = vmatpush1.msra.mxu0 0.0
        %6771 = vmatprep.subr.mxu0 0.0
        %6772 = vmatpush1.msra.mxu0 0.0
        %6773 = vmatprep.subr.mxu0 0.0
        %6774 = vmatpush1.msra.mxu0 0.0
        %6775 = vmatprep.subr.mxu0 0.0
        %6776 = vmatpush1.msra.mxu0 0.0
        %6777 = vmatprep.subr.mxu0 0.0
        %6778 = vmatpush1.msra.mxu0 0.0
        %6779 = vmatprep.subr.mxu0 0.0
        %6780 = vmatpush1.msra.mxu0 0.0
        %6781 = vmatprep.subr.mxu0 0.0
        %6782 = vmatpush1.msra.mxu0 0.0
        %6783 = vmatprep.subr.mxu0 0.0
        %6784 = vmatpush1.msra.mxu0 0.0
        %6785 = vmatprep.subr.mxu0 0.0
        %6786 = vmatpush1.msra.mxu0 0.0
        %6787 = vmatprep.subr.mxu0 0.0
        %6788 = vmatpush1.msra.mxu0 0.0
        %6789 = vmatprep.subr.mxu0 0.0
        %6790 = vmatpush1.msra.mxu0 0.0
        %6791 = vmatprep.subr.mxu0 0.0
        %6792 = vmatpush1.msra.mxu0 0.0
        %6793 = vmatprep.subr.mxu0 0.0
        %6794 = vmatpush1.msra.mxu0 0.0
        %6795 = vmatprep.subr.mxu0 0.0
        %6796 = vmatpush1.msra.mxu0 0.0
        %6797 = vmatprep.subr.mxu0 0.0
        %6798 = vmatpush1.msra.mxu0 0.0
        %6799 = vmatprep.mubr.f32.mxu0 0.0
        %6800 = vmatmul.mubr.f32.gmra.mrb[0].mxu0 %v6727
        %v6801 = vpop.f32.mrb[0].mxu0
        %v6802 = vadd.f32 %v6725, %v6801
        %v6803 = vpop.f32.mrb[0].mxu0
        %6804 = vmatprep.mubr.f32.mxu0 0.0
        %6805 = vmatmul.mubr.f32.gmra.mrb[0].mxu0 %v6730
        %v6806 = vpop.f32.mrb[0].mxu0
        %v6807 = vadd.f32 %v6725, %v6806
        %v6808 = vpop.f32.mrb[0].mxu0
        %6809 = vmatprep.mubr.f32.mxu0 0.0
        %6810 = vmatmul.mubr.f32.gmra.mrb[0].mxu0 %v6733
        %v6811 = vpop.f32.mrb[0].mxu0
        %v6812 = vadd.f32 %v6725, %v6811
        %v6813 = vpop.f32.mrb[0].mxu0
        %6814 = vdwg.mxu0
        %v6815 = vadd.f32 %v4517, %v6802
        %v6816 = vadd.f32 %v4518, %v6807
        %v6817 = vadd.f32 %v4519, %v6812
        %v6818 = vsel %vm1525, %v6815, 0.0
        %6819 = vadd.xlane.f32.xlu0 %v6818
        %v6820 = vpop.xlane.xlu0 %6819
        %v6821 = vsel %vm1525, %v6816, 0.0
        %6822 = vadd.xlane.f32.xlu0 %v6821
        %v6823 = vpop.xlane.xlu0 %6822
        %v6824 = vsel %vm1907, %v6817, 0.0
        %6825 = vadd.xlane.f32.xlu0 %v6824
        %v6826 = vpop.xlane.xlu0 %6825
        %v6827 = vmul.f32 %v6820, %v1911
        %v6828 = vmul.f32 %v6823, %v1911
        %v6829 = vmul.f32 %v6826, %v1911
        %v6830 = vsub.f32 %v6815, %v6827
        %v6831 = vsub.f32 %v6816, %v6828
        %v6832 = vsub.f32 %v6817, %v6829
        %v6833 = vmul.f32 %v6830, %v6830
        %v6834 = vmul.f32 %v6831, %v6831
        %v6835 = vmul.f32 %v6832, %v6832
        %v6836 = vsel %vm1525, %v6833, 0.0
        %6837 = vadd.xlane.f32.xlu0 %v6836
        %v6838 = vpop.xlane.xlu0 %6837
        %v6839 = vsel %vm1525, %v6834, 0.0
        %6840 = vadd.xlane.f32.xlu0 %v6839
        %v6841 = vpop.xlane.xlu0 %6840
        %v6842 = vsel %vm1907, %v6835, 0.0
        %6843 = vadd.xlane.f32.xlu0 %v6842
        %v6844 = vpop.xlane.xlu0 %6843
        %v6845 = vmul.f32 %v6838, %v1911
        %v6846 = vmul.f32 %v6841, %v1911
        %v6847 = vmul.f32 %v6844, %v1911
        %v6848 = vadd.f32 %v6845, 1e-05
        %v6849 = vadd.f32 %v6846, 1e-05
        %v6850 = vadd.f32 %v6847, 1e-05
        %v6851 = vrsqrt.pop %v6848
        %v6852 = vrsqrt.pop %v6849
        %v6853 = vrsqrt.pop %v6850
        %v6854 = vmul.f32 %v6830, %v6851
        %v6855 = vmul.f32 %v6831, %v6852
        %v6856 = vmul.f32 %v6832, %v6853
        %v6857 = vlaneseq
        %v6858 = vshrl.u32 %v6857, 7
        %v6859 = vsub.s32 2, %v6858
        %v6860 = vrot.slane %v4521, %v6859
        %v6861 = vmul.f32 %v6854, %v6860
        %v6862 = vmul.f32 %v6855, %v6860
        %v6863 = vmul.f32 %v6856, %v6860
        %v6864 = vlaneseq
        %v6865 = vshrl.u32 %v6864, 7
        %v6866 = vsub.s32 3, %v6865
        %v6867 = vrot.slane %v4521, %v6866
        %v6868 = vadd.f32 %v6861, %v6867
        %v6869 = vadd.f32 %v6862, %v6867
        %v6870 = vadd.f32 %v6863, %v6867
        %s6871 = scalar_lea.vmem %s7, 80
        %v6872 = vld [vmem:[%s6871] sm:$0xff]
        %v6873 = vld [vmem:[%s6871 + $0x8] sm:$0xff]
        %v6874 = vld [vmem:[%s6871 + $0x10] sm:$0xff]
        %v6875 = vld [vmem:[%s6871 + $0x18] sm:$0xff]
        %v6876 = vld [vmem:[%s6871 + $0x20] sm:$0xff]
        %v6877 = vld [vmem:[%s6871 + $0x28] sm:$0xff]
        %v6878 = vld [vmem:[%s6871 + $0x30] sm:$0xff]
        %v6879 = vld [vmem:[%s6871 + $0x38] sm:$0xff]
        %v6880 = vld [vmem:[%s6871 + $0x40] sm:$0xff]
        %v6881 = vld [vmem:[%s6871 + $0x48] sm:$0xff]
        %s6882 = scalar_lea.vmem %s8, 2
        %v6883 = vld [vmem:[%s6882] sm:$0x3]
        %v6885 = vlaneseq
        %v6886 = vshrl.u32 %v6885, 7
        %v6887 = vsub.s32 0, %v6886
        %v6888 = vrot.slane %v6883, %v6887
        %v6889 = vlaneseq
        %v6890 = vshrl.u32 %v6889, 7
        %v6891 = vsub.s32 1, %v6890
        %v6892 = vrot.slane %v6883, %v6891
        %v6896 = vsel %vm1525, %v6868, 0
        %v6899 = vsel %vm1525, %v6869, 0
        %v6902 = vsel %vm1525, %v6870, 0
        %6904 = vmatprep.subr.mxu0 %v6873
        %6905 = vmatpush1.msra.mxu0 %v6872
        %6906 = vmatprep.subr.mxu0 %v6875
        %6907 = vmatpush1.msra.mxu0 %v6874
        %6908 = vmatprep.subr.mxu0 %v6877
        %6909 = vmatpush1.msra.mxu0 %v6876
        %6910 = vmatprep.subr.mxu0 %v6879
        %6911 = vmatpush1.msra.mxu0 %v6878
        %6912 = vmatprep.subr.mxu0 %v6881
        %6913 = vmatpush1.msra.mxu0 %v6880
        %6914 = vmatprep.subr.mxu0 0.0
        %6915 = vmatpush1.msra.mxu0 0.0
        %6916 = vmatprep.subr.mxu0 0.0
        %6917 = vmatpush1.msra.mxu0 0.0
        %6918 = vmatprep.subr.mxu0 0.0
        %6919 = vmatpush1.msra.mxu0 0.0
        %6920 = vmatprep.subr.mxu0 0.0
        %6921 = vmatpush1.msra.mxu0 0.0
        %6922 = vmatprep.subr.mxu0 0.0
        %6923 = vmatpush1.msra.mxu0 0.0
        %6924 = vmatprep.subr.mxu0 0.0
        %6925 = vmatpush1.msra.mxu0 0.0
        %6926 = vmatprep.subr.mxu0 0.0
        %6927 = vmatpush1.msra.mxu0 0.0
        %6928 = vmatprep.subr.mxu0 0.0
        %6929 = vmatpush1.msra.mxu0 0.0
        %6930 = vmatprep.subr.mxu0 0.0
        %6931 = vmatpush1.msra.mxu0 0.0
        %6932 = vmatprep.subr.mxu0 0.0
        %6933 = vmatpush1.msra.mxu0 0.0
        %6934 = vmatprep.subr.mxu0 0.0
        %6935 = vmatpush1.msra.mxu0 0.0
        %6936 = vmatprep.subr.mxu0 0.0
        %6937 = vmatpush1.msra.mxu0 0.0
        %6938 = vmatprep.subr.mxu0 0.0
        %6939 = vmatpush1.msra.mxu0 0.0
        %6940 = vmatprep.subr.mxu0 0.0
        %6941 = vmatpush1.msra.mxu0 0.0
        %6942 = vmatprep.subr.mxu0 0.0
        %6943 = vmatpush1.msra.mxu0 0.0
        %6944 = vmatprep.subr.mxu0 0.0
        %6945 = vmatpush1.msra.mxu0 0.0
        %6946 = vmatprep.subr.mxu0 0.0
        %6947 = vmatpush1.msra.mxu0 0.0
        %6948 = vmatprep.subr.mxu0 0.0
        %6949 = vmatpush1.msra.mxu0 0.0
        %6950 = vmatprep.subr.mxu0 0.0
        %6951 = vmatpush1.msra.mxu0 0.0
        %6952 = vmatprep.subr.mxu0 0.0
        %6953 = vmatpush1.msra.mxu0 0.0
        %6954 = vmatprep.subr.mxu0 0.0
        %6955 = vmatpush1.msra.mxu0 0.0
        %6956 = vmatprep.subr.mxu0 0.0
        %6957 = vmatpush1.msra.mxu0 0.0
        %6958 = vmatprep.subr.mxu0 0.0
        %6959 = vmatpush1.msra.mxu0 0.0
        %6960 = vmatprep.subr.mxu0 0.0
        %6961 = vmatpush1.msra.mxu0 0.0
        %6962 = vmatprep.subr.mxu0 0.0
        %6963 = vmatpush1.msra.mxu0 0.0
        %6964 = vmatprep.subr.mxu0 0.0
        %6965 = vmatpush1.msra.mxu0 0.0
        %6966 = vmatprep.subr.mxu0 0.0
        %6967 = vmatpush1.msra.mxu0 0.0
        %6968 = vmatprep.mubr.f32.mxu0 0.0
        %6969 = vmatmul.mubr.f32.gmra.mrb[0].mxu0 %v6896
        %v6970 = vpop.f32.mrb[0].mxu0
        %v6971 = vadd.f32 %v6888, %v6970
        %v6972 = vpop.f32.mrb[0].mxu0
        %v6973 = vadd.f32 %v6892, %v6972
        %6974 = vmatprep.mubr.f32.mxu0 0.0
        %6975 = vmatmul.mubr.f32.gmra.mrb[0].mxu0 %v6899
        %v6976 = vpop.f32.mrb[0].mxu0
        %v6977 = vadd.f32 %v6888, %v6976
        %v6978 = vpop.f32.mrb[0].mxu0
        %v6979 = vadd.f32 %v6892, %v6978
        %6980 = vmatprep.mubr.f32.mxu0 0.0
        %6981 = vmatmul.mubr.f32.gmra.mrb[0].mxu0 %v6902
        %v6982 = vpop.f32.mrb[0].mxu0
        %v6983 = vadd.f32 %v6888, %v6982
        %v6984 = vpop.f32.mrb[0].mxu0
        %v6985 = vadd.f32 %v6892, %v6984
        %6986 = vdwg.mxu0
        %v6987 = vmul.f32 %v6971, 0.5
        %v6988 = vmul.f32 %v6973, 0.5
        %v6989 = vmul.f32 %v6977, 0.5
        %v6990 = vmul.f32 %v6979, 0.5
        %v6991 = vmul.f32 %v6983, 0.5
        %v6992 = vmul.f32 %v6985, 0.5
        %v6993 = vmul.f32 %v6971, 0.70710677
        %v6994 = vmul.f32 %v6973, 0.70710677
        %v6995 = vmul.f32 %v6977, 0.70710677
        %v6996 = vmul.f32 %v6979, 0.70710677
        %v6997 = vmul.f32 %v6983, 0.70710677
        %v6998 = vmul.f32 %v6985, 0.70710677
        %v6999 = verf.f32.pop %v6993
        %v7000 = verf.f32.pop %v6994
        %v7001 = verf.f32.pop %v6995
        %v7002 = verf.f32.pop %v6996
        %v7003 = verf.f32.pop %v6997
        %v7004 = verf.f32.pop %v6998
        %v7005 = vadd.f32 %v6999, 1.0
        %v7006 = vadd.f32 %v7000, 1.0
        %v7007 = vadd.f32 %v7001, 1.0
        %v7008 = vadd.f32 %v7002, 1.0
        %v7009 = vadd.f32 %v7003, 1.0
        %v7010 = vadd.f32 %v7004, 1.0
        %v7011 = vmul.f32 %v6987, %v7005
        %v7012 = vmul.f32 %v6988, %v7006
        %v7013 = vmul.f32 %v6989, %v7007
        %v7014 = vmul.f32 %v6990, %v7008
        %v7015 = vmul.f32 %v6991, %v7009
        %v7016 = vmul.f32 %v6992, %v7010
        %s7017 = scalar_lea.vmem %s9, 160
        %v7018 = vld [vmem:[%s7017] sm:$0xff]
        %v7019 = vld [vmem:[%s7017 + $0x8] sm:$0xff]
        %v7020 = vld [vmem:[%s7017 + $0x10] sm:$0xff]
        %v7021 = vld [vmem:[%s7017 + $0x18] sm:$0xff]
        %v7022 = vld [vmem:[%s7017 + $0x20] sm:$0xff]
        %v7023 = vld [vmem:[%s7017 + $0x28] sm:$0xff]
        %v7024 = vld [vmem:[%s7017 + $0x30] sm:$0xff]
        %v7025 = vld [vmem:[%s7017 + $0x38] sm:$0xff]
        %v7026 = vld [vmem:[%s7017 + $0x40] sm:$0xff]
        %v7027 = vld [vmem:[%s7017 + $0x48] sm:$0xff]
        %v7028 = vld [vmem:[%s7017 + $0x50] sm:$0xff]
        %v7029 = vld [vmem:[%s7017 + $0x58] sm:$0xff]
        %v7030 = vld [vmem:[%s7017 + $0x60] sm:$0xff]
        %v7031 = vld [vmem:[%s7017 + $0x68] sm:$0xff]
        %v7032 = vld [vmem:[%s7017 + $0x70] sm:$0xff]
        %v7033 = vld [vmem:[%s7017 + $0x78] sm:$0xff]
        %v7034 = vld [vmem:[%s7017 + $0x80] sm:$0xff]
        %v7035 = vld [vmem:[%s7017 + $0x88] sm:$0xff]
        %v7036 = vld [vmem:[%s7017 + $0x90] sm:$0xff]
        %v7037 = vld [vmem:[%s7017 + $0x98] sm:$0xff]
        %v7038 = vlaneseq
        %v7039 = vshrl.u32 %v7038, 7
        %v7040 = vsub.s32 5, %v7039
        %v7041 = vrot.slane %v4521, %v7040
        %v7043 = vsel %vm4427, %v7012, 0
        %v7046 = vsel %vm4427, %v7014, 0
        %v7049 = vsel %vm4427, %v7016, 0
        %7051 = vmatprep.subr.mxu0 0.0
        %7052 = vmatpush1.msra.mxu0 %v7018
        %7053 = vmatprep.subr.mxu0 0.0
        %7054 = vmatpush1.msra.mxu0 %v7019
        %7055 = vmatprep.subr.mxu0 0.0
        %7056 = vmatpush1.msra.mxu0 %v7020
        %7057 = vmatprep.subr.mxu0 0.0
        %7058 = vmatpush1.msra.mxu0 %v7021
        %7059 = vmatprep.subr.mxu0 0.0
        %7060 = vmatpush1.msra.mxu0 %v7022
        %7061 = vmatprep.subr.mxu0 0.0
        %7062 = vmatpush1.msra.mxu0 %v7023
        %7063 = vmatprep.subr.mxu0 0.0
        %7064 = vmatpush1.msra.mxu0 %v7024
        %7065 = vmatprep.subr.mxu0 0.0
        %7066 = vmatpush1.msra.mxu0 %v7025
        %7067 = vmatprep.subr.mxu0 0.0
        %7068 = vmatpush1.msra.mxu0 %v7026
        %7069 = vmatprep.subr.mxu0 0.0
        %7070 = vmatpush1.msra.mxu0 %v7027
        %7071 = vmatprep.subr.mxu0 0.0
        %7072 = vmatpush1.msra.mxu0 %v7028
        %7073 = vmatprep.subr.mxu0 0.0
        %7074 = vmatpush1.msra.mxu0 %v7029
        %7075 = vmatprep.subr.mxu0 0.0
        %7076 = vmatpush1.msra.mxu0 %v7030
        %7077 = vmatprep.subr.mxu0 0.0
        %7078 = vmatpush1.msra.mxu0 %v7031
        %7079 = vmatprep.subr.mxu0 0.0
        %7080 = vmatpush1.msra.mxu0 %v7032
        %7081 = vmatprep.subr.mxu0 0.0
        %7082 = vmatpush1.msra.mxu0 %v7033
        %7083 = vmatprep.subr.mxu0 0.0
        %7084 = vmatpush1.msra.mxu0 %v7034
        %7085 = vmatprep.subr.mxu0 0.0
        %7086 = vmatpush1.msra.mxu0 %v7035
        %7087 = vmatprep.subr.mxu0 0.0
        %7088 = vmatpush1.msra.mxu0 %v7036
        %7089 = vmatprep.subr.mxu0 0.0
        %7090 = vmatpush1.msra.mxu0 %v7037
        %7091 = vmatprep.subr.mxu0 0.0
        %7092 = vmatpush1.msra.mxu0 0.0
        %7093 = vmatprep.subr.mxu0 0.0
        %7094 = vmatpush1.msra.mxu0 0.0
        %7095 = vmatprep.subr.mxu0 0.0
        %7096 = vmatpush1.msra.mxu0 0.0
        %7097 = vmatprep.subr.mxu0 0.0
        %7098 = vmatpush1.msra.mxu0 0.0
        %7099 = vmatprep.subr.mxu0 0.0
        %7100 = vmatpush1.msra.mxu0 0.0
        %7101 = vmatprep.subr.mxu0 0.0
        %7102 = vmatpush1.msra.mxu0 0.0
        %7103 = vmatprep.subr.mxu0 0.0
        %7104 = vmatpush1.msra.mxu0 0.0
        %7105 = vmatprep.subr.mxu0 0.0
        %7106 = vmatpush1.msra.mxu0 0.0
        %7107 = vmatprep.subr.mxu0 0.0
        %7108 = vmatpush1.msra.mxu0 0.0
        %7109 = vmatprep.subr.mxu0 0.0
        %7110 = vmatpush1.msra.mxu0 0.0
        %7111 = vmatprep.subr.mxu0 0.0
        %7112 = vmatpush1.msra.mxu0 0.0
        %7113 = vmatprep.subr.mxu0 0.0
        %7114 = vmatpush1.msra.mxu0 0.0
        %7115 = vmatprep.mubr.f32.mxu0 %v7043
        %7116 = vmatmul.mubr.f32.gmra.mrb[0].mxu0 %v7011
        %v7117 = vpop.f32.mrb[0].mxu0
        %v7118 = vadd.f32 %v7041, %v7117
        %v7119 = vpop.f32.mrb[0].mxu0
        %7120 = vmatprep.mubr.f32.mxu0 %v7046
        %7121 = vmatmul.mubr.f32.gmra.mrb[0].mxu0 %v7013
        %v7122 = vpop.f32.mrb[0].mxu0
        %v7123 = vadd.f32 %v7041, %v7122
        %v7124 = vpop.f32.mrb[0].mxu0
        %7125 = vmatprep.mubr.f32.mxu0 %v7049
        %7126 = vmatmul.mubr.f32.gmra.mrb[0].mxu0 %v7015
        %v7127 = vpop.f32.mrb[0].mxu0
        %v7128 = vadd.f32 %v7041, %v7127
        %v7129 = vpop.f32.mrb[0].mxu0
        %7130 = vdwg.mxu0
        %v7131 = vadd.f32 %v6815, %v7118
        %v7132 = vadd.f32 %v6816, %v7123
        %v7133 = vadd.f32 %v6817, %v7128
        %v7134 = vld [vmem:[%s11] sm:$0xff]
        %v7135 = vld [vmem:[%s11 + $0x8] sm:$0x7]
        %v7136 = vld [vmem:[%s12] sm:$0xff]
        %v7137 = vld [vmem:[%s12 + $0x8] sm:$0x7]
        %7139 = vset.pattern.permute.xlu0 0
        %7140 = vperm.xlu0 %7139, %v7136
        %v7141 = vpop.permute.xlu0 %7140
        %7144 = vset.pattern.permute.xlu0 0
        %7145 = vperm.xlu0 %7144, %v7137
        %v7146 = vpop.permute.xlu0 %7145
        %v7149 = vsel %vm2935, %v7134, 0
        %v7152 = vsel %vm2935, %v7135, 0
        %v7155 = vsel %vm3218, %v7133, 0
        %7157 = vmatprep.subr.mxu0 0.0
        %7158 = vmatpush1.msra.mxu0 %v7131
        %7159 = vmatprep.subr.mxu0 0.0
        %7160 = vmatpush1.msra.mxu0 %v7132
        %7161 = vmatprep.subr.mxu0 0.0
        %7162 = vmatpush1.msra.mxu0 %v7155
        %7163 = vmatprep.subr.mxu0 0.0
        %7164 = vmatpush1.msra.mxu0 0.0
        %7165 = vmatprep.subr.mxu0 0.0
        %7166 = vmatpush1.msra.mxu0 0.0
        %7167 = vmatprep.subr.mxu0 0.0
        %7168 = vmatpush1.msra.mxu0 0.0
        %7169 = vmatprep.subr.mxu0 0.0
        %7170 = vmatpush1.msra.mxu0 0.0
        %7171 = vmatprep.subr.mxu0 0.0
        %7172 = vmatpush1.msra.mxu0 0.0
        %7173 = vmatprep.subr.mxu0 0.0
        %7174 = vmatpush1.msra.mxu0 0.0
        %7175 = vmatprep.subr.mxu0 0.0
        %7176 = vmatpush1.msra.mxu0 0.0
        %7177 = vmatprep.subr.mxu0 0.0
        %7178 = vmatpush1.msra.mxu0 0.0
        %7179 = vmatprep.subr.mxu0 0.0
        %7180 = vmatpush1.msra.mxu0 0.0
        %7181 = vmatprep.subr.mxu0 0.0
        %7182 = vmatpush1.msra.mxu0 0.0
        %7183 = vmatprep.subr.mxu0 0.0
        %7184 = vmatpush1.msra.mxu0 0.0
        %7185 = vmatprep.subr.mxu0 0.0
        %7186 = vmatpush1.msra.mxu0 0.0
        %7187 = vmatprep.subr.mxu0 0.0
        %7188 = vmatpush1.msra.mxu0 0.0
        %7189 = vmatprep.subr.mxu0 0.0
        %7190 = vmatpush1.msra.mxu0 0.0
        %7191 = vmatprep.subr.mxu0 0.0
        %7192 = vmatpush1.msra.mxu0 0.0
        %7193 = vmatprep.subr.mxu0 0.0
        %7194 = vmatpush1.msra.mxu0 0.0
        %7195 = vmatprep.subr.mxu0 0.0
        %7196 = vmatpush1.msra.mxu0 0.0
        %7197 = vmatprep.subr.mxu0 0.0
        %7198 = vmatpush1.msra.mxu0 0.0
        %7199 = vmatprep.subr.mxu0 0.0
        %7200 = vmatpush1.msra.mxu0 0.0
        %7201 = vmatprep.subr.mxu0 0.0
        %7202 = vmatpush1.msra.mxu0 0.0
        %7203 = vmatprep.subr.mxu0 0.0
        %7204 = vmatpush1.msra.mxu0 0.0
        %7205 = vmatprep.subr.mxu0 0.0
        %7206 = vmatpush1.msra.mxu0 0.0
        %7207 = vmatprep.subr.mxu0 0.0
        %7208 = vmatpush1.msra.mxu0 0.0
        %7209 = vmatprep.subr.mxu0 0.0
        %7210 = vmatpush1.msra.mxu0 0.0
        %7211 = vmatprep.subr.mxu0 0.0
        %7212 = vmatpush1.msra.mxu0 0.0
        %7213 = vmatprep.subr.mxu0 0.0
        %7214 = vmatpush1.msra.mxu0 0.0
        %7215 = vmatprep.subr.mxu0 0.0
        %7216 = vmatpush1.msra.mxu0 0.0
        %7217 = vmatprep.subr.mxu0 0.0
        %7218 = vmatpush1.msra.mxu0 0.0
        %7219 = vmatprep.subr.mxu0 0.0
        %7220 = vmatpush1.msra.mxu0 0.0
        %7221 = vmatprep.mubr.f32.mxu0 0.0
        %7222 = vmatmul.mubr.f32.gmra.mrb[0].mxu0 %v7149
        %v7223 = vpop.f32.mrb[0].mxu0
        %v7224 = vadd.f32 %v7141, %v7223
        %v7225 = vpop.f32.mrb[0].mxu0
        %7226 = vmatprep.mubr.f32.mxu0 0.0
        %7227 = vmatmul.mubr.f32.gmra.mrb[0].mxu0 %v7152
        %v7228 = vpop.f32.mrb[0].mxu0
        %v7229 = vadd.f32 %v7146, %v7228
        %v7230 = vpop.f32.mrb[0].mxu0
        %7231 = vdwg.mxu0
        %vm7232 = vcmp.gt.f32.partialorder %v7224, 0.0
        %vm7233 = vcmp.gt.f32.partialorder %v7229, 0.0
        %v7234 = vmin.f32 %v7224, 0.0
        %v7235 = vmin.f32 %v7229, 0.0
        %v7236 = vmul.f32 %v7234, 1.442695
        %v7237 = vpow.pop %v7236
        %v7238 = vmul.f32 %v7235, 1.442695
        %v7239 = vpow.pop %v7238
        %v7240 = vsub.f32 %v7237, 1.0
        %v7241 = vsub.f32 %v7239, 1.0
        %v7242 = vsel %vm7232, %v7224, %v7240
        %v7243 = vsel %vm7233, %v7229, %v7241
        %7244 = vst.msk [vmem:[%s531] sm:$0xff] %vm1525, %v7242
        %vm7245 = vcmask 321536
        %7246 = vst.msk [vmem:[%s531 + $0x8] sm:$0x7] %vm7245, %v7243
        %v7247 = vld [vmem:[%s13] sm:$0xff]
        %v7248 = vld [vmem:[%s13 + $0x8] sm:$0x7]
        %v7249 = vmul.f32 %v7242, %v7247
        %v7250 = vmul.f32 %v7243, %v7248
        %v7251 = vsel %vm1525, %v7249, 0.0
        %7252 = vadd.xlane.f32.xlu0 %v7251
        %v7253 = vpop.xlane.xlu0 %7252
        %v7254 = vsel %vm7245, %v7250, 0.0
        %7255 = vadd.xlane.f32.xlu0 %v7254
        %v7256 = vpop.xlane.xlu0 %7255
        %s7257 = scalar_lea.vmem %s13, 16
        %v7258 = vld [vmem:[%s7257] sm:$0xff]
        %v7259 = vld [vmem:[%s7257 + $0x8] sm:$0x7]
        %v7260 = vmul.f32 %v7242, %v7258
        %v7261 = vmul.f32 %v7243, %v7259
        %v7262 = vsel %vm1525, %v7260, 0.0
        %7263 = vadd.xlane.f32.xlu0 %v7262
        %v7264 = vpop.xlane.xlu0 %7263
        %v7265 = vsel %vm7245, %v7261, 0.0
        %7266 = vadd.xlane.f32.xlu0 %v7265
        %v7267 = vpop.xlane.xlu0 %7266
        %vm7268 = vcmask 7168
        %v7269 = vsel %vm7268, %v7253, %v7264
        %v7270 = vsel %vm7268, %v7256, %v7267
        %vm7271 = vcmask 15360
        %v7272 = vsel %vm7271, %v7269, 0.0
        %vm7273 = vcmask 10240
        %v7274 = vsel %vm7273, %v7270, 0.0
        %v7275 = vadd.f32 %v7272, %v7274
        %v7276 = vrot.slane %v7275, 4
        %v7277 = vadd.f32 %v7275, %v7276
        %v7278 = vrot.slane %v7277, 2
        %v7279 = vadd.f32 %v7277, %v7278
        %v7280 = vrot.slane %v7279, 1
        %v7281 = vadd.f32 %v7279, %v7280
        %v7282 = vld [vmem:[%s14] sm:$0x1]
        %v7283 = vadd.f32 %v7281, %v7282
        %vm7284 = vcmask 8192
        %7285 = vst.msk [vmem:[%s514] sm:$0x1] %vm7284, %v7283
        %s7286 = sand.u32 %s359, 1
        %s7287 = scalar_lea.sflag [#allocation3], %s7286
        %s7288 = sand.u32 %s359, 1
        %s7289 = scalar_lea.vmem [#allocation2], %s7288
        %p7290 = scmp.lt.s32.totalorder %s31, 1
        %s7291 = scalar_select %p7290, %s31, 1
        %s7292 = smul.addr %s7291, 2
        %s7293 = smul.addr %s7292, 8
        %s7294 = scalar_lea.vmem %s16, %s7293
        // Predicated region
        $region81: #{tmransnet_forward.1} parent=79 // pred_check
          %p7295 = pneg %p369
        $region82: #{tmransnet_forward.1} parent=79 // pred_check_branch
          %7297 = sbr.rel (%p7295) target = $region84
        $region83: #{tmransnet_forward.1} parent=79 // pred_region
          %s7299 = ssub.s32 16, 16
          %7300 = vsyncadd %s7287, %s7299
          %s7301 = smul.addr %s31, 16
          %s7302 = scalar_lea.hbm %s15, %s7301
          %s7304 = sshll.u32 %s7289, 4
          %s7305 = int_to_ptr.vmem [resolvable:$true] %s7304
          %7307 = dma.vmem_to_hbm [thread:$0]  %s7305, 16, %s7302, %s7287
        $region84: #{tmransnet_forward.1} parent=79 // pred_fallthru
          _
        // Predicated region
        $region85: #{tmransnet_forward.1} parent=79 // pred_check
          %p7308 = pneg %p395
        $region86: #{tmransnet_forward.1} parent=79 // pred_check_branch
          %7310 = sbr.rel (%p7308) target = $region88
        $region87: #{tmransnet_forward.1} parent=79 // pred_region
          _
        $region88: #{tmransnet_forward.1} parent=79 // pred_fallthru
          _
      $region80: #{tmransnet_forward.1} parent=5 // pred_fallthru
        _
      %p7311 = scmp.le.s32.totalorder 2, %s26
      // Predicated region
      $region89: #{tmransnet_forward.1} parent=5 // pred_check
        %p7312 = pneg %p7311
      $region90: #{tmransnet_forward.1} parent=5 // pred_check_branch
        %7314 = sbr.rel (%p7312) target = $region92
      $region91: #{tmransnet_forward.1} parent=5 // pred_region
        %s7315 = ssub.s32 %s26, 2
        // Predicated region
        $region93: #{tmransnet_forward.1} parent=91 // pred_check
          %p7316 = pneg %p375
        $region94: #{tmransnet_forward.1} parent=91 // pred_check_branch
          %7318 = sbr.rel (%p7316) target = $region96
        $region95: #{tmransnet_forward.1} parent=91 // pred_region
          %s7319 = sand.u32 %s360, 1
          %s7320 = scalar_lea.sflag [#allocation3], %s7319
          %s7321 = sand.u32 %s360, 1
          %s7322 = scalar_lea.vmem [#allocation2], %s7321
          %7323 = dma.done %s7320, 16
        $region96: #{tmransnet_forward.1} parent=91 // pred_fallthru
          _
        // Predicated region
        $region97: #{tmransnet_forward.1} parent=91 // pred_check
          %p7324 = pneg %p401
        $region98: #{tmransnet_forward.1} parent=91 // pred_check_branch
          %7326 = sbr.rel (%p7324) target = $region100
        $region99: #{tmransnet_forward.1} parent=91 // pred_region
          %p7327 = scmp.lt.s32.totalorder %s32, 1
          %s7328 = scalar_select %p7327, %s32, 1
          %s7329 = smul.addr %s7328, 2
          %s7330 = smul.addr %s7329, 8
          %s7331 = scalar_lea.vmem %s16, %s7330
        $region100: #{tmransnet_forward.1} parent=91 // pred_fallthru
          _
      $region92: #{tmransnet_forward.1} parent=5 // pred_fallthru
        _
    $region6: #{tmransnet_forward.1} parent=1 // loop_footer
      %s30 = sadd.s32 1, %s26
    $region7: #{tmransnet_forward.1} parent=1 // loop_footer_branch
      %25 = sbr.rel target = $region3
    $region8: #{tmransnet_forward.1} parent=1 // loop_exit
      _
    %7332 = vsyncpa [#allocation3], 1
    %s7333 = scalar_lea.sflag [#allocation3], 1
    %7334 = vsyncpa %s7333, 1

</llo_original>
